<compile_context>
chip_gen: v7x
topology: tpu7x:2x2x1
jax: 0.10.0
libtpu: 0.0.40
codegen_flags: <defaults>
</compile_context>

<pallas_src>
import functools

import numpy as np

import jax
import jax.numpy as jnp
from jax.experimental import pallas as pl
from jax.experimental.pallas import tpu as pltpu

# ----------------------------- configuration -------------------------------
DIM = 16          # `dim` of HyperBottleneck
STEP = 0.25       # `step` of HyperBottleneck (scalar)
REDUCTION = 16    # SE reduction
B, H, W = 2, 16, 16


# ------------------------------ fused kernel --------------------------------
def _hyper_bottleneck_kernel(x_ref, w_ref, m_ref, o_ref, *, H, W, B, dim, step, off):
    """Whole HyperBottleneck forward, all batch elements, one invocation.

    Layout: channels-first with batch folded into the lane axis.
      x_ref : (dim,  B*H*W)  input activation
      w_ref : (rows, 16)     packed, pre-transposed weight slab (see packer)
      m_ref : (16,   B*H*W)  rows 0..8: per-tap 3x3 boundary masks,
                             rows 9..9+B-1: per-batch lane masks (for SE)
      o_ref : (dim,  B*H*W)  output
    """
    HW = H * W
    N = B * HW

    def wslice(name):
        r, nr, nc = off[name]          # static python ints (8-aligned row start)
        return w_ref[r:r + nr, 0:nc]

    def conv3x3(h1, pfx):
        # 3x3 "same" conv (zero padding) as 9 accumulated matmuls over
        # rolled+masked views of h1; channels-first: (Cin, N) -> (Cout, N).
        acc = None
        for k in range(9):
            dy, dx = k // 3 - 1, k % 3 - 1
            wk = wslice(f"{pfx}_c2_{k}")                      # (Cout, Cin)
            if dy == 0 and dx == 0:
                shifted = h1
            else:
                sh = (-(dy * W + dx)) % N                     # static shift
                shifted = pltpu.roll(h1, shift=sh, axis=1) * m_ref[k:k + 1, :]
            term = jnp.dot(wk, shifted, preferred_element_type=jnp.float32)
            acc = term if acc is None else acc + term
        return acc

    def bottleneck_tail(h1, pfx):
        # h1 is the post-ReLU output of the first 1x1 conv: (hid, N).
        h2 = jnp.maximum(conv3x3(h1, pfx), 0.0)
        h3 = jnp.dot(wslice(f"{pfx}_c3"), h2,
                     preferred_element_type=jnp.float32)      # (Cout, N)
        se1 = wslice(f"{pfx}_se1")                            # (Cout, red)
        se2t = wslice(f"{pfx}_se2t")                          # (Cout, red)
        scale = None
        for b in range(B):                                    # per-batch SE
            pooled = jnp.sum(h3[:, b * HW:(b + 1) * HW], axis=1,
                             keepdims=True) * (1.0 / HW)      # (Cout, 1)
            s1 = jnp.maximum(jnp.sum(se1 * pooled, axis=0, keepdims=True), 0.0)
            z = jnp.sum(se2t * s1, axis=1, keepdims=True)     # (Cout, 1)
            sc = pl.reciprocal(1.0 + jnp.exp(-z))             # sigmoid (exact)
            sc = sc * m_ref[9 + b:10 + b, :]                  # only batch b lanes
            scale = sc if scale is None else scale + sc
        return h3 * scale

    xm = x_ref[...]                                           # (dim, N)

    # ---- input Bottleneck: dim -> 2*dim ----
    h1_in = jnp.maximum(
        jnp.dot(wslice("i_c1"), xm, preferred_element_type=jnp.float32), 0.0)
    inp = bottleneck_tail(h1_in, "i")                         # (2*dim, N)

    # ---- hyperbolic combine (VPU/EUP) ----
    velo = inp[:dim, :]
    theta = inp[dim:, :]
    t = jnp.tanh(theta)
    s = step * velo
    e_sin = jnp.exp(s * jnp.sin(theta))
    e_cos = jnp.exp(-s * jnp.cos(theta))
    xpt = xm + t
    xmt = xm - t
    ys = (xpt * e_sin - t, xpt * e_cos - t, xmt * e_sin + t, xmt * e_cos + t)

    # ---- output Bottleneck: 4*dim -> dim ----
    # Channel concat of (y1..y4) folded into a sum of four matmuls against
    # static slices of the output 1x1 weight (no lane/sublane concat needed).
    h1_out = None
    for i in range(4):
        term = jnp.dot(wslice(f"o_c1_{i}"), ys[i],
                       preferred_element_type=jnp.float32)
        h1_out = term if h1_out is None else h1_out + term
    h1_out = jnp.maximum(h1_out, 0.0)
    out = bottleneck_tail(h1_out, "o")                        # (dim, N)

    # residual
    o_ref[...] = xm + out


# ---------------------------- parameter building ----------------------------
def init_bottleneck_params(key, cin, cout, reduction):
    hid = max(cout // 4, 1)
    red = max(cout // reduction, 1)
    k1, k2, k3, k4, k5 = jax.random.split(key, 5)
    scale = 0.1
    return dict(
        conv1=jax.random.normal(k1, (cin, hid), jnp.float32) * scale,     # 1x1
        conv2=jax.random.normal(k2, (9, hid, hid), jnp.float32) * scale,  # 3x3
        conv3=jax.random.normal(k3, (hid, cout), jnp.float32) * scale,    # 1x1
        se_w1=jax.random.normal(k4, (cout, red), jnp.float32) * scale,
        se_w2=jax.random.normal(k5, (red, cout), jnp.float32) * scale,
    )


def init_hyper_params(key, dim, reduction):
    k_in, k_out = jax.random.split(key, 2)
    return dict(
        input=init_bottleneck_params(k_in, dim, 2 * dim, reduction),
        output=init_bottleneck_params(k_out, 4 * dim, dim, reduction),
    )


def _pack_weight_slab(params, dim):
    """Pre-transpose (for h = W^T @ x) and pack all weights into one f32 slab.

    Every entry starts at an 8-aligned sublane row.  Returns the slab and a
    dict name -> (row_start, n_rows, n_cols) of static python ints.
    """
    pi, po = params["input"], params["output"]
    entries = []

    def add(name, w):
        entries.append((name, jnp.asarray(w, jnp.float32)))

    add("i_c1", pi["conv1"].T)                        # (hid_i, dim)
    for k in range(9):
        add(f"i_c2_{k}", pi["conv2"][k].T)            # (hid_i, hid_i)
    add("i_c3", pi["conv3"].T)                        # (2*dim, hid_i)
    add("i_se1", pi["se_w1"])                         # (2*dim, red_i)
    add("i_se2t", pi["se_w2"].T)                      # (2*dim, red_i)

    for i in range(4):                                # split the 4*dim channels
        add(f"o_c1_{i}", po["conv1"][i * dim:(i + 1) * dim, :].T)   # (hid_o, dim)
    for k in range(9):
        add(f"o_c2_{k}", po["conv2"][k].T)            # (hid_o, hid_o)
    add("o_c3", po["conv3"].T)                        # (dim, hid_o)
    add("o_se1", po["se_w1"])                         # (dim, red_o)
    add("o_se2t", po["se_w2"].T)                      # (dim, red_o)

    lane_w = max(w.shape[1] for _, w in entries)
    blocks, off, row = [], {}, 0
    for name, w in entries:
        nr, nc = w.shape
        nr_pad = -(-nr // 8) * 8
        off[name] = (row, nr, nc)
        blocks.append(jnp.pad(w, ((0, nr_pad - nr), (0, lane_w - nc))))
        row += nr_pad
    return jnp.concatenate(blocks, axis=0), off


def _build_masks(b, h, w):
    """Host-built (16, B*H*W) f32 constant:
       rows 0..8   : validity mask per 3x3 tap (zero where the tap falls in
                     the zero-padding halo or would cross a batch boundary),
       rows 9..9+B : one-hot lane mask of each batch element (per-batch SE).
    """
    hw = h * w
    n = b * hw
    p = np.arange(n)
    xx = p % w
    yy = (p // w) % h
    bb = p // hw
    rows = []
    for k in range(9):
        dy, dx = k // 3 - 1, k % 3 - 1
        ok = (yy + dy >= 0) & (yy + dy < h) & (xx + dx >= 0) & (xx + dx < w)
        rows.append(ok.astype(np.float32))
    for i in range(b):
        rows.append((bb == i).astype(np.float32))
    m = np.stack(rows, axis=0)
    pad = (-m.shape[0]) % 8
    if pad:
        m = np.concatenate([m, np.zeros((pad, n), np.float32)], axis=0)
    return jnp.asarray(m)


# ------------------------------- forward pass -------------------------------
def hyper_bottleneck_forward(x_nchw, params):
    # x_nchw: (B, dim, H, W) -> (B, dim, H, W)
    b, dim, h, w = x_nchw.shape
    hw = h * w
    n = b * hw

    # NCHW -> channels-first folded layout (dim, B*H*W): channels on sublanes,
    # batch*spatial on lanes (lane-dense: 512).  Tiny XLA transpose.
    x_cf = jnp.transpose(x_nchw.reshape(b, dim, hw).astype(jnp.float32),
                         (1, 0, 2)).reshape(dim, n)

    slab, off = _pack_weight_slab(params, dim)
    masks = _build_masks(b, h, w)

    kern = functools.partial(_hyper_bottleneck_kernel,
                             H=h, W=w, B=b, dim=dim, step=STEP, off=off)

    out_cf = pl.pallas_call(
        kern,
        out_shape=jax.ShapeDtypeStruct((dim, n), jnp.float32),
        grid=(1,),
        in_specs=[pl.BlockSpec((dim, n), lambda i: (0, 0)),
                  pl.BlockSpec(slab.shape, lambda i: (0, 0)),
                  pl.BlockSpec(masks.shape, lambda i: (0, 0))],
        out_specs=pl.BlockSpec((dim, n), lambda i: (0, 0)),
        compiler_params=pltpu.CompilerParams(
            dimension_semantics=("arbitrary",)),
    )(x_cf, slab, masks)

    return jnp.transpose(out_cf.reshape(dim, b, hw), (1, 0, 2)).reshape(b, dim, h, w)


# ------------------------------ pure-JAX reference ---------------------------
def _bottleneck_ref(x, p):
    b, h, w, cin = x.shape
    hid = p["conv1"].shape[1]
    cout = p["conv3"].shape[1]
    y = jnp.maximum(x.reshape(-1, cin) @ p["conv1"], 0.0).reshape(b, h, w, hid)
    yp = jnp.pad(y, ((0, 0), (1, 1), (1, 1), (0, 0)))
    acc = jnp.zeros((b, h, w, hid), jnp.float32)
    for k in range(9):
        dy, dx = k // 3, k % 3
        acc = acc + jnp.einsum("bhwc,cd->bhwd",
                               yp[:, dy:dy + h, dx:dx + w, :], p["conv2"][k])
    y = jnp.maximum(acc, 0.0)
    y = (y.reshape(-1, hid) @ p["conv3"]).reshape(b, h, w, cout)
    pooled = jnp.mean(y, axis=(1, 2))
    s = jax.nn.sigmoid(jnp.maximum(pooled @ p["se_w1"], 0.0) @ p["se_w2"])
    return y * s[:, None, None, :]


def _hyper_ref(x_nchw, params):
    b, dim, h, w = x_nchw.shape
    x = jnp.transpose(x_nchw, (0, 2, 3, 1)).astype(jnp.float32)
    inp = _bottleneck_ref(x, params["input"])
    velo, theta = inp[..., :dim], inp[..., dim:]
    step = STEP * velo
    t = jnp.tanh(theta)
    y1 = (x + t) * jnp.exp(step * jnp.sin(theta)) - t
    y2 = (x + t) * jnp.exp(-step * jnp.cos(theta)) - t
    y3 = (x - t) * jnp.exp(step * jnp.sin(theta)) + t
    y4 = (x - t) * jnp.exp(-step * jnp.cos(theta)) + t
    ys = jnp.concatenate([y1, y2, y3, y4], axis=-1)
    out = _bottleneck_ref(ys, params["output"])
    return jnp.transpose(x + out, (0, 3, 1, 2))


# ---------------------------------- main ------------------------------------
if __name__ == "__main__":
    key = jax.random.PRNGKey(0)
    k_x, k_p = jax.random.split(key)
    x = jax.random.normal(k_x, (B, DIM, H, W), jnp.float32)   # NCHW like PyTorch
    params = init_hyper_params(k_p, DIM, REDUCTION)

    fwd = jax.jit(hyper_bottleneck_forward)
    out = jax.block_until_ready(fwd(x, params))

    ref = jax.block_until_ready(_hyper_ref(x, params))
    assert out.shape == (B, DIM, H, W), out.shape
    err = float(jnp.max(jnp.abs(out - ref)))
    assert err < 1e-3, err

    print("KERNEL_OK")
</pallas_src>

<mosaic_0001>
module attributes {stable_mosaic.version = 11 : i64} {
  func.func @_hyper_bottleneck_kernel(%arg0: i32, %arg1: memref<16x512xf32, #tpu.memory_space<vmem>>, %arg2: memref<328x16xf32, #tpu.memory_space<vmem>>, %arg3: memref<16x512xf32, #tpu.memory_space<vmem>>, %arg4: memref<16x512xf32, #tpu.memory_space<vmem>>) attributes {dimension_semantics = [#tpu.dimension_semantics<arbitrary>], iteration_bounds = array<i64: 1>, scalar_prefetch = 0 : i64, scratch_operands = 0 : i64, tpu.core_type = #tpu.core_type<tc>, window_params = [{pipeline_mode = #tpu.pipeline_mode<synchronous>, transform_indices = @transform_0, window_bounds = array<i64: 16, 512>}, {pipeline_mode = #tpu.pipeline_mode<synchronous>, transform_indices = @transform_1, window_bounds = array<i64: 328, 16>}, {pipeline_mode = #tpu.pipeline_mode<synchronous>, transform_indices = @transform_2, window_bounds = array<i64: 16, 512>}, {pipeline_mode = #tpu.pipeline_mode<synchronous>, transform_indices = @transform_3, window_bounds = array<i64: 16, 512>}]} {
    %c0 = arith.constant 0 : index
    %c0_0 = arith.constant 0 : index
    %0 = vector.load %arg1[%c0, %c0_0] : memref<16x512xf32, #tpu.memory_space<vmem>>, vector<16x512xf32>
    %c0_1 = arith.constant 0 : index
    %c0_2 = arith.constant 0 : index
    %1 = vector.load %arg2[%c0_1, %c0_2] : memref<328x16xf32, #tpu.memory_space<vmem>>, vector<8x16xf32>
    %cst = arith.constant dense<0.000000e+00> : vector<8x512xf32>
    %2 = tpu.matmul %1, %0, %cst {dimension_numbers = #tpu.dot_dimension_numbers<[1], [0], [0], [1], [0, 0, 1, 1], [], []>} : vector<8x16xf32>, vector<16x512xf32>, vector<8x512xf32> -> vector<8x512xf32>
    %cst_3 = arith.constant 0.000000e+00 : f32
    %3 = vector.broadcast %cst_3 : f32 to vector<8x512xf32>
    %4 = arith.maximumf %2, %3 : vector<8x512xf32>
    %c8 = arith.constant 8 : index
    %c0_4 = arith.constant 0 : index
    %5 = vector.load %arg2[%c8, %c0_4] : memref<328x16xf32, #tpu.memory_space<vmem>>, vector<8x8xf32>
    %c17_i32 = arith.constant 17 : i32
    %6 = tpu.dynamic_rotate %4 by %c17_i32 dim 1 : vector<8x512xf32>, i32 -> vector<8x512xf32>
    %c0_5 = arith.constant 0 : index
    %c0_6 = arith.constant 0 : index
    %7 = vector.load %arg3[%c0_5, %c0_6] : memref<16x512xf32, #tpu.memory_space<vmem>>, vector<1x512xf32>
    %8 = vector.broadcast %7 : vector<1x512xf32> to vector<8x512xf32>
    %9 = arith.mulf %6, %8 : vector<8x512xf32>
    %cst_7 = arith.constant dense<0.000000e+00> : vector<8x512xf32>
    %10 = tpu.matmul %5, %9, %cst_7 {dimension_numbers = #tpu.dot_dimension_numbers<[1], [0], [0], [1], [0, 0, 1, 1], [], []>} : vector<8x8xf32>, vector<8x512xf32>, vector<8x512xf32> -> vector<8x512xf32>
    %c16 = arith.constant 16 : index
    %c0_8 = arith.constant 0 : index
    %11 = vector.load %arg2[%c16, %c0_8] : memref<328x16xf32, #tpu.memory_space<vmem>>, vector<8x8xf32>
    %c16_i32 = arith.constant 16 : i32
    %12 = tpu.dynamic_rotate %4 by %c16_i32 dim 1 : vector<8x512xf32>, i32 -> vector<8x512xf32>
    %c1 = arith.constant 1 : index
    %c0_9 = arith.constant 0 : index
    %13 = vector.load %arg3[%c1, %c0_9] : memref<16x512xf32, #tpu.memory_space<vmem>>, vector<1x512xf32>
    %14 = vector.broadcast %13 : vector<1x512xf32> to vector<8x512xf32>
    %15 = arith.mulf %12, %14 : vector<8x512xf32>
    %cst_10 = arith.constant dense<0.000000e+00> : vector<8x512xf32>
    %16 = tpu.matmul %11, %15, %cst_10 {dimension_numbers = #tpu.dot_dimension_numbers<[1], [0], [0], [1], [0, 0, 1, 1], [], []>} : vector<8x8xf32>, vector<8x512xf32>, vector<8x512xf32> -> vector<8x512xf32>
    %17 = arith.addf %10, %16 : vector<8x512xf32>
    %c24 = arith.constant 24 : index
    %c0_11 = arith.constant 0 : index
    %18 = vector.load %arg2[%c24, %c0_11] : memref<328x16xf32, #tpu.memory_space<vmem>>, vector<8x8xf32>
    %c15_i32 = arith.constant 15 : i32
    %19 = tpu.dynamic_rotate %4 by %c15_i32 dim 1 : vector<8x512xf32>, i32 -> vector<8x512xf32>
    %c2 = arith.constant 2 : index
    %c0_12 = arith.constant 0 : index
    %20 = vector.load %arg3[%c2, %c0_12] : memref<16x512xf32, #tpu.memory_space<vmem>>, vector<1x512xf32>
    %21 = vector.broadcast %20 : vector<1x512xf32> to vector<8x512xf32>
    %22 = arith.mulf %19, %21 : vector<8x512xf32>
    %cst_13 = arith.constant dense<0.000000e+00> : vector<8x512xf32>
    %23 = tpu.matmul %18, %22, %cst_13 {dimension_numbers = #tpu.dot_dimension_numbers<[1], [0], [0], [1], [0, 0, 1, 1], [], []>} : vector<8x8xf32>, vector<8x512xf32>, vector<8x512xf32> -> vector<8x512xf32>
    %24 = arith.addf %17, %23 : vector<8x512xf32>
    %c32 = arith.constant 32 : index
    %c0_14 = arith.constant 0 : index
    %25 = vector.load %arg2[%c32, %c0_14] : memref<328x16xf32, #tpu.memory_space<vmem>>, vector<8x8xf32>
    %c1_i32 = arith.constant 1 : i32
    %26 = tpu.dynamic_rotate %4 by %c1_i32 dim 1 : vector<8x512xf32>, i32 -> vector<8x512xf32>
    %c3 = arith.constant 3 : index
    %c0_15 = arith.constant 0 : index
    %27 = vector.load %arg3[%c3, %c0_15] : memref<16x512xf32, #tpu.memory_space<vmem>>, vector<1x512xf32>
    %28 = vector.broadcast %27 : vector<1x512xf32> to vector<8x512xf32>
    %29 = arith.mulf %26, %28 : vector<8x512xf32>
    %cst_16 = arith.constant dense<0.000000e+00> : vector<8x512xf32>
    %30 = tpu.matmul %25, %29, %cst_16 {dimension_numbers = #tpu.dot_dimension_numbers<[1], [0], [0], [1], [0, 0, 1, 1], [], []>} : vector<8x8xf32>, vector<8x512xf32>, vector<8x512xf32> -> vector<8x512xf32>
    %31 = arith.addf %24, %30 : vector<8x512xf32>
    %c40 = arith.constant 40 : index
    %c0_17 = arith.constant 0 : index
    %32 = vector.load %arg2[%c40, %c0_17] : memref<328x16xf32, #tpu.memory_space<vmem>>, vector<8x8xf32>
    %cst_18 = arith.constant dense<0.000000e+00> : vector<8x512xf32>
    %33 = tpu.matmul %32, %4, %cst_18 {dimension_numbers = #tpu.dot_dimension_numbers<[1], [0], [0], [1], [0, 0, 1, 1], [], []>} : vector<8x8xf32>, vector<8x512xf32>, vector<8x512xf32> -> vector<8x512xf32>
    %34 = arith.addf %31, %33 : vector<8x512xf32>
    %c48 = arith.constant 48 : index
    %c0_19 = arith.constant 0 : index
    %35 = vector.load %arg2[%c48, %c0_19] : memref<328x16xf32, #tpu.memory_space<vmem>>, vector<8x8xf32>
    %c511_i32 = arith.constant 511 : i32
    %36 = tpu.dynamic_rotate %4 by %c511_i32 dim 1 : vector<8x512xf32>, i32 -> vector<8x512xf32>
    %c5 = arith.constant 5 : index
    %c0_20 = arith.constant 0 : index
    %37 = vector.load %arg3[%c5, %c0_20] : memref<16x512xf32, #tpu.memory_space<vmem>>, vector<1x512xf32>
    %38 = vector.broadcast %37 : vector<1x512xf32> to vector<8x512xf32>
    %39 = arith.mulf %36, %38 : vector<8x512xf32>
    %cst_21 = arith.constant dense<0.000000e+00> : vector<8x512xf32>
    %40 = tpu.matmul %35, %39, %cst_21 {dimension_numbers = #tpu.dot_dimension_numbers<[1], [0], [0], [1], [0, 0, 1, 1], [], []>} : vector<8x8xf32>, vector<8x512xf32>, vector<8x512xf32> -> vector<8x512xf32>
    %41 = arith.addf %34, %40 : vector<8x512xf32>
    %c56 = arith.constant 56 : index
    %c0_22 = arith.constant 0 : index
    %42 = vector.load %arg2[%c56, %c0_22] : memref<328x16xf32, #tpu.memory_space<vmem>>, vector<8x8xf32>
    %c497_i32 = arith.constant 497 : i32
    %43 = tpu.dynamic_rotate %4 by %c497_i32 dim 1 : vector<8x512xf32>, i32 -> vector<8x512xf32>
    %c6 = arith.constant 6 : index
    %c0_23 = arith.constant 0 : index
    %44 = vector.load %arg3[%c6, %c0_23] : memref<16x512xf32, #tpu.memory_space<vmem>>, vector<1x512xf32>
    %45 = vector.broadcast %44 : vector<1x512xf32> to vector<8x512xf32>
    %46 = arith.mulf %43, %45 : vector<8x512xf32>
    %cst_24 = arith.constant dense<0.000000e+00> : vector<8x512xf32>
    %47 = tpu.matmul %42, %46, %cst_24 {dimension_numbers = #tpu.dot_dimension_numbers<[1], [0], [0], [1], [0, 0, 1, 1], [], []>} : vector<8x8xf32>, vector<8x512xf32>, vector<8x512xf32> -> vector<8x512xf32>
    %48 = arith.addf %41, %47 : vector<8x512xf32>
    %c64 = arith.constant 64 : index
    %c0_25 = arith.constant 0 : index
    %49 = vector.load %arg2[%c64, %c0_25] : memref<328x16xf32, #tpu.memory_space<vmem>>, vector<8x8xf32>
    %c496_i32 = arith.constant 496 : i32
    %50 = tpu.dynamic_rotate %4 by %c496_i32 dim 1 : vector<8x512xf32>, i32 -> vector<8x512xf32>
    %c7 = arith.constant 7 : index
    %c0_26 = arith.constant 0 : index
    %51 = vector.load %arg3[%c7, %c0_26] : memref<16x512xf32, #tpu.memory_space<vmem>>, vector<1x512xf32>
    %52 = vector.broadcast %51 : vector<1x512xf32> to vector<8x512xf32>
    %53 = arith.mulf %50, %52 : vector<8x512xf32>
    %cst_27 = arith.constant dense<0.000000e+00> : vector<8x512xf32>
    %54 = tpu.matmul %49, %53, %cst_27 {dimension_numbers = #tpu.dot_dimension_numbers<[1], [0], [0], [1], [0, 0, 1, 1], [], []>} : vector<8x8xf32>, vector<8x512xf32>, vector<8x512xf32> -> vector<8x512xf32>
    %55 = arith.addf %48, %54 : vector<8x512xf32>
    %c72 = arith.constant 72 : index
    %c0_28 = arith.constant 0 : index
    %56 = vector.load %arg2[%c72, %c0_28] : memref<328x16xf32, #tpu.memory_space<vmem>>, vector<8x8xf32>
    %c495_i32 = arith.constant 495 : i32
    %57 = tpu.dynamic_rotate %4 by %c495_i32 dim 1 : vector<8x512xf32>, i32 -> vector<8x512xf32>
    %c8_29 = arith.constant 8 : index
    %c0_30 = arith.constant 0 : index
    %58 = vector.load %arg3[%c8_29, %c0_30] : memref<16x512xf32, #tpu.memory_space<vmem>>, vector<1x512xf32>
    %59 = vector.broadcast %58 : vector<1x512xf32> to vector<8x512xf32>
    %60 = arith.mulf %57, %59 : vector<8x512xf32>
    %cst_31 = arith.constant dense<0.000000e+00> : vector<8x512xf32>
    %61 = tpu.matmul %56, %60, %cst_31 {dimension_numbers = #tpu.dot_dimension_numbers<[1], [0], [0], [1], [0, 0, 1, 1], [], []>} : vector<8x8xf32>, vector<8x512xf32>, vector<8x512xf32> -> vector<8x512xf32>
    %62 = arith.addf %55, %61 : vector<8x512xf32>
    %cst_32 = arith.constant 0.000000e+00 : f32
    %63 = vector.broadcast %cst_32 : f32 to vector<8x512xf32>
    %64 = arith.maximumf %62, %63 : vector<8x512xf32>
    %c80 = arith.constant 80 : index
    %c0_33 = arith.constant 0 : index
    %65 = vector.load %arg2[%c80, %c0_33] : memref<328x16xf32, #tpu.memory_space<vmem>>, vector<32x8xf32>
    %cst_34 = arith.constant dense<0.000000e+00> : vector<32x512xf32>
    %66 = tpu.matmul %65, %64, %cst_34 {dimension_numbers = #tpu.dot_dimension_numbers<[1], [0], [0], [1], [0, 0, 1, 1], [], []>} : vector<32x8xf32>, vector<8x512xf32>, vector<32x512xf32> -> vector<32x512xf32>
    %c112 = arith.constant 112 : index
    %c0_35 = arith.constant 0 : index
    %67 = vector.load %arg2[%c112, %c0_35] : memref<328x16xf32, #tpu.memory_space<vmem>>, vector<32x2xf32>
    %c144 = arith.constant 144 : index
    %c0_36 = arith.constant 0 : index
    %68 = vector.load %arg2[%c144, %c0_36] : memref<328x16xf32, #tpu.memory_space<vmem>>, vector<32x2xf32>
    %69 = vector.extract_strided_slice %66 {offsets = [0, 0], sizes = [32, 256], strides = [1, 1]} : vector<32x512xf32> to vector<32x256xf32>
    %cst_37 = arith.constant dense<0.000000e+00> : vector<32xf32>
    %70 = vector.multi_reduction <add>, %69, %cst_37 [1] : vector<32x256xf32> to vector<32xf32>
    %71 = vector.shape_cast %70 : vector<32xf32> to vector<32x1xf32>
    %cst_38 = arith.constant 3.906250e-03 : f32
    %72 = vector.broadcast %cst_38 : f32 to vector<32x1xf32>
    %73 = arith.mulf %71, %72 : vector<32x1xf32>
    %74 = vector.broadcast %73 : vector<32x1xf32> to vector<32x2xf32>
    %75 = arith.mulf %67, %74 : vector<32x2xf32>
    %cst_39 = arith.constant dense<0.000000e+00> : vector<2xf32>
    %76 = vector.multi_reduction <add>, %75, %cst_39 [0] : vector<32x2xf32> to vector<2xf32>
    %77 = vector.shape_cast %76 : vector<2xf32> to vector<1x2xf32>
    %cst_40 = arith.constant 0.000000e+00 : f32
    %78 = vector.broadcast %cst_40 : f32 to vector<1x2xf32>
    %79 = arith.maximumf %77, %78 : vector<1x2xf32>
    %80 = vector.broadcast %79 : vector<1x2xf32> to vector<32x2xf32>
    %81 = arith.mulf %68, %80 : vector<32x2xf32>
    %cst_41 = arith.constant dense<0.000000e+00> : vector<32xf32>
    %82 = vector.multi_reduction <add>, %81, %cst_41 [1] : vector<32x2xf32> to vector<32xf32>
    %83 = vector.shape_cast %82 : vector<32xf32> to vector<32x1xf32>
    %cst_42 = arith.constant 0.000000e+00 : f32
    %84 = vector.broadcast %cst_42 : f32 to vector<32x1xf32>
    %85 = arith.subf %84, %83 : vector<32x1xf32>
    %86 = math.exp %85 : vector<32x1xf32>
    %cst_43 = arith.constant 1.000000e+00 : f32
    %87 = vector.broadcast %cst_43 : f32 to vector<32x1xf32>
    %88 = arith.addf %87, %86 : vector<32x1xf32>
    %89 = tpu.reciprocal %88 : vector<32x1xf32> -> vector<32x1xf32>
    %c9 = arith.constant 9 : index
    %c0_44 = arith.constant 0 : index
    %90 = vector.load %arg3[%c9, %c0_44] : memref<16x512xf32, #tpu.memory_space<vmem>>, vector<1x512xf32>
    %91 = vector.broadcast %89 : vector<32x1xf32> to vector<32x512xf32>
    %92 = vector.broadcast %90 : vector<1x512xf32> to vector<32x512xf32>
    %93 = arith.mulf %91, %92 : vector<32x512xf32>
    %94 = vector.extract_strided_slice %66 {offsets = [0, 256], sizes = [32, 256], strides = [1, 1]} : vector<32x512xf32> to vector<32x256xf32>
    %cst_45 = arith.constant dense<0.000000e+00> : vector<32xf32>
    %95 = vector.multi_reduction <add>, %94, %cst_45 [1] : vector<32x256xf32> to vector<32xf32>
    %96 = vector.shape_cast %95 : vector<32xf32> to vector<32x1xf32>
    %cst_46 = arith.constant 3.906250e-03 : f32
    %97 = vector.broadcast %cst_46 : f32 to vector<32x1xf32>
    %98 = arith.mulf %96, %97 : vector<32x1xf32>
    %99 = vector.broadcast %98 : vector<32x1xf32> to vector<32x2xf32>
    %100 = arith.mulf %67, %99 : vector<32x2xf32>
    %cst_47 = arith.constant dense<0.000000e+00> : vector<2xf32>
    %101 = vector.multi_reduction <add>, %100, %cst_47 [0] : vector<32x2xf32> to vector<2xf32>
    %102 = vector.shape_cast %101 : vector<2xf32> to vector<1x2xf32>
    %cst_48 = arith.constant 0.000000e+00 : f32
    %103 = vector.broadcast %cst_48 : f32 to vector<1x2xf32>
    %104 = arith.maximumf %102, %103 : vector<1x2xf32>
    %105 = vector.broadcast %104 : vector<1x2xf32> to vector<32x2xf32>
    %106 = arith.mulf %68, %105 : vector<32x2xf32>
    %cst_49 = arith.constant dense<0.000000e+00> : vector<32xf32>
    %107 = vector.multi_reduction <add>, %106, %cst_49 [1] : vector<32x2xf32> to vector<32xf32>
    %108 = vector.shape_cast %107 : vector<32xf32> to vector<32x1xf32>
    %cst_50 = arith.constant 0.000000e+00 : f32
    %109 = vector.broadcast %cst_50 : f32 to vector<32x1xf32>
    %110 = arith.subf %109, %108 : vector<32x1xf32>
    %111 = math.exp %110 : vector<32x1xf32>
    %cst_51 = arith.constant 1.000000e+00 : f32
    %112 = vector.broadcast %cst_51 : f32 to vector<32x1xf32>
    %113 = arith.addf %112, %111 : vector<32x1xf32>
    %114 = tpu.reciprocal %113 : vector<32x1xf32> -> vector<32x1xf32>
    %c10 = arith.constant 10 : index
    %c0_52 = arith.constant 0 : index
    %115 = vector.load %arg3[%c10, %c0_52] : memref<16x512xf32, #tpu.memory_space<vmem>>, vector<1x512xf32>
    %116 = vector.broadcast %114 : vector<32x1xf32> to vector<32x512xf32>
    %117 = vector.broadcast %115 : vector<1x512xf32> to vector<32x512xf32>
    %118 = arith.mulf %116, %117 : vector<32x512xf32>
    %119 = arith.addf %93, %118 : vector<32x512xf32>
    %120 = arith.mulf %66, %119 : vector<32x512xf32>
    %121 = vector.extract_strided_slice %120 {offsets = [0, 0], sizes = [16, 512], strides = [1, 1]} : vector<32x512xf32> to vector<16x512xf32>
    %122 = vector.extract_strided_slice %120 {offsets = [16, 0], sizes = [16, 512], strides = [1, 1]} : vector<32x512xf32> to vector<16x512xf32>
    %123 = math.tanh %122 : vector<16x512xf32>
    %cst_53 = arith.constant 2.500000e-01 : f32
    %124 = vector.broadcast %cst_53 : f32 to vector<16x512xf32>
    %125 = arith.mulf %124, %121 : vector<16x512xf32>
    %126 = math.sin %122 : vector<16x512xf32>
    %127 = arith.mulf %125, %126 : vector<16x512xf32>
    %128 = math.exp %127 : vector<16x512xf32>
    %cst_54 = arith.constant 0.000000e+00 : f32
    %129 = vector.broadcast %cst_54 : f32 to vector<16x512xf32>
    %130 = arith.subf %129, %125 : vector<16x512xf32>
    %131 = math.cos %122 : vector<16x512xf32>
    %132 = arith.mulf %130, %131 : vector<16x512xf32>
    %133 = math.exp %132 : vector<16x512xf32>
    %134 = arith.addf %0, %123 : vector<16x512xf32>
    %135 = arith.subf %0, %123 : vector<16x512xf32>
    %136 = arith.mulf %134, %128 : vector<16x512xf32>
    %137 = arith.subf %136, %123 : vector<16x512xf32>
    %138 = arith.mulf %134, %133 : vector<16x512xf32>
    %139 = arith.subf %138, %123 : vector<16x512xf32>
    %140 = arith.mulf %135, %128 : vector<16x512xf32>
    %141 = arith.addf %140, %123 : vector<16x512xf32>
    %142 = arith.mulf %135, %133 : vector<16x512xf32>
    %143 = arith.addf %142, %123 : vector<16x512xf32>
    %c176 = arith.constant 176 : index
    %c0_55 = arith.constant 0 : index
    %144 = vector.load %arg2[%c176, %c0_55] : memref<328x16xf32, #tpu.memory_space<vmem>>, vector<4x16xf32>
    %cst_56 = arith.constant dense<0.000000e+00> : vector<4x512xf32>
    %145 = tpu.matmul %144, %137, %cst_56 {dimension_numbers = #tpu.dot_dimension_numbers<[1], [0], [0], [1], [0, 0, 1, 1], [], []>} : vector<4x16xf32>, vector<16x512xf32>, vector<4x512xf32> -> vector<4x512xf32>
    %c184 = arith.constant 184 : index
    %c0_57 = arith.constant 0 : index
    %146 = vector.load %arg2[%c184, %c0_57] : memref<328x16xf32, #tpu.memory_space<vmem>>, vector<4x16xf32>
    %cst_58 = arith.constant dense<0.000000e+00> : vector<4x512xf32>
    %147 = tpu.matmul %146, %139, %cst_58 {dimension_numbers = #tpu.dot_dimension_numbers<[1], [0], [0], [1], [0, 0, 1, 1], [], []>} : vector<4x16xf32>, vector<16x512xf32>, vector<4x512xf32> -> vector<4x512xf32>
    %148 = arith.addf %145, %147 : vector<4x512xf32>
    %c192 = arith.constant 192 : index
    %c0_59 = arith.constant 0 : index
    %149 = vector.load %arg2[%c192, %c0_59] : memref<328x16xf32, #tpu.memory_space<vmem>>, vector<4x16xf32>
    %cst_60 = arith.constant dense<0.000000e+00> : vector<4x512xf32>
    %150 = tpu.matmul %149, %141, %cst_60 {dimension_numbers = #tpu.dot_dimension_numbers<[1], [0], [0], [1], [0, 0, 1, 1], [], []>} : vector<4x16xf32>, vector<16x512xf32>, vector<4x512xf32> -> vector<4x512xf32>
    %151 = arith.addf %148, %150 : vector<4x512xf32>
    %c200 = arith.constant 200 : index
    %c0_61 = arith.constant 0 : index
    %152 = vector.load %arg2[%c200, %c0_61] : memref<328x16xf32, #tpu.memory_space<vmem>>, vector<4x16xf32>
    %cst_62 = arith.constant dense<0.000000e+00> : vector<4x512xf32>
    %153 = tpu.matmul %152, %143, %cst_62 {dimension_numbers = #tpu.dot_dimension_numbers<[1], [0], [0], [1], [0, 0, 1, 1], [], []>} : vector<4x16xf32>, vector<16x512xf32>, vector<4x512xf32> -> vector<4x512xf32>
    %154 = arith.addf %151, %153 : vector<4x512xf32>
    %cst_63 = arith.constant 0.000000e+00 : f32
    %155 = vector.broadcast %cst_63 : f32 to vector<4x512xf32>
    %156 = arith.maximumf %154, %155 : vector<4x512xf32>
    %c208 = arith.constant 208 : index
    %c0_64 = arith.constant 0 : index
    %157 = vector.load %arg2[%c208, %c0_64] : memref<328x16xf32, #tpu.memory_space<vmem>>, vector<4x4xf32>
    %c17_i32_65 = arith.constant 17 : i32
    %158 = tpu.dynamic_rotate %156 by %c17_i32_65 dim 1 : vector<4x512xf32>, i32 -> vector<4x512xf32>
    %c0_66 = arith.constant 0 : index
    %c0_67 = arith.constant 0 : index
    %159 = vector.load %arg3[%c0_66, %c0_67] : memref<16x512xf32, #tpu.memory_space<vmem>>, vector<1x512xf32>
    %160 = vector.broadcast %159 : vector<1x512xf32> to vector<4x512xf32>
    %161 = arith.mulf %158, %160 : vector<4x512xf32>
    %cst_68 = arith.constant dense<0.000000e+00> : vector<4x512xf32>
    %162 = tpu.matmul %157, %161, %cst_68 {dimension_numbers = #tpu.dot_dimension_numbers<[1], [0], [0], [1], [0, 0, 1, 1], [], []>} : vector<4x4xf32>, vector<4x512xf32>, vector<4x512xf32> -> vector<4x512xf32>
    %c216 = arith.constant 216 : index
    %c0_69 = arith.constant 0 : index
    %163 = vector.load %arg2[%c216, %c0_69] : memref<328x16xf32, #tpu.memory_space<vmem>>, vector<4x4xf32>
    %c16_i32_70 = arith.constant 16 : i32
    %164 = tpu.dynamic_rotate %156 by %c16_i32_70 dim 1 : vector<4x512xf32>, i32 -> vector<4x512xf32>
    %c1_71 = arith.constant 1 : index
    %c0_72 = arith.constant 0 : index
    %165 = vector.load %arg3[%c1_71, %c0_72] : memref<16x512xf32, #tpu.memory_space<vmem>>, vector<1x512xf32>
    %166 = vector.broadcast %165 : vector<1x512xf32> to vector<4x512xf32>
    %167 = arith.mulf %164, %166 : vector<4x512xf32>
    %cst_73 = arith.constant dense<0.000000e+00> : vector<4x512xf32>
    %168 = tpu.matmul %163, %167, %cst_73 {dimension_numbers = #tpu.dot_dimension_numbers<[1], [0], [0], [1], [0, 0, 1, 1], [], []>} : vector<4x4xf32>, vector<4x512xf32>, vector<4x512xf32> -> vector<4x512xf32>
    %169 = arith.addf %162, %168 : vector<4x512xf32>
    %c224 = arith.constant 224 : index
    %c0_74 = arith.constant 0 : index
    %170 = vector.load %arg2[%c224, %c0_74] : memref<328x16xf32, #tpu.memory_space<vmem>>, vector<4x4xf32>
    %c15_i32_75 = arith.constant 15 : i32
    %171 = tpu.dynamic_rotate %156 by %c15_i32_75 dim 1 : vector<4x512xf32>, i32 -> vector<4x512xf32>
    %c2_76 = arith.constant 2 : index
    %c0_77 = arith.constant 0 : index
    %172 = vector.load %arg3[%c2_76, %c0_77] : memref<16x512xf32, #tpu.memory_space<vmem>>, vector<1x512xf32>
    %173 = vector.broadcast %172 : vector<1x512xf32> to vector<4x512xf32>
    %174 = arith.mulf %171, %173 : vector<4x512xf32>
    %cst_78 = arith.constant dense<0.000000e+00> : vector<4x512xf32>
    %175 = tpu.matmul %170, %174, %cst_78 {dimension_numbers = #tpu.dot_dimension_numbers<[1], [0], [0], [1], [0, 0, 1, 1], [], []>} : vector<4x4xf32>, vector<4x512xf32>, vector<4x512xf32> -> vector<4x512xf32>
    %176 = arith.addf %169, %175 : vector<4x512xf32>
    %c232 = arith.constant 232 : index
    %c0_79 = arith.constant 0 : index
    %177 = vector.load %arg2[%c232, %c0_79] : memref<328x16xf32, #tpu.memory_space<vmem>>, vector<4x4xf32>
    %c1_i32_80 = arith.constant 1 : i32
    %178 = tpu.dynamic_rotate %156 by %c1_i32_80 dim 1 : vector<4x512xf32>, i32 -> vector<4x512xf32>
    %c3_81 = arith.constant 3 : index
    %c0_82 = arith.constant 0 : index
    %179 = vector.load %arg3[%c3_81, %c0_82] : memref<16x512xf32, #tpu.memory_space<vmem>>, vector<1x512xf32>
    %180 = vector.broadcast %179 : vector<1x512xf32> to vector<4x512xf32>
    %181 = arith.mulf %178, %180 : vector<4x512xf32>
    %cst_83 = arith.constant dense<0.000000e+00> : vector<4x512xf32>
    %182 = tpu.matmul %177, %181, %cst_83 {dimension_numbers = #tpu.dot_dimension_numbers<[1], [0], [0], [1], [0, 0, 1, 1], [], []>} : vector<4x4xf32>, vector<4x512xf32>, vector<4x512xf32> -> vector<4x512xf32>
    %183 = arith.addf %176, %182 : vector<4x512xf32>
    %c240 = arith.constant 240 : index
    %c0_84 = arith.constant 0 : index
    %184 = vector.load %arg2[%c240, %c0_84] : memref<328x16xf32, #tpu.memory_space<vmem>>, vector<4x4xf32>
    %cst_85 = arith.constant dense<0.000000e+00> : vector<4x512xf32>
    %185 = tpu.matmul %184, %156, %cst_85 {dimension_numbers = #tpu.dot_dimension_numbers<[1], [0], [0], [1], [0, 0, 1, 1], [], []>} : vector<4x4xf32>, vector<4x512xf32>, vector<4x512xf32> -> vector<4x512xf32>
    %186 = arith.addf %183, %185 : vector<4x512xf32>
    %c248 = arith.constant 248 : index
    %c0_86 = arith.constant 0 : index
    %187 = vector.load %arg2[%c248, %c0_86] : memref<328x16xf32, #tpu.memory_space<vmem>>, vector<4x4xf32>
    %c511_i32_87 = arith.constant 511 : i32
    %188 = tpu.dynamic_rotate %156 by %c511_i32_87 dim 1 : vector<4x512xf32>, i32 -> vector<4x512xf32>
    %c5_88 = arith.constant 5 : index
    %c0_89 = arith.constant 0 : index
    %189 = vector.load %arg3[%c5_88, %c0_89] : memref<16x512xf32, #tpu.memory_space<vmem>>, vector<1x512xf32>
    %190 = vector.broadcast %189 : vector<1x512xf32> to vector<4x512xf32>
    %191 = arith.mulf %188, %190 : vector<4x512xf32>
    %cst_90 = arith.constant dense<0.000000e+00> : vector<4x512xf32>
    %192 = tpu.matmul %187, %191, %cst_90 {dimension_numbers = #tpu.dot_dimension_numbers<[1], [0], [0], [1], [0, 0, 1, 1], [], []>} : vector<4x4xf32>, vector<4x512xf32>, vector<4x512xf32> -> vector<4x512xf32>
    %193 = arith.addf %186, %192 : vector<4x512xf32>
    %c256 = arith.constant 256 : index
    %c0_91 = arith.constant 0 : index
    %194 = vector.load %arg2[%c256, %c0_91] : memref<328x16xf32, #tpu.memory_space<vmem>>, vector<4x4xf32>
    %c497_i32_92 = arith.constant 497 : i32
    %195 = tpu.dynamic_rotate %156 by %c497_i32_92 dim 1 : vector<4x512xf32>, i32 -> vector<4x512xf32>
    %c6_93 = arith.constant 6 : index
    %c0_94 = arith.constant 0 : index
    %196 = vector.load %arg3[%c6_93, %c0_94] : memref<16x512xf32, #tpu.memory_space<vmem>>, vector<1x512xf32>
    %197 = vector.broadcast %196 : vector<1x512xf32> to vector<4x512xf32>
    %198 = arith.mulf %195, %197 : vector<4x512xf32>
    %cst_95 = arith.constant dense<0.000000e+00> : vector<4x512xf32>
    %199 = tpu.matmul %194, %198, %cst_95 {dimension_numbers = #tpu.dot_dimension_numbers<[1], [0], [0], [1], [0, 0, 1, 1], [], []>} : vector<4x4xf32>, vector<4x512xf32>, vector<4x512xf32> -> vector<4x512xf32>
    %200 = arith.addf %193, %199 : vector<4x512xf32>
    %c264 = arith.constant 264 : index
    %c0_96 = arith.constant 0 : index
    %201 = vector.load %arg2[%c264, %c0_96] : memref<328x16xf32, #tpu.memory_space<vmem>>, vector<4x4xf32>
    %c496_i32_97 = arith.constant 496 : i32
    %202 = tpu.dynamic_rotate %156 by %c496_i32_97 dim 1 : vector<4x512xf32>, i32 -> vector<4x512xf32>
    %c7_98 = arith.constant 7 : index
    %c0_99 = arith.constant 0 : index
    %203 = vector.load %arg3[%c7_98, %c0_99] : memref<16x512xf32, #tpu.memory_space<vmem>>, vector<1x512xf32>
    %204 = vector.broadcast %203 : vector<1x512xf32> to vector<4x512xf32>
    %205 = arith.mulf %202, %204 : vector<4x512xf32>
    %cst_100 = arith.constant dense<0.000000e+00> : vector<4x512xf32>
    %206 = tpu.matmul %201, %205, %cst_100 {dimension_numbers = #tpu.dot_dimension_numbers<[1], [0], [0], [1], [0, 0, 1, 1], [], []>} : vector<4x4xf32>, vector<4x512xf32>, vector<4x512xf32> -> vector<4x512xf32>
    %207 = arith.addf %200, %206 : vector<4x512xf32>
    %c272 = arith.constant 272 : index
    %c0_101 = arith.constant 0 : index
    %208 = vector.load %arg2[%c272, %c0_101] : memref<328x16xf32, #tpu.memory_space<vmem>>, vector<4x4xf32>
    %c495_i32_102 = arith.constant 495 : i32
    %209 = tpu.dynamic_rotate %156 by %c495_i32_102 dim 1 : vector<4x512xf32>, i32 -> vector<4x512xf32>
    %c8_103 = arith.constant 8 : index
    %c0_104 = arith.constant 0 : index
    %210 = vector.load %arg3[%c8_103, %c0_104] : memref<16x512xf32, #tpu.memory_space<vmem>>, vector<1x512xf32>
    %211 = vector.broadcast %210 : vector<1x512xf32> to vector<4x512xf32>
    %212 = arith.mulf %209, %211 : vector<4x512xf32>
    %cst_105 = arith.constant dense<0.000000e+00> : vector<4x512xf32>
    %213 = tpu.matmul %208, %212, %cst_105 {dimension_numbers = #tpu.dot_dimension_numbers<[1], [0], [0], [1], [0, 0, 1, 1], [], []>} : vector<4x4xf32>, vector<4x512xf32>, vector<4x512xf32> -> vector<4x512xf32>
    %214 = arith.addf %207, %213 : vector<4x512xf32>
    %cst_106 = arith.constant 0.000000e+00 : f32
    %215 = vector.broadcast %cst_106 : f32 to vector<4x512xf32>
    %216 = arith.maximumf %214, %215 : vector<4x512xf32>
    %c280 = arith.constant 280 : index
    %c0_107 = arith.constant 0 : index
    %217 = vector.load %arg2[%c280, %c0_107] : memref<328x16xf32, #tpu.memory_space<vmem>>, vector<16x4xf32>
    %cst_108 = arith.constant dense<0.000000e+00> : vector<16x512xf32>
    %218 = tpu.matmul %217, %216, %cst_108 {dimension_numbers = #tpu.dot_dimension_numbers<[1], [0], [0], [1], [0, 0, 1, 1], [], []>} : vector<16x4xf32>, vector<4x512xf32>, vector<16x512xf32> -> vector<16x512xf32>
    %c296 = arith.constant 296 : index
    %c0_109 = arith.constant 0 : index
    %219 = vector.load %arg2[%c296, %c0_109] : memref<328x16xf32, #tpu.memory_space<vmem>>, vector<16x1xf32>
    %c312 = arith.constant 312 : index
    %c0_110 = arith.constant 0 : index
    %220 = vector.load %arg2[%c312, %c0_110] : memref<328x16xf32, #tpu.memory_space<vmem>>, vector<16x1xf32>
    %221 = vector.extract_strided_slice %218 {offsets = [0, 0], sizes = [16, 256], strides = [1, 1]} : vector<16x512xf32> to vector<16x256xf32>
    %cst_111 = arith.constant dense<0.000000e+00> : vector<16xf32>
    %222 = vector.multi_reduction <add>, %221, %cst_111 [1] : vector<16x256xf32> to vector<16xf32>
    %223 = vector.shape_cast %222 : vector<16xf32> to vector<16x1xf32>
    %cst_112 = arith.constant 3.906250e-03 : f32
    %224 = vector.broadcast %cst_112 : f32 to vector<16x1xf32>
    %225 = arith.mulf %223, %224 : vector<16x1xf32>
    %226 = arith.mulf %219, %225 : vector<16x1xf32>
    %cst_113 = arith.constant dense<0.000000e+00> : vector<1xf32>
    %227 = vector.multi_reduction <add>, %226, %cst_113 [0] : vector<16x1xf32> to vector<1xf32>
    %228 = vector.shape_cast %227 : vector<1xf32> to vector<1x1xf32>
    %cst_114 = arith.constant 0.000000e+00 : f32
    %229 = vector.broadcast %cst_114 : f32 to vector<1x1xf32>
    %230 = arith.maximumf %228, %229 : vector<1x1xf32>
    %231 = vector.broadcast %230 : vector<1x1xf32> to vector<16x1xf32>
    %232 = arith.mulf %220, %231 : vector<16x1xf32>
    %cst_115 = arith.constant dense<0.000000e+00> : vector<16xf32>
    %233 = vector.multi_reduction <add>, %232, %cst_115 [1] : vector<16x1xf32> to vector<16xf32>
    %234 = vector.shape_cast %233 : vector<16xf32> to vector<16x1xf32>
    %cst_116 = arith.constant 0.000000e+00 : f32
    %235 = vector.broadcast %cst_116 : f32 to vector<16x1xf32>
    %236 = arith.subf %235, %234 : vector<16x1xf32>
    %237 = math.exp %236 : vector<16x1xf32>
    %cst_117 = arith.constant 1.000000e+00 : f32
    %238 = vector.broadcast %cst_117 : f32 to vector<16x1xf32>
    %239 = arith.addf %238, %237 : vector<16x1xf32>
    %240 = tpu.reciprocal %239 : vector<16x1xf32> -> vector<16x1xf32>
    %c9_118 = arith.constant 9 : index
    %c0_119 = arith.constant 0 : index
    %241 = vector.load %arg3[%c9_118, %c0_119] : memref<16x512xf32, #tpu.memory_space<vmem>>, vector<1x512xf32>
    %242 = vector.broadcast %240 : vector<16x1xf32> to vector<16x512xf32>
    %243 = vector.broadcast %241 : vector<1x512xf32> to vector<16x512xf32>
    %244 = arith.mulf %242, %243 : vector<16x512xf32>
    %245 = vector.extract_strided_slice %218 {offsets = [0, 256], sizes = [16, 256], strides = [1, 1]} : vector<16x512xf32> to vector<16x256xf32>
    %cst_120 = arith.constant dense<0.000000e+00> : vector<16xf32>
    %246 = vector.multi_reduction <add>, %245, %cst_120 [1] : vector<16x256xf32> to vector<16xf32>
    %247 = vector.shape_cast %246 : vector<16xf32> to vector<16x1xf32>
    %cst_121 = arith.constant 3.906250e-03 : f32
    %248 = vector.broadcast %cst_121 : f32 to vector<16x1xf32>
    %249 = arith.mulf %247, %248 : vector<16x1xf32>
    %250 = arith.mulf %219, %249 : vector<16x1xf32>
    %cst_122 = arith.constant dense<0.000000e+00> : vector<1xf32>
    %251 = vector.multi_reduction <add>, %250, %cst_122 [0] : vector<16x1xf32> to vector<1xf32>
    %252 = vector.shape_cast %251 : vector<1xf32> to vector<1x1xf32>
    %cst_123 = arith.constant 0.000000e+00 : f32
    %253 = vector.broadcast %cst_123 : f32 to vector<1x1xf32>
    %254 = arith.maximumf %252, %253 : vector<1x1xf32>
    %255 = vector.broadcast %254 : vector<1x1xf32> to vector<16x1xf32>
    %256 = arith.mulf %220, %255 : vector<16x1xf32>
    %cst_124 = arith.constant dense<0.000000e+00> : vector<16xf32>
    %257 = vector.multi_reduction <add>, %256, %cst_124 [1] : vector<16x1xf32> to vector<16xf32>
    %258 = vector.shape_cast %257 : vector<16xf32> to vector<16x1xf32>
    %cst_125 = arith.constant 0.000000e+00 : f32
    %259 = vector.broadcast %cst_125 : f32 to vector<16x1xf32>
    %260 = arith.subf %259, %258 : vector<16x1xf32>
    %261 = math.exp %260 : vector<16x1xf32>
    %cst_126 = arith.constant 1.000000e+00 : f32
    %262 = vector.broadcast %cst_126 : f32 to vector<16x1xf32>
    %263 = arith.addf %262, %261 : vector<16x1xf32>
    %264 = tpu.reciprocal %263 : vector<16x1xf32> -> vector<16x1xf32>
    %c10_127 = arith.constant 10 : index
    %c0_128 = arith.constant 0 : index
    %265 = vector.load %arg3[%c10_127, %c0_128] : memref<16x512xf32, #tpu.memory_space<vmem>>, vector<1x512xf32>
    %266 = vector.broadcast %264 : vector<16x1xf32> to vector<16x512xf32>
    %267 = vector.broadcast %265 : vector<1x512xf32> to vector<16x512xf32>
    %268 = arith.mulf %266, %267 : vector<16x512xf32>
    %269 = arith.addf %244, %268 : vector<16x512xf32>
    %270 = arith.mulf %218, %269 : vector<16x512xf32>
    %271 = arith.addf %0, %270 : vector<16x512xf32>
    %c0_129 = arith.constant 0 : index
    %c0_130 = arith.constant 0 : index
    %272 = vector.load %arg4[%c0_129, %c0_130] : memref<16x512xf32, #tpu.memory_space<vmem>>, vector<16x512xf32>
    tpu.vector_store %arg4[%c0_129, %c0_130], %271 {strides = array<i32>} : memref<16x512xf32, #tpu.memory_space<vmem>>, vector<16x512xf32>,
    return
  }
  func.func @transform_0(%arg0: i32) -> (i32, i32) {
    %c0_i32 = arith.constant 0 : i32
    %c0_i32_0 = arith.constant 0 : i32
    %c0_i32_1 = arith.constant 0 : i32
    return %c0_i32, %c0_i32_0 : i32, i32
  }
  func.func @transform_1(%arg0: i32) -> (i32, i32) {
    %c0_i32 = arith.constant 0 : i32
    %c0_i32_0 = arith.constant 0 : i32
    %c0_i32_1 = arith.constant 0 : i32
    return %c0_i32, %c0_i32_0 : i32, i32
  }
  func.func @transform_2(%arg0: i32) -> (i32, i32) {
    %c0_i32 = arith.constant 0 : i32
    %c0_i32_0 = arith.constant 0 : i32
    %c0_i32_1 = arith.constant 0 : i32
    return %c0_i32, %c0_i32_0 : i32, i32
  }
  func.func @transform_3(%arg0: i32) -> (i32, i32) {
    %c0_i32 = arith.constant 0 : i32
    %c0_i32_0 = arith.constant 0 : i32
    %c0_i32_1 = arith.constant 0 : i32
    return %c0_i32, %c0_i32_0 : i32, i32
  }
}

</mosaic_0001>

<llo_original>
// kernel: hyper_bottleneck_forward.1
$region0: #{hyper_bottleneck_forward.1}
  #allocation0 [shape = 'u32[]', space=smem, size = 0x4, offset = 0x4, fixed_abs, tag = 'smem constant byte address 0x4 - core index']
  #allocation1 [shape = 'u32[144,128]{1,0:T(1,128)}', space=vmem, size = 0x12000, scoped, tag = 'internal scratch']
  %s0 = inlined_call_operand.vmem [shape: f32[16,512], index: 0, kind: input, shape index: {}]
  %s1 = inlined_call_operand.vmem [shape: f32[328,16], index: 1, kind: input, shape index: {}]
  %s2 = inlined_call_operand.vmem [shape: f32[16,512], index: 2, kind: input, shape index: {}]
  %s3 = inlined_call_operand.vmem [shape: f32[16,512], index: 3, kind: output, shape index: {}]
  %s4 = sld [smem:[#allocation0]]
  $region22: #{hyper_bottleneck_forward.1} parent=0
    _
  %s6 = ssub.s32 1, %s4
  %s7 = scalar_select 0, %s6, %s4
  // Predicated region
  $region2: #{hyper_bottleneck_forward.1} parent=0 // pred_check
    _
  $region3: #{hyper_bottleneck_forward.1} parent=0 // pred_check_branch
    %9 = sbr.rel (0) target = $region5
  $region4: #{hyper_bottleneck_forward.1} parent=0 // pred_region
    _
  $region5: #{hyper_bottleneck_forward.1} parent=0 // pred_fallthru
    _
  // Predicated region
  $region6: #{hyper_bottleneck_forward.1} parent=0 // pred_check
    _
  $region7: #{hyper_bottleneck_forward.1} parent=0 // pred_check_branch
    %11 = sbr.rel (0) target = $region9
  $region8: #{hyper_bottleneck_forward.1} parent=0 // pred_region
    _
  $region9: #{hyper_bottleneck_forward.1} parent=0 // pred_fallthru
    _
  // Predicated region
  $region10: #{hyper_bottleneck_forward.1} parent=0 // pred_check
    _
  $region11: #{hyper_bottleneck_forward.1} parent=0 // pred_check_branch
    %13 = sbr.rel (0) target = $region13
  $region12: #{hyper_bottleneck_forward.1} parent=0 // pred_region
    _
  $region13: #{hyper_bottleneck_forward.1} parent=0 // pred_fallthru
    _
  %v14 = vld [vmem:[%s0] sm:$0xff]
  %v15 = vld [vmem:[%s0 + $0x8] sm:$0xff]
  %v16 = vld [vmem:[%s0 + $0x10] sm:$0xff]
  %v17 = vld [vmem:[%s0 + $0x18] sm:$0xff]
  %v18 = vld [vmem:[%s0 + $0x20] sm:$0xff]
  %v19 = vld [vmem:[%s0 + $0x28] sm:$0xff]
  %v20 = vld [vmem:[%s0 + $0x30] sm:$0xff]
  %v21 = vld [vmem:[%s0 + $0x38] sm:$0xff]
  %v22 = vld [vmem:[%s1] sm:$0xff]
  %vm23 = vcmask 130048
  %v25 = vsel %vm23, %v22, 0
  %27 = vmatprep.subr.mxu0 %v15
  %28 = vmatpush1.msra.mxu0 %v14
  %29 = vmatprep.subr.mxu0 %v19
  %30 = vmatpush1.msra.mxu0 %v18
  %31 = vmatprep.subr.mxu0 0.0
  %32 = vmatpush1.msra.mxu0 0.0
  %33 = vmatprep.subr.mxu0 0.0
  %34 = vmatpush1.msra.mxu0 0.0
  %35 = vmatprep.subr.mxu0 0.0
  %36 = vmatpush1.msra.mxu0 0.0
  %37 = vmatprep.subr.mxu0 0.0
  %38 = vmatpush1.msra.mxu0 0.0
  %39 = vmatprep.subr.mxu0 0.0
  %40 = vmatpush1.msra.mxu0 0.0
  %41 = vmatprep.subr.mxu0 0.0
  %42 = vmatpush1.msra.mxu0 0.0
  %43 = vmatprep.subr.mxu0 0.0
  %44 = vmatpush1.msra.mxu0 0.0
  %45 = vmatprep.subr.mxu0 0.0
  %46 = vmatpush1.msra.mxu0 0.0
  %47 = vmatprep.subr.mxu0 0.0
  %48 = vmatpush1.msra.mxu0 0.0
  %49 = vmatprep.subr.mxu0 0.0
  %50 = vmatpush1.msra.mxu0 0.0
  %51 = vmatprep.subr.mxu0 0.0
  %52 = vmatpush1.msra.mxu0 0.0
  %53 = vmatprep.subr.mxu0 0.0
  %54 = vmatpush1.msra.mxu0 0.0
  %55 = vmatprep.subr.mxu0 0.0
  %56 = vmatpush1.msra.mxu0 0.0
  %57 = vmatprep.subr.mxu0 0.0
  %58 = vmatpush1.msra.mxu0 0.0
  %59 = vmatprep.subr.mxu0 0.0
  %60 = vmatpush1.msra.mxu0 0.0
  %61 = vmatprep.subr.mxu0 0.0
  %62 = vmatpush1.msra.mxu0 0.0
  %63 = vmatprep.subr.mxu0 0.0
  %64 = vmatpush1.msra.mxu0 0.0
  %65 = vmatprep.subr.mxu0 0.0
  %66 = vmatpush1.msra.mxu0 0.0
  %67 = vmatprep.subr.mxu0 0.0
  %68 = vmatpush1.msra.mxu0 0.0
  %69 = vmatprep.subr.mxu0 0.0
  %70 = vmatpush1.msra.mxu0 0.0
  %71 = vmatprep.subr.mxu0 0.0
  %72 = vmatpush1.msra.mxu0 0.0
  %73 = vmatprep.subr.mxu0 0.0
  %74 = vmatpush1.msra.mxu0 0.0
  %75 = vmatprep.subr.mxu0 0.0
  %76 = vmatpush1.msra.mxu0 0.0
  %77 = vmatprep.subr.mxu0 0.0
  %78 = vmatpush1.msra.mxu0 0.0
  %79 = vmatprep.subr.mxu0 0.0
  %80 = vmatpush1.msra.mxu0 0.0
  %81 = vmatprep.subr.mxu0 0.0
  %82 = vmatpush1.msra.mxu0 0.0
  %83 = vmatprep.subr.mxu0 0.0
  %84 = vmatpush1.msra.mxu0 0.0
  %85 = vmatprep.subr.mxu0 0.0
  %86 = vmatpush1.msra.mxu0 0.0
  %87 = vmatprep.subr.mxu0 0.0
  %88 = vmatpush1.msra.mxu0 0.0
  %89 = vmatprep.subr.mxu0 0.0
  %90 = vmatpush1.msra.mxu0 0.0
  %91 = vmatprep.mubr.f32.mxu0 0.0
  %92 = vmatmul.mubr.f32.gmra.mrb[0].mxu0 %v25
  %v93 = vpop.f32.mrb[0].mxu0
  %v94 = vadd.f32 0.0, %v93
  %v95 = vpop.f32.mrb[0].mxu0
  %v96 = vadd.f32 0.0, %v95
  %97 = vdwg.mxu0
  %98 = vmatprep.subr.mxu0 %v17
  %99 = vmatpush1.msra.mxu0 %v16
  %100 = vmatprep.subr.mxu0 %v21
  %101 = vmatpush1.msra.mxu0 %v20
  %102 = vmatprep.subr.mxu0 0.0
  %103 = vmatpush1.msra.mxu0 0.0
  %104 = vmatprep.subr.mxu0 0.0
  %105 = vmatpush1.msra.mxu0 0.0
  %106 = vmatprep.subr.mxu0 0.0
  %107 = vmatpush1.msra.mxu0 0.0
  %108 = vmatprep.subr.mxu0 0.0
  %109 = vmatpush1.msra.mxu0 0.0
  %110 = vmatprep.subr.mxu0 0.0
  %111 = vmatpush1.msra.mxu0 0.0
  %112 = vmatprep.subr.mxu0 0.0
  %113 = vmatpush1.msra.mxu0 0.0
  %114 = vmatprep.subr.mxu0 0.0
  %115 = vmatpush1.msra.mxu0 0.0
  %116 = vmatprep.subr.mxu0 0.0
  %117 = vmatpush1.msra.mxu0 0.0
  %118 = vmatprep.subr.mxu0 0.0
  %119 = vmatpush1.msra.mxu0 0.0
  %120 = vmatprep.subr.mxu0 0.0
  %121 = vmatpush1.msra.mxu0 0.0
  %122 = vmatprep.subr.mxu0 0.0
  %123 = vmatpush1.msra.mxu0 0.0
  %124 = vmatprep.subr.mxu0 0.0
  %125 = vmatpush1.msra.mxu0 0.0
  %126 = vmatprep.subr.mxu0 0.0
  %127 = vmatpush1.msra.mxu0 0.0
  %128 = vmatprep.subr.mxu0 0.0
  %129 = vmatpush1.msra.mxu0 0.0
  %130 = vmatprep.subr.mxu0 0.0
  %131 = vmatpush1.msra.mxu0 0.0
  %132 = vmatprep.subr.mxu0 0.0
  %133 = vmatpush1.msra.mxu0 0.0
  %134 = vmatprep.subr.mxu0 0.0
  %135 = vmatpush1.msra.mxu0 0.0
  %136 = vmatprep.subr.mxu0 0.0
  %137 = vmatpush1.msra.mxu0 0.0
  %138 = vmatprep.subr.mxu0 0.0
  %139 = vmatpush1.msra.mxu0 0.0
  %140 = vmatprep.subr.mxu0 0.0
  %141 = vmatpush1.msra.mxu0 0.0
  %142 = vmatprep.subr.mxu0 0.0
  %143 = vmatpush1.msra.mxu0 0.0
  %144 = vmatprep.subr.mxu0 0.0
  %145 = vmatpush1.msra.mxu0 0.0
  %146 = vmatprep.subr.mxu0 0.0
  %147 = vmatpush1.msra.mxu0 0.0
  %148 = vmatprep.subr.mxu0 0.0
  %149 = vmatpush1.msra.mxu0 0.0
  %150 = vmatprep.subr.mxu0 0.0
  %151 = vmatpush1.msra.mxu0 0.0
  %152 = vmatprep.subr.mxu0 0.0
  %153 = vmatpush1.msra.mxu0 0.0
  %154 = vmatprep.subr.mxu0 0.0
  %155 = vmatpush1.msra.mxu0 0.0
  %156 = vmatprep.subr.mxu0 0.0
  %157 = vmatpush1.msra.mxu0 0.0
  %158 = vmatprep.subr.mxu0 0.0
  %159 = vmatpush1.msra.mxu0 0.0
  %160 = vmatprep.subr.mxu0 0.0
  %161 = vmatpush1.msra.mxu0 0.0
  %162 = vmatprep.mubr.f32.mxu0 0.0
  %163 = vmatmul.mubr.f32.gmra.mrb[0].mxu0 %v25
  %v164 = vpop.f32.mrb[0].mxu0
  %v165 = vadd.f32 0.0, %v164
  %v166 = vpop.f32.mrb[0].mxu0
  %v167 = vadd.f32 0.0, %v166
  %168 = vdwg.mxu0
  %v169 = vmax.f32 %v94, 0.0
  %v170 = vmax.f32 %v96, 0.0
  %v171 = vmax.f32 %v165, 0.0
  %v172 = vmax.f32 %v167, 0.0
  %v173 = vld [vmem:[%s1 + $0x8] sm:$0xff]
  %174 = vrot.lane.b32.xlu0 %v169, 17
  %v175 = vpop.permute.xlu0 %174
  %176 = vrot.lane.b32.xlu0 %v170, 17
  %v177 = vpop.permute.xlu0 %176
  %178 = vrot.lane.b32.xlu0 %v171, 17
  %v179 = vpop.permute.xlu0 %178
  %180 = vrot.lane.b32.xlu0 %v172, 17
  %v181 = vpop.permute.xlu0 %180
  %v182 = vlaneseq
  %v183 = vand.u32 %v182, 127
  %vm184 = vcmp.lt.s32.totalorder %v183, 17
  %v185 = vsel %vm184, %v179, %v181
  %v186 = vsel %vm184, %v177, %v179
  %v187 = vsel %vm184, %v175, %v177
  %v188 = vsel %vm184, %v181, %v175
  %v189 = vld [vmem:[%s2] ss:$8 sm:$0xf]
  %v191 = vlaneseq
  %v192 = vshrl.u32 %v191, 7
  %v193 = vsub.s32 0, %v192
  %v194 = vrot.slane %v189, %v193
  %v195 = vlaneseq
  %v196 = vshrl.u32 %v195, 7
  %v197 = vsub.s32 1, %v196
  %v198 = vrot.slane %v189, %v197
  %v199 = vlaneseq
  %v200 = vshrl.u32 %v199, 7
  %v201 = vsub.s32 2, %v200
  %v202 = vrot.slane %v189, %v201
  %v203 = vlaneseq
  %v204 = vshrl.u32 %v203, 7
  %v205 = vsub.s32 3, %v204
  %v206 = vrot.slane %v189, %v205
  %v211 = vmul.f32 %v188, %v194
  %v212 = vmul.f32 %v187, %v198
  %v213 = vmul.f32 %v186, %v202
  %v214 = vmul.f32 %v185, %v206
  %v215 = vld [vmem:[%s1 + $0x10] sm:$0xff]
  %216 = vrot.lane.b32.xlu0 %v169, 16
  %v217 = vpop.permute.xlu0 %216
  %218 = vrot.lane.b32.xlu0 %v170, 16
  %v219 = vpop.permute.xlu0 %218
  %220 = vrot.lane.b32.xlu0 %v171, 16
  %v221 = vpop.permute.xlu0 %220
  %222 = vrot.lane.b32.xlu0 %v172, 16
  %v223 = vpop.permute.xlu0 %222
  %vm224 = vcmp.lt.s32.totalorder %v183, 16
  %v225 = vsel %vm224, %v221, %v223
  %v226 = vsel %vm224, %v219, %v221
  %v227 = vsel %vm224, %v217, %v219
  %v228 = vsel %vm224, %v223, %v217
  %s229 = scalar_lea.vmem %s2, 1
  %v230 = vld [vmem:[%s229] ss:$8 sm:$0xf]
  %v232 = vlaneseq
  %v233 = vshrl.u32 %v232, 7
  %v234 = vsub.s32 0, %v233
  %v235 = vrot.slane %v230, %v234
  %v236 = vlaneseq
  %v237 = vshrl.u32 %v236, 7
  %v238 = vsub.s32 1, %v237
  %v239 = vrot.slane %v230, %v238
  %v240 = vlaneseq
  %v241 = vshrl.u32 %v240, 7
  %v242 = vsub.s32 2, %v241
  %v243 = vrot.slane %v230, %v242
  %v244 = vlaneseq
  %v245 = vshrl.u32 %v244, 7
  %v246 = vsub.s32 3, %v245
  %v247 = vrot.slane %v230, %v246
  %v252 = vmul.f32 %v228, %v235
  %v253 = vmul.f32 %v227, %v239
  %v254 = vmul.f32 %v226, %v243
  %v255 = vmul.f32 %v225, %v247
  %vm256 = vcmask 64512
  %v258 = vsel %vm256, %v215, 0
  %260 = vmatprep.subr.mxu0 %v253
  %261 = vmatpush1.msra.mxu0 %v252
  %262 = vmatprep.subr.mxu0 0.0
  %263 = vmatpush1.msra.mxu0 0.0
  %264 = vmatprep.subr.mxu0 0.0
  %265 = vmatpush1.msra.mxu0 0.0
  %266 = vmatprep.subr.mxu0 0.0
  %267 = vmatpush1.msra.mxu0 0.0
  %268 = vmatprep.subr.mxu0 0.0
  %269 = vmatpush1.msra.mxu0 0.0
  %270 = vmatprep.subr.mxu0 0.0
  %271 = vmatpush1.msra.mxu0 0.0
  %272 = vmatprep.subr.mxu0 0.0
  %273 = vmatpush1.msra.mxu0 0.0
  %274 = vmatprep.subr.mxu0 0.0
  %275 = vmatpush1.msra.mxu0 0.0
  %276 = vmatprep.subr.mxu0 0.0
  %277 = vmatpush1.msra.mxu0 0.0
  %278 = vmatprep.subr.mxu0 0.0
  %279 = vmatpush1.msra.mxu0 0.0
  %280 = vmatprep.subr.mxu0 0.0
  %281 = vmatpush1.msra.mxu0 0.0
  %282 = vmatprep.subr.mxu0 0.0
  %283 = vmatpush1.msra.mxu0 0.0
  %284 = vmatprep.subr.mxu0 0.0
  %285 = vmatpush1.msra.mxu0 0.0
  %286 = vmatprep.subr.mxu0 0.0
  %287 = vmatpush1.msra.mxu0 0.0
  %288 = vmatprep.subr.mxu0 0.0
  %289 = vmatpush1.msra.mxu0 0.0
  %290 = vmatprep.subr.mxu0 0.0
  %291 = vmatpush1.msra.mxu0 0.0
  %292 = vmatprep.subr.mxu0 0.0
  %293 = vmatpush1.msra.mxu0 0.0
  %294 = vmatprep.subr.mxu0 0.0
  %295 = vmatpush1.msra.mxu0 0.0
  %296 = vmatprep.subr.mxu0 0.0
  %297 = vmatpush1.msra.mxu0 0.0
  %298 = vmatprep.subr.mxu0 0.0
  %299 = vmatpush1.msra.mxu0 0.0
  %300 = vmatprep.subr.mxu0 0.0
  %301 = vmatpush1.msra.mxu0 0.0
  %302 = vmatprep.subr.mxu0 0.0
  %303 = vmatpush1.msra.mxu0 0.0
  %304 = vmatprep.subr.mxu0 0.0
  %305 = vmatpush1.msra.mxu0 0.0
  %306 = vmatprep.subr.mxu0 0.0
  %307 = vmatpush1.msra.mxu0 0.0
  %308 = vmatprep.subr.mxu0 0.0
  %309 = vmatpush1.msra.mxu0 0.0
  %310 = vmatprep.subr.mxu0 0.0
  %311 = vmatpush1.msra.mxu0 0.0
  %312 = vmatprep.subr.mxu0 0.0
  %313 = vmatpush1.msra.mxu0 0.0
  %314 = vmatprep.subr.mxu0 0.0
  %315 = vmatpush1.msra.mxu0 0.0
  %316 = vmatprep.subr.mxu0 0.0
  %317 = vmatpush1.msra.mxu0 0.0
  %318 = vmatprep.subr.mxu0 0.0
  %319 = vmatpush1.msra.mxu0 0.0
  %320 = vmatprep.subr.mxu0 0.0
  %321 = vmatpush1.msra.mxu0 0.0
  %322 = vmatprep.subr.mxu0 0.0
  %323 = vmatpush1.msra.mxu0 0.0
  %324 = vmatprep.mubr.f32.mxu0 0.0
  %325 = vmatmul.mubr.f32.gmra.mrb[0].mxu0 %v258
  %v326 = vpop.f32.mrb[0].mxu0
  %v327 = vadd.f32 0.0, %v326
  %v328 = vpop.f32.mrb[0].mxu0
  %v329 = vadd.f32 0.0, %v328
  %330 = vdwg.mxu0
  %331 = vmatprep.subr.mxu0 %v255
  %332 = vmatpush1.msra.mxu0 %v254
  %333 = vmatprep.subr.mxu0 0.0
  %334 = vmatpush1.msra.mxu0 0.0
  %335 = vmatprep.subr.mxu0 0.0
  %336 = vmatpush1.msra.mxu0 0.0
  %337 = vmatprep.subr.mxu0 0.0
  %338 = vmatpush1.msra.mxu0 0.0
  %339 = vmatprep.subr.mxu0 0.0
  %340 = vmatpush1.msra.mxu0 0.0
  %341 = vmatprep.subr.mxu0 0.0
  %342 = vmatpush1.msra.mxu0 0.0
  %343 = vmatprep.subr.mxu0 0.0
  %344 = vmatpush1.msra.mxu0 0.0
  %345 = vmatprep.subr.mxu0 0.0
  %346 = vmatpush1.msra.mxu0 0.0
  %347 = vmatprep.subr.mxu0 0.0
  %348 = vmatpush1.msra.mxu0 0.0
  %349 = vmatprep.subr.mxu0 0.0
  %350 = vmatpush1.msra.mxu0 0.0
  %351 = vmatprep.subr.mxu0 0.0
  %352 = vmatpush1.msra.mxu0 0.0
  %353 = vmatprep.subr.mxu0 0.0
  %354 = vmatpush1.msra.mxu0 0.0
  %355 = vmatprep.subr.mxu0 0.0
  %356 = vmatpush1.msra.mxu0 0.0
  %357 = vmatprep.subr.mxu0 0.0
  %358 = vmatpush1.msra.mxu0 0.0
  %359 = vmatprep.subr.mxu0 0.0
  %360 = vmatpush1.msra.mxu0 0.0
  %361 = vmatprep.subr.mxu0 0.0
  %362 = vmatpush1.msra.mxu0 0.0
  %363 = vmatprep.subr.mxu0 0.0
  %364 = vmatpush1.msra.mxu0 0.0
  %365 = vmatprep.subr.mxu0 0.0
  %366 = vmatpush1.msra.mxu0 0.0
  %367 = vmatprep.subr.mxu0 0.0
  %368 = vmatpush1.msra.mxu0 0.0
  %369 = vmatprep.subr.mxu0 0.0
  %370 = vmatpush1.msra.mxu0 0.0
  %371 = vmatprep.subr.mxu0 0.0
  %372 = vmatpush1.msra.mxu0 0.0
  %373 = vmatprep.subr.mxu0 0.0
  %374 = vmatpush1.msra.mxu0 0.0
  %375 = vmatprep.subr.mxu0 0.0
  %376 = vmatpush1.msra.mxu0 0.0
  %377 = vmatprep.subr.mxu0 0.0
  %378 = vmatpush1.msra.mxu0 0.0
  %379 = vmatprep.subr.mxu0 0.0
  %380 = vmatpush1.msra.mxu0 0.0
  %381 = vmatprep.subr.mxu0 0.0
  %382 = vmatpush1.msra.mxu0 0.0
  %383 = vmatprep.subr.mxu0 0.0
  %384 = vmatpush1.msra.mxu0 0.0
  %385 = vmatprep.subr.mxu0 0.0
  %386 = vmatpush1.msra.mxu0 0.0
  %387 = vmatprep.subr.mxu0 0.0
  %388 = vmatpush1.msra.mxu0 0.0
  %389 = vmatprep.subr.mxu0 0.0
  %390 = vmatpush1.msra.mxu0 0.0
  %391 = vmatprep.subr.mxu0 0.0
  %392 = vmatpush1.msra.mxu0 0.0
  %393 = vmatprep.subr.mxu0 0.0
  %394 = vmatpush1.msra.mxu0 0.0
  %395 = vmatprep.mubr.f32.mxu0 0.0
  %396 = vmatmul.mubr.f32.gmra.mrb[0].mxu0 %v258
  %v397 = vpop.f32.mrb[0].mxu0
  %v398 = vadd.f32 0.0, %v397
  %v399 = vpop.f32.mrb[0].mxu0
  %v400 = vadd.f32 0.0, %v399
  %401 = vdwg.mxu0
  %v403 = vsel %vm256, %v173, 0
  %405 = vmatprep.subr.mxu0 %v212
  %406 = vmatpush1.msra.mxu0 %v211
  %407 = vmatprep.subr.mxu0 0.0
  %408 = vmatpush1.msra.mxu0 0.0
  %409 = vmatprep.subr.mxu0 0.0
  %410 = vmatpush1.msra.mxu0 0.0
  %411 = vmatprep.subr.mxu0 0.0
  %412 = vmatpush1.msra.mxu0 0.0
  %413 = vmatprep.subr.mxu0 0.0
  %414 = vmatpush1.msra.mxu0 0.0
  %415 = vmatprep.subr.mxu0 0.0
  %416 = vmatpush1.msra.mxu0 0.0
  %417 = vmatprep.subr.mxu0 0.0
  %418 = vmatpush1.msra.mxu0 0.0
  %419 = vmatprep.subr.mxu0 0.0
  %420 = vmatpush1.msra.mxu0 0.0
  %421 = vmatprep.subr.mxu0 0.0
  %422 = vmatpush1.msra.mxu0 0.0
  %423 = vmatprep.subr.mxu0 0.0
  %424 = vmatpush1.msra.mxu0 0.0
  %425 = vmatprep.subr.mxu0 0.0
  %426 = vmatpush1.msra.mxu0 0.0
  %427 = vmatprep.subr.mxu0 0.0
  %428 = vmatpush1.msra.mxu0 0.0
  %429 = vmatprep.subr.mxu0 0.0
  %430 = vmatpush1.msra.mxu0 0.0
  %431 = vmatprep.subr.mxu0 0.0
  %432 = vmatpush1.msra.mxu0 0.0
  %433 = vmatprep.subr.mxu0 0.0
  %434 = vmatpush1.msra.mxu0 0.0
  %435 = vmatprep.subr.mxu0 0.0
  %436 = vmatpush1.msra.mxu0 0.0
  %437 = vmatprep.subr.mxu0 0.0
  %438 = vmatpush1.msra.mxu0 0.0
  %439 = vmatprep.subr.mxu0 0.0
  %440 = vmatpush1.msra.mxu0 0.0
  %441 = vmatprep.subr.mxu0 0.0
  %442 = vmatpush1.msra.mxu0 0.0
  %443 = vmatprep.subr.mxu0 0.0
  %444 = vmatpush1.msra.mxu0 0.0
  %445 = vmatprep.subr.mxu0 0.0
  %446 = vmatpush1.msra.mxu0 0.0
  %447 = vmatprep.subr.mxu0 0.0
  %448 = vmatpush1.msra.mxu0 0.0
  %449 = vmatprep.subr.mxu0 0.0
  %450 = vmatpush1.msra.mxu0 0.0
  %451 = vmatprep.subr.mxu0 0.0
  %452 = vmatpush1.msra.mxu0 0.0
  %453 = vmatprep.subr.mxu0 0.0
  %454 = vmatpush1.msra.mxu0 0.0
  %455 = vmatprep.subr.mxu0 0.0
  %456 = vmatpush1.msra.mxu0 0.0
  %457 = vmatprep.subr.mxu0 0.0
  %458 = vmatpush1.msra.mxu0 0.0
  %459 = vmatprep.subr.mxu0 0.0
  %460 = vmatpush1.msra.mxu0 0.0
  %461 = vmatprep.subr.mxu0 0.0
  %462 = vmatpush1.msra.mxu0 0.0
  %463 = vmatprep.subr.mxu0 0.0
  %464 = vmatpush1.msra.mxu0 0.0
  %465 = vmatprep.subr.mxu0 0.0
  %466 = vmatpush1.msra.mxu0 0.0
  %467 = vmatprep.subr.mxu0 0.0
  %468 = vmatpush1.msra.mxu0 0.0
  %469 = vmatprep.mubr.f32.mxu0 0.0
  %470 = vmatmul.mubr.f32.gmra.mrb[0].mxu0 %v403
  %v471 = vpop.f32.mrb[0].mxu0
  %v472 = vadd.f32 %v327, %v471
  %v473 = vpop.f32.mrb[0].mxu0
  %v474 = vadd.f32 %v329, %v473
  %475 = vdwg.mxu0
  %476 = vmatprep.subr.mxu0 %v214
  %477 = vmatpush1.msra.mxu0 %v213
  %478 = vmatprep.subr.mxu0 0.0
  %479 = vmatpush1.msra.mxu0 0.0
  %480 = vmatprep.subr.mxu0 0.0
  %481 = vmatpush1.msra.mxu0 0.0
  %482 = vmatprep.subr.mxu0 0.0
  %483 = vmatpush1.msra.mxu0 0.0
  %484 = vmatprep.subr.mxu0 0.0
  %485 = vmatpush1.msra.mxu0 0.0
  %486 = vmatprep.subr.mxu0 0.0
  %487 = vmatpush1.msra.mxu0 0.0
  %488 = vmatprep.subr.mxu0 0.0
  %489 = vmatpush1.msra.mxu0 0.0
  %490 = vmatprep.subr.mxu0 0.0
  %491 = vmatpush1.msra.mxu0 0.0
  %492 = vmatprep.subr.mxu0 0.0
  %493 = vmatpush1.msra.mxu0 0.0
  %494 = vmatprep.subr.mxu0 0.0
  %495 = vmatpush1.msra.mxu0 0.0
  %496 = vmatprep.subr.mxu0 0.0
  %497 = vmatpush1.msra.mxu0 0.0
  %498 = vmatprep.subr.mxu0 0.0
  %499 = vmatpush1.msra.mxu0 0.0
  %500 = vmatprep.subr.mxu0 0.0
  %501 = vmatpush1.msra.mxu0 0.0
  %502 = vmatprep.subr.mxu0 0.0
  %503 = vmatpush1.msra.mxu0 0.0
  %504 = vmatprep.subr.mxu0 0.0
  %505 = vmatpush1.msra.mxu0 0.0
  %506 = vmatprep.subr.mxu0 0.0
  %507 = vmatpush1.msra.mxu0 0.0
  %508 = vmatprep.subr.mxu0 0.0
  %509 = vmatpush1.msra.mxu0 0.0
  %510 = vmatprep.subr.mxu0 0.0
  %511 = vmatpush1.msra.mxu0 0.0
  %512 = vmatprep.subr.mxu0 0.0
  %513 = vmatpush1.msra.mxu0 0.0
  %514 = vmatprep.subr.mxu0 0.0
  %515 = vmatpush1.msra.mxu0 0.0
  %516 = vmatprep.subr.mxu0 0.0
  %517 = vmatpush1.msra.mxu0 0.0
  %518 = vmatprep.subr.mxu0 0.0
  %519 = vmatpush1.msra.mxu0 0.0
  %520 = vmatprep.subr.mxu0 0.0
  %521 = vmatpush1.msra.mxu0 0.0
  %522 = vmatprep.subr.mxu0 0.0
  %523 = vmatpush1.msra.mxu0 0.0
  %524 = vmatprep.subr.mxu0 0.0
  %525 = vmatpush1.msra.mxu0 0.0
  %526 = vmatprep.subr.mxu0 0.0
  %527 = vmatpush1.msra.mxu0 0.0
  %528 = vmatprep.subr.mxu0 0.0
  %529 = vmatpush1.msra.mxu0 0.0
  %530 = vmatprep.subr.mxu0 0.0
  %531 = vmatpush1.msra.mxu0 0.0
  %532 = vmatprep.subr.mxu0 0.0
  %533 = vmatpush1.msra.mxu0 0.0
  %534 = vmatprep.subr.mxu0 0.0
  %535 = vmatpush1.msra.mxu0 0.0
  %536 = vmatprep.subr.mxu0 0.0
  %537 = vmatpush1.msra.mxu0 0.0
  %538 = vmatprep.subr.mxu0 0.0
  %539 = vmatpush1.msra.mxu0 0.0
  %540 = vmatprep.mubr.f32.mxu0 0.0
  %541 = vmatmul.mubr.f32.gmra.mrb[0].mxu0 %v403
  %v542 = vpop.f32.mrb[0].mxu0
  %v543 = vadd.f32 %v398, %v542
  %v544 = vpop.f32.mrb[0].mxu0
  %v545 = vadd.f32 %v400, %v544
  %546 = vdwg.mxu0
  %v547 = vld [vmem:[%s1 + $0x18] sm:$0xff]
  %548 = vrot.lane.b32.xlu0 %v169, 15
  %v549 = vpop.permute.xlu0 %548
  %550 = vrot.lane.b32.xlu0 %v170, 15
  %v551 = vpop.permute.xlu0 %550
  %552 = vrot.lane.b32.xlu0 %v171, 15
  %v553 = vpop.permute.xlu0 %552
  %554 = vrot.lane.b32.xlu0 %v172, 15
  %v555 = vpop.permute.xlu0 %554
  %vm556 = vcmp.lt.s32.totalorder %v183, 15
  %v557 = vsel %vm556, %v553, %v555
  %v558 = vsel %vm556, %v551, %v553
  %v559 = vsel %vm556, %v549, %v551
  %v560 = vsel %vm556, %v555, %v549
  %s561 = scalar_lea.vmem %s2, 2
  %v562 = vld [vmem:[%s561] ss:$8 sm:$0xf]
  %v564 = vlaneseq
  %v565 = vshrl.u32 %v564, 7
  %v566 = vsub.s32 0, %v565
  %v567 = vrot.slane %v562, %v566
  %v568 = vlaneseq
  %v569 = vshrl.u32 %v568, 7
  %v570 = vsub.s32 1, %v569
  %v571 = vrot.slane %v562, %v570
  %v572 = vlaneseq
  %v573 = vshrl.u32 %v572, 7
  %v574 = vsub.s32 2, %v573
  %v575 = vrot.slane %v562, %v574
  %v576 = vlaneseq
  %v577 = vshrl.u32 %v576, 7
  %v578 = vsub.s32 3, %v577
  %v579 = vrot.slane %v562, %v578
  %v584 = vmul.f32 %v560, %v567
  %v585 = vmul.f32 %v559, %v571
  %v586 = vmul.f32 %v558, %v575
  %v587 = vmul.f32 %v557, %v579
  %v589 = vsel %vm256, %v547, 0
  %591 = vmatprep.subr.mxu0 %v585
  %592 = vmatpush1.msra.mxu0 %v584
  %593 = vmatprep.subr.mxu0 0.0
  %594 = vmatpush1.msra.mxu0 0.0
  %595 = vmatprep.subr.mxu0 0.0
  %596 = vmatpush1.msra.mxu0 0.0
  %597 = vmatprep.subr.mxu0 0.0
  %598 = vmatpush1.msra.mxu0 0.0
  %599 = vmatprep.subr.mxu0 0.0
  %600 = vmatpush1.msra.mxu0 0.0
  %601 = vmatprep.subr.mxu0 0.0
  %602 = vmatpush1.msra.mxu0 0.0
  %603 = vmatprep.subr.mxu0 0.0
  %604 = vmatpush1.msra.mxu0 0.0
  %605 = vmatprep.subr.mxu0 0.0
  %606 = vmatpush1.msra.mxu0 0.0
  %607 = vmatprep.subr.mxu0 0.0
  %608 = vmatpush1.msra.mxu0 0.0
  %609 = vmatprep.subr.mxu0 0.0
  %610 = vmatpush1.msra.mxu0 0.0
  %611 = vmatprep.subr.mxu0 0.0
  %612 = vmatpush1.msra.mxu0 0.0
  %613 = vmatprep.subr.mxu0 0.0
  %614 = vmatpush1.msra.mxu0 0.0
  %615 = vmatprep.subr.mxu0 0.0
  %616 = vmatpush1.msra.mxu0 0.0
  %617 = vmatprep.subr.mxu0 0.0
  %618 = vmatpush1.msra.mxu0 0.0
  %619 = vmatprep.subr.mxu0 0.0
  %620 = vmatpush1.msra.mxu0 0.0
  %621 = vmatprep.subr.mxu0 0.0
  %622 = vmatpush1.msra.mxu0 0.0
  %623 = vmatprep.subr.mxu0 0.0
  %624 = vmatpush1.msra.mxu0 0.0
  %625 = vmatprep.subr.mxu0 0.0
  %626 = vmatpush1.msra.mxu0 0.0
  %627 = vmatprep.subr.mxu0 0.0
  %628 = vmatpush1.msra.mxu0 0.0
  %629 = vmatprep.subr.mxu0 0.0
  %630 = vmatpush1.msra.mxu0 0.0
  %631 = vmatprep.subr.mxu0 0.0
  %632 = vmatpush1.msra.mxu0 0.0
  %633 = vmatprep.subr.mxu0 0.0
  %634 = vmatpush1.msra.mxu0 0.0
  %635 = vmatprep.subr.mxu0 0.0
  %636 = vmatpush1.msra.mxu0 0.0
  %637 = vmatprep.subr.mxu0 0.0
  %638 = vmatpush1.msra.mxu0 0.0
  %639 = vmatprep.subr.mxu0 0.0
  %640 = vmatpush1.msra.mxu0 0.0
  %641 = vmatprep.subr.mxu0 0.0
  %642 = vmatpush1.msra.mxu0 0.0
  %643 = vmatprep.subr.mxu0 0.0
  %644 = vmatpush1.msra.mxu0 0.0
  %645 = vmatprep.subr.mxu0 0.0
  %646 = vmatpush1.msra.mxu0 0.0
  %647 = vmatprep.subr.mxu0 0.0
  %648 = vmatpush1.msra.mxu0 0.0
  %649 = vmatprep.subr.mxu0 0.0
  %650 = vmatpush1.msra.mxu0 0.0
  %651 = vmatprep.subr.mxu0 0.0
  %652 = vmatpush1.msra.mxu0 0.0
  %653 = vmatprep.subr.mxu0 0.0
  %654 = vmatpush1.msra.mxu0 0.0
  %655 = vmatprep.mubr.f32.mxu0 0.0
  %656 = vmatmul.mubr.f32.gmra.mrb[0].mxu0 %v589
  %v657 = vpop.f32.mrb[0].mxu0
  %v658 = vadd.f32 0.0, %v657
  %v659 = vpop.f32.mrb[0].mxu0
  %v660 = vadd.f32 0.0, %v659
  %661 = vdwg.mxu0
  %662 = vmatprep.subr.mxu0 %v587
  %663 = vmatpush1.msra.mxu0 %v586
  %664 = vmatprep.subr.mxu0 0.0
  %665 = vmatpush1.msra.mxu0 0.0
  %666 = vmatprep.subr.mxu0 0.0
  %667 = vmatpush1.msra.mxu0 0.0
  %668 = vmatprep.subr.mxu0 0.0
  %669 = vmatpush1.msra.mxu0 0.0
  %670 = vmatprep.subr.mxu0 0.0
  %671 = vmatpush1.msra.mxu0 0.0
  %672 = vmatprep.subr.mxu0 0.0
  %673 = vmatpush1.msra.mxu0 0.0
  %674 = vmatprep.subr.mxu0 0.0
  %675 = vmatpush1.msra.mxu0 0.0
  %676 = vmatprep.subr.mxu0 0.0
  %677 = vmatpush1.msra.mxu0 0.0
  %678 = vmatprep.subr.mxu0 0.0
  %679 = vmatpush1.msra.mxu0 0.0
  %680 = vmatprep.subr.mxu0 0.0
  %681 = vmatpush1.msra.mxu0 0.0
  %682 = vmatprep.subr.mxu0 0.0
  %683 = vmatpush1.msra.mxu0 0.0
  %684 = vmatprep.subr.mxu0 0.0
  %685 = vmatpush1.msra.mxu0 0.0
  %686 = vmatprep.subr.mxu0 0.0
  %687 = vmatpush1.msra.mxu0 0.0
  %688 = vmatprep.subr.mxu0 0.0
  %689 = vmatpush1.msra.mxu0 0.0
  %690 = vmatprep.subr.mxu0 0.0
  %691 = vmatpush1.msra.mxu0 0.0
  %692 = vmatprep.subr.mxu0 0.0
  %693 = vmatpush1.msra.mxu0 0.0
  %694 = vmatprep.subr.mxu0 0.0
  %695 = vmatpush1.msra.mxu0 0.0
  %696 = vmatprep.subr.mxu0 0.0
  %697 = vmatpush1.msra.mxu0 0.0
  %698 = vmatprep.subr.mxu0 0.0
  %699 = vmatpush1.msra.mxu0 0.0
  %700 = vmatprep.subr.mxu0 0.0
  %701 = vmatpush1.msra.mxu0 0.0
  %702 = vmatprep.subr.mxu0 0.0
  %703 = vmatpush1.msra.mxu0 0.0
  %704 = vmatprep.subr.mxu0 0.0
  %705 = vmatpush1.msra.mxu0 0.0
  %706 = vmatprep.subr.mxu0 0.0
  %707 = vmatpush1.msra.mxu0 0.0
  %708 = vmatprep.subr.mxu0 0.0
  %709 = vmatpush1.msra.mxu0 0.0
  %710 = vmatprep.subr.mxu0 0.0
  %711 = vmatpush1.msra.mxu0 0.0
  %712 = vmatprep.subr.mxu0 0.0
  %713 = vmatpush1.msra.mxu0 0.0
  %714 = vmatprep.subr.mxu0 0.0
  %715 = vmatpush1.msra.mxu0 0.0
  %716 = vmatprep.subr.mxu0 0.0
  %717 = vmatpush1.msra.mxu0 0.0
  %718 = vmatprep.subr.mxu0 0.0
  %719 = vmatpush1.msra.mxu0 0.0
  %720 = vmatprep.subr.mxu0 0.0
  %721 = vmatpush1.msra.mxu0 0.0
  %722 = vmatprep.subr.mxu0 0.0
  %723 = vmatpush1.msra.mxu0 0.0
  %724 = vmatprep.subr.mxu0 0.0
  %725 = vmatpush1.msra.mxu0 0.0
  %726 = vmatprep.mubr.f32.mxu0 0.0
  %727 = vmatmul.mubr.f32.gmra.mrb[0].mxu0 %v589
  %v728 = vpop.f32.mrb[0].mxu0
  %v729 = vadd.f32 0.0, %v728
  %v730 = vpop.f32.mrb[0].mxu0
  %v731 = vadd.f32 0.0, %v730
  %732 = vdwg.mxu0
  %v733 = vadd.f32 %v472, %v658
  %v734 = vadd.f32 %v474, %v660
  %v735 = vadd.f32 %v543, %v729
  %v736 = vadd.f32 %v545, %v731
  %v737 = vld [vmem:[%s1 + $0x20] sm:$0xff]
  %738 = vrot.lane.b32.xlu0 %v169, 1
  %v739 = vpop.permute.xlu0 %738
  %740 = vrot.lane.b32.xlu0 %v170, 1
  %v741 = vpop.permute.xlu0 %740
  %742 = vrot.lane.b32.xlu0 %v171, 1
  %v743 = vpop.permute.xlu0 %742
  %744 = vrot.lane.b32.xlu0 %v172, 1
  %v745 = vpop.permute.xlu0 %744
  %vm746 = vcmp.lt.s32.totalorder %v183, 1
  %v747 = vsel %vm746, %v743, %v745
  %v748 = vsel %vm746, %v741, %v743
  %v749 = vsel %vm746, %v739, %v741
  %v750 = vsel %vm746, %v745, %v739
  %s751 = scalar_lea.vmem %s2, 3
  %v752 = vld [vmem:[%s751] ss:$8 sm:$0xf]
  %v754 = vlaneseq
  %v755 = vshrl.u32 %v754, 7
  %v756 = vsub.s32 0, %v755
  %v757 = vrot.slane %v752, %v756
  %v758 = vlaneseq
  %v759 = vshrl.u32 %v758, 7
  %v760 = vsub.s32 1, %v759
  %v761 = vrot.slane %v752, %v760
  %v762 = vlaneseq
  %v763 = vshrl.u32 %v762, 7
  %v764 = vsub.s32 2, %v763
  %v765 = vrot.slane %v752, %v764
  %v766 = vlaneseq
  %v767 = vshrl.u32 %v766, 7
  %v768 = vsub.s32 3, %v767
  %v769 = vrot.slane %v752, %v768
  %v774 = vmul.f32 %v750, %v757
  %v775 = vmul.f32 %v749, %v761
  %v776 = vmul.f32 %v748, %v765
  %v777 = vmul.f32 %v747, %v769
  %v779 = vsel %vm256, %v737, 0
  %781 = vmatprep.subr.mxu0 %v775
  %782 = vmatpush1.msra.mxu0 %v774
  %783 = vmatprep.subr.mxu0 0.0
  %784 = vmatpush1.msra.mxu0 0.0
  %785 = vmatprep.subr.mxu0 0.0
  %786 = vmatpush1.msra.mxu0 0.0
  %787 = vmatprep.subr.mxu0 0.0
  %788 = vmatpush1.msra.mxu0 0.0
  %789 = vmatprep.subr.mxu0 0.0
  %790 = vmatpush1.msra.mxu0 0.0
  %791 = vmatprep.subr.mxu0 0.0
  %792 = vmatpush1.msra.mxu0 0.0
  %793 = vmatprep.subr.mxu0 0.0
  %794 = vmatpush1.msra.mxu0 0.0
  %795 = vmatprep.subr.mxu0 0.0
  %796 = vmatpush1.msra.mxu0 0.0
  %797 = vmatprep.subr.mxu0 0.0
  %798 = vmatpush1.msra.mxu0 0.0
  %799 = vmatprep.subr.mxu0 0.0
  %800 = vmatpush1.msra.mxu0 0.0
  %801 = vmatprep.subr.mxu0 0.0
  %802 = vmatpush1.msra.mxu0 0.0
  %803 = vmatprep.subr.mxu0 0.0
  %804 = vmatpush1.msra.mxu0 0.0
  %805 = vmatprep.subr.mxu0 0.0
  %806 = vmatpush1.msra.mxu0 0.0
  %807 = vmatprep.subr.mxu0 0.0
  %808 = vmatpush1.msra.mxu0 0.0
  %809 = vmatprep.subr.mxu0 0.0
  %810 = vmatpush1.msra.mxu0 0.0
  %811 = vmatprep.subr.mxu0 0.0
  %812 = vmatpush1.msra.mxu0 0.0
  %813 = vmatprep.subr.mxu0 0.0
  %814 = vmatpush1.msra.mxu0 0.0
  %815 = vmatprep.subr.mxu0 0.0
  %816 = vmatpush1.msra.mxu0 0.0
  %817 = vmatprep.subr.mxu0 0.0
  %818 = vmatpush1.msra.mxu0 0.0
  %819 = vmatprep.subr.mxu0 0.0
  %820 = vmatpush1.msra.mxu0 0.0
  %821 = vmatprep.subr.mxu0 0.0
  %822 = vmatpush1.msra.mxu0 0.0
  %823 = vmatprep.subr.mxu0 0.0
  %824 = vmatpush1.msra.mxu0 0.0
  %825 = vmatprep.subr.mxu0 0.0
  %826 = vmatpush1.msra.mxu0 0.0
  %827 = vmatprep.subr.mxu0 0.0
  %828 = vmatpush1.msra.mxu0 0.0
  %829 = vmatprep.subr.mxu0 0.0
  %830 = vmatpush1.msra.mxu0 0.0
  %831 = vmatprep.subr.mxu0 0.0
  %832 = vmatpush1.msra.mxu0 0.0
  %833 = vmatprep.subr.mxu0 0.0
  %834 = vmatpush1.msra.mxu0 0.0
  %835 = vmatprep.subr.mxu0 0.0
  %836 = vmatpush1.msra.mxu0 0.0
  %837 = vmatprep.subr.mxu0 0.0
  %838 = vmatpush1.msra.mxu0 0.0
  %839 = vmatprep.subr.mxu0 0.0
  %840 = vmatpush1.msra.mxu0 0.0
  %841 = vmatprep.subr.mxu0 0.0
  %842 = vmatpush1.msra.mxu0 0.0
  %843 = vmatprep.subr.mxu0 0.0
  %844 = vmatpush1.msra.mxu0 0.0
  %845 = vmatprep.mubr.f32.mxu0 0.0
  %846 = vmatmul.mubr.f32.gmra.mrb[0].mxu0 %v779
  %v847 = vpop.f32.mrb[0].mxu0
  %v848 = vadd.f32 0.0, %v847
  %v849 = vpop.f32.mrb[0].mxu0
  %v850 = vadd.f32 0.0, %v849
  %851 = vdwg.mxu0
  %852 = vmatprep.subr.mxu0 %v777
  %853 = vmatpush1.msra.mxu0 %v776
  %854 = vmatprep.subr.mxu0 0.0
  %855 = vmatpush1.msra.mxu0 0.0
  %856 = vmatprep.subr.mxu0 0.0
  %857 = vmatpush1.msra.mxu0 0.0
  %858 = vmatprep.subr.mxu0 0.0
  %859 = vmatpush1.msra.mxu0 0.0
  %860 = vmatprep.subr.mxu0 0.0
  %861 = vmatpush1.msra.mxu0 0.0
  %862 = vmatprep.subr.mxu0 0.0
  %863 = vmatpush1.msra.mxu0 0.0
  %864 = vmatprep.subr.mxu0 0.0
  %865 = vmatpush1.msra.mxu0 0.0
  %866 = vmatprep.subr.mxu0 0.0
  %867 = vmatpush1.msra.mxu0 0.0
  %868 = vmatprep.subr.mxu0 0.0
  %869 = vmatpush1.msra.mxu0 0.0
  %870 = vmatprep.subr.mxu0 0.0
  %871 = vmatpush1.msra.mxu0 0.0
  %872 = vmatprep.subr.mxu0 0.0
  %873 = vmatpush1.msra.mxu0 0.0
  %874 = vmatprep.subr.mxu0 0.0
  %875 = vmatpush1.msra.mxu0 0.0
  %876 = vmatprep.subr.mxu0 0.0
  %877 = vmatpush1.msra.mxu0 0.0
  %878 = vmatprep.subr.mxu0 0.0
  %879 = vmatpush1.msra.mxu0 0.0
  %880 = vmatprep.subr.mxu0 0.0
  %881 = vmatpush1.msra.mxu0 0.0
  %882 = vmatprep.subr.mxu0 0.0
  %883 = vmatpush1.msra.mxu0 0.0
  %884 = vmatprep.subr.mxu0 0.0
  %885 = vmatpush1.msra.mxu0 0.0
  %886 = vmatprep.subr.mxu0 0.0
  %887 = vmatpush1.msra.mxu0 0.0
  %888 = vmatprep.subr.mxu0 0.0
  %889 = vmatpush1.msra.mxu0 0.0
  %890 = vmatprep.subr.mxu0 0.0
  %891 = vmatpush1.msra.mxu0 0.0
  %892 = vmatprep.subr.mxu0 0.0
  %893 = vmatpush1.msra.mxu0 0.0
  %894 = vmatprep.subr.mxu0 0.0
  %895 = vmatpush1.msra.mxu0 0.0
  %896 = vmatprep.subr.mxu0 0.0
  %897 = vmatpush1.msra.mxu0 0.0
  %898 = vmatprep.subr.mxu0 0.0
  %899 = vmatpush1.msra.mxu0 0.0
  %900 = vmatprep.subr.mxu0 0.0
  %901 = vmatpush1.msra.mxu0 0.0
  %902 = vmatprep.subr.mxu0 0.0
  %903 = vmatpush1.msra.mxu0 0.0
  %904 = vmatprep.subr.mxu0 0.0
  %905 = vmatpush1.msra.mxu0 0.0
  %906 = vmatprep.subr.mxu0 0.0
  %907 = vmatpush1.msra.mxu0 0.0
  %908 = vmatprep.subr.mxu0 0.0
  %909 = vmatpush1.msra.mxu0 0.0
  %910 = vmatprep.subr.mxu0 0.0
  %911 = vmatpush1.msra.mxu0 0.0
  %912 = vmatprep.subr.mxu0 0.0
  %913 = vmatpush1.msra.mxu0 0.0
  %914 = vmatprep.subr.mxu0 0.0
  %915 = vmatpush1.msra.mxu0 0.0
  %916 = vmatprep.mubr.f32.mxu0 0.0
  %917 = vmatmul.mubr.f32.gmra.mrb[0].mxu0 %v779
  %v918 = vpop.f32.mrb[0].mxu0
  %v919 = vadd.f32 0.0, %v918
  %v920 = vpop.f32.mrb[0].mxu0
  %v921 = vadd.f32 0.0, %v920
  %922 = vdwg.mxu0
  %v923 = vadd.f32 %v733, %v848
  %v924 = vadd.f32 %v734, %v850
  %v925 = vadd.f32 %v735, %v919
  %v926 = vadd.f32 %v736, %v921
  %v927 = vld [vmem:[%s1 + $0x28] sm:$0xff]
  %v929 = vsel %vm256, %v927, 0
  %931 = vmatprep.subr.mxu0 %v170
  %932 = vmatpush1.msra.mxu0 %v169
  %933 = vmatprep.subr.mxu0 0.0
  %934 = vmatpush1.msra.mxu0 0.0
  %935 = vmatprep.subr.mxu0 0.0
  %936 = vmatpush1.msra.mxu0 0.0
  %937 = vmatprep.subr.mxu0 0.0
  %938 = vmatpush1.msra.mxu0 0.0
  %939 = vmatprep.subr.mxu0 0.0
  %940 = vmatpush1.msra.mxu0 0.0
  %941 = vmatprep.subr.mxu0 0.0
  %942 = vmatpush1.msra.mxu0 0.0
  %943 = vmatprep.subr.mxu0 0.0
  %944 = vmatpush1.msra.mxu0 0.0
  %945 = vmatprep.subr.mxu0 0.0
  %946 = vmatpush1.msra.mxu0 0.0
  %947 = vmatprep.subr.mxu0 0.0
  %948 = vmatpush1.msra.mxu0 0.0
  %949 = vmatprep.subr.mxu0 0.0
  %950 = vmatpush1.msra.mxu0 0.0
  %951 = vmatprep.subr.mxu0 0.0
  %952 = vmatpush1.msra.mxu0 0.0
  %953 = vmatprep.subr.mxu0 0.0
  %954 = vmatpush1.msra.mxu0 0.0
  %955 = vmatprep.subr.mxu0 0.0
  %956 = vmatpush1.msra.mxu0 0.0
  %957 = vmatprep.subr.mxu0 0.0
  %958 = vmatpush1.msra.mxu0 0.0
  %959 = vmatprep.subr.mxu0 0.0
  %960 = vmatpush1.msra.mxu0 0.0
  %961 = vmatprep.subr.mxu0 0.0
  %962 = vmatpush1.msra.mxu0 0.0
  %963 = vmatprep.subr.mxu0 0.0
  %964 = vmatpush1.msra.mxu0 0.0
  %965 = vmatprep.subr.mxu0 0.0
  %966 = vmatpush1.msra.mxu0 0.0
  %967 = vmatprep.subr.mxu0 0.0
  %968 = vmatpush1.msra.mxu0 0.0
  %969 = vmatprep.subr.mxu0 0.0
  %970 = vmatpush1.msra.mxu0 0.0
  %971 = vmatprep.subr.mxu0 0.0
  %972 = vmatpush1.msra.mxu0 0.0
  %973 = vmatprep.subr.mxu0 0.0
  %974 = vmatpush1.msra.mxu0 0.0
  %975 = vmatprep.subr.mxu0 0.0
  %976 = vmatpush1.msra.mxu0 0.0
  %977 = vmatprep.subr.mxu0 0.0
  %978 = vmatpush1.msra.mxu0 0.0
  %979 = vmatprep.subr.mxu0 0.0
  %980 = vmatpush1.msra.mxu0 0.0
  %981 = vmatprep.subr.mxu0 0.0
  %982 = vmatpush1.msra.mxu0 0.0
  %983 = vmatprep.subr.mxu0 0.0
  %984 = vmatpush1.msra.mxu0 0.0
  %985 = vmatprep.subr.mxu0 0.0
  %986 = vmatpush1.msra.mxu0 0.0
  %987 = vmatprep.subr.mxu0 0.0
  %988 = vmatpush1.msra.mxu0 0.0
  %989 = vmatprep.subr.mxu0 0.0
  %990 = vmatpush1.msra.mxu0 0.0
  %991 = vmatprep.subr.mxu0 0.0
  %992 = vmatpush1.msra.mxu0 0.0
  %993 = vmatprep.subr.mxu0 0.0
  %994 = vmatpush1.msra.mxu0 0.0
  %995 = vmatprep.mubr.f32.mxu0 0.0
  %996 = vmatmul.mubr.f32.gmra.mrb[0].mxu0 %v929
  %v997 = vpop.f32.mrb[0].mxu0
  %v998 = vadd.f32 0.0, %v997
  %v999 = vpop.f32.mrb[0].mxu0
  %v1000 = vadd.f32 0.0, %v999
  %1001 = vdwg.mxu0
  %1002 = vmatprep.subr.mxu0 %v172
  %1003 = vmatpush1.msra.mxu0 %v171
  %1004 = vmatprep.subr.mxu0 0.0
  %1005 = vmatpush1.msra.mxu0 0.0
  %1006 = vmatprep.subr.mxu0 0.0
  %1007 = vmatpush1.msra.mxu0 0.0
  %1008 = vmatprep.subr.mxu0 0.0
  %1009 = vmatpush1.msra.mxu0 0.0
  %1010 = vmatprep.subr.mxu0 0.0
  %1011 = vmatpush1.msra.mxu0 0.0
  %1012 = vmatprep.subr.mxu0 0.0
  %1013 = vmatpush1.msra.mxu0 0.0
  %1014 = vmatprep.subr.mxu0 0.0
  %1015 = vmatpush1.msra.mxu0 0.0
  %1016 = vmatprep.subr.mxu0 0.0
  %1017 = vmatpush1.msra.mxu0 0.0
  %1018 = vmatprep.subr.mxu0 0.0
  %1019 = vmatpush1.msra.mxu0 0.0
  %1020 = vmatprep.subr.mxu0 0.0
  %1021 = vmatpush1.msra.mxu0 0.0
  %1022 = vmatprep.subr.mxu0 0.0
  %1023 = vmatpush1.msra.mxu0 0.0
  %1024 = vmatprep.subr.mxu0 0.0
  %1025 = vmatpush1.msra.mxu0 0.0
  %1026 = vmatprep.subr.mxu0 0.0
  %1027 = vmatpush1.msra.mxu0 0.0
  %1028 = vmatprep.subr.mxu0 0.0
  %1029 = vmatpush1.msra.mxu0 0.0
  %1030 = vmatprep.subr.mxu0 0.0
  %1031 = vmatpush1.msra.mxu0 0.0
  %1032 = vmatprep.subr.mxu0 0.0
  %1033 = vmatpush1.msra.mxu0 0.0
  %1034 = vmatprep.subr.mxu0 0.0
  %1035 = vmatpush1.msra.mxu0 0.0
  %1036 = vmatprep.subr.mxu0 0.0
  %1037 = vmatpush1.msra.mxu0 0.0
  %1038 = vmatprep.subr.mxu0 0.0
  %1039 = vmatpush1.msra.mxu0 0.0
  %1040 = vmatprep.subr.mxu0 0.0
  %1041 = vmatpush1.msra.mxu0 0.0
  %1042 = vmatprep.subr.mxu0 0.0
  %1043 = vmatpush1.msra.mxu0 0.0
  %1044 = vmatprep.subr.mxu0 0.0
  %1045 = vmatpush1.msra.mxu0 0.0
  %1046 = vmatprep.subr.mxu0 0.0
  %1047 = vmatpush1.msra.mxu0 0.0
  %1048 = vmatprep.subr.mxu0 0.0
  %1049 = vmatpush1.msra.mxu0 0.0
  %1050 = vmatprep.subr.mxu0 0.0
  %1051 = vmatpush1.msra.mxu0 0.0
  %1052 = vmatprep.subr.mxu0 0.0
  %1053 = vmatpush1.msra.mxu0 0.0
  %1054 = vmatprep.subr.mxu0 0.0
  %1055 = vmatpush1.msra.mxu0 0.0
  %1056 = vmatprep.subr.mxu0 0.0
  %1057 = vmatpush1.msra.mxu0 0.0
  %1058 = vmatprep.subr.mxu0 0.0
  %1059 = vmatpush1.msra.mxu0 0.0
  %1060 = vmatprep.subr.mxu0 0.0
  %1061 = vmatpush1.msra.mxu0 0.0
  %1062 = vmatprep.subr.mxu0 0.0
  %1063 = vmatpush1.msra.mxu0 0.0
  %1064 = vmatprep.subr.mxu0 0.0
  %1065 = vmatpush1.msra.mxu0 0.0
  %1066 = vmatprep.mubr.f32.mxu0 0.0
  %1067 = vmatmul.mubr.f32.gmra.mrb[0].mxu0 %v929
  %v1068 = vpop.f32.mrb[0].mxu0
  %v1069 = vadd.f32 0.0, %v1068
  %v1070 = vpop.f32.mrb[0].mxu0
  %v1071 = vadd.f32 0.0, %v1070
  %1072 = vdwg.mxu0
  %v1073 = vadd.f32 %v923, %v998
  %v1074 = vadd.f32 %v924, %v1000
  %v1075 = vadd.f32 %v925, %v1069
  %v1076 = vadd.f32 %v926, %v1071
  %v1077 = vld [vmem:[%s1 + $0x30] sm:$0xff]
  %1078 = vrot.lane.b32.xlu0 %v169, 127
  %v1079 = vpop.permute.xlu0 %1078
  %1080 = vrot.lane.b32.xlu0 %v170, 127
  %v1081 = vpop.permute.xlu0 %1080
  %1082 = vrot.lane.b32.xlu0 %v171, 127
  %v1083 = vpop.permute.xlu0 %1082
  %1084 = vrot.lane.b32.xlu0 %v172, 127
  %v1085 = vpop.permute.xlu0 %1084
  %vm1086 = vcmp.lt.s32.totalorder %v183, 127
  %v1087 = vsel %vm1086, %v1083, %v1085
  %v1088 = vsel %vm1086, %v1081, %v1083
  %v1089 = vsel %vm1086, %v1079, %v1081
  %v1090 = vsel %vm1086, %v1085, %v1079
  %s1091 = scalar_lea.vmem %s2, 5
  %v1092 = vld [vmem:[%s1091] ss:$8 sm:$0xf]
  %v1094 = vlaneseq
  %v1095 = vshrl.u32 %v1094, 7
  %v1096 = vsub.s32 0, %v1095
  %v1097 = vrot.slane %v1092, %v1096
  %v1098 = vlaneseq
  %v1099 = vshrl.u32 %v1098, 7
  %v1100 = vsub.s32 1, %v1099
  %v1101 = vrot.slane %v1092, %v1100
  %v1102 = vlaneseq
  %v1103 = vshrl.u32 %v1102, 7
  %v1104 = vsub.s32 2, %v1103
  %v1105 = vrot.slane %v1092, %v1104
  %v1106 = vlaneseq
  %v1107 = vshrl.u32 %v1106, 7
  %v1108 = vsub.s32 3, %v1107
  %v1109 = vrot.slane %v1092, %v1108
  %v1114 = vmul.f32 %v1089, %v1097
  %v1115 = vmul.f32 %v1088, %v1101
  %v1116 = vmul.f32 %v1087, %v1105
  %v1117 = vmul.f32 %v1090, %v1109
  %v1119 = vsel %vm256, %v1077, 0
  %1121 = vmatprep.subr.mxu0 %v1115
  %1122 = vmatpush1.msra.mxu0 %v1114
  %1123 = vmatprep.subr.mxu0 0.0
  %1124 = vmatpush1.msra.mxu0 0.0
  %1125 = vmatprep.subr.mxu0 0.0
  %1126 = vmatpush1.msra.mxu0 0.0
  %1127 = vmatprep.subr.mxu0 0.0
  %1128 = vmatpush1.msra.mxu0 0.0
  %1129 = vmatprep.subr.mxu0 0.0
  %1130 = vmatpush1.msra.mxu0 0.0
  %1131 = vmatprep.subr.mxu0 0.0
  %1132 = vmatpush1.msra.mxu0 0.0
  %1133 = vmatprep.subr.mxu0 0.0
  %1134 = vmatpush1.msra.mxu0 0.0
  %1135 = vmatprep.subr.mxu0 0.0
  %1136 = vmatpush1.msra.mxu0 0.0
  %1137 = vmatprep.subr.mxu0 0.0
  %1138 = vmatpush1.msra.mxu0 0.0
  %1139 = vmatprep.subr.mxu0 0.0
  %1140 = vmatpush1.msra.mxu0 0.0
  %1141 = vmatprep.subr.mxu0 0.0
  %1142 = vmatpush1.msra.mxu0 0.0
  %1143 = vmatprep.subr.mxu0 0.0
  %1144 = vmatpush1.msra.mxu0 0.0
  %1145 = vmatprep.subr.mxu0 0.0
  %1146 = vmatpush1.msra.mxu0 0.0
  %1147 = vmatprep.subr.mxu0 0.0
  %1148 = vmatpush1.msra.mxu0 0.0
  %1149 = vmatprep.subr.mxu0 0.0
  %1150 = vmatpush1.msra.mxu0 0.0
  %1151 = vmatprep.subr.mxu0 0.0
  %1152 = vmatpush1.msra.mxu0 0.0
  %1153 = vmatprep.subr.mxu0 0.0
  %1154 = vmatpush1.msra.mxu0 0.0
  %1155 = vmatprep.subr.mxu0 0.0
  %1156 = vmatpush1.msra.mxu0 0.0
  %1157 = vmatprep.subr.mxu0 0.0
  %1158 = vmatpush1.msra.mxu0 0.0
  %1159 = vmatprep.subr.mxu0 0.0
  %1160 = vmatpush1.msra.mxu0 0.0
  %1161 = vmatprep.subr.mxu0 0.0
  %1162 = vmatpush1.msra.mxu0 0.0
  %1163 = vmatprep.subr.mxu0 0.0
  %1164 = vmatpush1.msra.mxu0 0.0
  %1165 = vmatprep.subr.mxu0 0.0
  %1166 = vmatpush1.msra.mxu0 0.0
  %1167 = vmatprep.subr.mxu0 0.0
  %1168 = vmatpush1.msra.mxu0 0.0
  %1169 = vmatprep.subr.mxu0 0.0
  %1170 = vmatpush1.msra.mxu0 0.0
  %1171 = vmatprep.subr.mxu0 0.0
  %1172 = vmatpush1.msra.mxu0 0.0
  %1173 = vmatprep.subr.mxu0 0.0
  %1174 = vmatpush1.msra.mxu0 0.0
  %1175 = vmatprep.subr.mxu0 0.0
  %1176 = vmatpush1.msra.mxu0 0.0
  %1177 = vmatprep.subr.mxu0 0.0
  %1178 = vmatpush1.msra.mxu0 0.0
  %1179 = vmatprep.subr.mxu0 0.0
  %1180 = vmatpush1.msra.mxu0 0.0
  %1181 = vmatprep.subr.mxu0 0.0
  %1182 = vmatpush1.msra.mxu0 0.0
  %1183 = vmatprep.subr.mxu0 0.0
  %1184 = vmatpush1.msra.mxu0 0.0
  %1185 = vmatprep.mubr.f32.mxu0 0.0
  %1186 = vmatmul.mubr.f32.gmra.mrb[0].mxu0 %v1119
  %v1187 = vpop.f32.mrb[0].mxu0
  %v1188 = vadd.f32 0.0, %v1187
  %v1189 = vpop.f32.mrb[0].mxu0
  %v1190 = vadd.f32 0.0, %v1189
  %1191 = vdwg.mxu0
  %1192 = vmatprep.subr.mxu0 %v1117
  %1193 = vmatpush1.msra.mxu0 %v1116
  %1194 = vmatprep.subr.mxu0 0.0
  %1195 = vmatpush1.msra.mxu0 0.0
  %1196 = vmatprep.subr.mxu0 0.0
  %1197 = vmatpush1.msra.mxu0 0.0
  %1198 = vmatprep.subr.mxu0 0.0
  %1199 = vmatpush1.msra.mxu0 0.0
  %1200 = vmatprep.subr.mxu0 0.0
  %1201 = vmatpush1.msra.mxu0 0.0
  %1202 = vmatprep.subr.mxu0 0.0
  %1203 = vmatpush1.msra.mxu0 0.0
  %1204 = vmatprep.subr.mxu0 0.0
  %1205 = vmatpush1.msra.mxu0 0.0
  %1206 = vmatprep.subr.mxu0 0.0
  %1207 = vmatpush1.msra.mxu0 0.0
  %1208 = vmatprep.subr.mxu0 0.0
  %1209 = vmatpush1.msra.mxu0 0.0
  %1210 = vmatprep.subr.mxu0 0.0
  %1211 = vmatpush1.msra.mxu0 0.0
  %1212 = vmatprep.subr.mxu0 0.0
  %1213 = vmatpush1.msra.mxu0 0.0
  %1214 = vmatprep.subr.mxu0 0.0
  %1215 = vmatpush1.msra.mxu0 0.0
  %1216 = vmatprep.subr.mxu0 0.0
  %1217 = vmatpush1.msra.mxu0 0.0
  %1218 = vmatprep.subr.mxu0 0.0
  %1219 = vmatpush1.msra.mxu0 0.0
  %1220 = vmatprep.subr.mxu0 0.0
  %1221 = vmatpush1.msra.mxu0 0.0
  %1222 = vmatprep.subr.mxu0 0.0
  %1223 = vmatpush1.msra.mxu0 0.0
  %1224 = vmatprep.subr.mxu0 0.0
  %1225 = vmatpush1.msra.mxu0 0.0
  %1226 = vmatprep.subr.mxu0 0.0
  %1227 = vmatpush1.msra.mxu0 0.0
  %1228 = vmatprep.subr.mxu0 0.0
  %1229 = vmatpush1.msra.mxu0 0.0
  %1230 = vmatprep.subr.mxu0 0.0
  %1231 = vmatpush1.msra.mxu0 0.0
  %1232 = vmatprep.subr.mxu0 0.0
  %1233 = vmatpush1.msra.mxu0 0.0
  %1234 = vmatprep.subr.mxu0 0.0
  %1235 = vmatpush1.msra.mxu0 0.0
  %1236 = vmatprep.subr.mxu0 0.0
  %1237 = vmatpush1.msra.mxu0 0.0
  %1238 = vmatprep.subr.mxu0 0.0
  %1239 = vmatpush1.msra.mxu0 0.0
  %1240 = vmatprep.subr.mxu0 0.0
  %1241 = vmatpush1.msra.mxu0 0.0
  %1242 = vmatprep.subr.mxu0 0.0
  %1243 = vmatpush1.msra.mxu0 0.0
  %1244 = vmatprep.subr.mxu0 0.0
  %1245 = vmatpush1.msra.mxu0 0.0
  %1246 = vmatprep.subr.mxu0 0.0
  %1247 = vmatpush1.msra.mxu0 0.0
  %1248 = vmatprep.subr.mxu0 0.0
  %1249 = vmatpush1.msra.mxu0 0.0
  %1250 = vmatprep.subr.mxu0 0.0
  %1251 = vmatpush1.msra.mxu0 0.0
  %1252 = vmatprep.subr.mxu0 0.0
  %1253 = vmatpush1.msra.mxu0 0.0
  %1254 = vmatprep.subr.mxu0 0.0
  %1255 = vmatpush1.msra.mxu0 0.0
  %1256 = vmatprep.mubr.f32.mxu0 0.0
  %1257 = vmatmul.mubr.f32.gmra.mrb[0].mxu0 %v1119
  %v1258 = vpop.f32.mrb[0].mxu0
  %v1259 = vadd.f32 0.0, %v1258
  %v1260 = vpop.f32.mrb[0].mxu0
  %v1261 = vadd.f32 0.0, %v1260
  %1262 = vdwg.mxu0
  %v1263 = vadd.f32 %v1073, %v1188
  %v1264 = vadd.f32 %v1074, %v1190
  %v1265 = vadd.f32 %v1075, %v1259
  %v1266 = vadd.f32 %v1076, %v1261
  %v1267 = vld [vmem:[%s1 + $0x38] sm:$0xff]
  %1268 = vrot.lane.b32.xlu0 %v169, 113
  %v1269 = vpop.permute.xlu0 %1268
  %1270 = vrot.lane.b32.xlu0 %v170, 113
  %v1271 = vpop.permute.xlu0 %1270
  %1272 = vrot.lane.b32.xlu0 %v171, 113
  %v1273 = vpop.permute.xlu0 %1272
  %1274 = vrot.lane.b32.xlu0 %v172, 113
  %v1275 = vpop.permute.xlu0 %1274
  %vm1276 = vcmp.lt.s32.totalorder %v183, 113
  %v1277 = vsel %vm1276, %v1273, %v1275
  %v1278 = vsel %vm1276, %v1271, %v1273
  %v1279 = vsel %vm1276, %v1269, %v1271
  %v1280 = vsel %vm1276, %v1275, %v1269
  %s1281 = scalar_lea.vmem %s2, 6
  %v1282 = vld [vmem:[%s1281] ss:$8 sm:$0xf]
  %v1284 = vlaneseq
  %v1285 = vshrl.u32 %v1284, 7
  %v1286 = vsub.s32 0, %v1285
  %v1287 = vrot.slane %v1282, %v1286
  %v1288 = vlaneseq
  %v1289 = vshrl.u32 %v1288, 7
  %v1290 = vsub.s32 1, %v1289
  %v1291 = vrot.slane %v1282, %v1290
  %v1292 = vlaneseq
  %v1293 = vshrl.u32 %v1292, 7
  %v1294 = vsub.s32 2, %v1293
  %v1295 = vrot.slane %v1282, %v1294
  %v1296 = vlaneseq
  %v1297 = vshrl.u32 %v1296, 7
  %v1298 = vsub.s32 3, %v1297
  %v1299 = vrot.slane %v1282, %v1298
  %v1304 = vmul.f32 %v1279, %v1287
  %v1305 = vmul.f32 %v1278, %v1291
  %v1306 = vmul.f32 %v1277, %v1295
  %v1307 = vmul.f32 %v1280, %v1299
  %v1309 = vsel %vm256, %v1267, 0
  %1311 = vmatprep.subr.mxu0 %v1305
  %1312 = vmatpush1.msra.mxu0 %v1304
  %1313 = vmatprep.subr.mxu0 0.0
  %1314 = vmatpush1.msra.mxu0 0.0
  %1315 = vmatprep.subr.mxu0 0.0
  %1316 = vmatpush1.msra.mxu0 0.0
  %1317 = vmatprep.subr.mxu0 0.0
  %1318 = vmatpush1.msra.mxu0 0.0
  %1319 = vmatprep.subr.mxu0 0.0
  %1320 = vmatpush1.msra.mxu0 0.0
  %1321 = vmatprep.subr.mxu0 0.0
  %1322 = vmatpush1.msra.mxu0 0.0
  %1323 = vmatprep.subr.mxu0 0.0
  %1324 = vmatpush1.msra.mxu0 0.0
  %1325 = vmatprep.subr.mxu0 0.0
  %1326 = vmatpush1.msra.mxu0 0.0
  %1327 = vmatprep.subr.mxu0 0.0
  %1328 = vmatpush1.msra.mxu0 0.0
  %1329 = vmatprep.subr.mxu0 0.0
  %1330 = vmatpush1.msra.mxu0 0.0
  %1331 = vmatprep.subr.mxu0 0.0
  %1332 = vmatpush1.msra.mxu0 0.0
  %1333 = vmatprep.subr.mxu0 0.0
  %1334 = vmatpush1.msra.mxu0 0.0
  %1335 = vmatprep.subr.mxu0 0.0
  %1336 = vmatpush1.msra.mxu0 0.0
  %1337 = vmatprep.subr.mxu0 0.0
  %1338 = vmatpush1.msra.mxu0 0.0
  %1339 = vmatprep.subr.mxu0 0.0
  %1340 = vmatpush1.msra.mxu0 0.0
  %1341 = vmatprep.subr.mxu0 0.0
  %1342 = vmatpush1.msra.mxu0 0.0
  %1343 = vmatprep.subr.mxu0 0.0
  %1344 = vmatpush1.msra.mxu0 0.0
  %1345 = vmatprep.subr.mxu0 0.0
  %1346 = vmatpush1.msra.mxu0 0.0
  %1347 = vmatprep.subr.mxu0 0.0
  %1348 = vmatpush1.msra.mxu0 0.0
  %1349 = vmatprep.subr.mxu0 0.0
  %1350 = vmatpush1.msra.mxu0 0.0
  %1351 = vmatprep.subr.mxu0 0.0
  %1352 = vmatpush1.msra.mxu0 0.0
  %1353 = vmatprep.subr.mxu0 0.0
  %1354 = vmatpush1.msra.mxu0 0.0
  %1355 = vmatprep.subr.mxu0 0.0
  %1356 = vmatpush1.msra.mxu0 0.0
  %1357 = vmatprep.subr.mxu0 0.0
  %1358 = vmatpush1.msra.mxu0 0.0
  %1359 = vmatprep.subr.mxu0 0.0
  %1360 = vmatpush1.msra.mxu0 0.0
  %1361 = vmatprep.subr.mxu0 0.0
  %1362 = vmatpush1.msra.mxu0 0.0
  %1363 = vmatprep.subr.mxu0 0.0
  %1364 = vmatpush1.msra.mxu0 0.0
  %1365 = vmatprep.subr.mxu0 0.0
  %1366 = vmatpush1.msra.mxu0 0.0
  %1367 = vmatprep.subr.mxu0 0.0
  %1368 = vmatpush1.msra.mxu0 0.0
  %1369 = vmatprep.subr.mxu0 0.0
  %1370 = vmatpush1.msra.mxu0 0.0
  %1371 = vmatprep.subr.mxu0 0.0
  %1372 = vmatpush1.msra.mxu0 0.0
  %1373 = vmatprep.subr.mxu0 0.0
  %1374 = vmatpush1.msra.mxu0 0.0
  %1375 = vmatprep.mubr.f32.mxu0 0.0
  %1376 = vmatmul.mubr.f32.gmra.mrb[0].mxu0 %v1309
  %v1377 = vpop.f32.mrb[0].mxu0
  %v1378 = vadd.f32 0.0, %v1377
  %v1379 = vpop.f32.mrb[0].mxu0
  %v1380 = vadd.f32 0.0, %v1379
  %1381 = vdwg.mxu0
  %1382 = vmatprep.subr.mxu0 %v1307
  %1383 = vmatpush1.msra.mxu0 %v1306
  %1384 = vmatprep.subr.mxu0 0.0
  %1385 = vmatpush1.msra.mxu0 0.0
  %1386 = vmatprep.subr.mxu0 0.0
  %1387 = vmatpush1.msra.mxu0 0.0
  %1388 = vmatprep.subr.mxu0 0.0
  %1389 = vmatpush1.msra.mxu0 0.0
  %1390 = vmatprep.subr.mxu0 0.0
  %1391 = vmatpush1.msra.mxu0 0.0
  %1392 = vmatprep.subr.mxu0 0.0
  %1393 = vmatpush1.msra.mxu0 0.0
  %1394 = vmatprep.subr.mxu0 0.0
  %1395 = vmatpush1.msra.mxu0 0.0
  %1396 = vmatprep.subr.mxu0 0.0
  %1397 = vmatpush1.msra.mxu0 0.0
  %1398 = vmatprep.subr.mxu0 0.0
  %1399 = vmatpush1.msra.mxu0 0.0
  %1400 = vmatprep.subr.mxu0 0.0
  %1401 = vmatpush1.msra.mxu0 0.0
  %1402 = vmatprep.subr.mxu0 0.0
  %1403 = vmatpush1.msra.mxu0 0.0
  %1404 = vmatprep.subr.mxu0 0.0
  %1405 = vmatpush1.msra.mxu0 0.0
  %1406 = vmatprep.subr.mxu0 0.0
  %1407 = vmatpush1.msra.mxu0 0.0
  %1408 = vmatprep.subr.mxu0 0.0
  %1409 = vmatpush1.msra.mxu0 0.0
  %1410 = vmatprep.subr.mxu0 0.0
  %1411 = vmatpush1.msra.mxu0 0.0
  %1412 = vmatprep.subr.mxu0 0.0
  %1413 = vmatpush1.msra.mxu0 0.0
  %1414 = vmatprep.subr.mxu0 0.0
  %1415 = vmatpush1.msra.mxu0 0.0
  %1416 = vmatprep.subr.mxu0 0.0
  %1417 = vmatpush1.msra.mxu0 0.0
  %1418 = vmatprep.subr.mxu0 0.0
  %1419 = vmatpush1.msra.mxu0 0.0
  %1420 = vmatprep.subr.mxu0 0.0
  %1421 = vmatpush1.msra.mxu0 0.0
  %1422 = vmatprep.subr.mxu0 0.0
  %1423 = vmatpush1.msra.mxu0 0.0
  %1424 = vmatprep.subr.mxu0 0.0
  %1425 = vmatpush1.msra.mxu0 0.0
  %1426 = vmatprep.subr.mxu0 0.0
  %1427 = vmatpush1.msra.mxu0 0.0
  %1428 = vmatprep.subr.mxu0 0.0
  %1429 = vmatpush1.msra.mxu0 0.0
  %1430 = vmatprep.subr.mxu0 0.0
  %1431 = vmatpush1.msra.mxu0 0.0
  %1432 = vmatprep.subr.mxu0 0.0
  %1433 = vmatpush1.msra.mxu0 0.0
  %1434 = vmatprep.subr.mxu0 0.0
  %1435 = vmatpush1.msra.mxu0 0.0
  %1436 = vmatprep.subr.mxu0 0.0
  %1437 = vmatpush1.msra.mxu0 0.0
  %1438 = vmatprep.subr.mxu0 0.0
  %1439 = vmatpush1.msra.mxu0 0.0
  %1440 = vmatprep.subr.mxu0 0.0
  %1441 = vmatpush1.msra.mxu0 0.0
  %1442 = vmatprep.subr.mxu0 0.0
  %1443 = vmatpush1.msra.mxu0 0.0
  %1444 = vmatprep.subr.mxu0 0.0
  %1445 = vmatpush1.msra.mxu0 0.0
  %1446 = vmatprep.mubr.f32.mxu0 0.0
  %1447 = vmatmul.mubr.f32.gmra.mrb[0].mxu0 %v1309
  %v1448 = vpop.f32.mrb[0].mxu0
  %v1449 = vadd.f32 0.0, %v1448
  %v1450 = vpop.f32.mrb[0].mxu0
  %v1451 = vadd.f32 0.0, %v1450
  %1452 = vdwg.mxu0
  %v1453 = vadd.f32 %v1263, %v1378
  %v1454 = vadd.f32 %v1264, %v1380
  %v1455 = vadd.f32 %v1265, %v1449
  %v1456 = vadd.f32 %v1266, %v1451
  %v1457 = vld [vmem:[%s1 + $0x40] sm:$0xff]
  %1458 = vrot.lane.b32.xlu0 %v169, 112
  %v1459 = vpop.permute.xlu0 %1458
  %1460 = vrot.lane.b32.xlu0 %v170, 112
  %v1461 = vpop.permute.xlu0 %1460
  %1462 = vrot.lane.b32.xlu0 %v171, 112
  %v1463 = vpop.permute.xlu0 %1462
  %1464 = vrot.lane.b32.xlu0 %v172, 112
  %v1465 = vpop.permute.xlu0 %1464
  %vm1466 = vcmp.lt.s32.totalorder %v183, 112
  %v1467 = vsel %vm1466, %v1463, %v1465
  %v1468 = vsel %vm1466, %v1461, %v1463
  %v1469 = vsel %vm1466, %v1459, %v1461
  %v1470 = vsel %vm1466, %v1465, %v1459
  %s1471 = scalar_lea.vmem %s2, 7
  %v1472 = vld [vmem:[%s1471] ss:$8 sm:$0xf]
  %v1474 = vlaneseq
  %v1475 = vshrl.u32 %v1474, 7
  %v1476 = vsub.s32 0, %v1475
  %v1477 = vrot.slane %v1472, %v1476
  %v1478 = vlaneseq
  %v1479 = vshrl.u32 %v1478, 7
  %v1480 = vsub.s32 1, %v1479
  %v1481 = vrot.slane %v1472, %v1480
  %v1482 = vlaneseq
  %v1483 = vshrl.u32 %v1482, 7
  %v1484 = vsub.s32 2, %v1483
  %v1485 = vrot.slane %v1472, %v1484
  %v1486 = vlaneseq
  %v1487 = vshrl.u32 %v1486, 7
  %v1488 = vsub.s32 3, %v1487
  %v1489 = vrot.slane %v1472, %v1488
  %v1494 = vmul.f32 %v1469, %v1477
  %v1495 = vmul.f32 %v1468, %v1481
  %v1496 = vmul.f32 %v1467, %v1485
  %v1497 = vmul.f32 %v1470, %v1489
  %v1499 = vsel %vm256, %v1457, 0
  %1501 = vmatprep.subr.mxu0 %v1495
  %1502 = vmatpush1.msra.mxu0 %v1494
  %1503 = vmatprep.subr.mxu0 0.0
  %1504 = vmatpush1.msra.mxu0 0.0
  %1505 = vmatprep.subr.mxu0 0.0
  %1506 = vmatpush1.msra.mxu0 0.0
  %1507 = vmatprep.subr.mxu0 0.0
  %1508 = vmatpush1.msra.mxu0 0.0
  %1509 = vmatprep.subr.mxu0 0.0
  %1510 = vmatpush1.msra.mxu0 0.0
  %1511 = vmatprep.subr.mxu0 0.0
  %1512 = vmatpush1.msra.mxu0 0.0
  %1513 = vmatprep.subr.mxu0 0.0
  %1514 = vmatpush1.msra.mxu0 0.0
  %1515 = vmatprep.subr.mxu0 0.0
  %1516 = vmatpush1.msra.mxu0 0.0
  %1517 = vmatprep.subr.mxu0 0.0
  %1518 = vmatpush1.msra.mxu0 0.0
  %1519 = vmatprep.subr.mxu0 0.0
  %1520 = vmatpush1.msra.mxu0 0.0
  %1521 = vmatprep.subr.mxu0 0.0
  %1522 = vmatpush1.msra.mxu0 0.0
  %1523 = vmatprep.subr.mxu0 0.0
  %1524 = vmatpush1.msra.mxu0 0.0
  %1525 = vmatprep.subr.mxu0 0.0
  %1526 = vmatpush1.msra.mxu0 0.0
  %1527 = vmatprep.subr.mxu0 0.0
  %1528 = vmatpush1.msra.mxu0 0.0
  %1529 = vmatprep.subr.mxu0 0.0
  %1530 = vmatpush1.msra.mxu0 0.0
  %1531 = vmatprep.subr.mxu0 0.0
  %1532 = vmatpush1.msra.mxu0 0.0
  %1533 = vmatprep.subr.mxu0 0.0
  %1534 = vmatpush1.msra.mxu0 0.0
  %1535 = vmatprep.subr.mxu0 0.0
  %1536 = vmatpush1.msra.mxu0 0.0
  %1537 = vmatprep.subr.mxu0 0.0
  %1538 = vmatpush1.msra.mxu0 0.0
  %1539 = vmatprep.subr.mxu0 0.0
  %1540 = vmatpush1.msra.mxu0 0.0
  %1541 = vmatprep.subr.mxu0 0.0
  %1542 = vmatpush1.msra.mxu0 0.0
  %1543 = vmatprep.subr.mxu0 0.0
  %1544 = vmatpush1.msra.mxu0 0.0
  %1545 = vmatprep.subr.mxu0 0.0
  %1546 = vmatpush1.msra.mxu0 0.0
  %1547 = vmatprep.subr.mxu0 0.0
  %1548 = vmatpush1.msra.mxu0 0.0
  %1549 = vmatprep.subr.mxu0 0.0
  %1550 = vmatpush1.msra.mxu0 0.0
  %1551 = vmatprep.subr.mxu0 0.0
  %1552 = vmatpush1.msra.mxu0 0.0
  %1553 = vmatprep.subr.mxu0 0.0
  %1554 = vmatpush1.msra.mxu0 0.0
  %1555 = vmatprep.subr.mxu0 0.0
  %1556 = vmatpush1.msra.mxu0 0.0
  %1557 = vmatprep.subr.mxu0 0.0
  %1558 = vmatpush1.msra.mxu0 0.0
  %1559 = vmatprep.subr.mxu0 0.0
  %1560 = vmatpush1.msra.mxu0 0.0
  %1561 = vmatprep.subr.mxu0 0.0
  %1562 = vmatpush1.msra.mxu0 0.0
  %1563 = vmatprep.subr.mxu0 0.0
  %1564 = vmatpush1.msra.mxu0 0.0
  %1565 = vmatprep.mubr.f32.mxu0 0.0
  %1566 = vmatmul.mubr.f32.gmra.mrb[0].mxu0 %v1499
  %v1567 = vpop.f32.mrb[0].mxu0
  %v1568 = vadd.f32 0.0, %v1567
  %v1569 = vpop.f32.mrb[0].mxu0
  %v1570 = vadd.f32 0.0, %v1569
  %1571 = vdwg.mxu0
  %1572 = vmatprep.subr.mxu0 %v1497
  %1573 = vmatpush1.msra.mxu0 %v1496
  %1574 = vmatprep.subr.mxu0 0.0
  %1575 = vmatpush1.msra.mxu0 0.0
  %1576 = vmatprep.subr.mxu0 0.0
  %1577 = vmatpush1.msra.mxu0 0.0
  %1578 = vmatprep.subr.mxu0 0.0
  %1579 = vmatpush1.msra.mxu0 0.0
  %1580 = vmatprep.subr.mxu0 0.0
  %1581 = vmatpush1.msra.mxu0 0.0
  %1582 = vmatprep.subr.mxu0 0.0
  %1583 = vmatpush1.msra.mxu0 0.0
  %1584 = vmatprep.subr.mxu0 0.0
  %1585 = vmatpush1.msra.mxu0 0.0
  %1586 = vmatprep.subr.mxu0 0.0
  %1587 = vmatpush1.msra.mxu0 0.0
  %1588 = vmatprep.subr.mxu0 0.0
  %1589 = vmatpush1.msra.mxu0 0.0
  %1590 = vmatprep.subr.mxu0 0.0
  %1591 = vmatpush1.msra.mxu0 0.0
  %1592 = vmatprep.subr.mxu0 0.0
  %1593 = vmatpush1.msra.mxu0 0.0
  %1594 = vmatprep.subr.mxu0 0.0
  %1595 = vmatpush1.msra.mxu0 0.0
  %1596 = vmatprep.subr.mxu0 0.0
  %1597 = vmatpush1.msra.mxu0 0.0
  %1598 = vmatprep.subr.mxu0 0.0
  %1599 = vmatpush1.msra.mxu0 0.0
  %1600 = vmatprep.subr.mxu0 0.0
  %1601 = vmatpush1.msra.mxu0 0.0
  %1602 = vmatprep.subr.mxu0 0.0
  %1603 = vmatpush1.msra.mxu0 0.0
  %1604 = vmatprep.subr.mxu0 0.0
  %1605 = vmatpush1.msra.mxu0 0.0
  %1606 = vmatprep.subr.mxu0 0.0
  %1607 = vmatpush1.msra.mxu0 0.0
  %1608 = vmatprep.subr.mxu0 0.0
  %1609 = vmatpush1.msra.mxu0 0.0
  %1610 = vmatprep.subr.mxu0 0.0
  %1611 = vmatpush1.msra.mxu0 0.0
  %1612 = vmatprep.subr.mxu0 0.0
  %1613 = vmatpush1.msra.mxu0 0.0
  %1614 = vmatprep.subr.mxu0 0.0
  %1615 = vmatpush1.msra.mxu0 0.0
  %1616 = vmatprep.subr.mxu0 0.0
  %1617 = vmatpush1.msra.mxu0 0.0
  %1618 = vmatprep.subr.mxu0 0.0
  %1619 = vmatpush1.msra.mxu0 0.0
  %1620 = vmatprep.subr.mxu0 0.0
  %1621 = vmatpush1.msra.mxu0 0.0
  %1622 = vmatprep.subr.mxu0 0.0
  %1623 = vmatpush1.msra.mxu0 0.0
  %1624 = vmatprep.subr.mxu0 0.0
  %1625 = vmatpush1.msra.mxu0 0.0
  %1626 = vmatprep.subr.mxu0 0.0
  %1627 = vmatpush1.msra.mxu0 0.0
  %1628 = vmatprep.subr.mxu0 0.0
  %1629 = vmatpush1.msra.mxu0 0.0
  %1630 = vmatprep.subr.mxu0 0.0
  %1631 = vmatpush1.msra.mxu0 0.0
  %1632 = vmatprep.subr.mxu0 0.0
  %1633 = vmatpush1.msra.mxu0 0.0
  %1634 = vmatprep.subr.mxu0 0.0
  %1635 = vmatpush1.msra.mxu0 0.0
  %1636 = vmatprep.mubr.f32.mxu0 0.0
  %1637 = vmatmul.mubr.f32.gmra.mrb[0].mxu0 %v1499
  %v1638 = vpop.f32.mrb[0].mxu0
  %v1639 = vadd.f32 0.0, %v1638
  %v1640 = vpop.f32.mrb[0].mxu0
  %v1641 = vadd.f32 0.0, %v1640
  %1642 = vdwg.mxu0
  %v1643 = vadd.f32 %v1453, %v1568
  %v1644 = vadd.f32 %v1454, %v1570
  %v1645 = vadd.f32 %v1455, %v1639
  %v1646 = vadd.f32 %v1456, %v1641
  %v1647 = vld [vmem:[%s1 + $0x48] sm:$0xff]
  %1648 = vrot.lane.b32.xlu0 %v169, 111
  %v1649 = vpop.permute.xlu0 %1648
  %1650 = vrot.lane.b32.xlu0 %v170, 111
  %v1651 = vpop.permute.xlu0 %1650
  %1652 = vrot.lane.b32.xlu0 %v171, 111
  %v1653 = vpop.permute.xlu0 %1652
  %1654 = vrot.lane.b32.xlu0 %v172, 111
  %v1655 = vpop.permute.xlu0 %1654
  %vm1656 = vcmp.lt.s32.totalorder %v183, 111
  %v1657 = vsel %vm1656, %v1653, %v1655
  %v1658 = vsel %vm1656, %v1651, %v1653
  %v1659 = vsel %vm1656, %v1649, %v1651
  %v1660 = vsel %vm1656, %v1655, %v1649
  %s1661 = scalar_lea.vmem %s2, 32
  %v1662 = vld [vmem:[%s1661] ss:$8 sm:$0xf]
  %v1664 = vlaneseq
  %v1665 = vshrl.u32 %v1664, 7
  %v1666 = vsub.s32 0, %v1665
  %v1667 = vrot.slane %v1662, %v1666
  %v1668 = vlaneseq
  %v1669 = vshrl.u32 %v1668, 7
  %v1670 = vsub.s32 1, %v1669
  %v1671 = vrot.slane %v1662, %v1670
  %v1672 = vlaneseq
  %v1673 = vshrl.u32 %v1672, 7
  %v1674 = vsub.s32 2, %v1673
  %v1675 = vrot.slane %v1662, %v1674
  %v1676 = vlaneseq
  %v1677 = vshrl.u32 %v1676, 7
  %v1678 = vsub.s32 3, %v1677
  %v1679 = vrot.slane %v1662, %v1678
  %v1684 = vmul.f32 %v1659, %v1667
  %v1685 = vmul.f32 %v1658, %v1671
  %v1686 = vmul.f32 %v1657, %v1675
  %v1687 = vmul.f32 %v1660, %v1679
  %v1689 = vsel %vm256, %v1647, 0
  %1691 = vmatprep.subr.mxu0 %v1685
  %1692 = vmatpush1.msra.mxu0 %v1684
  %1693 = vmatprep.subr.mxu0 0.0
  %1694 = vmatpush1.msra.mxu0 0.0
  %1695 = vmatprep.subr.mxu0 0.0
  %1696 = vmatpush1.msra.mxu0 0.0
  %1697 = vmatprep.subr.mxu0 0.0
  %1698 = vmatpush1.msra.mxu0 0.0
  %1699 = vmatprep.subr.mxu0 0.0
  %1700 = vmatpush1.msra.mxu0 0.0
  %1701 = vmatprep.subr.mxu0 0.0
  %1702 = vmatpush1.msra.mxu0 0.0
  %1703 = vmatprep.subr.mxu0 0.0
  %1704 = vmatpush1.msra.mxu0 0.0
  %1705 = vmatprep.subr.mxu0 0.0
  %1706 = vmatpush1.msra.mxu0 0.0
  %1707 = vmatprep.subr.mxu0 0.0
  %1708 = vmatpush1.msra.mxu0 0.0
  %1709 = vmatprep.subr.mxu0 0.0
  %1710 = vmatpush1.msra.mxu0 0.0
  %1711 = vmatprep.subr.mxu0 0.0
  %1712 = vmatpush1.msra.mxu0 0.0
  %1713 = vmatprep.subr.mxu0 0.0
  %1714 = vmatpush1.msra.mxu0 0.0
  %1715 = vmatprep.subr.mxu0 0.0
  %1716 = vmatpush1.msra.mxu0 0.0
  %1717 = vmatprep.subr.mxu0 0.0
  %1718 = vmatpush1.msra.mxu0 0.0
  %1719 = vmatprep.subr.mxu0 0.0
  %1720 = vmatpush1.msra.mxu0 0.0
  %1721 = vmatprep.subr.mxu0 0.0
  %1722 = vmatpush1.msra.mxu0 0.0
  %1723 = vmatprep.subr.mxu0 0.0
  %1724 = vmatpush1.msra.mxu0 0.0
  %1725 = vmatprep.subr.mxu0 0.0
  %1726 = vmatpush1.msra.mxu0 0.0
  %1727 = vmatprep.subr.mxu0 0.0
  %1728 = vmatpush1.msra.mxu0 0.0
  %1729 = vmatprep.subr.mxu0 0.0
  %1730 = vmatpush1.msra.mxu0 0.0
  %1731 = vmatprep.subr.mxu0 0.0
  %1732 = vmatpush1.msra.mxu0 0.0
  %1733 = vmatprep.subr.mxu0 0.0
  %1734 = vmatpush1.msra.mxu0 0.0
  %1735 = vmatprep.subr.mxu0 0.0
  %1736 = vmatpush1.msra.mxu0 0.0
  %1737 = vmatprep.subr.mxu0 0.0
  %1738 = vmatpush1.msra.mxu0 0.0
  %1739 = vmatprep.subr.mxu0 0.0
  %1740 = vmatpush1.msra.mxu0 0.0
  %1741 = vmatprep.subr.mxu0 0.0
  %1742 = vmatpush1.msra.mxu0 0.0
  %1743 = vmatprep.subr.mxu0 0.0
  %1744 = vmatpush1.msra.mxu0 0.0
  %1745 = vmatprep.subr.mxu0 0.0
  %1746 = vmatpush1.msra.mxu0 0.0
  %1747 = vmatprep.subr.mxu0 0.0
  %1748 = vmatpush1.msra.mxu0 0.0
  %1749 = vmatprep.subr.mxu0 0.0
  %1750 = vmatpush1.msra.mxu0 0.0
  %1751 = vmatprep.subr.mxu0 0.0
  %1752 = vmatpush1.msra.mxu0 0.0
  %1753 = vmatprep.subr.mxu0 0.0
  %1754 = vmatpush1.msra.mxu0 0.0
  %1755 = vmatprep.mubr.f32.mxu0 0.0
  %1756 = vmatmul.mubr.f32.gmra.mrb[0].mxu0 %v1689
  %v1757 = vpop.f32.mrb[0].mxu0
  %v1758 = vadd.f32 0.0, %v1757
  %v1759 = vpop.f32.mrb[0].mxu0
  %v1760 = vadd.f32 0.0, %v1759
  %1761 = vdwg.mxu0
  %1762 = vmatprep.subr.mxu0 %v1687
  %1763 = vmatpush1.msra.mxu0 %v1686
  %1764 = vmatprep.subr.mxu0 0.0
  %1765 = vmatpush1.msra.mxu0 0.0
  %1766 = vmatprep.subr.mxu0 0.0
  %1767 = vmatpush1.msra.mxu0 0.0
  %1768 = vmatprep.subr.mxu0 0.0
  %1769 = vmatpush1.msra.mxu0 0.0
  %1770 = vmatprep.subr.mxu0 0.0
  %1771 = vmatpush1.msra.mxu0 0.0
  %1772 = vmatprep.subr.mxu0 0.0
  %1773 = vmatpush1.msra.mxu0 0.0
  %1774 = vmatprep.subr.mxu0 0.0
  %1775 = vmatpush1.msra.mxu0 0.0
  %1776 = vmatprep.subr.mxu0 0.0
  %1777 = vmatpush1.msra.mxu0 0.0
  %1778 = vmatprep.subr.mxu0 0.0
  %1779 = vmatpush1.msra.mxu0 0.0
  %1780 = vmatprep.subr.mxu0 0.0
  %1781 = vmatpush1.msra.mxu0 0.0
  %1782 = vmatprep.subr.mxu0 0.0
  %1783 = vmatpush1.msra.mxu0 0.0
  %1784 = vmatprep.subr.mxu0 0.0
  %1785 = vmatpush1.msra.mxu0 0.0
  %1786 = vmatprep.subr.mxu0 0.0
  %1787 = vmatpush1.msra.mxu0 0.0
  %1788 = vmatprep.subr.mxu0 0.0
  %1789 = vmatpush1.msra.mxu0 0.0
  %1790 = vmatprep.subr.mxu0 0.0
  %1791 = vmatpush1.msra.mxu0 0.0
  %1792 = vmatprep.subr.mxu0 0.0
  %1793 = vmatpush1.msra.mxu0 0.0
  %1794 = vmatprep.subr.mxu0 0.0
  %1795 = vmatpush1.msra.mxu0 0.0
  %1796 = vmatprep.subr.mxu0 0.0
  %1797 = vmatpush1.msra.mxu0 0.0
  %1798 = vmatprep.subr.mxu0 0.0
  %1799 = vmatpush1.msra.mxu0 0.0
  %1800 = vmatprep.subr.mxu0 0.0
  %1801 = vmatpush1.msra.mxu0 0.0
  %1802 = vmatprep.subr.mxu0 0.0
  %1803 = vmatpush1.msra.mxu0 0.0
  %1804 = vmatprep.subr.mxu0 0.0
  %1805 = vmatpush1.msra.mxu0 0.0
  %1806 = vmatprep.subr.mxu0 0.0
  %1807 = vmatpush1.msra.mxu0 0.0
  %1808 = vmatprep.subr.mxu0 0.0
  %1809 = vmatpush1.msra.mxu0 0.0
  %1810 = vmatprep.subr.mxu0 0.0
  %1811 = vmatpush1.msra.mxu0 0.0
  %1812 = vmatprep.subr.mxu0 0.0
  %1813 = vmatpush1.msra.mxu0 0.0
  %1814 = vmatprep.subr.mxu0 0.0
  %1815 = vmatpush1.msra.mxu0 0.0
  %1816 = vmatprep.subr.mxu0 0.0
  %1817 = vmatpush1.msra.mxu0 0.0
  %1818 = vmatprep.subr.mxu0 0.0
  %1819 = vmatpush1.msra.mxu0 0.0
  %1820 = vmatprep.subr.mxu0 0.0
  %1821 = vmatpush1.msra.mxu0 0.0
  %1822 = vmatprep.subr.mxu0 0.0
  %1823 = vmatpush1.msra.mxu0 0.0
  %1824 = vmatprep.subr.mxu0 0.0
  %1825 = vmatpush1.msra.mxu0 0.0
  %1826 = vmatprep.mubr.f32.mxu0 0.0
  %1827 = vmatmul.mubr.f32.gmra.mrb[0].mxu0 %v1689
  %v1828 = vpop.f32.mrb[0].mxu0
  %v1829 = vadd.f32 0.0, %v1828
  %v1830 = vpop.f32.mrb[0].mxu0
  %v1831 = vadd.f32 0.0, %v1830
  %1832 = vdwg.mxu0
  %v1833 = vadd.f32 %v1643, %v1758
  %v1834 = vadd.f32 %v1644, %v1760
  %v1835 = vadd.f32 %v1645, %v1829
  %v1836 = vadd.f32 %v1646, %v1831
  %v1837 = vmax.f32 %v1833, 0.0
  %v1838 = vmax.f32 %v1834, 0.0
  %v1839 = vmax.f32 %v1835, 0.0
  %v1840 = vmax.f32 %v1836, 0.0
  %v1841 = vld [vmem:[%s1 + $0x50] sm:$0xff]
  %v1842 = vld [vmem:[%s1 + $0x58] sm:$0xff]
  %v1843 = vld [vmem:[%s1 + $0x60] sm:$0xff]
  %v1844 = vld [vmem:[%s1 + $0x68] sm:$0xff]
  %v1846 = vsel %vm256, %v1841, 0
  %v1849 = vsel %vm256, %v1842, 0
  %v1852 = vsel %vm256, %v1843, 0
  %v1855 = vsel %vm256, %v1844, 0
  %1857 = vmatprep.subr.mxu0 %v1838
  %1858 = vmatpush1.msra.mxu0 %v1837
  %1859 = vmatprep.subr.mxu0 0.0
  %1860 = vmatpush1.msra.mxu0 0.0
  %1861 = vmatprep.subr.mxu0 0.0
  %1862 = vmatpush1.msra.mxu0 0.0
  %1863 = vmatprep.subr.mxu0 0.0
  %1864 = vmatpush1.msra.mxu0 0.0
  %1865 = vmatprep.subr.mxu0 0.0
  %1866 = vmatpush1.msra.mxu0 0.0
  %1867 = vmatprep.subr.mxu0 0.0
  %1868 = vmatpush1.msra.mxu0 0.0
  %1869 = vmatprep.subr.mxu0 0.0
  %1870 = vmatpush1.msra.mxu0 0.0
  %1871 = vmatprep.subr.mxu0 0.0
  %1872 = vmatpush1.msra.mxu0 0.0
  %1873 = vmatprep.subr.mxu0 0.0
  %1874 = vmatpush1.msra.mxu0 0.0
  %1875 = vmatprep.subr.mxu0 0.0
  %1876 = vmatpush1.msra.mxu0 0.0
  %1877 = vmatprep.subr.mxu0 0.0
  %1878 = vmatpush1.msra.mxu0 0.0
  %1879 = vmatprep.subr.mxu0 0.0
  %1880 = vmatpush1.msra.mxu0 0.0
  %1881 = vmatprep.subr.mxu0 0.0
  %1882 = vmatpush1.msra.mxu0 0.0
  %1883 = vmatprep.subr.mxu0 0.0
  %1884 = vmatpush1.msra.mxu0 0.0
  %1885 = vmatprep.subr.mxu0 0.0
  %1886 = vmatpush1.msra.mxu0 0.0
  %1887 = vmatprep.subr.mxu0 0.0
  %1888 = vmatpush1.msra.mxu0 0.0
  %1889 = vmatprep.subr.mxu0 0.0
  %1890 = vmatpush1.msra.mxu0 0.0
  %1891 = vmatprep.subr.mxu0 0.0
  %1892 = vmatpush1.msra.mxu0 0.0
  %1893 = vmatprep.subr.mxu0 0.0
  %1894 = vmatpush1.msra.mxu0 0.0
  %1895 = vmatprep.subr.mxu0 0.0
  %1896 = vmatpush1.msra.mxu0 0.0
  %1897 = vmatprep.subr.mxu0 0.0
  %1898 = vmatpush1.msra.mxu0 0.0
  %1899 = vmatprep.subr.mxu0 0.0
  %1900 = vmatpush1.msra.mxu0 0.0
  %1901 = vmatprep.subr.mxu0 0.0
  %1902 = vmatpush1.msra.mxu0 0.0
  %1903 = vmatprep.subr.mxu0 0.0
  %1904 = vmatpush1.msra.mxu0 0.0
  %1905 = vmatprep.subr.mxu0 0.0
  %1906 = vmatpush1.msra.mxu0 0.0
  %1907 = vmatprep.subr.mxu0 0.0
  %1908 = vmatpush1.msra.mxu0 0.0
  %1909 = vmatprep.subr.mxu0 0.0
  %1910 = vmatpush1.msra.mxu0 0.0
  %1911 = vmatprep.subr.mxu0 0.0
  %1912 = vmatpush1.msra.mxu0 0.0
  %1913 = vmatprep.subr.mxu0 0.0
  %1914 = vmatpush1.msra.mxu0 0.0
  %1915 = vmatprep.subr.mxu0 0.0
  %1916 = vmatpush1.msra.mxu0 0.0
  %1917 = vmatprep.subr.mxu0 0.0
  %1918 = vmatpush1.msra.mxu0 0.0
  %1919 = vmatprep.subr.mxu0 0.0
  %1920 = vmatpush1.msra.mxu0 0.0
  %1921 = vmatprep.mubr.f32.mxu0 0.0
  %1922 = vmatmul.mubr.f32.gmra.mrb[0].mxu0 %v1846
  %v1923 = vpop.f32.mrb[0].mxu0
  %v1924 = vadd.f32 0.0, %v1923
  %v1925 = vpop.f32.mrb[0].mxu0
  %v1926 = vadd.f32 0.0, %v1925
  %1927 = vmatprep.mubr.f32.mxu0 0.0
  %1928 = vmatmul.mubr.f32.gmra.mrb[0].mxu0 %v1849
  %v1929 = vpop.f32.mrb[0].mxu0
  %v1930 = vadd.f32 0.0, %v1929
  %v1931 = vpop.f32.mrb[0].mxu0
  %v1932 = vadd.f32 0.0, %v1931
  %1933 = vmatprep.mubr.f32.mxu0 0.0
  %1934 = vmatmul.mubr.f32.gmra.mrb[0].mxu0 %v1852
  %v1935 = vpop.f32.mrb[0].mxu0
  %v1936 = vadd.f32 0.0, %v1935
  %v1937 = vpop.f32.mrb[0].mxu0
  %v1938 = vadd.f32 0.0, %v1937
  %1939 = vmatprep.mubr.f32.mxu0 0.0
  %1940 = vmatmul.mubr.f32.gmra.mrb[0].mxu0 %v1855
  %v1941 = vpop.f32.mrb[0].mxu0
  %v1942 = vadd.f32 0.0, %v1941
  %v1943 = vpop.f32.mrb[0].mxu0
  %v1944 = vadd.f32 0.0, %v1943
  %1945 = vdwg.mxu0
  %1946 = vmatprep.subr.mxu0 %v1840
  %1947 = vmatpush1.msra.mxu0 %v1839
  %1948 = vmatprep.subr.mxu0 0.0
  %1949 = vmatpush1.msra.mxu0 0.0
  %1950 = vmatprep.subr.mxu0 0.0
  %1951 = vmatpush1.msra.mxu0 0.0
  %1952 = vmatprep.subr.mxu0 0.0
  %1953 = vmatpush1.msra.mxu0 0.0
  %1954 = vmatprep.subr.mxu0 0.0
  %1955 = vmatpush1.msra.mxu0 0.0
  %1956 = vmatprep.subr.mxu0 0.0
  %1957 = vmatpush1.msra.mxu0 0.0
  %1958 = vmatprep.subr.mxu0 0.0
  %1959 = vmatpush1.msra.mxu0 0.0
  %1960 = vmatprep.subr.mxu0 0.0
  %1961 = vmatpush1.msra.mxu0 0.0
  %1962 = vmatprep.subr.mxu0 0.0
  %1963 = vmatpush1.msra.mxu0 0.0
  %1964 = vmatprep.subr.mxu0 0.0
  %1965 = vmatpush1.msra.mxu0 0.0
  %1966 = vmatprep.subr.mxu0 0.0
  %1967 = vmatpush1.msra.mxu0 0.0
  %1968 = vmatprep.subr.mxu0 0.0
  %1969 = vmatpush1.msra.mxu0 0.0
  %1970 = vmatprep.subr.mxu0 0.0
  %1971 = vmatpush1.msra.mxu0 0.0
  %1972 = vmatprep.subr.mxu0 0.0
  %1973 = vmatpush1.msra.mxu0 0.0
  %1974 = vmatprep.subr.mxu0 0.0
  %1975 = vmatpush1.msra.mxu0 0.0
  %1976 = vmatprep.subr.mxu0 0.0
  %1977 = vmatpush1.msra.mxu0 0.0
  %1978 = vmatprep.subr.mxu0 0.0
  %1979 = vmatpush1.msra.mxu0 0.0
  %1980 = vmatprep.subr.mxu0 0.0
  %1981 = vmatpush1.msra.mxu0 0.0
  %1982 = vmatprep.subr.mxu0 0.0
  %1983 = vmatpush1.msra.mxu0 0.0
  %1984 = vmatprep.subr.mxu0 0.0
  %1985 = vmatpush1.msra.mxu0 0.0
  %1986 = vmatprep.subr.mxu0 0.0
  %1987 = vmatpush1.msra.mxu0 0.0
  %1988 = vmatprep.subr.mxu0 0.0
  %1989 = vmatpush1.msra.mxu0 0.0
  %1990 = vmatprep.subr.mxu0 0.0
  %1991 = vmatpush1.msra.mxu0 0.0
  %1992 = vmatprep.subr.mxu0 0.0
  %1993 = vmatpush1.msra.mxu0 0.0
  %1994 = vmatprep.subr.mxu0 0.0
  %1995 = vmatpush1.msra.mxu0 0.0
  %1996 = vmatprep.subr.mxu0 0.0
  %1997 = vmatpush1.msra.mxu0 0.0
  %1998 = vmatprep.subr.mxu0 0.0
  %1999 = vmatpush1.msra.mxu0 0.0
  %2000 = vmatprep.subr.mxu0 0.0
  %2001 = vmatpush1.msra.mxu0 0.0
  %2002 = vmatprep.subr.mxu0 0.0
  %2003 = vmatpush1.msra.mxu0 0.0
  %2004 = vmatprep.subr.mxu0 0.0
  %2005 = vmatpush1.msra.mxu0 0.0
  %2006 = vmatprep.subr.mxu0 0.0
  %2007 = vmatpush1.msra.mxu0 0.0
  %2008 = vmatprep.subr.mxu0 0.0
  %2009 = vmatpush1.msra.mxu0 0.0
  %2010 = vmatprep.mubr.f32.mxu0 0.0
  %2011 = vmatmul.mubr.f32.gmra.mrb[0].mxu0 %v1846
  %v2012 = vpop.f32.mrb[0].mxu0
  %v2013 = vadd.f32 0.0, %v2012
  %v2014 = vpop.f32.mrb[0].mxu0
  %v2015 = vadd.f32 0.0, %v2014
  %2016 = vmatprep.mubr.f32.mxu0 0.0
  %2017 = vmatmul.mubr.f32.gmra.mrb[0].mxu0 %v1849
  %v2018 = vpop.f32.mrb[0].mxu0
  %v2019 = vadd.f32 0.0, %v2018
  %v2020 = vpop.f32.mrb[0].mxu0
  %v2021 = vadd.f32 0.0, %v2020
  %2022 = vmatprep.mubr.f32.mxu0 0.0
  %2023 = vmatmul.mubr.f32.gmra.mrb[0].mxu0 %v1852
  %v2024 = vpop.f32.mrb[0].mxu0
  %v2025 = vadd.f32 0.0, %v2024
  %v2026 = vpop.f32.mrb[0].mxu0
  %v2027 = vadd.f32 0.0, %v2026
  %2028 = vmatprep.mubr.f32.mxu0 0.0
  %2029 = vmatmul.mubr.f32.gmra.mrb[0].mxu0 %v1855
  %v2030 = vpop.f32.mrb[0].mxu0
  %v2031 = vadd.f32 0.0, %v2030
  %v2032 = vpop.f32.mrb[0].mxu0
  %v2033 = vadd.f32 0.0, %v2032
  %2034 = vdwg.mxu0
  %v2035 = vld [vmem:[%s1 + $0x70] sm:$0xff]
  %v2036 = vld [vmem:[%s1 + $0x78] sm:$0xff]
  %v2037 = vld [vmem:[%s1 + $0x80] sm:$0xff]
  %v2038 = vld [vmem:[%s1 + $0x88] sm:$0xff]
  %v2039 = vld [vmem:[%s1 + $0x90] sm:$0xff]
  %v2040 = vld [vmem:[%s1 + $0x98] sm:$0xff]
  %v2041 = vld [vmem:[%s1 + $0xa0] sm:$0xff]
  %v2042 = vld [vmem:[%s1 + $0xa8] sm:$0xff]
  %v2043 = vadd.f32 %v1924, %v1926
  %2044 = vadd.xlane.f32.xlu0 %v2043
  %v2045 = vpop.xlane.xlu0 %2044
  %v2046 = vadd.f32 %v1930, %v1932
  %2047 = vadd.xlane.f32.xlu0 %v2046
  %v2048 = vpop.xlane.xlu0 %2047
  %v2049 = vadd.f32 %v1936, %v1938
  %2050 = vadd.xlane.f32.xlu0 %v2049
  %v2051 = vpop.xlane.xlu0 %2050
  %v2052 = vadd.f32 %v1942, %v1944
  %2053 = vadd.xlane.f32.xlu0 %v2052
  %v2054 = vpop.xlane.xlu0 %2053
  %v2055 = vmul.f32 %v2045, 0.00390625
  %v2056 = vmul.f32 %v2048, 0.00390625
  %v2057 = vmul.f32 %v2051, 0.00390625
  %v2058 = vmul.f32 %v2054, 0.00390625
  %v2059 = vmul.f32 %v2035, %v2055
  %v2060 = vmul.f32 %v2036, %v2056
  %v2061 = vmul.f32 %v2037, %v2057
  %v2062 = vmul.f32 %v2038, %v2058
  %vm2063 = vcmask 15360
  %v2064 = vsel %vm2063, %v2059, 0.0
  %v2065 = vsel %vm2063, %v2060, 0.0
  %v2066 = vadd.f32 %v2064, %v2065
  %v2067 = vsel %vm2063, %v2061, 0.0
  %v2068 = vadd.f32 %v2066, %v2067
  %v2069 = vsel %vm2063, %v2062, 0.0
  %v2070 = vadd.f32 %v2068, %v2069
  %v2071 = vrot.slane %v2070, 4
  %v2072 = vadd.f32 %v2070, %v2071
  %v2073 = vrot.slane %v2072, 2
  %v2074 = vadd.f32 %v2072, %v2073
  %v2075 = vrot.slane %v2074, 1
  %v2076 = vadd.f32 %v2074, %v2075
  %v2077 = vmax.f32 %v2076, 0.0
  %v2078 = vmul.f32 %v2039, %v2077
  %v2079 = vmul.f32 %v2040, %v2077
  %v2080 = vmul.f32 %v2041, %v2077
  %v2081 = vmul.f32 %v2042, %v2077
  %v2082 = vsel %vm2063, %v2078, 0.0
  %2083 = vadd.xlane.f32.xlu0 %v2082
  %v2084 = vpop.xlane.xlu0 %2083
  %v2085 = vsel %vm2063, %v2079, 0.0
  %2086 = vadd.xlane.f32.xlu0 %v2085
  %v2087 = vpop.xlane.xlu0 %2086
  %v2088 = vsel %vm2063, %v2080, 0.0
  %2089 = vadd.xlane.f32.xlu0 %v2088
  %v2090 = vpop.xlane.xlu0 %2089
  %v2091 = vsel %vm2063, %v2081, 0.0
  %2092 = vadd.xlane.f32.xlu0 %v2091
  %v2093 = vpop.xlane.xlu0 %2092
  %v2094 = vsub.f32 0.0, %v2084
  %v2095 = vsub.f32 0.0, %v2087
  %v2096 = vsub.f32 0.0, %v2090
  %v2097 = vsub.f32 0.0, %v2093
  %v2098 = vmul.f32 %v2094, 1.442695
  %v2099 = vpow.pop %v2098
  %v2100 = vmul.f32 %v2095, 1.442695
  %v2101 = vpow.pop %v2100
  %v2102 = vmul.f32 %v2096, 1.442695
  %v2103 = vpow.pop %v2102
  %v2104 = vmul.f32 %v2097, 1.442695
  %v2105 = vpow.pop %v2104
  %v2106 = vadd.f32 %v2099, 1.0
  %v2107 = vadd.f32 %v2101, 1.0
  %v2108 = vadd.f32 %v2103, 1.0
  %v2109 = vadd.f32 %v2105, 1.0
  %v2110 = vrcp.pop %v2106
  %v2111 = vrcp.pop %v2107
  %v2112 = vrcp.pop %v2108
  %v2113 = vrcp.pop %v2109
  %s2114 = scalar_lea.vmem %s2, 33
  %v2115 = vld [vmem:[%s2114] ss:$8 sm:$0xf]
  %v2117 = vlaneseq
  %v2118 = vshrl.u32 %v2117, 7
  %v2119 = vsub.s32 0, %v2118
  %v2120 = vrot.slane %v2115, %v2119
  %v2121 = vlaneseq
  %v2122 = vshrl.u32 %v2121, 7
  %v2123 = vsub.s32 1, %v2122
  %v2124 = vrot.slane %v2115, %v2123
  %v2125 = vlaneseq
  %v2126 = vshrl.u32 %v2125, 7
  %v2127 = vsub.s32 2, %v2126
  %v2128 = vrot.slane %v2115, %v2127
  %v2129 = vlaneseq
  %v2130 = vshrl.u32 %v2129, 7
  %v2131 = vsub.s32 3, %v2130
  %v2132 = vrot.slane %v2115, %v2131
  %v2137 = vmul.f32 %v2110, %v2120
  %v2138 = vmul.f32 %v2110, %v2124
  %v2139 = vmul.f32 %v2110, %v2128
  %v2140 = vmul.f32 %v2110, %v2132
  %v2141 = vmul.f32 %v2111, %v2120
  %v2142 = vmul.f32 %v2111, %v2124
  %v2143 = vmul.f32 %v2111, %v2128
  %v2144 = vmul.f32 %v2111, %v2132
  %v2145 = vmul.f32 %v2112, %v2120
  %v2146 = vmul.f32 %v2112, %v2124
  %v2147 = vmul.f32 %v2112, %v2128
  %v2148 = vmul.f32 %v2112, %v2132
  %v2149 = vmul.f32 %v2113, %v2120
  %v2150 = vmul.f32 %v2113, %v2124
  %v2151 = vmul.f32 %v2113, %v2128
  %v2152 = vmul.f32 %v2113, %v2132
  %v2153 = vadd.f32 %v2013, %v2015
  %2154 = vadd.xlane.f32.xlu0 %v2153
  %v2155 = vpop.xlane.xlu0 %2154
  %v2156 = vadd.f32 %v2019, %v2021
  %2157 = vadd.xlane.f32.xlu0 %v2156
  %v2158 = vpop.xlane.xlu0 %2157
  %v2159 = vadd.f32 %v2025, %v2027
  %2160 = vadd.xlane.f32.xlu0 %v2159
  %v2161 = vpop.xlane.xlu0 %2160
  %v2162 = vadd.f32 %v2031, %v2033
  %2163 = vadd.xlane.f32.xlu0 %v2162
  %v2164 = vpop.xlane.xlu0 %2163
  %v2165 = vmul.f32 %v2155, 0.00390625
  %v2166 = vmul.f32 %v2158, 0.00390625
  %v2167 = vmul.f32 %v2161, 0.00390625
  %v2168 = vmul.f32 %v2164, 0.00390625
  %v2169 = vmul.f32 %v2035, %v2165
  %v2170 = vmul.f32 %v2036, %v2166
  %v2171 = vmul.f32 %v2037, %v2167
  %v2172 = vmul.f32 %v2038, %v2168
  %v2173 = vsel %vm2063, %v2169, 0.0
  %v2174 = vsel %vm2063, %v2170, 0.0
  %v2175 = vadd.f32 %v2173, %v2174
  %v2176 = vsel %vm2063, %v2171, 0.0
  %v2177 = vadd.f32 %v2175, %v2176
  %v2178 = vsel %vm2063, %v2172, 0.0
  %v2179 = vadd.f32 %v2177, %v2178
  %v2180 = vrot.slane %v2179, 4
  %v2181 = vadd.f32 %v2179, %v2180
  %v2182 = vrot.slane %v2181, 2
  %v2183 = vadd.f32 %v2181, %v2182
  %v2184 = vrot.slane %v2183, 1
  %v2185 = vadd.f32 %v2183, %v2184
  %v2186 = vmax.f32 %v2185, 0.0
  %v2187 = vmul.f32 %v2039, %v2186
  %v2188 = vmul.f32 %v2040, %v2186
  %v2189 = vmul.f32 %v2041, %v2186
  %v2190 = vmul.f32 %v2042, %v2186
  %v2191 = vsel %vm2063, %v2187, 0.0
  %2192 = vadd.xlane.f32.xlu0 %v2191
  %v2193 = vpop.xlane.xlu0 %2192
  %v2194 = vsel %vm2063, %v2188, 0.0
  %2195 = vadd.xlane.f32.xlu0 %v2194
  %v2196 = vpop.xlane.xlu0 %2195
  %v2197 = vsel %vm2063, %v2189, 0.0
  %2198 = vadd.xlane.f32.xlu0 %v2197
  %v2199 = vpop.xlane.xlu0 %2198
  %v2200 = vsel %vm2063, %v2190, 0.0
  %2201 = vadd.xlane.f32.xlu0 %v2200
  %v2202 = vpop.xlane.xlu0 %2201
  %v2203 = vsub.f32 0.0, %v2193
  %v2204 = vsub.f32 0.0, %v2196
  %v2205 = vsub.f32 0.0, %v2199
  %v2206 = vsub.f32 0.0, %v2202
  %v2207 = vmul.f32 %v2203, 1.442695
  %v2208 = vpow.pop %v2207
  %v2209 = vmul.f32 %v2204, 1.442695
  %v2210 = vpow.pop %v2209
  %v2211 = vmul.f32 %v2205, 1.442695
  %v2212 = vpow.pop %v2211
  %v2213 = vmul.f32 %v2206, 1.442695
  %v2214 = vpow.pop %v2213
  %v2215 = vadd.f32 %v2208, 1.0
  %v2216 = vadd.f32 %v2210, 1.0
  %v2217 = vadd.f32 %v2212, 1.0
  %v2218 = vadd.f32 %v2214, 1.0
  %v2219 = vrcp.pop %v2215
  %v2220 = vrcp.pop %v2216
  %v2221 = vrcp.pop %v2217
  %v2222 = vrcp.pop %v2218
  %s2223 = scalar_lea.vmem %s2, 34
  %v2224 = vld [vmem:[%s2223] ss:$8 sm:$0xf]
  %v2226 = vlaneseq
  %v2227 = vshrl.u32 %v2226, 7
  %v2228 = vsub.s32 0, %v2227
  %v2229 = vrot.slane %v2224, %v2228
  %v2230 = vlaneseq
  %v2231 = vshrl.u32 %v2230, 7
  %v2232 = vsub.s32 1, %v2231
  %v2233 = vrot.slane %v2224, %v2232
  %v2234 = vlaneseq
  %v2235 = vshrl.u32 %v2234, 7
  %v2236 = vsub.s32 2, %v2235
  %v2237 = vrot.slane %v2224, %v2236
  %v2238 = vlaneseq
  %v2239 = vshrl.u32 %v2238, 7
  %v2240 = vsub.s32 3, %v2239
  %v2241 = vrot.slane %v2224, %v2240
  %v2246 = vmul.f32 %v2219, %v2229
  %v2247 = vmul.f32 %v2219, %v2233
  %v2248 = vmul.f32 %v2219, %v2237
  %v2249 = vmul.f32 %v2219, %v2241
  %v2250 = vmul.f32 %v2220, %v2229
  %v2251 = vmul.f32 %v2220, %v2233
  %v2252 = vmul.f32 %v2220, %v2237
  %v2253 = vmul.f32 %v2220, %v2241
  %v2254 = vmul.f32 %v2221, %v2229
  %v2255 = vmul.f32 %v2221, %v2233
  %v2256 = vmul.f32 %v2221, %v2237
  %v2257 = vmul.f32 %v2221, %v2241
  %v2258 = vmul.f32 %v2222, %v2229
  %v2259 = vmul.f32 %v2222, %v2233
  %v2260 = vmul.f32 %v2222, %v2237
  %v2261 = vmul.f32 %v2222, %v2241
  %v2262 = vadd.f32 %v2137, %v2246
  %v2263 = vadd.f32 %v2138, %v2247
  %v2264 = vadd.f32 %v2139, %v2248
  %v2265 = vadd.f32 %v2140, %v2249
  %v2266 = vadd.f32 %v2141, %v2250
  %v2267 = vadd.f32 %v2142, %v2251
  %v2268 = vadd.f32 %v2143, %v2252
  %v2269 = vadd.f32 %v2144, %v2253
  %v2270 = vadd.f32 %v2145, %v2254
  %v2271 = vadd.f32 %v2146, %v2255
  %v2272 = vadd.f32 %v2147, %v2256
  %v2273 = vadd.f32 %v2148, %v2257
  %v2274 = vadd.f32 %v2149, %v2258
  %v2275 = vadd.f32 %v2150, %v2259
  %v2276 = vadd.f32 %v2151, %v2260
  %v2277 = vadd.f32 %v2152, %v2261
  %v2278 = vmul.f32 %v1924, %v2262
  %v2279 = vmul.f32 %v1926, %v2263
  %v2280 = vmul.f32 %v2013, %v2264
  %v2281 = vmul.f32 %v2015, %v2265
  %v2282 = vmul.f32 %v1930, %v2266
  %v2283 = vmul.f32 %v1932, %v2267
  %v2284 = vmul.f32 %v2019, %v2268
  %v2285 = vmul.f32 %v2021, %v2269
  %v2286 = vmul.f32 %v1936, %v2270
  %v2287 = vmul.f32 %v1938, %v2271
  %v2288 = vmul.f32 %v2025, %v2272
  %v2289 = vmul.f32 %v2027, %v2273
  %v2290 = vmul.f32 %v1942, %v2274
  %v2291 = vmul.f32 %v1944, %v2275
  %v2292 = vmul.f32 %v2031, %v2276
  %v2293 = vmul.f32 %v2033, %v2277
  %v2294 = vtanh.pop %v2286
  %v2295 = vtanh.pop %v2287
  %v2296 = vtanh.pop %v2288
  %v2297 = vtanh.pop %v2289
  %v2298 = vtanh.pop %v2290
  %v2299 = vtanh.pop %v2291
  %v2300 = vtanh.pop %v2292
  %v2301 = vtanh.pop %v2293
  %v2302 = vmul.f32 %v2278, 0.25
  %v2303 = vmul.f32 %v2279, 0.25
  %v2304 = vmul.f32 %v2280, 0.25
  %v2305 = vmul.f32 %v2281, 0.25
  %v2306 = vmul.f32 %v2282, 0.25
  %v2307 = vmul.f32 %v2283, 0.25
  %v2308 = vmul.f32 %v2284, 0.25
  %v2309 = vmul.f32 %v2285, 0.25
  %v2310 = vand.u32 2147483647, %v2286
  %vm2311 = vcmp.le.f32.partialorder %v2310, 0.7853982
  %vm2312 = vcmp.lt.s32.totalorder %v2286, 0
  %v2313 = vand.u32 %v2286, 2139095040
  %v2314 = vshrl.u32 %v2313, 23
  %v2315 = vsub.s32 %v2314, 127
  %v2316 = vand.u32 2147483647, %v2286
  %v2317 = vand.u32 %v2316, 8388607
  %v2318 = vor.u32 %v2317, 8388608
  %v2319 = vsub.s32 0, %v2318
  %v2320 = vadd.s32 %v2315, 1
  %vm2321 = vcmp.gt.s32.totalorder %v2320, 0
  %v2322 = vsel %vm2321, %v2320, 0
  %v2323 = vshrl.u32 %v2322, 5
  %v2324 = vand.u32 %v2322, 31
  %v2325 = vsub.s32 32, %v2324
  %v2326 = vshrl.u32 683565275, %v2325
  %v2327 = vshll.u32 683565275, %v2324
  %v2328 = vshrl.u32 2475754826, %v2325
  %v2329 = vor.u32 %v2327, %v2328
  %v2330 = vshll.u32 2475754826, %v2324
  %v2331 = vshrl.u32 2131351028, %v2325
  %v2332 = vor.u32 %v2330, %v2331
  %v2333 = vshll.u32 2131351028, %v2324
  %v2334 = vshrl.u32 2102212464, %v2325
  %v2335 = vor.u32 %v2333, %v2334
  %v2336 = vshll.u32 2102212464, %v2324
  %v2337 = vshrl.u32 920167782, %v2325
  %v2338 = vor.u32 %v2336, %v2337
  %v2339 = vshll.u32 920167782, %v2324
  %v2340 = vshrl.u32 1326507024, %v2325
  %v2341 = vor.u32 %v2339, %v2340
  %vm2342 = vcmp.lt.s32.totalorder %v2323, 1
  %vm2343 = vcmp.lt.s32.totalorder %v2323, 2
  %vm2344 = vcmp.lt.s32.totalorder %v2323, 3
  %vm2345 = vcmp.lt.s32.totalorder %v2323, 4
  %v2346 = vsel %vm2342, %v2326, %v2329
  %v2347 = vsel %vm2345, %v2335, 2102212464
  %v2348 = vsel %vm2344, %v2332, %v2347
  %v2349 = vsel %vm2343, %v2346, %v2348
  %v2350 = vsel %vm2342, %v2329, %v2332
  %v2351 = vsel %vm2345, %v2338, 920167782
  %v2352 = vsel %vm2344, %v2335, %v2351
  %v2353 = vsel %vm2343, %v2350, %v2352
  %v2354 = vsel %vm2342, %v2332, %v2335
  %v2355 = vsel %vm2345, %v2341, 1326507024
  %v2356 = vsel %vm2344, %v2338, %v2355
  %v2357 = vsel %vm2343, %v2354, %v2356
  %v2358 = vshll.u32 %v2318, 8
  %v2359 = vmul.u32.u64.compose %v2358, %v2357
  %v2360 = vextract.low.u32 %v2359
  %v2361 = vextract.high.u32 %v2359
  %v2362 = vmul.u32.u64.compose %v2358, %v2353
  %v2363 = vextract.low.u32 %v2362
  %v2364 = vextract.high.u32 %v2362
  %v2365 = vmul.u32 %v2358, %v2349
  %v2366 = vadd.s32 %v2361, %v2363
  %vm2367 = vc.u32 %v2361, %v2363
  %v2368 = vadd.s32 %v2364, 1
  %v2369 = vsel %vm2367, %v2368, %v2364
  %v2370 = vadd.s32 %v2365, %v2369
  %v2371 = vadd.s32 %v2370, 536870912
  %v2372 = vshrl.u32 %v2371, 30
  %v2373 = vshll.u32 %v2372, 30
  %v2374 = vsub.s32 %v2370, %v2373
  %vm2375 = vcmp.lt.s32.totalorder %v2374, 0
  %v2376 = vsub.s32 0, %v2374
  %v2377 = vsel %vm2375, %v2376, %v2374
  %v2378 = vclz %v2377
  %v2379 = vsub.s32 %v2378, 2
  %vm2380 = vcmp.gt.s32.totalorder 0, %v2379
  %v2381 = vsel %vm2380, 0, %v2379
  %v2382 = vsub.s32 32, %v2381
  %v2383 = vshll.u32 %v2374, %v2381
  %v2384 = vshrl.u32 %v2366, %v2382
  %v2385 = vor.u32 %v2383, %v2384
  %v2386 = vsub.s32 4294967266, %v2381
  %v2387 = vadd.s32 %v2386, 127
  %v2388 = vshll.u32 %v2387, 23
  %v2389 = vor.u32 4788187, %v2388
  %v2390 = vand.u32 2147483647, %v2389
  %v2392 = vcvt.s32.f32 %v2385
  %v2393 = vmul.f32 %v2392, %v2390
  %v2394 = vxor.u32 %v2393, 2147483648
  %v2395 = vsel %vm2312, %v2394, %v2393
  %v2396 = vsub.s32 4, %v2372
  %v2397 = vsel %vm2312, %v2396, %v2372
  %v2398 = vsel %vm2311, %v2286, %v2395
  %v2399 = vsel %vm2311, 0, %v2397
  %v2400 = vcosq.f32.pop %v2398
  %v2401 = vsinq.f32.pop %v2398
  %vm2402 = vweird.f32 %v2286
  %v2403 = vadd.s32 %v2399, 3
  %v2404 = vand.u32 %v2403, 3
  %vm2405 = vcmp.lt.s32.totalorder %v2404, 2
  %vm2406 = vcmp.eq.s32.totalorder %v2404, 0
  %v2407 = vxor.u32 %v2401, 2147483648
  %v2408 = vsel %vm2406, %v2400, %v2407
  %vm2409 = vcmp.eq.s32.totalorder %v2404, 2
  %v2410 = vxor.u32 %v2400, 2147483648
  %v2411 = vsel %vm2409, %v2410, %v2401
  %v2412 = vsel %vm2405, %v2408, %v2411
  %v2413 = vsel %vm2402, nan, %v2412
  %v2414 = vand.u32 2147483647, %v2287
  %vm2415 = vcmp.le.f32.partialorder %v2414, 0.7853982
  %vm2416 = vcmp.lt.s32.totalorder %v2287, 0
  %v2417 = vand.u32 %v2287, 2139095040
  %v2418 = vshrl.u32 %v2417, 23
  %v2419 = vsub.s32 %v2418, 127
  %v2420 = vand.u32 2147483647, %v2287
  %v2421 = vand.u32 %v2420, 8388607
  %v2422 = vor.u32 %v2421, 8388608
  %v2423 = vsub.s32 0, %v2422
  %v2424 = vadd.s32 %v2419, 1
  %vm2425 = vcmp.gt.s32.totalorder %v2424, 0
  %v2426 = vsel %vm2425, %v2424, 0
  %v2427 = vshrl.u32 %v2426, 5
  %v2428 = vand.u32 %v2426, 31
  %v2429 = vsub.s32 32, %v2428
  %v2430 = vshrl.u32 683565275, %v2429
  %v2431 = vshll.u32 683565275, %v2428
  %v2432 = vshrl.u32 2475754826, %v2429
  %v2433 = vor.u32 %v2431, %v2432
  %v2434 = vshll.u32 2475754826, %v2428
  %v2435 = vshrl.u32 2131351028, %v2429
  %v2436 = vor.u32 %v2434, %v2435
  %v2437 = vshll.u32 2131351028, %v2428
  %v2438 = vshrl.u32 2102212464, %v2429
  %v2439 = vor.u32 %v2437, %v2438
  %v2440 = vshll.u32 2102212464, %v2428
  %v2441 = vshrl.u32 920167782, %v2429
  %v2442 = vor.u32 %v2440, %v2441
  %v2443 = vshll.u32 920167782, %v2428
  %v2444 = vshrl.u32 1326507024, %v2429
  %v2445 = vor.u32 %v2443, %v2444
  %vm2446 = vcmp.lt.s32.totalorder %v2427, 1
  %vm2447 = vcmp.lt.s32.totalorder %v2427, 2
  %vm2448 = vcmp.lt.s32.totalorder %v2427, 3
  %vm2449 = vcmp.lt.s32.totalorder %v2427, 4
  %v2450 = vsel %vm2446, %v2430, %v2433
  %v2451 = vsel %vm2449, %v2439, 2102212464
  %v2452 = vsel %vm2448, %v2436, %v2451
  %v2453 = vsel %vm2447, %v2450, %v2452
  %v2454 = vsel %vm2446, %v2433, %v2436
  %v2455 = vsel %vm2449, %v2442, 920167782
  %v2456 = vsel %vm2448, %v2439, %v2455
  %v2457 = vsel %vm2447, %v2454, %v2456
  %v2458 = vsel %vm2446, %v2436, %v2439
  %v2459 = vsel %vm2449, %v2445, 1326507024
  %v2460 = vsel %vm2448, %v2442, %v2459
  %v2461 = vsel %vm2447, %v2458, %v2460
  %v2462 = vshll.u32 %v2422, 8
  %v2463 = vmul.u32.u64.compose %v2462, %v2461
  %v2464 = vextract.low.u32 %v2463
  %v2465 = vextract.high.u32 %v2463
  %v2466 = vmul.u32.u64.compose %v2462, %v2457
  %v2467 = vextract.low.u32 %v2466
  %v2468 = vextract.high.u32 %v2466
  %v2469 = vmul.u32 %v2462, %v2453
  %v2470 = vadd.s32 %v2465, %v2467
  %vm2471 = vc.u32 %v2465, %v2467
  %v2472 = vadd.s32 %v2468, 1
  %v2473 = vsel %vm2471, %v2472, %v2468
  %v2474 = vadd.s32 %v2469, %v2473
  %v2475 = vadd.s32 %v2474, 536870912
  %v2476 = vshrl.u32 %v2475, 30
  %v2477 = vshll.u32 %v2476, 30
  %v2478 = vsub.s32 %v2474, %v2477
  %vm2479 = vcmp.lt.s32.totalorder %v2478, 0
  %v2480 = vsub.s32 0, %v2478
  %v2481 = vsel %vm2479, %v2480, %v2478
  %v2482 = vclz %v2481
  %v2483 = vsub.s32 %v2482, 2
  %vm2484 = vcmp.gt.s32.totalorder 0, %v2483
  %v2485 = vsel %vm2484, 0, %v2483
  %v2486 = vsub.s32 32, %v2485
  %v2487 = vshll.u32 %v2478, %v2485
  %v2488 = vshrl.u32 %v2470, %v2486
  %v2489 = vor.u32 %v2487, %v2488
  %v2490 = vsub.s32 4294967266, %v2485
  %v2491 = vadd.s32 %v2490, 127
  %v2492 = vshll.u32 %v2491, 23
  %v2493 = vor.u32 4788187, %v2492
  %v2494 = vand.u32 2147483647, %v2493
  %v2496 = vcvt.s32.f32 %v2489
  %v2497 = vmul.f32 %v2496, %v2494
  %v2498 = vxor.u32 %v2497, 2147483648
  %v2499 = vsel %vm2416, %v2498, %v2497
  %v2500 = vsub.s32 4, %v2476
  %v2501 = vsel %vm2416, %v2500, %v2476
  %v2502 = vsel %vm2415, %v2287, %v2499
  %v2503 = vsel %vm2415, 0, %v2501
  %v2504 = vcosq.f32.pop %v2502
  %v2505 = vsinq.f32.pop %v2502
  %vm2506 = vweird.f32 %v2287
  %v2507 = vadd.s32 %v2503, 3
  %v2508 = vand.u32 %v2507, 3
  %vm2509 = vcmp.lt.s32.totalorder %v2508, 2
  %vm2510 = vcmp.eq.s32.totalorder %v2508, 0
  %v2511 = vxor.u32 %v2505, 2147483648
  %v2512 = vsel %vm2510, %v2504, %v2511
  %vm2513 = vcmp.eq.s32.totalorder %v2508, 2
  %v2514 = vxor.u32 %v2504, 2147483648
  %v2515 = vsel %vm2513, %v2514, %v2505
  %v2516 = vsel %vm2509, %v2512, %v2515
  %v2517 = vsel %vm2506, nan, %v2516
  %v2518 = vand.u32 2147483647, %v2288
  %vm2519 = vcmp.le.f32.partialorder %v2518, 0.7853982
  %vm2520 = vcmp.lt.s32.totalorder %v2288, 0
  %v2521 = vand.u32 %v2288, 2139095040
  %v2522 = vshrl.u32 %v2521, 23
  %v2523 = vsub.s32 %v2522, 127
  %v2524 = vand.u32 2147483647, %v2288
  %v2525 = vand.u32 %v2524, 8388607
  %v2526 = vor.u32 %v2525, 8388608
  %v2527 = vsub.s32 0, %v2526
  %v2528 = vadd.s32 %v2523, 1
  %vm2529 = vcmp.gt.s32.totalorder %v2528, 0
  %v2530 = vsel %vm2529, %v2528, 0
  %v2531 = vshrl.u32 %v2530, 5
  %v2532 = vand.u32 %v2530, 31
  %v2533 = vsub.s32 32, %v2532
  %v2534 = vshrl.u32 683565275, %v2533
  %v2535 = vshll.u32 683565275, %v2532
  %v2536 = vshrl.u32 2475754826, %v2533
  %v2537 = vor.u32 %v2535, %v2536
  %v2538 = vshll.u32 2475754826, %v2532
  %v2539 = vshrl.u32 2131351028, %v2533
  %v2540 = vor.u32 %v2538, %v2539
  %v2541 = vshll.u32 2131351028, %v2532
  %v2542 = vshrl.u32 2102212464, %v2533
  %v2543 = vor.u32 %v2541, %v2542
  %v2544 = vshll.u32 2102212464, %v2532
  %v2545 = vshrl.u32 920167782, %v2533
  %v2546 = vor.u32 %v2544, %v2545
  %v2547 = vshll.u32 920167782, %v2532
  %v2548 = vshrl.u32 1326507024, %v2533
  %v2549 = vor.u32 %v2547, %v2548
  %vm2550 = vcmp.lt.s32.totalorder %v2531, 1
  %vm2551 = vcmp.lt.s32.totalorder %v2531, 2
  %vm2552 = vcmp.lt.s32.totalorder %v2531, 3
  %vm2553 = vcmp.lt.s32.totalorder %v2531, 4
  %v2554 = vsel %vm2550, %v2534, %v2537
  %v2555 = vsel %vm2553, %v2543, 2102212464
  %v2556 = vsel %vm2552, %v2540, %v2555
  %v2557 = vsel %vm2551, %v2554, %v2556
  %v2558 = vsel %vm2550, %v2537, %v2540
  %v2559 = vsel %vm2553, %v2546, 920167782
  %v2560 = vsel %vm2552, %v2543, %v2559
  %v2561 = vsel %vm2551, %v2558, %v2560
  %v2562 = vsel %vm2550, %v2540, %v2543
  %v2563 = vsel %vm2553, %v2549, 1326507024
  %v2564 = vsel %vm2552, %v2546, %v2563
  %v2565 = vsel %vm2551, %v2562, %v2564
  %v2566 = vshll.u32 %v2526, 8
  %v2567 = vmul.u32.u64.compose %v2566, %v2565
  %v2568 = vextract.low.u32 %v2567
  %v2569 = vextract.high.u32 %v2567
  %v2570 = vmul.u32.u64.compose %v2566, %v2561
  %v2571 = vextract.low.u32 %v2570
  %v2572 = vextract.high.u32 %v2570
  %v2573 = vmul.u32 %v2566, %v2557
  %v2574 = vadd.s32 %v2569, %v2571
  %vm2575 = vc.u32 %v2569, %v2571
  %v2576 = vadd.s32 %v2572, 1
  %v2577 = vsel %vm2575, %v2576, %v2572
  %v2578 = vadd.s32 %v2573, %v2577
  %v2579 = vadd.s32 %v2578, 536870912
  %v2580 = vshrl.u32 %v2579, 30
  %v2581 = vshll.u32 %v2580, 30
  %v2582 = vsub.s32 %v2578, %v2581
  %vm2583 = vcmp.lt.s32.totalorder %v2582, 0
  %v2584 = vsub.s32 0, %v2582
  %v2585 = vsel %vm2583, %v2584, %v2582
  %v2586 = vclz %v2585
  %v2587 = vsub.s32 %v2586, 2
  %vm2588 = vcmp.gt.s32.totalorder 0, %v2587
  %v2589 = vsel %vm2588, 0, %v2587
  %v2590 = vsub.s32 32, %v2589
  %v2591 = vshll.u32 %v2582, %v2589
  %v2592 = vshrl.u32 %v2574, %v2590
  %v2593 = vor.u32 %v2591, %v2592
  %v2594 = vsub.s32 4294967266, %v2589
  %v2595 = vadd.s32 %v2594, 127
  %v2596 = vshll.u32 %v2595, 23
  %v2597 = vor.u32 4788187, %v2596
  %v2598 = vand.u32 2147483647, %v2597
  %v2600 = vcvt.s32.f32 %v2593
  %v2601 = vmul.f32 %v2600, %v2598
  %v2602 = vxor.u32 %v2601, 2147483648
  %v2603 = vsel %vm2520, %v2602, %v2601
  %v2604 = vsub.s32 4, %v2580
  %v2605 = vsel %vm2520, %v2604, %v2580
  %v2606 = vsel %vm2519, %v2288, %v2603
  %v2607 = vsel %vm2519, 0, %v2605
  %v2608 = vcosq.f32.pop %v2606
  %v2609 = vsinq.f32.pop %v2606
  %vm2610 = vweird.f32 %v2288
  %v2611 = vadd.s32 %v2607, 3
  %v2612 = vand.u32 %v2611, 3
  %vm2613 = vcmp.lt.s32.totalorder %v2612, 2
  %vm2614 = vcmp.eq.s32.totalorder %v2612, 0
  %v2615 = vxor.u32 %v2609, 2147483648
  %v2616 = vsel %vm2614, %v2608, %v2615
  %vm2617 = vcmp.eq.s32.totalorder %v2612, 2
  %v2618 = vxor.u32 %v2608, 2147483648
  %v2619 = vsel %vm2617, %v2618, %v2609
  %v2620 = vsel %vm2613, %v2616, %v2619
  %v2621 = vsel %vm2610, nan, %v2620
  %v2622 = vand.u32 2147483647, %v2289
  %vm2623 = vcmp.le.f32.partialorder %v2622, 0.7853982
  %vm2624 = vcmp.lt.s32.totalorder %v2289, 0
  %v2625 = vand.u32 %v2289, 2139095040
  %v2626 = vshrl.u32 %v2625, 23
  %v2627 = vsub.s32 %v2626, 127
  %v2628 = vand.u32 2147483647, %v2289
  %v2629 = vand.u32 %v2628, 8388607
  %v2630 = vor.u32 %v2629, 8388608
  %v2631 = vsub.s32 0, %v2630
  %v2632 = vadd.s32 %v2627, 1
  %vm2633 = vcmp.gt.s32.totalorder %v2632, 0
  %v2634 = vsel %vm2633, %v2632, 0
  %v2635 = vshrl.u32 %v2634, 5
  %v2636 = vand.u32 %v2634, 31
  %v2637 = vsub.s32 32, %v2636
  %v2638 = vshrl.u32 683565275, %v2637
  %v2639 = vshll.u32 683565275, %v2636
  %v2640 = vshrl.u32 2475754826, %v2637
  %v2641 = vor.u32 %v2639, %v2640
  %v2642 = vshll.u32 2475754826, %v2636
  %v2643 = vshrl.u32 2131351028, %v2637
  %v2644 = vor.u32 %v2642, %v2643
  %v2645 = vshll.u32 2131351028, %v2636
  %v2646 = vshrl.u32 2102212464, %v2637
  %v2647 = vor.u32 %v2645, %v2646
  %v2648 = vshll.u32 2102212464, %v2636
  %v2649 = vshrl.u32 920167782, %v2637
  %v2650 = vor.u32 %v2648, %v2649
  %v2651 = vshll.u32 920167782, %v2636
  %v2652 = vshrl.u32 1326507024, %v2637
  %v2653 = vor.u32 %v2651, %v2652
  %vm2654 = vcmp.lt.s32.totalorder %v2635, 1
  %vm2655 = vcmp.lt.s32.totalorder %v2635, 2
  %vm2656 = vcmp.lt.s32.totalorder %v2635, 3
  %vm2657 = vcmp.lt.s32.totalorder %v2635, 4
  %v2658 = vsel %vm2654, %v2638, %v2641
  %v2659 = vsel %vm2657, %v2647, 2102212464
  %v2660 = vsel %vm2656, %v2644, %v2659
  %v2661 = vsel %vm2655, %v2658, %v2660
  %v2662 = vsel %vm2654, %v2641, %v2644
  %v2663 = vsel %vm2657, %v2650, 920167782
  %v2664 = vsel %vm2656, %v2647, %v2663
  %v2665 = vsel %vm2655, %v2662, %v2664
  %v2666 = vsel %vm2654, %v2644, %v2647
  %v2667 = vsel %vm2657, %v2653, 1326507024
  %v2668 = vsel %vm2656, %v2650, %v2667
  %v2669 = vsel %vm2655, %v2666, %v2668
  %v2670 = vshll.u32 %v2630, 8
  %v2671 = vmul.u32.u64.compose %v2670, %v2669
  %v2672 = vextract.low.u32 %v2671
  %v2673 = vextract.high.u32 %v2671
  %v2674 = vmul.u32.u64.compose %v2670, %v2665
  %v2675 = vextract.low.u32 %v2674
  %v2676 = vextract.high.u32 %v2674
  %v2677 = vmul.u32 %v2670, %v2661
  %v2678 = vadd.s32 %v2673, %v2675
  %vm2679 = vc.u32 %v2673, %v2675
  %v2680 = vadd.s32 %v2676, 1
  %v2681 = vsel %vm2679, %v2680, %v2676
  %v2682 = vadd.s32 %v2677, %v2681
  %v2683 = vadd.s32 %v2682, 536870912
  %v2684 = vshrl.u32 %v2683, 30
  %v2685 = vshll.u32 %v2684, 30
  %v2686 = vsub.s32 %v2682, %v2685
  %vm2687 = vcmp.lt.s32.totalorder %v2686, 0
  %v2688 = vsub.s32 0, %v2686
  %v2689 = vsel %vm2687, %v2688, %v2686
  %v2690 = vclz %v2689
  %v2691 = vsub.s32 %v2690, 2
  %vm2692 = vcmp.gt.s32.totalorder 0, %v2691
  %v2693 = vsel %vm2692, 0, %v2691
  %v2694 = vsub.s32 32, %v2693
  %v2695 = vshll.u32 %v2686, %v2693
  %v2696 = vshrl.u32 %v2678, %v2694
  %v2697 = vor.u32 %v2695, %v2696
  %v2698 = vsub.s32 4294967266, %v2693
  %v2699 = vadd.s32 %v2698, 127
  %v2700 = vshll.u32 %v2699, 23
  %v2701 = vor.u32 4788187, %v2700
  %v2702 = vand.u32 2147483647, %v2701
  %v2704 = vcvt.s32.f32 %v2697
  %v2705 = vmul.f32 %v2704, %v2702
  %v2706 = vxor.u32 %v2705, 2147483648
  %v2707 = vsel %vm2624, %v2706, %v2705
  %v2708 = vsub.s32 4, %v2684
  %v2709 = vsel %vm2624, %v2708, %v2684
  %v2710 = vsel %vm2623, %v2289, %v2707
  %v2711 = vsel %vm2623, 0, %v2709
  %v2712 = vcosq.f32.pop %v2710
  %v2713 = vsinq.f32.pop %v2710
  %vm2714 = vweird.f32 %v2289
  %v2715 = vadd.s32 %v2711, 3
  %v2716 = vand.u32 %v2715, 3
  %vm2717 = vcmp.lt.s32.totalorder %v2716, 2
  %vm2718 = vcmp.eq.s32.totalorder %v2716, 0
  %v2719 = vxor.u32 %v2713, 2147483648
  %v2720 = vsel %vm2718, %v2712, %v2719
  %vm2721 = vcmp.eq.s32.totalorder %v2716, 2
  %v2722 = vxor.u32 %v2712, 2147483648
  %v2723 = vsel %vm2721, %v2722, %v2713
  %v2724 = vsel %vm2717, %v2720, %v2723
  %v2725 = vsel %vm2714, nan, %v2724
  %v2726 = vand.u32 2147483647, %v2290
  %vm2727 = vcmp.le.f32.partialorder %v2726, 0.7853982
  %vm2728 = vcmp.lt.s32.totalorder %v2290, 0
  %v2729 = vand.u32 %v2290, 2139095040
  %v2730 = vshrl.u32 %v2729, 23
  %v2731 = vsub.s32 %v2730, 127
  %v2732 = vand.u32 2147483647, %v2290
  %v2733 = vand.u32 %v2732, 8388607
  %v2734 = vor.u32 %v2733, 8388608
  %v2735 = vsub.s32 0, %v2734
  %v2736 = vadd.s32 %v2731, 1
  %vm2737 = vcmp.gt.s32.totalorder %v2736, 0
  %v2738 = vsel %vm2737, %v2736, 0
  %v2739 = vshrl.u32 %v2738, 5
  %v2740 = vand.u32 %v2738, 31
  %v2741 = vsub.s32 32, %v2740
  %v2742 = vshrl.u32 683565275, %v2741
  %v2743 = vshll.u32 683565275, %v2740
  %v2744 = vshrl.u32 2475754826, %v2741
  %v2745 = vor.u32 %v2743, %v2744
  %v2746 = vshll.u32 2475754826, %v2740
  %v2747 = vshrl.u32 2131351028, %v2741
  %v2748 = vor.u32 %v2746, %v2747
  %v2749 = vshll.u32 2131351028, %v2740
  %v2750 = vshrl.u32 2102212464, %v2741
  %v2751 = vor.u32 %v2749, %v2750
  %v2752 = vshll.u32 2102212464, %v2740
  %v2753 = vshrl.u32 920167782, %v2741
  %v2754 = vor.u32 %v2752, %v2753
  %v2755 = vshll.u32 920167782, %v2740
  %v2756 = vshrl.u32 1326507024, %v2741
  %v2757 = vor.u32 %v2755, %v2756
  %vm2758 = vcmp.lt.s32.totalorder %v2739, 1
  %vm2759 = vcmp.lt.s32.totalorder %v2739, 2
  %vm2760 = vcmp.lt.s32.totalorder %v2739, 3
  %vm2761 = vcmp.lt.s32.totalorder %v2739, 4
  %v2762 = vsel %vm2758, %v2742, %v2745
  %v2763 = vsel %vm2761, %v2751, 2102212464
  %v2764 = vsel %vm2760, %v2748, %v2763
  %v2765 = vsel %vm2759, %v2762, %v2764
  %v2766 = vsel %vm2758, %v2745, %v2748
  %v2767 = vsel %vm2761, %v2754, 920167782
  %v2768 = vsel %vm2760, %v2751, %v2767
  %v2769 = vsel %vm2759, %v2766, %v2768
  %v2770 = vsel %vm2758, %v2748, %v2751
  %v2771 = vsel %vm2761, %v2757, 1326507024
  %v2772 = vsel %vm2760, %v2754, %v2771
  %v2773 = vsel %vm2759, %v2770, %v2772
  %v2774 = vshll.u32 %v2734, 8
  %v2775 = vmul.u32.u64.compose %v2774, %v2773
  %v2776 = vextract.low.u32 %v2775
  %v2777 = vextract.high.u32 %v2775
  %v2778 = vmul.u32.u64.compose %v2774, %v2769
  %v2779 = vextract.low.u32 %v2778
  %v2780 = vextract.high.u32 %v2778
  %v2781 = vmul.u32 %v2774, %v2765
  %v2782 = vadd.s32 %v2777, %v2779
  %vm2783 = vc.u32 %v2777, %v2779
  %v2784 = vadd.s32 %v2780, 1
  %v2785 = vsel %vm2783, %v2784, %v2780
  %v2786 = vadd.s32 %v2781, %v2785
  %v2787 = vadd.s32 %v2786, 536870912
  %v2788 = vshrl.u32 %v2787, 30
  %v2789 = vshll.u32 %v2788, 30
  %v2790 = vsub.s32 %v2786, %v2789
  %vm2791 = vcmp.lt.s32.totalorder %v2790, 0
  %v2792 = vsub.s32 0, %v2790
  %v2793 = vsel %vm2791, %v2792, %v2790
  %v2794 = vclz %v2793
  %v2795 = vsub.s32 %v2794, 2
  %vm2796 = vcmp.gt.s32.totalorder 0, %v2795
  %v2797 = vsel %vm2796, 0, %v2795
  %v2798 = vsub.s32 32, %v2797
  %v2799 = vshll.u32 %v2790, %v2797
  %v2800 = vshrl.u32 %v2782, %v2798
  %v2801 = vor.u32 %v2799, %v2800
  %v2802 = vsub.s32 4294967266, %v2797
  %v2803 = vadd.s32 %v2802, 127
  %v2804 = vshll.u32 %v2803, 23
  %v2805 = vor.u32 4788187, %v2804
  %v2806 = vand.u32 2147483647, %v2805
  %v2808 = vcvt.s32.f32 %v2801
  %v2809 = vmul.f32 %v2808, %v2806
  %v2810 = vxor.u32 %v2809, 2147483648
  %v2811 = vsel %vm2728, %v2810, %v2809
  %v2812 = vsub.s32 4, %v2788
  %v2813 = vsel %vm2728, %v2812, %v2788
  %v2814 = vsel %vm2727, %v2290, %v2811
  %v2815 = vsel %vm2727, 0, %v2813
  %v2816 = vcosq.f32.pop %v2814
  %v2817 = vsinq.f32.pop %v2814
  %vm2818 = vweird.f32 %v2290
  %v2819 = vadd.s32 %v2815, 3
  %v2820 = vand.u32 %v2819, 3
  %vm2821 = vcmp.lt.s32.totalorder %v2820, 2
  %vm2822 = vcmp.eq.s32.totalorder %v2820, 0
  %v2823 = vxor.u32 %v2817, 2147483648
  %v2824 = vsel %vm2822, %v2816, %v2823
  %vm2825 = vcmp.eq.s32.totalorder %v2820, 2
  %v2826 = vxor.u32 %v2816, 2147483648
  %v2827 = vsel %vm2825, %v2826, %v2817
  %v2828 = vsel %vm2821, %v2824, %v2827
  %v2829 = vsel %vm2818, nan, %v2828
  %v2830 = vand.u32 2147483647, %v2291
  %vm2831 = vcmp.le.f32.partialorder %v2830, 0.7853982
  %vm2832 = vcmp.lt.s32.totalorder %v2291, 0
  %v2833 = vand.u32 %v2291, 2139095040
  %v2834 = vshrl.u32 %v2833, 23
  %v2835 = vsub.s32 %v2834, 127
  %v2836 = vand.u32 2147483647, %v2291
  %v2837 = vand.u32 %v2836, 8388607
  %v2838 = vor.u32 %v2837, 8388608
  %v2839 = vsub.s32 0, %v2838
  %v2840 = vadd.s32 %v2835, 1
  %vm2841 = vcmp.gt.s32.totalorder %v2840, 0
  %v2842 = vsel %vm2841, %v2840, 0
  %v2843 = vshrl.u32 %v2842, 5
  %v2844 = vand.u32 %v2842, 31
  %v2845 = vsub.s32 32, %v2844
  %v2846 = vshrl.u32 683565275, %v2845
  %v2847 = vshll.u32 683565275, %v2844
  %v2848 = vshrl.u32 2475754826, %v2845
  %v2849 = vor.u32 %v2847, %v2848
  %v2850 = vshll.u32 2475754826, %v2844
  %v2851 = vshrl.u32 2131351028, %v2845
  %v2852 = vor.u32 %v2850, %v2851
  %v2853 = vshll.u32 2131351028, %v2844
  %v2854 = vshrl.u32 2102212464, %v2845
  %v2855 = vor.u32 %v2853, %v2854
  %v2856 = vshll.u32 2102212464, %v2844
  %v2857 = vshrl.u32 920167782, %v2845
  %v2858 = vor.u32 %v2856, %v2857
  %v2859 = vshll.u32 920167782, %v2844
  %v2860 = vshrl.u32 1326507024, %v2845
  %v2861 = vor.u32 %v2859, %v2860
  %vm2862 = vcmp.lt.s32.totalorder %v2843, 1
  %vm2863 = vcmp.lt.s32.totalorder %v2843, 2
  %vm2864 = vcmp.lt.s32.totalorder %v2843, 3
  %vm2865 = vcmp.lt.s32.totalorder %v2843, 4
  %v2866 = vsel %vm2862, %v2846, %v2849
  %v2867 = vsel %vm2865, %v2855, 2102212464
  %v2868 = vsel %vm2864, %v2852, %v2867
  %v2869 = vsel %vm2863, %v2866, %v2868
  %v2870 = vsel %vm2862, %v2849, %v2852
  %v2871 = vsel %vm2865, %v2858, 920167782
  %v2872 = vsel %vm2864, %v2855, %v2871
  %v2873 = vsel %vm2863, %v2870, %v2872
  %v2874 = vsel %vm2862, %v2852, %v2855
  %v2875 = vsel %vm2865, %v2861, 1326507024
  %v2876 = vsel %vm2864, %v2858, %v2875
  %v2877 = vsel %vm2863, %v2874, %v2876
  %v2878 = vshll.u32 %v2838, 8
  %v2879 = vmul.u32.u64.compose %v2878, %v2877
  %v2880 = vextract.low.u32 %v2879
  %v2881 = vextract.high.u32 %v2879
  %v2882 = vmul.u32.u64.compose %v2878, %v2873
  %v2883 = vextract.low.u32 %v2882
  %v2884 = vextract.high.u32 %v2882
  %v2885 = vmul.u32 %v2878, %v2869
  %v2886 = vadd.s32 %v2881, %v2883
  %vm2887 = vc.u32 %v2881, %v2883
  %v2888 = vadd.s32 %v2884, 1
  %v2889 = vsel %vm2887, %v2888, %v2884
  %v2890 = vadd.s32 %v2885, %v2889
  %v2891 = vadd.s32 %v2890, 536870912
  %v2892 = vshrl.u32 %v2891, 30
  %v2893 = vshll.u32 %v2892, 30
  %v2894 = vsub.s32 %v2890, %v2893
  %vm2895 = vcmp.lt.s32.totalorder %v2894, 0
  %v2896 = vsub.s32 0, %v2894
  %v2897 = vsel %vm2895, %v2896, %v2894
  %v2898 = vclz %v2897
  %v2899 = vsub.s32 %v2898, 2
  %vm2900 = vcmp.gt.s32.totalorder 0, %v2899
  %v2901 = vsel %vm2900, 0, %v2899
  %v2902 = vsub.s32 32, %v2901
  %v2903 = vshll.u32 %v2894, %v2901
  %v2904 = vshrl.u32 %v2886, %v2902
  %v2905 = vor.u32 %v2903, %v2904
  %v2906 = vsub.s32 4294967266, %v2901
  %v2907 = vadd.s32 %v2906, 127
  %v2908 = vshll.u32 %v2907, 23
  %v2909 = vor.u32 4788187, %v2908
  %v2910 = vand.u32 2147483647, %v2909
  %v2912 = vcvt.s32.f32 %v2905
  %v2913 = vmul.f32 %v2912, %v2910
  %v2914 = vxor.u32 %v2913, 2147483648
  %v2915 = vsel %vm2832, %v2914, %v2913
  %v2916 = vsub.s32 4, %v2892
  %v2917 = vsel %vm2832, %v2916, %v2892
  %v2918 = vsel %vm2831, %v2291, %v2915
  %v2919 = vsel %vm2831, 0, %v2917
  %v2920 = vcosq.f32.pop %v2918
  %v2921 = vsinq.f32.pop %v2918
  %vm2922 = vweird.f32 %v2291
  %v2923 = vadd.s32 %v2919, 3
  %v2924 = vand.u32 %v2923, 3
  %vm2925 = vcmp.lt.s32.totalorder %v2924, 2
  %vm2926 = vcmp.eq.s32.totalorder %v2924, 0
  %v2927 = vxor.u32 %v2921, 2147483648
  %v2928 = vsel %vm2926, %v2920, %v2927
  %vm2929 = vcmp.eq.s32.totalorder %v2924, 2
  %v2930 = vxor.u32 %v2920, 2147483648
  %v2931 = vsel %vm2929, %v2930, %v2921
  %v2932 = vsel %vm2925, %v2928, %v2931
  %v2933 = vsel %vm2922, nan, %v2932
  %v2934 = vand.u32 2147483647, %v2292
  %vm2935 = vcmp.le.f32.partialorder %v2934, 0.7853982
  %vm2936 = vcmp.lt.s32.totalorder %v2292, 0
  %v2937 = vand.u32 %v2292, 2139095040
  %v2938 = vshrl.u32 %v2937, 23
  %v2939 = vsub.s32 %v2938, 127
  %v2940 = vand.u32 2147483647, %v2292
  %v2941 = vand.u32 %v2940, 8388607
  %v2942 = vor.u32 %v2941, 8388608
  %v2943 = vsub.s32 0, %v2942
  %v2944 = vadd.s32 %v2939, 1
  %vm2945 = vcmp.gt.s32.totalorder %v2944, 0
  %v2946 = vsel %vm2945, %v2944, 0
  %v2947 = vshrl.u32 %v2946, 5
  %v2948 = vand.u32 %v2946, 31
  %v2949 = vsub.s32 32, %v2948
  %v2950 = vshrl.u32 683565275, %v2949
  %v2951 = vshll.u32 683565275, %v2948
  %v2952 = vshrl.u32 2475754826, %v2949
  %v2953 = vor.u32 %v2951, %v2952
  %v2954 = vshll.u32 2475754826, %v2948
  %v2955 = vshrl.u32 2131351028, %v2949
  %v2956 = vor.u32 %v2954, %v2955
  %v2957 = vshll.u32 2131351028, %v2948
  %v2958 = vshrl.u32 2102212464, %v2949
  %v2959 = vor.u32 %v2957, %v2958
  %v2960 = vshll.u32 2102212464, %v2948
  %v2961 = vshrl.u32 920167782, %v2949
  %v2962 = vor.u32 %v2960, %v2961
  %v2963 = vshll.u32 920167782, %v2948
  %v2964 = vshrl.u32 1326507024, %v2949
  %v2965 = vor.u32 %v2963, %v2964
  %vm2966 = vcmp.lt.s32.totalorder %v2947, 1
  %vm2967 = vcmp.lt.s32.totalorder %v2947, 2
  %vm2968 = vcmp.lt.s32.totalorder %v2947, 3
  %vm2969 = vcmp.lt.s32.totalorder %v2947, 4
  %v2970 = vsel %vm2966, %v2950, %v2953
  %v2971 = vsel %vm2969, %v2959, 2102212464
  %v2972 = vsel %vm2968, %v2956, %v2971
  %v2973 = vsel %vm2967, %v2970, %v2972
  %v2974 = vsel %vm2966, %v2953, %v2956
  %v2975 = vsel %vm2969, %v2962, 920167782
  %v2976 = vsel %vm2968, %v2959, %v2975
  %v2977 = vsel %vm2967, %v2974, %v2976
  %v2978 = vsel %vm2966, %v2956, %v2959
  %v2979 = vsel %vm2969, %v2965, 1326507024
  %v2980 = vsel %vm2968, %v2962, %v2979
  %v2981 = vsel %vm2967, %v2978, %v2980
  %v2982 = vshll.u32 %v2942, 8
  %v2983 = vmul.u32.u64.compose %v2982, %v2981
  %v2984 = vextract.low.u32 %v2983
  %v2985 = vextract.high.u32 %v2983
  %v2986 = vmul.u32.u64.compose %v2982, %v2977
  %v2987 = vextract.low.u32 %v2986
  %v2988 = vextract.high.u32 %v2986
  %v2989 = vmul.u32 %v2982, %v2973
  %v2990 = vadd.s32 %v2985, %v2987
  %vm2991 = vc.u32 %v2985, %v2987
  %v2992 = vadd.s32 %v2988, 1
  %v2993 = vsel %vm2991, %v2992, %v2988
  %v2994 = vadd.s32 %v2989, %v2993
  %v2995 = vadd.s32 %v2994, 536870912
  %v2996 = vshrl.u32 %v2995, 30
  %v2997 = vshll.u32 %v2996, 30
  %v2998 = vsub.s32 %v2994, %v2997
  %vm2999 = vcmp.lt.s32.totalorder %v2998, 0
  %v3000 = vsub.s32 0, %v2998
  %v3001 = vsel %vm2999, %v3000, %v2998
  %v3002 = vclz %v3001
  %v3003 = vsub.s32 %v3002, 2
  %vm3004 = vcmp.gt.s32.totalorder 0, %v3003
  %v3005 = vsel %vm3004, 0, %v3003
  %v3006 = vsub.s32 32, %v3005
  %v3007 = vshll.u32 %v2998, %v3005
  %v3008 = vshrl.u32 %v2990, %v3006
  %v3009 = vor.u32 %v3007, %v3008
  %v3010 = vsub.s32 4294967266, %v3005
  %v3011 = vadd.s32 %v3010, 127
  %v3012 = vshll.u32 %v3011, 23
  %v3013 = vor.u32 4788187, %v3012
  %v3014 = vand.u32 2147483647, %v3013
  %v3016 = vcvt.s32.f32 %v3009
  %v3017 = vmul.f32 %v3016, %v3014
  %v3018 = vxor.u32 %v3017, 2147483648
  %v3019 = vsel %vm2936, %v3018, %v3017
  %v3020 = vsub.s32 4, %v2996
  %v3021 = vsel %vm2936, %v3020, %v2996
  %v3022 = vsel %vm2935, %v2292, %v3019
  %v3023 = vsel %vm2935, 0, %v3021
  %v3024 = vcosq.f32.pop %v3022
  %v3025 = vsinq.f32.pop %v3022
  %vm3026 = vweird.f32 %v2292
  %v3027 = vadd.s32 %v3023, 3
  %v3028 = vand.u32 %v3027, 3
  %vm3029 = vcmp.lt.s32.totalorder %v3028, 2
  %vm3030 = vcmp.eq.s32.totalorder %v3028, 0
  %v3031 = vxor.u32 %v3025, 2147483648
  %v3032 = vsel %vm3030, %v3024, %v3031
  %vm3033 = vcmp.eq.s32.totalorder %v3028, 2
  %v3034 = vxor.u32 %v3024, 2147483648
  %v3035 = vsel %vm3033, %v3034, %v3025
  %v3036 = vsel %vm3029, %v3032, %v3035
  %v3037 = vsel %vm3026, nan, %v3036
  %v3038 = vand.u32 2147483647, %v2293
  %vm3039 = vcmp.le.f32.partialorder %v3038, 0.7853982
  %vm3040 = vcmp.lt.s32.totalorder %v2293, 0
  %v3041 = vand.u32 %v2293, 2139095040
  %v3042 = vshrl.u32 %v3041, 23
  %v3043 = vsub.s32 %v3042, 127
  %v3044 = vand.u32 2147483647, %v2293
  %v3045 = vand.u32 %v3044, 8388607
  %v3046 = vor.u32 %v3045, 8388608
  %v3047 = vsub.s32 0, %v3046
  %v3048 = vadd.s32 %v3043, 1
  %vm3049 = vcmp.gt.s32.totalorder %v3048, 0
  %v3050 = vsel %vm3049, %v3048, 0
  %v3051 = vshrl.u32 %v3050, 5
  %v3052 = vand.u32 %v3050, 31
  %v3053 = vsub.s32 32, %v3052
  %v3054 = vshrl.u32 683565275, %v3053
  %v3055 = vshll.u32 683565275, %v3052
  %v3056 = vshrl.u32 2475754826, %v3053
  %v3057 = vor.u32 %v3055, %v3056
  %v3058 = vshll.u32 2475754826, %v3052
  %v3059 = vshrl.u32 2131351028, %v3053
  %v3060 = vor.u32 %v3058, %v3059
  %v3061 = vshll.u32 2131351028, %v3052
  %v3062 = vshrl.u32 2102212464, %v3053
  %v3063 = vor.u32 %v3061, %v3062
  %v3064 = vshll.u32 2102212464, %v3052
  %v3065 = vshrl.u32 920167782, %v3053
  %v3066 = vor.u32 %v3064, %v3065
  %v3067 = vshll.u32 920167782, %v3052
  %v3068 = vshrl.u32 1326507024, %v3053
  %v3069 = vor.u32 %v3067, %v3068
  %vm3070 = vcmp.lt.s32.totalorder %v3051, 1
  %vm3071 = vcmp.lt.s32.totalorder %v3051, 2
  %vm3072 = vcmp.lt.s32.totalorder %v3051, 3
  %vm3073 = vcmp.lt.s32.totalorder %v3051, 4
  %v3074 = vsel %vm3070, %v3054, %v3057
  %v3075 = vsel %vm3073, %v3063, 2102212464
  %v3076 = vsel %vm3072, %v3060, %v3075
  %v3077 = vsel %vm3071, %v3074, %v3076
  %v3078 = vsel %vm3070, %v3057, %v3060
  %v3079 = vsel %vm3073, %v3066, 920167782
  %v3080 = vsel %vm3072, %v3063, %v3079
  %v3081 = vsel %vm3071, %v3078, %v3080
  %v3082 = vsel %vm3070, %v3060, %v3063
  %v3083 = vsel %vm3073, %v3069, 1326507024
  %v3084 = vsel %vm3072, %v3066, %v3083
  %v3085 = vsel %vm3071, %v3082, %v3084
  %v3086 = vshll.u32 %v3046, 8
  %v3087 = vmul.u32.u64.compose %v3086, %v3085
  %v3088 = vextract.low.u32 %v3087
  %v3089 = vextract.high.u32 %v3087
  %v3090 = vmul.u32.u64.compose %v3086, %v3081
  %v3091 = vextract.low.u32 %v3090
  %v3092 = vextract.high.u32 %v3090
  %v3093 = vmul.u32 %v3086, %v3077
  %v3094 = vadd.s32 %v3089, %v3091
  %vm3095 = vc.u32 %v3089, %v3091
  %v3096 = vadd.s32 %v3092, 1
  %v3097 = vsel %vm3095, %v3096, %v3092
  %v3098 = vadd.s32 %v3093, %v3097
  %v3099 = vadd.s32 %v3098, 536870912
  %v3100 = vshrl.u32 %v3099, 30
  %v3101 = vshll.u32 %v3100, 30
  %v3102 = vsub.s32 %v3098, %v3101
  %vm3103 = vcmp.lt.s32.totalorder %v3102, 0
  %v3104 = vsub.s32 0, %v3102
  %v3105 = vsel %vm3103, %v3104, %v3102
  %v3106 = vclz %v3105
  %v3107 = vsub.s32 %v3106, 2
  %vm3108 = vcmp.gt.s32.totalorder 0, %v3107
  %v3109 = vsel %vm3108, 0, %v3107
  %v3110 = vsub.s32 32, %v3109
  %v3111 = vshll.u32 %v3102, %v3109
  %v3112 = vshrl.u32 %v3094, %v3110
  %v3113 = vor.u32 %v3111, %v3112
  %v3114 = vsub.s32 4294967266, %v3109
  %v3115 = vadd.s32 %v3114, 127
  %v3116 = vshll.u32 %v3115, 23
  %v3117 = vor.u32 4788187, %v3116
  %v3118 = vand.u32 2147483647, %v3117
  %v3120 = vcvt.s32.f32 %v3113
  %v3121 = vmul.f32 %v3120, %v3118
  %v3122 = vxor.u32 %v3121, 2147483648
  %v3123 = vsel %vm3040, %v3122, %v3121
  %v3124 = vsub.s32 4, %v3100
  %v3125 = vsel %vm3040, %v3124, %v3100
  %v3126 = vsel %vm3039, %v2293, %v3123
  %v3127 = vsel %vm3039, 0, %v3125
  %v3128 = vcosq.f32.pop %v3126
  %v3129 = vsinq.f32.pop %v3126
  %vm3130 = vweird.f32 %v2293
  %v3131 = vadd.s32 %v3127, 3
  %v3132 = vand.u32 %v3131, 3
  %vm3133 = vcmp.lt.s32.totalorder %v3132, 2
  %vm3134 = vcmp.eq.s32.totalorder %v3132, 0
  %v3135 = vxor.u32 %v3129, 2147483648
  %v3136 = vsel %vm3134, %v3128, %v3135
  %vm3137 = vcmp.eq.s32.totalorder %v3132, 2
  %v3138 = vxor.u32 %v3128, 2147483648
  %v3139 = vsel %vm3137, %v3138, %v3129
  %v3140 = vsel %vm3133, %v3136, %v3139
  %v3141 = vsel %vm3130, nan, %v3140
  %v3142 = vmul.f32 %v2302, %v2413
  %v3143 = vmul.f32 %v2303, %v2517
  %v3144 = vmul.f32 %v2304, %v2621
  %v3145 = vmul.f32 %v2305, %v2725
  %v3146 = vmul.f32 %v2306, %v2829
  %v3147 = vmul.f32 %v2307, %v2933
  %v3148 = vmul.f32 %v2308, %v3037
  %v3149 = vmul.f32 %v2309, %v3141
  %v3150 = vmul.f32 %v3142, 1.442695
  %v3151 = vpow.pop %v3150
  %v3152 = vmul.f32 %v3143, 1.442695
  %v3153 = vpow.pop %v3152
  %v3154 = vmul.f32 %v3144, 1.442695
  %v3155 = vpow.pop %v3154
  %v3156 = vmul.f32 %v3145, 1.442695
  %v3157 = vpow.pop %v3156
  %v3158 = vmul.f32 %v3146, 1.442695
  %v3159 = vpow.pop %v3158
  %v3160 = vmul.f32 %v3147, 1.442695
  %v3161 = vpow.pop %v3160
  %v3162 = vmul.f32 %v3148, 1.442695
  %v3163 = vpow.pop %v3162
  %v3164 = vmul.f32 %v3149, 1.442695
  %v3165 = vpow.pop %v3164
  %v3166 = vsub.f32 0.0, %v2302
  %v3167 = vsub.f32 0.0, %v2303
  %v3168 = vsub.f32 0.0, %v2304
  %v3169 = vsub.f32 0.0, %v2305
  %v3170 = vsub.f32 0.0, %v2306
  %v3171 = vsub.f32 0.0, %v2307
  %v3172 = vsub.f32 0.0, %v2308
  %v3173 = vsub.f32 0.0, %v2309
  %v3174 = vand.u32 2147483647, %v2286
  %vm3175 = vcmp.le.f32.partialorder %v3174, 0.7853982
  %vm3176 = vcmp.lt.s32.totalorder %v2286, 0
  %v3177 = vand.u32 %v2286, 2139095040
  %v3178 = vshrl.u32 %v3177, 23
  %v3179 = vsub.s32 %v3178, 127
  %v3180 = vand.u32 2147483647, %v2286
  %v3181 = vand.u32 %v3180, 8388607
  %v3182 = vor.u32 %v3181, 8388608
  %v3183 = vsub.s32 0, %v3182
  %v3184 = vadd.s32 %v3179, 1
  %vm3185 = vcmp.gt.s32.totalorder %v3184, 0
  %v3186 = vsel %vm3185, %v3184, 0
  %v3187 = vshrl.u32 %v3186, 5
  %v3188 = vand.u32 %v3186, 31
  %v3189 = vsub.s32 32, %v3188
  %v3190 = vshrl.u32 683565275, %v3189
  %v3191 = vshll.u32 683565275, %v3188
  %v3192 = vshrl.u32 2475754826, %v3189
  %v3193 = vor.u32 %v3191, %v3192
  %v3194 = vshll.u32 2475754826, %v3188
  %v3195 = vshrl.u32 2131351028, %v3189
  %v3196 = vor.u32 %v3194, %v3195
  %v3197 = vshll.u32 2131351028, %v3188
  %v3198 = vshrl.u32 2102212464, %v3189
  %v3199 = vor.u32 %v3197, %v3198
  %v3200 = vshll.u32 2102212464, %v3188
  %v3201 = vshrl.u32 920167782, %v3189
  %v3202 = vor.u32 %v3200, %v3201
  %v3203 = vshll.u32 920167782, %v3188
  %v3204 = vshrl.u32 1326507024, %v3189
  %v3205 = vor.u32 %v3203, %v3204
  %vm3206 = vcmp.lt.s32.totalorder %v3187, 1
  %vm3207 = vcmp.lt.s32.totalorder %v3187, 2
  %vm3208 = vcmp.lt.s32.totalorder %v3187, 3
  %vm3209 = vcmp.lt.s32.totalorder %v3187, 4
  %v3210 = vsel %vm3206, %v3190, %v3193
  %v3211 = vsel %vm3209, %v3199, 2102212464
  %v3212 = vsel %vm3208, %v3196, %v3211
  %v3213 = vsel %vm3207, %v3210, %v3212
  %v3214 = vsel %vm3206, %v3193, %v3196
  %v3215 = vsel %vm3209, %v3202, 920167782
  %v3216 = vsel %vm3208, %v3199, %v3215
  %v3217 = vsel %vm3207, %v3214, %v3216
  %v3218 = vsel %vm3206, %v3196, %v3199
  %v3219 = vsel %vm3209, %v3205, 1326507024
  %v3220 = vsel %vm3208, %v3202, %v3219
  %v3221 = vsel %vm3207, %v3218, %v3220
  %v3222 = vshll.u32 %v3182, 8
  %v3223 = vmul.u32.u64.compose %v3222, %v3221
  %v3224 = vextract.low.u32 %v3223
  %v3225 = vextract.high.u32 %v3223
  %v3226 = vmul.u32.u64.compose %v3222, %v3217
  %v3227 = vextract.low.u32 %v3226
  %v3228 = vextract.high.u32 %v3226
  %v3229 = vmul.u32 %v3222, %v3213
  %v3230 = vadd.s32 %v3225, %v3227
  %vm3231 = vc.u32 %v3225, %v3227
  %v3232 = vadd.s32 %v3228, 1
  %v3233 = vsel %vm3231, %v3232, %v3228
  %v3234 = vadd.s32 %v3229, %v3233
  %v3235 = vadd.s32 %v3234, 536870912
  %v3236 = vshrl.u32 %v3235, 30
  %v3237 = vshll.u32 %v3236, 30
  %v3238 = vsub.s32 %v3234, %v3237
  %vm3239 = vcmp.lt.s32.totalorder %v3238, 0
  %v3240 = vsub.s32 0, %v3238
  %v3241 = vsel %vm3239, %v3240, %v3238
  %v3242 = vclz %v3241
  %v3243 = vsub.s32 %v3242, 2
  %vm3244 = vcmp.gt.s32.totalorder 0, %v3243
  %v3245 = vsel %vm3244, 0, %v3243
  %v3246 = vsub.s32 32, %v3245
  %v3247 = vshll.u32 %v3238, %v3245
  %v3248 = vshrl.u32 %v3230, %v3246
  %v3249 = vor.u32 %v3247, %v3248
  %v3250 = vsub.s32 4294967266, %v3245
  %v3251 = vadd.s32 %v3250, 127
  %v3252 = vshll.u32 %v3251, 23
  %v3253 = vor.u32 4788187, %v3252
  %v3254 = vand.u32 2147483647, %v3253
  %v3256 = vcvt.s32.f32 %v3249
  %v3257 = vmul.f32 %v3256, %v3254
  %v3258 = vxor.u32 %v3257, 2147483648
  %v3259 = vsel %vm3176, %v3258, %v3257
  %v3260 = vsub.s32 4, %v3236
  %v3261 = vsel %vm3176, %v3260, %v3236
  %v3262 = vsel %vm3175, %v2286, %v3259
  %v3263 = vsel %vm3175, 0, %v3261
  %v3264 = vcosq.f32.pop %v3262
  %v3265 = vsinq.f32.pop %v3262
  %vm3266 = vweird.f32 %v2286
  %v3267 = vand.u32 %v3263, 3
  %vm3268 = vcmp.lt.s32.totalorder %v3267, 2
  %vm3269 = vcmp.eq.s32.totalorder %v3267, 0
  %v3270 = vxor.u32 %v3265, 2147483648
  %v3271 = vsel %vm3269, %v3264, %v3270
  %vm3272 = vcmp.eq.s32.totalorder %v3267, 2
  %v3273 = vxor.u32 %v3264, 2147483648
  %v3274 = vsel %vm3272, %v3273, %v3265
  %v3275 = vsel %vm3268, %v3271, %v3274
  %v3276 = vsel %vm3266, nan, %v3275
  %v3277 = vand.u32 2147483647, %v2287
  %vm3278 = vcmp.le.f32.partialorder %v3277, 0.7853982
  %vm3279 = vcmp.lt.s32.totalorder %v2287, 0
  %v3280 = vand.u32 %v2287, 2139095040
  %v3281 = vshrl.u32 %v3280, 23
  %v3282 = vsub.s32 %v3281, 127
  %v3283 = vand.u32 2147483647, %v2287
  %v3284 = vand.u32 %v3283, 8388607
  %v3285 = vor.u32 %v3284, 8388608
  %v3286 = vsub.s32 0, %v3285
  %v3287 = vadd.s32 %v3282, 1
  %vm3288 = vcmp.gt.s32.totalorder %v3287, 0
  %v3289 = vsel %vm3288, %v3287, 0
  %v3290 = vshrl.u32 %v3289, 5
  %v3291 = vand.u32 %v3289, 31
  %v3292 = vsub.s32 32, %v3291
  %v3293 = vshrl.u32 683565275, %v3292
  %v3294 = vshll.u32 683565275, %v3291
  %v3295 = vshrl.u32 2475754826, %v3292
  %v3296 = vor.u32 %v3294, %v3295
  %v3297 = vshll.u32 2475754826, %v3291
  %v3298 = vshrl.u32 2131351028, %v3292
  %v3299 = vor.u32 %v3297, %v3298
  %v3300 = vshll.u32 2131351028, %v3291
  %v3301 = vshrl.u32 2102212464, %v3292
  %v3302 = vor.u32 %v3300, %v3301
  %v3303 = vshll.u32 2102212464, %v3291
  %v3304 = vshrl.u32 920167782, %v3292
  %v3305 = vor.u32 %v3303, %v3304
  %v3306 = vshll.u32 920167782, %v3291
  %v3307 = vshrl.u32 1326507024, %v3292
  %v3308 = vor.u32 %v3306, %v3307
  %vm3309 = vcmp.lt.s32.totalorder %v3290, 1
  %vm3310 = vcmp.lt.s32.totalorder %v3290, 2
  %vm3311 = vcmp.lt.s32.totalorder %v3290, 3
  %vm3312 = vcmp.lt.s32.totalorder %v3290, 4
  %v3313 = vsel %vm3309, %v3293, %v3296
  %v3314 = vsel %vm3312, %v3302, 2102212464
  %v3315 = vsel %vm3311, %v3299, %v3314
  %v3316 = vsel %vm3310, %v3313, %v3315
  %v3317 = vsel %vm3309, %v3296, %v3299
  %v3318 = vsel %vm3312, %v3305, 920167782
  %v3319 = vsel %vm3311, %v3302, %v3318
  %v3320 = vsel %vm3310, %v3317, %v3319
  %v3321 = vsel %vm3309, %v3299, %v3302
  %v3322 = vsel %vm3312, %v3308, 1326507024
  %v3323 = vsel %vm3311, %v3305, %v3322
  %v3324 = vsel %vm3310, %v3321, %v3323
  %v3325 = vshll.u32 %v3285, 8
  %v3326 = vmul.u32.u64.compose %v3325, %v3324
  %v3327 = vextract.low.u32 %v3326
  %v3328 = vextract.high.u32 %v3326
  %v3329 = vmul.u32.u64.compose %v3325, %v3320
  %v3330 = vextract.low.u32 %v3329
  %v3331 = vextract.high.u32 %v3329
  %v3332 = vmul.u32 %v3325, %v3316
  %v3333 = vadd.s32 %v3328, %v3330
  %vm3334 = vc.u32 %v3328, %v3330
  %v3335 = vadd.s32 %v3331, 1
  %v3336 = vsel %vm3334, %v3335, %v3331
  %v3337 = vadd.s32 %v3332, %v3336
  %v3338 = vadd.s32 %v3337, 536870912
  %v3339 = vshrl.u32 %v3338, 30
  %v3340 = vshll.u32 %v3339, 30
  %v3341 = vsub.s32 %v3337, %v3340
  %vm3342 = vcmp.lt.s32.totalorder %v3341, 0
  %v3343 = vsub.s32 0, %v3341
  %v3344 = vsel %vm3342, %v3343, %v3341
  %v3345 = vclz %v3344
  %v3346 = vsub.s32 %v3345, 2
  %vm3347 = vcmp.gt.s32.totalorder 0, %v3346
  %v3348 = vsel %vm3347, 0, %v3346
  %v3349 = vsub.s32 32, %v3348
  %v3350 = vshll.u32 %v3341, %v3348
  %v3351 = vshrl.u32 %v3333, %v3349
  %v3352 = vor.u32 %v3350, %v3351
  %v3353 = vsub.s32 4294967266, %v3348
  %v3354 = vadd.s32 %v3353, 127
  %v3355 = vshll.u32 %v3354, 23
  %v3356 = vor.u32 4788187, %v3355
  %v3357 = vand.u32 2147483647, %v3356
  %v3359 = vcvt.s32.f32 %v3352
  %v3360 = vmul.f32 %v3359, %v3357
  %v3361 = vxor.u32 %v3360, 2147483648
  %v3362 = vsel %vm3279, %v3361, %v3360
  %v3363 = vsub.s32 4, %v3339
  %v3364 = vsel %vm3279, %v3363, %v3339
  %v3365 = vsel %vm3278, %v2287, %v3362
  %v3366 = vsel %vm3278, 0, %v3364
  %v3367 = vcosq.f32.pop %v3365
  %v3368 = vsinq.f32.pop %v3365
  %vm3369 = vweird.f32 %v2287
  %v3370 = vand.u32 %v3366, 3
  %vm3371 = vcmp.lt.s32.totalorder %v3370, 2
  %vm3372 = vcmp.eq.s32.totalorder %v3370, 0
  %v3373 = vxor.u32 %v3368, 2147483648
  %v3374 = vsel %vm3372, %v3367, %v3373
  %vm3375 = vcmp.eq.s32.totalorder %v3370, 2
  %v3376 = vxor.u32 %v3367, 2147483648
  %v3377 = vsel %vm3375, %v3376, %v3368
  %v3378 = vsel %vm3371, %v3374, %v3377
  %v3379 = vsel %vm3369, nan, %v3378
  %v3380 = vand.u32 2147483647, %v2288
  %vm3381 = vcmp.le.f32.partialorder %v3380, 0.7853982
  %vm3382 = vcmp.lt.s32.totalorder %v2288, 0
  %v3383 = vand.u32 %v2288, 2139095040
  %v3384 = vshrl.u32 %v3383, 23
  %v3385 = vsub.s32 %v3384, 127
  %v3386 = vand.u32 2147483647, %v2288
  %v3387 = vand.u32 %v3386, 8388607
  %v3388 = vor.u32 %v3387, 8388608
  %v3389 = vsub.s32 0, %v3388
  %v3390 = vadd.s32 %v3385, 1
  %vm3391 = vcmp.gt.s32.totalorder %v3390, 0
  %v3392 = vsel %vm3391, %v3390, 0
  %v3393 = vshrl.u32 %v3392, 5
  %v3394 = vand.u32 %v3392, 31
  %v3395 = vsub.s32 32, %v3394
  %v3396 = vshrl.u32 683565275, %v3395
  %v3397 = vshll.u32 683565275, %v3394
  %v3398 = vshrl.u32 2475754826, %v3395
  %v3399 = vor.u32 %v3397, %v3398
  %v3400 = vshll.u32 2475754826, %v3394
  %v3401 = vshrl.u32 2131351028, %v3395
  %v3402 = vor.u32 %v3400, %v3401
  %v3403 = vshll.u32 2131351028, %v3394
  %v3404 = vshrl.u32 2102212464, %v3395
  %v3405 = vor.u32 %v3403, %v3404
  %v3406 = vshll.u32 2102212464, %v3394
  %v3407 = vshrl.u32 920167782, %v3395
  %v3408 = vor.u32 %v3406, %v3407
  %v3409 = vshll.u32 920167782, %v3394
  %v3410 = vshrl.u32 1326507024, %v3395
  %v3411 = vor.u32 %v3409, %v3410
  %vm3412 = vcmp.lt.s32.totalorder %v3393, 1
  %vm3413 = vcmp.lt.s32.totalorder %v3393, 2
  %vm3414 = vcmp.lt.s32.totalorder %v3393, 3
  %vm3415 = vcmp.lt.s32.totalorder %v3393, 4
  %v3416 = vsel %vm3412, %v3396, %v3399
  %v3417 = vsel %vm3415, %v3405, 2102212464
  %v3418 = vsel %vm3414, %v3402, %v3417
  %v3419 = vsel %vm3413, %v3416, %v3418
  %v3420 = vsel %vm3412, %v3399, %v3402
  %v3421 = vsel %vm3415, %v3408, 920167782
  %v3422 = vsel %vm3414, %v3405, %v3421
  %v3423 = vsel %vm3413, %v3420, %v3422
  %v3424 = vsel %vm3412, %v3402, %v3405
  %v3425 = vsel %vm3415, %v3411, 1326507024
  %v3426 = vsel %vm3414, %v3408, %v3425
  %v3427 = vsel %vm3413, %v3424, %v3426
  %v3428 = vshll.u32 %v3388, 8
  %v3429 = vmul.u32.u64.compose %v3428, %v3427
  %v3430 = vextract.low.u32 %v3429
  %v3431 = vextract.high.u32 %v3429
  %v3432 = vmul.u32.u64.compose %v3428, %v3423
  %v3433 = vextract.low.u32 %v3432
  %v3434 = vextract.high.u32 %v3432
  %v3435 = vmul.u32 %v3428, %v3419
  %v3436 = vadd.s32 %v3431, %v3433
  %vm3437 = vc.u32 %v3431, %v3433
  %v3438 = vadd.s32 %v3434, 1
  %v3439 = vsel %vm3437, %v3438, %v3434
  %v3440 = vadd.s32 %v3435, %v3439
  %v3441 = vadd.s32 %v3440, 536870912
  %v3442 = vshrl.u32 %v3441, 30
  %v3443 = vshll.u32 %v3442, 30
  %v3444 = vsub.s32 %v3440, %v3443
  %vm3445 = vcmp.lt.s32.totalorder %v3444, 0
  %v3446 = vsub.s32 0, %v3444
  %v3447 = vsel %vm3445, %v3446, %v3444
  %v3448 = vclz %v3447
  %v3449 = vsub.s32 %v3448, 2
  %vm3450 = vcmp.gt.s32.totalorder 0, %v3449
  %v3451 = vsel %vm3450, 0, %v3449
  %v3452 = vsub.s32 32, %v3451
  %v3453 = vshll.u32 %v3444, %v3451
  %v3454 = vshrl.u32 %v3436, %v3452
  %v3455 = vor.u32 %v3453, %v3454
  %v3456 = vsub.s32 4294967266, %v3451
  %v3457 = vadd.s32 %v3456, 127
  %v3458 = vshll.u32 %v3457, 23
  %v3459 = vor.u32 4788187, %v3458
  %v3460 = vand.u32 2147483647, %v3459
  %v3462 = vcvt.s32.f32 %v3455
  %v3463 = vmul.f32 %v3462, %v3460
  %v3464 = vxor.u32 %v3463, 2147483648
  %v3465 = vsel %vm3382, %v3464, %v3463
  %v3466 = vsub.s32 4, %v3442
  %v3467 = vsel %vm3382, %v3466, %v3442
  %v3468 = vsel %vm3381, %v2288, %v3465
  %v3469 = vsel %vm3381, 0, %v3467
  %v3470 = vcosq.f32.pop %v3468
  %v3471 = vsinq.f32.pop %v3468
  %vm3472 = vweird.f32 %v2288
  %v3473 = vand.u32 %v3469, 3
  %vm3474 = vcmp.lt.s32.totalorder %v3473, 2
  %vm3475 = vcmp.eq.s32.totalorder %v3473, 0
  %v3476 = vxor.u32 %v3471, 2147483648
  %v3477 = vsel %vm3475, %v3470, %v3476
  %vm3478 = vcmp.eq.s32.totalorder %v3473, 2
  %v3479 = vxor.u32 %v3470, 2147483648
  %v3480 = vsel %vm3478, %v3479, %v3471
  %v3481 = vsel %vm3474, %v3477, %v3480
  %v3482 = vsel %vm3472, nan, %v3481
  %v3483 = vand.u32 2147483647, %v2289
  %vm3484 = vcmp.le.f32.partialorder %v3483, 0.7853982
  %vm3485 = vcmp.lt.s32.totalorder %v2289, 0
  %v3486 = vand.u32 %v2289, 2139095040
  %v3487 = vshrl.u32 %v3486, 23
  %v3488 = vsub.s32 %v3487, 127
  %v3489 = vand.u32 2147483647, %v2289
  %v3490 = vand.u32 %v3489, 8388607
  %v3491 = vor.u32 %v3490, 8388608
  %v3492 = vsub.s32 0, %v3491
  %v3493 = vadd.s32 %v3488, 1
  %vm3494 = vcmp.gt.s32.totalorder %v3493, 0
  %v3495 = vsel %vm3494, %v3493, 0
  %v3496 = vshrl.u32 %v3495, 5
  %v3497 = vand.u32 %v3495, 31
  %v3498 = vsub.s32 32, %v3497
  %v3499 = vshrl.u32 683565275, %v3498
  %v3500 = vshll.u32 683565275, %v3497
  %v3501 = vshrl.u32 2475754826, %v3498
  %v3502 = vor.u32 %v3500, %v3501
  %v3503 = vshll.u32 2475754826, %v3497
  %v3504 = vshrl.u32 2131351028, %v3498
  %v3505 = vor.u32 %v3503, %v3504
  %v3506 = vshll.u32 2131351028, %v3497
  %v3507 = vshrl.u32 2102212464, %v3498
  %v3508 = vor.u32 %v3506, %v3507
  %v3509 = vshll.u32 2102212464, %v3497
  %v3510 = vshrl.u32 920167782, %v3498
  %v3511 = vor.u32 %v3509, %v3510
  %v3512 = vshll.u32 920167782, %v3497
  %v3513 = vshrl.u32 1326507024, %v3498
  %v3514 = vor.u32 %v3512, %v3513
  %vm3515 = vcmp.lt.s32.totalorder %v3496, 1
  %vm3516 = vcmp.lt.s32.totalorder %v3496, 2
  %vm3517 = vcmp.lt.s32.totalorder %v3496, 3
  %vm3518 = vcmp.lt.s32.totalorder %v3496, 4
  %v3519 = vsel %vm3515, %v3499, %v3502
  %v3520 = vsel %vm3518, %v3508, 2102212464
  %v3521 = vsel %vm3517, %v3505, %v3520
  %v3522 = vsel %vm3516, %v3519, %v3521
  %v3523 = vsel %vm3515, %v3502, %v3505
  %v3524 = vsel %vm3518, %v3511, 920167782
  %v3525 = vsel %vm3517, %v3508, %v3524
  %v3526 = vsel %vm3516, %v3523, %v3525
  %v3527 = vsel %vm3515, %v3505, %v3508
  %v3528 = vsel %vm3518, %v3514, 1326507024
  %v3529 = vsel %vm3517, %v3511, %v3528
  %v3530 = vsel %vm3516, %v3527, %v3529
  %v3531 = vshll.u32 %v3491, 8
  %v3532 = vmul.u32.u64.compose %v3531, %v3530
  %v3533 = vextract.low.u32 %v3532
  %v3534 = vextract.high.u32 %v3532
  %v3535 = vmul.u32.u64.compose %v3531, %v3526
  %v3536 = vextract.low.u32 %v3535
  %v3537 = vextract.high.u32 %v3535
  %v3538 = vmul.u32 %v3531, %v3522
  %v3539 = vadd.s32 %v3534, %v3536
  %vm3540 = vc.u32 %v3534, %v3536
  %v3541 = vadd.s32 %v3537, 1
  %v3542 = vsel %vm3540, %v3541, %v3537
  %v3543 = vadd.s32 %v3538, %v3542
  %v3544 = vadd.s32 %v3543, 536870912
  %v3545 = vshrl.u32 %v3544, 30
  %v3546 = vshll.u32 %v3545, 30
  %v3547 = vsub.s32 %v3543, %v3546
  %vm3548 = vcmp.lt.s32.totalorder %v3547, 0
  %v3549 = vsub.s32 0, %v3547
  %v3550 = vsel %vm3548, %v3549, %v3547
  %v3551 = vclz %v3550
  %v3552 = vsub.s32 %v3551, 2
  %vm3553 = vcmp.gt.s32.totalorder 0, %v3552
  %v3554 = vsel %vm3553, 0, %v3552
  %v3555 = vsub.s32 32, %v3554
  %v3556 = vshll.u32 %v3547, %v3554
  %v3557 = vshrl.u32 %v3539, %v3555
  %v3558 = vor.u32 %v3556, %v3557
  %v3559 = vsub.s32 4294967266, %v3554
  %v3560 = vadd.s32 %v3559, 127
  %v3561 = vshll.u32 %v3560, 23
  %v3562 = vor.u32 4788187, %v3561
  %v3563 = vand.u32 2147483647, %v3562
  %v3565 = vcvt.s32.f32 %v3558
  %v3566 = vmul.f32 %v3565, %v3563
  %v3567 = vxor.u32 %v3566, 2147483648
  %v3568 = vsel %vm3485, %v3567, %v3566
  %v3569 = vsub.s32 4, %v3545
  %v3570 = vsel %vm3485, %v3569, %v3545
  %v3571 = vsel %vm3484, %v2289, %v3568
  %v3572 = vsel %vm3484, 0, %v3570
  %v3573 = vcosq.f32.pop %v3571
  %v3574 = vsinq.f32.pop %v3571
  %vm3575 = vweird.f32 %v2289
  %v3576 = vand.u32 %v3572, 3
  %vm3577 = vcmp.lt.s32.totalorder %v3576, 2
  %vm3578 = vcmp.eq.s32.totalorder %v3576, 0
  %v3579 = vxor.u32 %v3574, 2147483648
  %v3580 = vsel %vm3578, %v3573, %v3579
  %vm3581 = vcmp.eq.s32.totalorder %v3576, 2
  %v3582 = vxor.u32 %v3573, 2147483648
  %v3583 = vsel %vm3581, %v3582, %v3574
  %v3584 = vsel %vm3577, %v3580, %v3583
  %v3585 = vsel %vm3575, nan, %v3584
  %v3586 = vand.u32 2147483647, %v2290
  %vm3587 = vcmp.le.f32.partialorder %v3586, 0.7853982
  %vm3588 = vcmp.lt.s32.totalorder %v2290, 0
  %v3589 = vand.u32 %v2290, 2139095040
  %v3590 = vshrl.u32 %v3589, 23
  %v3591 = vsub.s32 %v3590, 127
  %v3592 = vand.u32 2147483647, %v2290
  %v3593 = vand.u32 %v3592, 8388607
  %v3594 = vor.u32 %v3593, 8388608
  %v3595 = vsub.s32 0, %v3594
  %v3596 = vadd.s32 %v3591, 1
  %vm3597 = vcmp.gt.s32.totalorder %v3596, 0
  %v3598 = vsel %vm3597, %v3596, 0
  %v3599 = vshrl.u32 %v3598, 5
  %v3600 = vand.u32 %v3598, 31
  %v3601 = vsub.s32 32, %v3600
  %v3602 = vshrl.u32 683565275, %v3601
  %v3603 = vshll.u32 683565275, %v3600
  %v3604 = vshrl.u32 2475754826, %v3601
  %v3605 = vor.u32 %v3603, %v3604
  %v3606 = vshll.u32 2475754826, %v3600
  %v3607 = vshrl.u32 2131351028, %v3601
  %v3608 = vor.u32 %v3606, %v3607
  %v3609 = vshll.u32 2131351028, %v3600
  %v3610 = vshrl.u32 2102212464, %v3601
  %v3611 = vor.u32 %v3609, %v3610
  %v3612 = vshll.u32 2102212464, %v3600
  %v3613 = vshrl.u32 920167782, %v3601
  %v3614 = vor.u32 %v3612, %v3613
  %v3615 = vshll.u32 920167782, %v3600
  %v3616 = vshrl.u32 1326507024, %v3601
  %v3617 = vor.u32 %v3615, %v3616
  %vm3618 = vcmp.lt.s32.totalorder %v3599, 1
  %vm3619 = vcmp.lt.s32.totalorder %v3599, 2
  %vm3620 = vcmp.lt.s32.totalorder %v3599, 3
  %vm3621 = vcmp.lt.s32.totalorder %v3599, 4
  %v3622 = vsel %vm3618, %v3602, %v3605
  %v3623 = vsel %vm3621, %v3611, 2102212464
  %v3624 = vsel %vm3620, %v3608, %v3623
  %v3625 = vsel %vm3619, %v3622, %v3624
  %v3626 = vsel %vm3618, %v3605, %v3608
  %v3627 = vsel %vm3621, %v3614, 920167782
  %v3628 = vsel %vm3620, %v3611, %v3627
  %v3629 = vsel %vm3619, %v3626, %v3628
  %v3630 = vsel %vm3618, %v3608, %v3611
  %v3631 = vsel %vm3621, %v3617, 1326507024
  %v3632 = vsel %vm3620, %v3614, %v3631
  %v3633 = vsel %vm3619, %v3630, %v3632
  %v3634 = vshll.u32 %v3594, 8
  %v3635 = vmul.u32.u64.compose %v3634, %v3633
  %v3636 = vextract.low.u32 %v3635
  %v3637 = vextract.high.u32 %v3635
  %v3638 = vmul.u32.u64.compose %v3634, %v3629
  %v3639 = vextract.low.u32 %v3638
  %v3640 = vextract.high.u32 %v3638
  %v3641 = vmul.u32 %v3634, %v3625
  %v3642 = vadd.s32 %v3637, %v3639
  %vm3643 = vc.u32 %v3637, %v3639
  %v3644 = vadd.s32 %v3640, 1
  %v3645 = vsel %vm3643, %v3644, %v3640
  %v3646 = vadd.s32 %v3641, %v3645
  %v3647 = vadd.s32 %v3646, 536870912
  %v3648 = vshrl.u32 %v3647, 30
  %v3649 = vshll.u32 %v3648, 30
  %v3650 = vsub.s32 %v3646, %v3649
  %vm3651 = vcmp.lt.s32.totalorder %v3650, 0
  %v3652 = vsub.s32 0, %v3650
  %v3653 = vsel %vm3651, %v3652, %v3650
  %v3654 = vclz %v3653
  %v3655 = vsub.s32 %v3654, 2
  %vm3656 = vcmp.gt.s32.totalorder 0, %v3655
  %v3657 = vsel %vm3656, 0, %v3655
  %v3658 = vsub.s32 32, %v3657
  %v3659 = vshll.u32 %v3650, %v3657
  %v3660 = vshrl.u32 %v3642, %v3658
  %v3661 = vor.u32 %v3659, %v3660
  %v3662 = vsub.s32 4294967266, %v3657
  %v3663 = vadd.s32 %v3662, 127
  %v3664 = vshll.u32 %v3663, 23
  %v3665 = vor.u32 4788187, %v3664
  %v3666 = vand.u32 2147483647, %v3665
  %v3668 = vcvt.s32.f32 %v3661
  %v3669 = vmul.f32 %v3668, %v3666
  %v3670 = vxor.u32 %v3669, 2147483648
  %v3671 = vsel %vm3588, %v3670, %v3669
  %v3672 = vsub.s32 4, %v3648
  %v3673 = vsel %vm3588, %v3672, %v3648
  %v3674 = vsel %vm3587, %v2290, %v3671
  %v3675 = vsel %vm3587, 0, %v3673
  %v3676 = vcosq.f32.pop %v3674
  %v3677 = vsinq.f32.pop %v3674
  %vm3678 = vweird.f32 %v2290
  %v3679 = vand.u32 %v3675, 3
  %vm3680 = vcmp.lt.s32.totalorder %v3679, 2
  %vm3681 = vcmp.eq.s32.totalorder %v3679, 0
  %v3682 = vxor.u32 %v3677, 2147483648
  %v3683 = vsel %vm3681, %v3676, %v3682
  %vm3684 = vcmp.eq.s32.totalorder %v3679, 2
  %v3685 = vxor.u32 %v3676, 2147483648
  %v3686 = vsel %vm3684, %v3685, %v3677
  %v3687 = vsel %vm3680, %v3683, %v3686
  %v3688 = vsel %vm3678, nan, %v3687
  %v3689 = vand.u32 2147483647, %v2291
  %vm3690 = vcmp.le.f32.partialorder %v3689, 0.7853982
  %vm3691 = vcmp.lt.s32.totalorder %v2291, 0
  %v3692 = vand.u32 %v2291, 2139095040
  %v3693 = vshrl.u32 %v3692, 23
  %v3694 = vsub.s32 %v3693, 127
  %v3695 = vand.u32 2147483647, %v2291
  %v3696 = vand.u32 %v3695, 8388607
  %v3697 = vor.u32 %v3696, 8388608
  %v3698 = vsub.s32 0, %v3697
  %v3699 = vadd.s32 %v3694, 1
  %vm3700 = vcmp.gt.s32.totalorder %v3699, 0
  %v3701 = vsel %vm3700, %v3699, 0
  %v3702 = vshrl.u32 %v3701, 5
  %v3703 = vand.u32 %v3701, 31
  %v3704 = vsub.s32 32, %v3703
  %v3705 = vshrl.u32 683565275, %v3704
  %v3706 = vshll.u32 683565275, %v3703
  %v3707 = vshrl.u32 2475754826, %v3704
  %v3708 = vor.u32 %v3706, %v3707
  %v3709 = vshll.u32 2475754826, %v3703
  %v3710 = vshrl.u32 2131351028, %v3704
  %v3711 = vor.u32 %v3709, %v3710
  %v3712 = vshll.u32 2131351028, %v3703
  %v3713 = vshrl.u32 2102212464, %v3704
  %v3714 = vor.u32 %v3712, %v3713
  %v3715 = vshll.u32 2102212464, %v3703
  %v3716 = vshrl.u32 920167782, %v3704
  %v3717 = vor.u32 %v3715, %v3716
  %v3718 = vshll.u32 920167782, %v3703
  %v3719 = vshrl.u32 1326507024, %v3704
  %v3720 = vor.u32 %v3718, %v3719
  %vm3721 = vcmp.lt.s32.totalorder %v3702, 1
  %vm3722 = vcmp.lt.s32.totalorder %v3702, 2
  %vm3723 = vcmp.lt.s32.totalorder %v3702, 3
  %vm3724 = vcmp.lt.s32.totalorder %v3702, 4
  %v3725 = vsel %vm3721, %v3705, %v3708
  %v3726 = vsel %vm3724, %v3714, 2102212464
  %v3727 = vsel %vm3723, %v3711, %v3726
  %v3728 = vsel %vm3722, %v3725, %v3727
  %v3729 = vsel %vm3721, %v3708, %v3711
  %v3730 = vsel %vm3724, %v3717, 920167782
  %v3731 = vsel %vm3723, %v3714, %v3730
  %v3732 = vsel %vm3722, %v3729, %v3731
  %v3733 = vsel %vm3721, %v3711, %v3714
  %v3734 = vsel %vm3724, %v3720, 1326507024
  %v3735 = vsel %vm3723, %v3717, %v3734
  %v3736 = vsel %vm3722, %v3733, %v3735
  %v3737 = vshll.u32 %v3697, 8
  %v3738 = vmul.u32.u64.compose %v3737, %v3736
  %v3739 = vextract.low.u32 %v3738
  %v3740 = vextract.high.u32 %v3738
  %v3741 = vmul.u32.u64.compose %v3737, %v3732
  %v3742 = vextract.low.u32 %v3741
  %v3743 = vextract.high.u32 %v3741
  %v3744 = vmul.u32 %v3737, %v3728
  %v3745 = vadd.s32 %v3740, %v3742
  %vm3746 = vc.u32 %v3740, %v3742
  %v3747 = vadd.s32 %v3743, 1
  %v3748 = vsel %vm3746, %v3747, %v3743
  %v3749 = vadd.s32 %v3744, %v3748
  %v3750 = vadd.s32 %v3749, 536870912
  %v3751 = vshrl.u32 %v3750, 30
  %v3752 = vshll.u32 %v3751, 30
  %v3753 = vsub.s32 %v3749, %v3752
  %vm3754 = vcmp.lt.s32.totalorder %v3753, 0
  %v3755 = vsub.s32 0, %v3753
  %v3756 = vsel %vm3754, %v3755, %v3753
  %v3757 = vclz %v3756
  %v3758 = vsub.s32 %v3757, 2
  %vm3759 = vcmp.gt.s32.totalorder 0, %v3758
  %v3760 = vsel %vm3759, 0, %v3758
  %v3761 = vsub.s32 32, %v3760
  %v3762 = vshll.u32 %v3753, %v3760
  %v3763 = vshrl.u32 %v3745, %v3761
  %v3764 = vor.u32 %v3762, %v3763
  %v3765 = vsub.s32 4294967266, %v3760
  %v3766 = vadd.s32 %v3765, 127
  %v3767 = vshll.u32 %v3766, 23
  %v3768 = vor.u32 4788187, %v3767
  %v3769 = vand.u32 2147483647, %v3768
  %v3771 = vcvt.s32.f32 %v3764
  %v3772 = vmul.f32 %v3771, %v3769
  %v3773 = vxor.u32 %v3772, 2147483648
  %v3774 = vsel %vm3691, %v3773, %v3772
  %v3775 = vsub.s32 4, %v3751
  %v3776 = vsel %vm3691, %v3775, %v3751
  %v3777 = vsel %vm3690, %v2291, %v3774
  %v3778 = vsel %vm3690, 0, %v3776
  %v3779 = vcosq.f32.pop %v3777
  %v3780 = vsinq.f32.pop %v3777
  %vm3781 = vweird.f32 %v2291
  %v3782 = vand.u32 %v3778, 3
  %vm3783 = vcmp.lt.s32.totalorder %v3782, 2
  %vm3784 = vcmp.eq.s32.totalorder %v3782, 0
  %v3785 = vxor.u32 %v3780, 2147483648
  %v3786 = vsel %vm3784, %v3779, %v3785
  %vm3787 = vcmp.eq.s32.totalorder %v3782, 2
  %v3788 = vxor.u32 %v3779, 2147483648
  %v3789 = vsel %vm3787, %v3788, %v3780
  %v3790 = vsel %vm3783, %v3786, %v3789
  %v3791 = vsel %vm3781, nan, %v3790
  %v3792 = vand.u32 2147483647, %v2292
  %vm3793 = vcmp.le.f32.partialorder %v3792, 0.7853982
  %vm3794 = vcmp.lt.s32.totalorder %v2292, 0
  %v3795 = vand.u32 %v2292, 2139095040
  %v3796 = vshrl.u32 %v3795, 23
  %v3797 = vsub.s32 %v3796, 127
  %v3798 = vand.u32 2147483647, %v2292
  %v3799 = vand.u32 %v3798, 8388607
  %v3800 = vor.u32 %v3799, 8388608
  %v3801 = vsub.s32 0, %v3800
  %v3802 = vadd.s32 %v3797, 1
  %vm3803 = vcmp.gt.s32.totalorder %v3802, 0
  %v3804 = vsel %vm3803, %v3802, 0
  %v3805 = vshrl.u32 %v3804, 5
  %v3806 = vand.u32 %v3804, 31
  %v3807 = vsub.s32 32, %v3806
  %v3808 = vshrl.u32 683565275, %v3807
  %v3809 = vshll.u32 683565275, %v3806
  %v3810 = vshrl.u32 2475754826, %v3807
  %v3811 = vor.u32 %v3809, %v3810
  %v3812 = vshll.u32 2475754826, %v3806
  %v3813 = vshrl.u32 2131351028, %v3807
  %v3814 = vor.u32 %v3812, %v3813
  %v3815 = vshll.u32 2131351028, %v3806
  %v3816 = vshrl.u32 2102212464, %v3807
  %v3817 = vor.u32 %v3815, %v3816
  %v3818 = vshll.u32 2102212464, %v3806
  %v3819 = vshrl.u32 920167782, %v3807
  %v3820 = vor.u32 %v3818, %v3819
  %v3821 = vshll.u32 920167782, %v3806
  %v3822 = vshrl.u32 1326507024, %v3807
  %v3823 = vor.u32 %v3821, %v3822
  %vm3824 = vcmp.lt.s32.totalorder %v3805, 1
  %vm3825 = vcmp.lt.s32.totalorder %v3805, 2
  %vm3826 = vcmp.lt.s32.totalorder %v3805, 3
  %vm3827 = vcmp.lt.s32.totalorder %v3805, 4
  %v3828 = vsel %vm3824, %v3808, %v3811
  %v3829 = vsel %vm3827, %v3817, 2102212464
  %v3830 = vsel %vm3826, %v3814, %v3829
  %v3831 = vsel %vm3825, %v3828, %v3830
  %v3832 = vsel %vm3824, %v3811, %v3814
  %v3833 = vsel %vm3827, %v3820, 920167782
  %v3834 = vsel %vm3826, %v3817, %v3833
  %v3835 = vsel %vm3825, %v3832, %v3834
  %v3836 = vsel %vm3824, %v3814, %v3817
  %v3837 = vsel %vm3827, %v3823, 1326507024
  %v3838 = vsel %vm3826, %v3820, %v3837
  %v3839 = vsel %vm3825, %v3836, %v3838
  %v3840 = vshll.u32 %v3800, 8
  %v3841 = vmul.u32.u64.compose %v3840, %v3839
  %v3842 = vextract.low.u32 %v3841
  %v3843 = vextract.high.u32 %v3841
  %v3844 = vmul.u32.u64.compose %v3840, %v3835
  %v3845 = vextract.low.u32 %v3844
  %v3846 = vextract.high.u32 %v3844
  %v3847 = vmul.u32 %v3840, %v3831
  %v3848 = vadd.s32 %v3843, %v3845
  %vm3849 = vc.u32 %v3843, %v3845
  %v3850 = vadd.s32 %v3846, 1
  %v3851 = vsel %vm3849, %v3850, %v3846
  %v3852 = vadd.s32 %v3847, %v3851
  %v3853 = vadd.s32 %v3852, 536870912
  %v3854 = vshrl.u32 %v3853, 30
  %v3855 = vshll.u32 %v3854, 30
  %v3856 = vsub.s32 %v3852, %v3855
  %vm3857 = vcmp.lt.s32.totalorder %v3856, 0
  %v3858 = vsub.s32 0, %v3856
  %v3859 = vsel %vm3857, %v3858, %v3856
  %v3860 = vclz %v3859
  %v3861 = vsub.s32 %v3860, 2
  %vm3862 = vcmp.gt.s32.totalorder 0, %v3861
  %v3863 = vsel %vm3862, 0, %v3861
  %v3864 = vsub.s32 32, %v3863
  %v3865 = vshll.u32 %v3856, %v3863
  %v3866 = vshrl.u32 %v3848, %v3864
  %v3867 = vor.u32 %v3865, %v3866
  %v3868 = vsub.s32 4294967266, %v3863
  %v3869 = vadd.s32 %v3868, 127
  %v3870 = vshll.u32 %v3869, 23
  %v3871 = vor.u32 4788187, %v3870
  %v3872 = vand.u32 2147483647, %v3871
  %v3874 = vcvt.s32.f32 %v3867
  %v3875 = vmul.f32 %v3874, %v3872
  %v3876 = vxor.u32 %v3875, 2147483648
  %v3877 = vsel %vm3794, %v3876, %v3875
  %v3878 = vsub.s32 4, %v3854
  %v3879 = vsel %vm3794, %v3878, %v3854
  %v3880 = vsel %vm3793, %v2292, %v3877
  %v3881 = vsel %vm3793, 0, %v3879
  %v3882 = vcosq.f32.pop %v3880
  %v3883 = vsinq.f32.pop %v3880
  %vm3884 = vweird.f32 %v2292
  %v3885 = vand.u32 %v3881, 3
  %vm3886 = vcmp.lt.s32.totalorder %v3885, 2
  %vm3887 = vcmp.eq.s32.totalorder %v3885, 0
  %v3888 = vxor.u32 %v3883, 2147483648
  %v3889 = vsel %vm3887, %v3882, %v3888
  %vm3890 = vcmp.eq.s32.totalorder %v3885, 2
  %v3891 = vxor.u32 %v3882, 2147483648
  %v3892 = vsel %vm3890, %v3891, %v3883
  %v3893 = vsel %vm3886, %v3889, %v3892
  %v3894 = vsel %vm3884, nan, %v3893
  %v3895 = vand.u32 2147483647, %v2293
  %vm3896 = vcmp.le.f32.partialorder %v3895, 0.7853982
  %vm3897 = vcmp.lt.s32.totalorder %v2293, 0
  %v3898 = vand.u32 %v2293, 2139095040
  %v3899 = vshrl.u32 %v3898, 23
  %v3900 = vsub.s32 %v3899, 127
  %v3901 = vand.u32 2147483647, %v2293
  %v3902 = vand.u32 %v3901, 8388607
  %v3903 = vor.u32 %v3902, 8388608
  %v3904 = vsub.s32 0, %v3903
  %v3905 = vadd.s32 %v3900, 1
  %vm3906 = vcmp.gt.s32.totalorder %v3905, 0
  %v3907 = vsel %vm3906, %v3905, 0
  %v3908 = vshrl.u32 %v3907, 5
  %v3909 = vand.u32 %v3907, 31
  %v3910 = vsub.s32 32, %v3909
  %v3911 = vshrl.u32 683565275, %v3910
  %v3912 = vshll.u32 683565275, %v3909
  %v3913 = vshrl.u32 2475754826, %v3910
  %v3914 = vor.u32 %v3912, %v3913
  %v3915 = vshll.u32 2475754826, %v3909
  %v3916 = vshrl.u32 2131351028, %v3910
  %v3917 = vor.u32 %v3915, %v3916
  %v3918 = vshll.u32 2131351028, %v3909
  %v3919 = vshrl.u32 2102212464, %v3910
  %v3920 = vor.u32 %v3918, %v3919
  %v3921 = vshll.u32 2102212464, %v3909
  %v3922 = vshrl.u32 920167782, %v3910
  %v3923 = vor.u32 %v3921, %v3922
  %v3924 = vshll.u32 920167782, %v3909
  %v3925 = vshrl.u32 1326507024, %v3910
  %v3926 = vor.u32 %v3924, %v3925
  %vm3927 = vcmp.lt.s32.totalorder %v3908, 1
  %vm3928 = vcmp.lt.s32.totalorder %v3908, 2
  %vm3929 = vcmp.lt.s32.totalorder %v3908, 3
  %vm3930 = vcmp.lt.s32.totalorder %v3908, 4
  %v3931 = vsel %vm3927, %v3911, %v3914
  %v3932 = vsel %vm3930, %v3920, 2102212464
  %v3933 = vsel %vm3929, %v3917, %v3932
  %v3934 = vsel %vm3928, %v3931, %v3933
  %v3935 = vsel %vm3927, %v3914, %v3917
  %v3936 = vsel %vm3930, %v3923, 920167782
  %v3937 = vsel %vm3929, %v3920, %v3936
  %v3938 = vsel %vm3928, %v3935, %v3937
  %v3939 = vsel %vm3927, %v3917, %v3920
  %v3940 = vsel %vm3930, %v3926, 1326507024
  %v3941 = vsel %vm3929, %v3923, %v3940
  %v3942 = vsel %vm3928, %v3939, %v3941
  %v3943 = vshll.u32 %v3903, 8
  %v3944 = vmul.u32.u64.compose %v3943, %v3942
  %v3945 = vextract.low.u32 %v3944
  %v3946 = vextract.high.u32 %v3944
  %v3947 = vmul.u32.u64.compose %v3943, %v3938
  %v3948 = vextract.low.u32 %v3947
  %v3949 = vextract.high.u32 %v3947
  %v3950 = vmul.u32 %v3943, %v3934
  %v3951 = vadd.s32 %v3946, %v3948
  %vm3952 = vc.u32 %v3946, %v3948
  %v3953 = vadd.s32 %v3949, 1
  %v3954 = vsel %vm3952, %v3953, %v3949
  %v3955 = vadd.s32 %v3950, %v3954
  %v3956 = vadd.s32 %v3955, 536870912
  %v3957 = vshrl.u32 %v3956, 30
  %v3958 = vshll.u32 %v3957, 30
  %v3959 = vsub.s32 %v3955, %v3958
  %vm3960 = vcmp.lt.s32.totalorder %v3959, 0
  %v3961 = vsub.s32 0, %v3959
  %v3962 = vsel %vm3960, %v3961, %v3959
  %v3963 = vclz %v3962
  %v3964 = vsub.s32 %v3963, 2
  %vm3965 = vcmp.gt.s32.totalorder 0, %v3964
  %v3966 = vsel %vm3965, 0, %v3964
  %v3967 = vsub.s32 32, %v3966
  %v3968 = vshll.u32 %v3959, %v3966
  %v3969 = vshrl.u32 %v3951, %v3967
  %v3970 = vor.u32 %v3968, %v3969
  %v3971 = vsub.s32 4294967266, %v3966
  %v3972 = vadd.s32 %v3971, 127
  %v3973 = vshll.u32 %v3972, 23
  %v3974 = vor.u32 4788187, %v3973
  %v3975 = vand.u32 2147483647, %v3974
  %v3977 = vcvt.s32.f32 %v3970
  %v3978 = vmul.f32 %v3977, %v3975
  %v3979 = vxor.u32 %v3978, 2147483648
  %v3980 = vsel %vm3897, %v3979, %v3978
  %v3981 = vsub.s32 4, %v3957
  %v3982 = vsel %vm3897, %v3981, %v3957
  %v3983 = vsel %vm3896, %v2293, %v3980
  %v3984 = vsel %vm3896, 0, %v3982
  %v3985 = vcosq.f32.pop %v3983
  %v3986 = vsinq.f32.pop %v3983
  %vm3987 = vweird.f32 %v2293
  %v3988 = vand.u32 %v3984, 3
  %vm3989 = vcmp.lt.s32.totalorder %v3988, 2
  %vm3990 = vcmp.eq.s32.totalorder %v3988, 0
  %v3991 = vxor.u32 %v3986, 2147483648
  %v3992 = vsel %vm3990, %v3985, %v3991
  %vm3993 = vcmp.eq.s32.totalorder %v3988, 2
  %v3994 = vxor.u32 %v3985, 2147483648
  %v3995 = vsel %vm3993, %v3994, %v3986
  %v3996 = vsel %vm3989, %v3992, %v3995
  %v3997 = vsel %vm3987, nan, %v3996
  %v3998 = vmul.f32 %v3166, %v3276
  %v3999 = vmul.f32 %v3167, %v3379
  %v4000 = vmul.f32 %v3168, %v3482
  %v4001 = vmul.f32 %v3169, %v3585
  %v4002 = vmul.f32 %v3170, %v3688
  %v4003 = vmul.f32 %v3171, %v3791
  %v4004 = vmul.f32 %v3172, %v3894
  %v4005 = vmul.f32 %v3173, %v3997
  %v4006 = vmul.f32 %v3998, 1.442695
  %v4007 = vpow.pop %v4006
  %v4008 = vmul.f32 %v3999, 1.442695
  %v4009 = vpow.pop %v4008
  %v4010 = vmul.f32 %v4000, 1.442695
  %v4011 = vpow.pop %v4010
  %v4012 = vmul.f32 %v4001, 1.442695
  %v4013 = vpow.pop %v4012
  %v4014 = vmul.f32 %v4002, 1.442695
  %v4015 = vpow.pop %v4014
  %v4016 = vmul.f32 %v4003, 1.442695
  %v4017 = vpow.pop %v4016
  %v4018 = vmul.f32 %v4004, 1.442695
  %v4019 = vpow.pop %v4018
  %v4020 = vmul.f32 %v4005, 1.442695
  %v4021 = vpow.pop %v4020
  %v4022 = vadd.f32 %v14, %v2294
  %v4023 = vadd.f32 %v15, %v2295
  %v4024 = vadd.f32 %v16, %v2296
  %v4025 = vadd.f32 %v17, %v2297
  %v4026 = vadd.f32 %v18, %v2298
  %v4027 = vadd.f32 %v19, %v2299
  %v4028 = vadd.f32 %v20, %v2300
  %v4029 = vadd.f32 %v21, %v2301
  %v4030 = vsub.f32 %v14, %v2294
  %v4031 = vsub.f32 %v15, %v2295
  %v4032 = vsub.f32 %v16, %v2296
  %v4033 = vsub.f32 %v17, %v2297
  %v4034 = vsub.f32 %v18, %v2298
  %v4035 = vsub.f32 %v19, %v2299
  %v4036 = vsub.f32 %v20, %v2300
  %v4037 = vsub.f32 %v21, %v2301
  %v4038 = vmul.f32 %v4022, %v3151
  %v4039 = vmul.f32 %v4023, %v3153
  %v4040 = vmul.f32 %v4024, %v3155
  %v4041 = vmul.f32 %v4025, %v3157
  %v4042 = vmul.f32 %v4026, %v3159
  %v4043 = vmul.f32 %v4027, %v3161
  %v4044 = vmul.f32 %v4028, %v3163
  %v4045 = vmul.f32 %v4029, %v3165
  %v4046 = vsub.f32 %v4038, %v2294
  %v4047 = vsub.f32 %v4039, %v2295
  %v4048 = vsub.f32 %v4040, %v2296
  %v4049 = vsub.f32 %v4041, %v2297
  %v4050 = vsub.f32 %v4042, %v2298
  %v4051 = vsub.f32 %v4043, %v2299
  %v4052 = vsub.f32 %v4044, %v2300
  %v4053 = vsub.f32 %v4045, %v2301
  %v4054 = vmul.f32 %v4022, %v4007
  %v4055 = vmul.f32 %v4023, %v4009
  %v4056 = vmul.f32 %v4024, %v4011
  %v4057 = vmul.f32 %v4025, %v4013
  %v4058 = vmul.f32 %v4026, %v4015
  %v4059 = vmul.f32 %v4027, %v4017
  %v4060 = vmul.f32 %v4028, %v4019
  %v4061 = vmul.f32 %v4029, %v4021
  %v4062 = vsub.f32 %v4054, %v2294
  %v4063 = vsub.f32 %v4055, %v2295
  %v4064 = vsub.f32 %v4056, %v2296
  %v4065 = vsub.f32 %v4057, %v2297
  %v4066 = vsub.f32 %v4058, %v2298
  %v4067 = vsub.f32 %v4059, %v2299
  %v4068 = vsub.f32 %v4060, %v2300
  %v4069 = vsub.f32 %v4061, %v2301
  %v4070 = vmul.f32 %v4030, %v3151
  %v4071 = vmul.f32 %v4031, %v3153
  %v4072 = vmul.f32 %v4032, %v3155
  %v4073 = vmul.f32 %v4033, %v3157
  %v4074 = vmul.f32 %v4034, %v3159
  %v4075 = vmul.f32 %v4035, %v3161
  %v4076 = vmul.f32 %v4036, %v3163
  %v4077 = vmul.f32 %v4037, %v3165
  %v4078 = vadd.f32 %v4070, %v2294
  %v4079 = vadd.f32 %v4071, %v2295
  %v4080 = vadd.f32 %v4072, %v2296
  %v4081 = vadd.f32 %v4073, %v2297
  %v4082 = vadd.f32 %v4074, %v2298
  %v4083 = vadd.f32 %v4075, %v2299
  %v4084 = vadd.f32 %v4076, %v2300
  %v4085 = vadd.f32 %v4077, %v2301
  %v4086 = vmul.f32 %v4030, %v4007
  %v4087 = vmul.f32 %v4031, %v4009
  %v4088 = vmul.f32 %v4032, %v4011
  %v4089 = vmul.f32 %v4033, %v4013
  %v4090 = vmul.f32 %v4034, %v4015
  %v4091 = vmul.f32 %v4035, %v4017
  %v4092 = vmul.f32 %v4036, %v4019
  %v4093 = vmul.f32 %v4037, %v4021
  %v4094 = vadd.f32 %v4086, %v2294
  %v4095 = vadd.f32 %v4087, %v2295
  %v4096 = vadd.f32 %v4088, %v2296
  %v4097 = vadd.f32 %v4089, %v2297
  %v4098 = vadd.f32 %v4090, %v2298
  %v4099 = vadd.f32 %v4091, %v2299
  %v4100 = vadd.f32 %v4092, %v2300
  %v4101 = vadd.f32 %v4093, %v2301
  %v4102 = vld [vmem:[%s1 + $0xb0] sm:$0xf]
  %v4103 = vld [vmem:[%s1 + $0xb8] sm:$0xf]
  %v4105 = vsel %vm23, %v4103, 0
  %4107 = vmatprep.subr.mxu0 %v4063
  %4108 = vmatpush1.msra.mxu0 %v4062
  %4109 = vmatprep.subr.mxu0 %v4067
  %4110 = vmatpush1.msra.mxu0 %v4066
  %4111 = vmatprep.subr.mxu0 0.0
  %4112 = vmatpush1.msra.mxu0 0.0
  %4113 = vmatprep.subr.mxu0 0.0
  %4114 = vmatpush1.msra.mxu0 0.0
  %4115 = vmatprep.subr.mxu0 0.0
  %4116 = vmatpush1.msra.mxu0 0.0
  %4117 = vmatprep.subr.mxu0 0.0
  %4118 = vmatpush1.msra.mxu0 0.0
  %4119 = vmatprep.subr.mxu0 0.0
  %4120 = vmatpush1.msra.mxu0 0.0
  %4121 = vmatprep.subr.mxu0 0.0
  %4122 = vmatpush1.msra.mxu0 0.0
  %4123 = vmatprep.subr.mxu0 0.0
  %4124 = vmatpush1.msra.mxu0 0.0
  %4125 = vmatprep.subr.mxu0 0.0
  %4126 = vmatpush1.msra.mxu0 0.0
  %4127 = vmatprep.subr.mxu0 0.0
  %4128 = vmatpush1.msra.mxu0 0.0
  %4129 = vmatprep.subr.mxu0 0.0
  %4130 = vmatpush1.msra.mxu0 0.0
  %4131 = vmatprep.subr.mxu0 0.0
  %4132 = vmatpush1.msra.mxu0 0.0
  %4133 = vmatprep.subr.mxu0 0.0
  %4134 = vmatpush1.msra.mxu0 0.0
  %4135 = vmatprep.subr.mxu0 0.0
  %4136 = vmatpush1.msra.mxu0 0.0
  %4137 = vmatprep.subr.mxu0 0.0
  %4138 = vmatpush1.msra.mxu0 0.0
  %4139 = vmatprep.subr.mxu0 0.0
  %4140 = vmatpush1.msra.mxu0 0.0
  %4141 = vmatprep.subr.mxu0 0.0
  %4142 = vmatpush1.msra.mxu0 0.0
  %4143 = vmatprep.subr.mxu0 0.0
  %4144 = vmatpush1.msra.mxu0 0.0
  %4145 = vmatprep.subr.mxu0 0.0
  %4146 = vmatpush1.msra.mxu0 0.0
  %4147 = vmatprep.subr.mxu0 0.0
  %4148 = vmatpush1.msra.mxu0 0.0
  %4149 = vmatprep.subr.mxu0 0.0
  %4150 = vmatpush1.msra.mxu0 0.0
  %4151 = vmatprep.subr.mxu0 0.0
  %4152 = vmatpush1.msra.mxu0 0.0
  %4153 = vmatprep.subr.mxu0 0.0
  %4154 = vmatpush1.msra.mxu0 0.0
  %4155 = vmatprep.subr.mxu0 0.0
  %4156 = vmatpush1.msra.mxu0 0.0
  %4157 = vmatprep.subr.mxu0 0.0
  %4158 = vmatpush1.msra.mxu0 0.0
  %4159 = vmatprep.subr.mxu0 0.0
  %4160 = vmatpush1.msra.mxu0 0.0
  %4161 = vmatprep.subr.mxu0 0.0
  %4162 = vmatpush1.msra.mxu0 0.0
  %4163 = vmatprep.subr.mxu0 0.0
  %4164 = vmatpush1.msra.mxu0 0.0
  %4165 = vmatprep.subr.mxu0 0.0
  %4166 = vmatpush1.msra.mxu0 0.0
  %4167 = vmatprep.subr.mxu0 0.0
  %4168 = vmatpush1.msra.mxu0 0.0
  %4169 = vmatprep.subr.mxu0 0.0
  %4170 = vmatpush1.msra.mxu0 0.0
  %4171 = vmatprep.mubr.f32.mxu0 0.0
  %4172 = vmatmul.mubr.f32.gmra.mrb[0].mxu0 %v4105
  %v4173 = vpop.f32.mrb[0].mxu0
  %v4174 = vadd.f32 0.0, %v4173
  %v4175 = vpop.f32.mrb[0].mxu0
  %v4176 = vadd.f32 0.0, %v4175
  %4177 = vdwg.mxu0
  %4178 = vmatprep.subr.mxu0 %v4065
  %4179 = vmatpush1.msra.mxu0 %v4064
  %4180 = vmatprep.subr.mxu0 %v4069
  %4181 = vmatpush1.msra.mxu0 %v4068
  %4182 = vmatprep.subr.mxu0 0.0
  %4183 = vmatpush1.msra.mxu0 0.0
  %4184 = vmatprep.subr.mxu0 0.0
  %4185 = vmatpush1.msra.mxu0 0.0
  %4186 = vmatprep.subr.mxu0 0.0
  %4187 = vmatpush1.msra.mxu0 0.0
  %4188 = vmatprep.subr.mxu0 0.0
  %4189 = vmatpush1.msra.mxu0 0.0
  %4190 = vmatprep.subr.mxu0 0.0
  %4191 = vmatpush1.msra.mxu0 0.0
  %4192 = vmatprep.subr.mxu0 0.0
  %4193 = vmatpush1.msra.mxu0 0.0
  %4194 = vmatprep.subr.mxu0 0.0
  %4195 = vmatpush1.msra.mxu0 0.0
  %4196 = vmatprep.subr.mxu0 0.0
  %4197 = vmatpush1.msra.mxu0 0.0
  %4198 = vmatprep.subr.mxu0 0.0
  %4199 = vmatpush1.msra.mxu0 0.0
  %4200 = vmatprep.subr.mxu0 0.0
  %4201 = vmatpush1.msra.mxu0 0.0
  %4202 = vmatprep.subr.mxu0 0.0
  %4203 = vmatpush1.msra.mxu0 0.0
  %4204 = vmatprep.subr.mxu0 0.0
  %4205 = vmatpush1.msra.mxu0 0.0
  %4206 = vmatprep.subr.mxu0 0.0
  %4207 = vmatpush1.msra.mxu0 0.0
  %4208 = vmatprep.subr.mxu0 0.0
  %4209 = vmatpush1.msra.mxu0 0.0
  %4210 = vmatprep.subr.mxu0 0.0
  %4211 = vmatpush1.msra.mxu0 0.0
  %4212 = vmatprep.subr.mxu0 0.0
  %4213 = vmatpush1.msra.mxu0 0.0
  %4214 = vmatprep.subr.mxu0 0.0
  %4215 = vmatpush1.msra.mxu0 0.0
  %4216 = vmatprep.subr.mxu0 0.0
  %4217 = vmatpush1.msra.mxu0 0.0
  %4218 = vmatprep.subr.mxu0 0.0
  %4219 = vmatpush1.msra.mxu0 0.0
  %4220 = vmatprep.subr.mxu0 0.0
  %4221 = vmatpush1.msra.mxu0 0.0
  %4222 = vmatprep.subr.mxu0 0.0
  %4223 = vmatpush1.msra.mxu0 0.0
  %4224 = vmatprep.subr.mxu0 0.0
  %4225 = vmatpush1.msra.mxu0 0.0
  %4226 = vmatprep.subr.mxu0 0.0
  %4227 = vmatpush1.msra.mxu0 0.0
  %4228 = vmatprep.subr.mxu0 0.0
  %4229 = vmatpush1.msra.mxu0 0.0
  %4230 = vmatprep.subr.mxu0 0.0
  %4231 = vmatpush1.msra.mxu0 0.0
  %4232 = vmatprep.subr.mxu0 0.0
  %4233 = vmatpush1.msra.mxu0 0.0
  %4234 = vmatprep.subr.mxu0 0.0
  %4235 = vmatpush1.msra.mxu0 0.0
  %4236 = vmatprep.subr.mxu0 0.0
  %4237 = vmatpush1.msra.mxu0 0.0
  %4238 = vmatprep.subr.mxu0 0.0
  %4239 = vmatpush1.msra.mxu0 0.0
  %4240 = vmatprep.subr.mxu0 0.0
  %4241 = vmatpush1.msra.mxu0 0.0
  %4242 = vmatprep.mubr.f32.mxu0 0.0
  %4243 = vmatmul.mubr.f32.gmra.mrb[0].mxu0 %v4105
  %v4244 = vpop.f32.mrb[0].mxu0
  %v4245 = vadd.f32 0.0, %v4244
  %v4246 = vpop.f32.mrb[0].mxu0
  %v4247 = vadd.f32 0.0, %v4246
  %4248 = vdwg.mxu0
  %v4250 = vsel %vm23, %v4102, 0
  %4252 = vmatprep.subr.mxu0 %v4047
  %4253 = vmatpush1.msra.mxu0 %v4046
  %4254 = vmatprep.subr.mxu0 %v4051
  %4255 = vmatpush1.msra.mxu0 %v4050
  %4256 = vmatprep.subr.mxu0 0.0
  %4257 = vmatpush1.msra.mxu0 0.0
  %4258 = vmatprep.subr.mxu0 0.0
  %4259 = vmatpush1.msra.mxu0 0.0
  %4260 = vmatprep.subr.mxu0 0.0
  %4261 = vmatpush1.msra.mxu0 0.0
  %4262 = vmatprep.subr.mxu0 0.0
  %4263 = vmatpush1.msra.mxu0 0.0
  %4264 = vmatprep.subr.mxu0 0.0
  %4265 = vmatpush1.msra.mxu0 0.0
  %4266 = vmatprep.subr.mxu0 0.0
  %4267 = vmatpush1.msra.mxu0 0.0
  %4268 = vmatprep.subr.mxu0 0.0
  %4269 = vmatpush1.msra.mxu0 0.0
  %4270 = vmatprep.subr.mxu0 0.0
  %4271 = vmatpush1.msra.mxu0 0.0
  %4272 = vmatprep.subr.mxu0 0.0
  %4273 = vmatpush1.msra.mxu0 0.0
  %4274 = vmatprep.subr.mxu0 0.0
  %4275 = vmatpush1.msra.mxu0 0.0
  %4276 = vmatprep.subr.mxu0 0.0
  %4277 = vmatpush1.msra.mxu0 0.0
  %4278 = vmatprep.subr.mxu0 0.0
  %4279 = vmatpush1.msra.mxu0 0.0
  %4280 = vmatprep.subr.mxu0 0.0
  %4281 = vmatpush1.msra.mxu0 0.0
  %4282 = vmatprep.subr.mxu0 0.0
  %4283 = vmatpush1.msra.mxu0 0.0
  %4284 = vmatprep.subr.mxu0 0.0
  %4285 = vmatpush1.msra.mxu0 0.0
  %4286 = vmatprep.subr.mxu0 0.0
  %4287 = vmatpush1.msra.mxu0 0.0
  %4288 = vmatprep.subr.mxu0 0.0
  %4289 = vmatpush1.msra.mxu0 0.0
  %4290 = vmatprep.subr.mxu0 0.0
  %4291 = vmatpush1.msra.mxu0 0.0
  %4292 = vmatprep.subr.mxu0 0.0
  %4293 = vmatpush1.msra.mxu0 0.0
  %4294 = vmatprep.subr.mxu0 0.0
  %4295 = vmatpush1.msra.mxu0 0.0
  %4296 = vmatprep.subr.mxu0 0.0
  %4297 = vmatpush1.msra.mxu0 0.0
  %4298 = vmatprep.subr.mxu0 0.0
  %4299 = vmatpush1.msra.mxu0 0.0
  %4300 = vmatprep.subr.mxu0 0.0
  %4301 = vmatpush1.msra.mxu0 0.0
  %4302 = vmatprep.subr.mxu0 0.0
  %4303 = vmatpush1.msra.mxu0 0.0
  %4304 = vmatprep.subr.mxu0 0.0
  %4305 = vmatpush1.msra.mxu0 0.0
  %4306 = vmatprep.subr.mxu0 0.0
  %4307 = vmatpush1.msra.mxu0 0.0
  %4308 = vmatprep.subr.mxu0 0.0
  %4309 = vmatpush1.msra.mxu0 0.0
  %4310 = vmatprep.subr.mxu0 0.0
  %4311 = vmatpush1.msra.mxu0 0.0
  %4312 = vmatprep.subr.mxu0 0.0
  %4313 = vmatpush1.msra.mxu0 0.0
  %4314 = vmatprep.subr.mxu0 0.0
  %4315 = vmatpush1.msra.mxu0 0.0
  %4316 = vmatprep.mubr.f32.mxu0 0.0
  %4317 = vmatmul.mubr.f32.gmra.mrb[0].mxu0 %v4250
  %v4318 = vpop.f32.mrb[0].mxu0
  %v4319 = vadd.f32 %v4174, %v4318
  %v4320 = vpop.f32.mrb[0].mxu0
  %v4321 = vadd.f32 %v4176, %v4320
  %4322 = vdwg.mxu0
  %4323 = vmatprep.subr.mxu0 %v4049
  %4324 = vmatpush1.msra.mxu0 %v4048
  %4325 = vmatprep.subr.mxu0 %v4053
  %4326 = vmatpush1.msra.mxu0 %v4052
  %4327 = vmatprep.subr.mxu0 0.0
  %4328 = vmatpush1.msra.mxu0 0.0
  %4329 = vmatprep.subr.mxu0 0.0
  %4330 = vmatpush1.msra.mxu0 0.0
  %4331 = vmatprep.subr.mxu0 0.0
  %4332 = vmatpush1.msra.mxu0 0.0
  %4333 = vmatprep.subr.mxu0 0.0
  %4334 = vmatpush1.msra.mxu0 0.0
  %4335 = vmatprep.subr.mxu0 0.0
  %4336 = vmatpush1.msra.mxu0 0.0
  %4337 = vmatprep.subr.mxu0 0.0
  %4338 = vmatpush1.msra.mxu0 0.0
  %4339 = vmatprep.subr.mxu0 0.0
  %4340 = vmatpush1.msra.mxu0 0.0
  %4341 = vmatprep.subr.mxu0 0.0
  %4342 = vmatpush1.msra.mxu0 0.0
  %4343 = vmatprep.subr.mxu0 0.0
  %4344 = vmatpush1.msra.mxu0 0.0
  %4345 = vmatprep.subr.mxu0 0.0
  %4346 = vmatpush1.msra.mxu0 0.0
  %4347 = vmatprep.subr.mxu0 0.0
  %4348 = vmatpush1.msra.mxu0 0.0
  %4349 = vmatprep.subr.mxu0 0.0
  %4350 = vmatpush1.msra.mxu0 0.0
  %4351 = vmatprep.subr.mxu0 0.0
  %4352 = vmatpush1.msra.mxu0 0.0
  %4353 = vmatprep.subr.mxu0 0.0
  %4354 = vmatpush1.msra.mxu0 0.0
  %4355 = vmatprep.subr.mxu0 0.0
  %4356 = vmatpush1.msra.mxu0 0.0
  %4357 = vmatprep.subr.mxu0 0.0
  %4358 = vmatpush1.msra.mxu0 0.0
  %4359 = vmatprep.subr.mxu0 0.0
  %4360 = vmatpush1.msra.mxu0 0.0
  %4361 = vmatprep.subr.mxu0 0.0
  %4362 = vmatpush1.msra.mxu0 0.0
  %4363 = vmatprep.subr.mxu0 0.0
  %4364 = vmatpush1.msra.mxu0 0.0
  %4365 = vmatprep.subr.mxu0 0.0
  %4366 = vmatpush1.msra.mxu0 0.0
  %4367 = vmatprep.subr.mxu0 0.0
  %4368 = vmatpush1.msra.mxu0 0.0
  %4369 = vmatprep.subr.mxu0 0.0
  %4370 = vmatpush1.msra.mxu0 0.0
  %4371 = vmatprep.subr.mxu0 0.0
  %4372 = vmatpush1.msra.mxu0 0.0
  %4373 = vmatprep.subr.mxu0 0.0
  %4374 = vmatpush1.msra.mxu0 0.0
  %4375 = vmatprep.subr.mxu0 0.0
  %4376 = vmatpush1.msra.mxu0 0.0
  %4377 = vmatprep.subr.mxu0 0.0
  %4378 = vmatpush1.msra.mxu0 0.0
  %4379 = vmatprep.subr.mxu0 0.0
  %4380 = vmatpush1.msra.mxu0 0.0
  %4381 = vmatprep.subr.mxu0 0.0
  %4382 = vmatpush1.msra.mxu0 0.0
  %4383 = vmatprep.subr.mxu0 0.0
  %4384 = vmatpush1.msra.mxu0 0.0
  %4385 = vmatprep.subr.mxu0 0.0
  %4386 = vmatpush1.msra.mxu0 0.0
  %4387 = vmatprep.mubr.f32.mxu0 0.0
  %4388 = vmatmul.mubr.f32.gmra.mrb[0].mxu0 %v4250
  %v4389 = vpop.f32.mrb[0].mxu0
  %v4390 = vadd.f32 %v4245, %v4389
  %v4391 = vpop.f32.mrb[0].mxu0
  %v4392 = vadd.f32 %v4247, %v4391
  %4393 = vdwg.mxu0
  %v4394 = vld [vmem:[%s1 + $0xc0] sm:$0xf]
  %v4396 = vsel %vm23, %v4394, 0
  %4398 = vmatprep.subr.mxu0 %v4079
  %4399 = vmatpush1.msra.mxu0 %v4078
  %4400 = vmatprep.subr.mxu0 %v4083
  %4401 = vmatpush1.msra.mxu0 %v4082
  %4402 = vmatprep.subr.mxu0 0.0
  %4403 = vmatpush1.msra.mxu0 0.0
  %4404 = vmatprep.subr.mxu0 0.0
  %4405 = vmatpush1.msra.mxu0 0.0
  %4406 = vmatprep.subr.mxu0 0.0
  %4407 = vmatpush1.msra.mxu0 0.0
  %4408 = vmatprep.subr.mxu0 0.0
  %4409 = vmatpush1.msra.mxu0 0.0
  %4410 = vmatprep.subr.mxu0 0.0
  %4411 = vmatpush1.msra.mxu0 0.0
  %4412 = vmatprep.subr.mxu0 0.0
  %4413 = vmatpush1.msra.mxu0 0.0
  %4414 = vmatprep.subr.mxu0 0.0
  %4415 = vmatpush1.msra.mxu0 0.0
  %4416 = vmatprep.subr.mxu0 0.0
  %4417 = vmatpush1.msra.mxu0 0.0
  %4418 = vmatprep.subr.mxu0 0.0
  %4419 = vmatpush1.msra.mxu0 0.0
  %4420 = vmatprep.subr.mxu0 0.0
  %4421 = vmatpush1.msra.mxu0 0.0
  %4422 = vmatprep.subr.mxu0 0.0
  %4423 = vmatpush1.msra.mxu0 0.0
  %4424 = vmatprep.subr.mxu0 0.0
  %4425 = vmatpush1.msra.mxu0 0.0
  %4426 = vmatprep.subr.mxu0 0.0
  %4427 = vmatpush1.msra.mxu0 0.0
  %4428 = vmatprep.subr.mxu0 0.0
  %4429 = vmatpush1.msra.mxu0 0.0
  %4430 = vmatprep.subr.mxu0 0.0
  %4431 = vmatpush1.msra.mxu0 0.0
  %4432 = vmatprep.subr.mxu0 0.0
  %4433 = vmatpush1.msra.mxu0 0.0
  %4434 = vmatprep.subr.mxu0 0.0
  %4435 = vmatpush1.msra.mxu0 0.0
  %4436 = vmatprep.subr.mxu0 0.0
  %4437 = vmatpush1.msra.mxu0 0.0
  %4438 = vmatprep.subr.mxu0 0.0
  %4439 = vmatpush1.msra.mxu0 0.0
  %4440 = vmatprep.subr.mxu0 0.0
  %4441 = vmatpush1.msra.mxu0 0.0
  %4442 = vmatprep.subr.mxu0 0.0
  %4443 = vmatpush1.msra.mxu0 0.0
  %4444 = vmatprep.subr.mxu0 0.0
  %4445 = vmatpush1.msra.mxu0 0.0
  %4446 = vmatprep.subr.mxu0 0.0
  %4447 = vmatpush1.msra.mxu0 0.0
  %4448 = vmatprep.subr.mxu0 0.0
  %4449 = vmatpush1.msra.mxu0 0.0
  %4450 = vmatprep.subr.mxu0 0.0
  %4451 = vmatpush1.msra.mxu0 0.0
  %4452 = vmatprep.subr.mxu0 0.0
  %4453 = vmatpush1.msra.mxu0 0.0
  %4454 = vmatprep.subr.mxu0 0.0
  %4455 = vmatpush1.msra.mxu0 0.0
  %4456 = vmatprep.subr.mxu0 0.0
  %4457 = vmatpush1.msra.mxu0 0.0
  %4458 = vmatprep.subr.mxu0 0.0
  %4459 = vmatpush1.msra.mxu0 0.0
  %4460 = vmatprep.subr.mxu0 0.0
  %4461 = vmatpush1.msra.mxu0 0.0
  %4462 = vmatprep.mubr.f32.mxu0 0.0
  %4463 = vmatmul.mubr.f32.gmra.mrb[0].mxu0 %v4396
  %v4464 = vpop.f32.mrb[0].mxu0
  %v4465 = vadd.f32 0.0, %v4464
  %v4466 = vpop.f32.mrb[0].mxu0
  %v4467 = vadd.f32 0.0, %v4466
  %4468 = vdwg.mxu0
  %4469 = vmatprep.subr.mxu0 %v4081
  %4470 = vmatpush1.msra.mxu0 %v4080
  %4471 = vmatprep.subr.mxu0 %v4085
  %4472 = vmatpush1.msra.mxu0 %v4084
  %4473 = vmatprep.subr.mxu0 0.0
  %4474 = vmatpush1.msra.mxu0 0.0
  %4475 = vmatprep.subr.mxu0 0.0
  %4476 = vmatpush1.msra.mxu0 0.0
  %4477 = vmatprep.subr.mxu0 0.0
  %4478 = vmatpush1.msra.mxu0 0.0
  %4479 = vmatprep.subr.mxu0 0.0
  %4480 = vmatpush1.msra.mxu0 0.0
  %4481 = vmatprep.subr.mxu0 0.0
  %4482 = vmatpush1.msra.mxu0 0.0
  %4483 = vmatprep.subr.mxu0 0.0
  %4484 = vmatpush1.msra.mxu0 0.0
  %4485 = vmatprep.subr.mxu0 0.0
  %4486 = vmatpush1.msra.mxu0 0.0
  %4487 = vmatprep.subr.mxu0 0.0
  %4488 = vmatpush1.msra.mxu0 0.0
  %4489 = vmatprep.subr.mxu0 0.0
  %4490 = vmatpush1.msra.mxu0 0.0
  %4491 = vmatprep.subr.mxu0 0.0
  %4492 = vmatpush1.msra.mxu0 0.0
  %4493 = vmatprep.subr.mxu0 0.0
  %4494 = vmatpush1.msra.mxu0 0.0
  %4495 = vmatprep.subr.mxu0 0.0
  %4496 = vmatpush1.msra.mxu0 0.0
  %4497 = vmatprep.subr.mxu0 0.0
  %4498 = vmatpush1.msra.mxu0 0.0
  %4499 = vmatprep.subr.mxu0 0.0
  %4500 = vmatpush1.msra.mxu0 0.0
  %4501 = vmatprep.subr.mxu0 0.0
  %4502 = vmatpush1.msra.mxu0 0.0
  %4503 = vmatprep.subr.mxu0 0.0
  %4504 = vmatpush1.msra.mxu0 0.0
  %4505 = vmatprep.subr.mxu0 0.0
  %4506 = vmatpush1.msra.mxu0 0.0
  %4507 = vmatprep.subr.mxu0 0.0
  %4508 = vmatpush1.msra.mxu0 0.0
  %4509 = vmatprep.subr.mxu0 0.0
  %4510 = vmatpush1.msra.mxu0 0.0
  %4511 = vmatprep.subr.mxu0 0.0
  %4512 = vmatpush1.msra.mxu0 0.0
  %4513 = vmatprep.subr.mxu0 0.0
  %4514 = vmatpush1.msra.mxu0 0.0
  %4515 = vmatprep.subr.mxu0 0.0
  %4516 = vmatpush1.msra.mxu0 0.0
  %4517 = vmatprep.subr.mxu0 0.0
  %4518 = vmatpush1.msra.mxu0 0.0
  %4519 = vmatprep.subr.mxu0 0.0
  %4520 = vmatpush1.msra.mxu0 0.0
  %4521 = vmatprep.subr.mxu0 0.0
  %4522 = vmatpush1.msra.mxu0 0.0
  %4523 = vmatprep.subr.mxu0 0.0
  %4524 = vmatpush1.msra.mxu0 0.0
  %4525 = vmatprep.subr.mxu0 0.0
  %4526 = vmatpush1.msra.mxu0 0.0
  %4527 = vmatprep.subr.mxu0 0.0
  %4528 = vmatpush1.msra.mxu0 0.0
  %4529 = vmatprep.subr.mxu0 0.0
  %4530 = vmatpush1.msra.mxu0 0.0
  %4531 = vmatprep.subr.mxu0 0.0
  %4532 = vmatpush1.msra.mxu0 0.0
  %4533 = vmatprep.mubr.f32.mxu0 0.0
  %4534 = vmatmul.mubr.f32.gmra.mrb[0].mxu0 %v4396
  %v4535 = vpop.f32.mrb[0].mxu0
  %v4536 = vadd.f32 0.0, %v4535
  %v4537 = vpop.f32.mrb[0].mxu0
  %v4538 = vadd.f32 0.0, %v4537
  %4539 = vdwg.mxu0
  %v4540 = vadd.f32 %v4319, %v4465
  %v4541 = vadd.f32 %v4321, %v4467
  %v4542 = vadd.f32 %v4390, %v4536
  %v4543 = vadd.f32 %v4392, %v4538
  %v4544 = vld [vmem:[%s1 + $0xc8] sm:$0xf]
  %v4546 = vsel %vm23, %v4544, 0
  %4548 = vmatprep.subr.mxu0 %v4095
  %4549 = vmatpush1.msra.mxu0 %v4094
  %4550 = vmatprep.subr.mxu0 %v4099
  %4551 = vmatpush1.msra.mxu0 %v4098
  %4552 = vmatprep.subr.mxu0 0.0
  %4553 = vmatpush1.msra.mxu0 0.0
  %4554 = vmatprep.subr.mxu0 0.0
  %4555 = vmatpush1.msra.mxu0 0.0
  %4556 = vmatprep.subr.mxu0 0.0
  %4557 = vmatpush1.msra.mxu0 0.0
  %4558 = vmatprep.subr.mxu0 0.0
  %4559 = vmatpush1.msra.mxu0 0.0
  %4560 = vmatprep.subr.mxu0 0.0
  %4561 = vmatpush1.msra.mxu0 0.0
  %4562 = vmatprep.subr.mxu0 0.0
  %4563 = vmatpush1.msra.mxu0 0.0
  %4564 = vmatprep.subr.mxu0 0.0
  %4565 = vmatpush1.msra.mxu0 0.0
  %4566 = vmatprep.subr.mxu0 0.0
  %4567 = vmatpush1.msra.mxu0 0.0
  %4568 = vmatprep.subr.mxu0 0.0
  %4569 = vmatpush1.msra.mxu0 0.0
  %4570 = vmatprep.subr.mxu0 0.0
  %4571 = vmatpush1.msra.mxu0 0.0
  %4572 = vmatprep.subr.mxu0 0.0
  %4573 = vmatpush1.msra.mxu0 0.0
  %4574 = vmatprep.subr.mxu0 0.0
  %4575 = vmatpush1.msra.mxu0 0.0
  %4576 = vmatprep.subr.mxu0 0.0
  %4577 = vmatpush1.msra.mxu0 0.0
  %4578 = vmatprep.subr.mxu0 0.0
  %4579 = vmatpush1.msra.mxu0 0.0
  %4580 = vmatprep.subr.mxu0 0.0
  %4581 = vmatpush1.msra.mxu0 0.0
  %4582 = vmatprep.subr.mxu0 0.0
  %4583 = vmatpush1.msra.mxu0 0.0
  %4584 = vmatprep.subr.mxu0 0.0
  %4585 = vmatpush1.msra.mxu0 0.0
  %4586 = vmatprep.subr.mxu0 0.0
  %4587 = vmatpush1.msra.mxu0 0.0
  %4588 = vmatprep.subr.mxu0 0.0
  %4589 = vmatpush1.msra.mxu0 0.0
  %4590 = vmatprep.subr.mxu0 0.0
  %4591 = vmatpush1.msra.mxu0 0.0
  %4592 = vmatprep.subr.mxu0 0.0
  %4593 = vmatpush1.msra.mxu0 0.0
  %4594 = vmatprep.subr.mxu0 0.0
  %4595 = vmatpush1.msra.mxu0 0.0
  %4596 = vmatprep.subr.mxu0 0.0
  %4597 = vmatpush1.msra.mxu0 0.0
  %4598 = vmatprep.subr.mxu0 0.0
  %4599 = vmatpush1.msra.mxu0 0.0
  %4600 = vmatprep.subr.mxu0 0.0
  %4601 = vmatpush1.msra.mxu0 0.0
  %4602 = vmatprep.subr.mxu0 0.0
  %4603 = vmatpush1.msra.mxu0 0.0
  %4604 = vmatprep.subr.mxu0 0.0
  %4605 = vmatpush1.msra.mxu0 0.0
  %4606 = vmatprep.subr.mxu0 0.0
  %4607 = vmatpush1.msra.mxu0 0.0
  %4608 = vmatprep.subr.mxu0 0.0
  %4609 = vmatpush1.msra.mxu0 0.0
  %4610 = vmatprep.subr.mxu0 0.0
  %4611 = vmatpush1.msra.mxu0 0.0
  %4612 = vmatprep.mubr.f32.mxu0 0.0
  %4613 = vmatmul.mubr.f32.gmra.mrb[0].mxu0 %v4546
  %v4614 = vpop.f32.mrb[0].mxu0
  %v4615 = vadd.f32 0.0, %v4614
  %v4616 = vpop.f32.mrb[0].mxu0
  %v4617 = vadd.f32 0.0, %v4616
  %4618 = vdwg.mxu0
  %4619 = vmatprep.subr.mxu0 %v4097
  %4620 = vmatpush1.msra.mxu0 %v4096
  %4621 = vmatprep.subr.mxu0 %v4101
  %4622 = vmatpush1.msra.mxu0 %v4100
  %4623 = vmatprep.subr.mxu0 0.0
  %4624 = vmatpush1.msra.mxu0 0.0
  %4625 = vmatprep.subr.mxu0 0.0
  %4626 = vmatpush1.msra.mxu0 0.0
  %4627 = vmatprep.subr.mxu0 0.0
  %4628 = vmatpush1.msra.mxu0 0.0
  %4629 = vmatprep.subr.mxu0 0.0
  %4630 = vmatpush1.msra.mxu0 0.0
  %4631 = vmatprep.subr.mxu0 0.0
  %4632 = vmatpush1.msra.mxu0 0.0
  %4633 = vmatprep.subr.mxu0 0.0
  %4634 = vmatpush1.msra.mxu0 0.0
  %4635 = vmatprep.subr.mxu0 0.0
  %4636 = vmatpush1.msra.mxu0 0.0
  %4637 = vmatprep.subr.mxu0 0.0
  %4638 = vmatpush1.msra.mxu0 0.0
  %4639 = vmatprep.subr.mxu0 0.0
  %4640 = vmatpush1.msra.mxu0 0.0
  %4641 = vmatprep.subr.mxu0 0.0
  %4642 = vmatpush1.msra.mxu0 0.0
  %4643 = vmatprep.subr.mxu0 0.0
  %4644 = vmatpush1.msra.mxu0 0.0
  %4645 = vmatprep.subr.mxu0 0.0
  %4646 = vmatpush1.msra.mxu0 0.0
  %4647 = vmatprep.subr.mxu0 0.0
  %4648 = vmatpush1.msra.mxu0 0.0
  %4649 = vmatprep.subr.mxu0 0.0
  %4650 = vmatpush1.msra.mxu0 0.0
  %4651 = vmatprep.subr.mxu0 0.0
  %4652 = vmatpush1.msra.mxu0 0.0
  %4653 = vmatprep.subr.mxu0 0.0
  %4654 = vmatpush1.msra.mxu0 0.0
  %4655 = vmatprep.subr.mxu0 0.0
  %4656 = vmatpush1.msra.mxu0 0.0
  %4657 = vmatprep.subr.mxu0 0.0
  %4658 = vmatpush1.msra.mxu0 0.0
  %4659 = vmatprep.subr.mxu0 0.0
  %4660 = vmatpush1.msra.mxu0 0.0
  %4661 = vmatprep.subr.mxu0 0.0
  %4662 = vmatpush1.msra.mxu0 0.0
  %4663 = vmatprep.subr.mxu0 0.0
  %4664 = vmatpush1.msra.mxu0 0.0
  %4665 = vmatprep.subr.mxu0 0.0
  %4666 = vmatpush1.msra.mxu0 0.0
  %4667 = vmatprep.subr.mxu0 0.0
  %4668 = vmatpush1.msra.mxu0 0.0
  %4669 = vmatprep.subr.mxu0 0.0
  %4670 = vmatpush1.msra.mxu0 0.0
  %4671 = vmatprep.subr.mxu0 0.0
  %4672 = vmatpush1.msra.mxu0 0.0
  %4673 = vmatprep.subr.mxu0 0.0
  %4674 = vmatpush1.msra.mxu0 0.0
  %4675 = vmatprep.subr.mxu0 0.0
  %4676 = vmatpush1.msra.mxu0 0.0
  %4677 = vmatprep.subr.mxu0 0.0
  %4678 = vmatpush1.msra.mxu0 0.0
  %4679 = vmatprep.subr.mxu0 0.0
  %4680 = vmatpush1.msra.mxu0 0.0
  %4681 = vmatprep.subr.mxu0 0.0
  %4682 = vmatpush1.msra.mxu0 0.0
  %4683 = vmatprep.mubr.f32.mxu0 0.0
  %4684 = vmatmul.mubr.f32.gmra.mrb[0].mxu0 %v4546
  %v4685 = vpop.f32.mrb[0].mxu0
  %v4686 = vadd.f32 0.0, %v4685
  %v4687 = vpop.f32.mrb[0].mxu0
  %v4688 = vadd.f32 0.0, %v4687
  %4689 = vdwg.mxu0
  %v4690 = vadd.f32 %v4540, %v4615
  %v4691 = vadd.f32 %v4541, %v4617
  %v4692 = vadd.f32 %v4542, %v4686
  %v4693 = vadd.f32 %v4543, %v4688
  %v4694 = vmax.f32 %v4690, 0.0
  %v4695 = vmax.f32 %v4691, 0.0
  %v4696 = vmax.f32 %v4692, 0.0
  %v4697 = vmax.f32 %v4693, 0.0
  %v4698 = vld [vmem:[%s1 + $0xd0] sm:$0xf]
  %4699 = vrot.lane.b32.xlu0 %v4694, 17
  %v4700 = vpop.permute.xlu0 %4699
  %4701 = vrot.lane.b32.xlu0 %v4695, 17
  %v4702 = vpop.permute.xlu0 %4701
  %4703 = vrot.lane.b32.xlu0 %v4696, 17
  %v4704 = vpop.permute.xlu0 %4703
  %4705 = vrot.lane.b32.xlu0 %v4697, 17
  %v4706 = vpop.permute.xlu0 %4705
  %v4707 = vsel %vm184, %v4704, %v4706
  %v4708 = vsel %vm184, %v4702, %v4704
  %v4709 = vsel %vm184, %v4700, %v4702
  %v4710 = vsel %vm184, %v4706, %v4700
  %v4711 = vmul.f32 %v4710, %v194
  %v4712 = vmul.f32 %v4709, %v198
  %v4713 = vmul.f32 %v4708, %v202
  %v4714 = vmul.f32 %v4707, %v206
  %v4715 = vld [vmem:[%s1 + $0xd8] sm:$0xf]
  %4716 = vrot.lane.b32.xlu0 %v4694, 16
  %v4717 = vpop.permute.xlu0 %4716
  %4718 = vrot.lane.b32.xlu0 %v4695, 16
  %v4719 = vpop.permute.xlu0 %4718
  %4720 = vrot.lane.b32.xlu0 %v4696, 16
  %v4721 = vpop.permute.xlu0 %4720
  %4722 = vrot.lane.b32.xlu0 %v4697, 16
  %v4723 = vpop.permute.xlu0 %4722
  %v4724 = vsel %vm224, %v4721, %v4723
  %v4725 = vsel %vm224, %v4719, %v4721
  %v4726 = vsel %vm224, %v4717, %v4719
  %v4727 = vsel %vm224, %v4723, %v4717
  %v4728 = vmul.f32 %v4727, %v235
  %v4729 = vmul.f32 %v4726, %v239
  %v4730 = vmul.f32 %v4725, %v243
  %v4731 = vmul.f32 %v4724, %v247
  %vm4732 = vcmask 31744
  %v4734 = vsel %vm4732, %v4715, 0
  %vm4736 = vcmask 1043456
  %v4738 = vsel %vm4736, %v4728, 0
  %v4741 = vsel %vm4736, %v4729, 0
  %v4744 = vsel %vm4736, %v4730, 0
  %v4747 = vsel %vm4736, %v4731, 0
  %4749 = vmatprep.subr.mxu0 %v4741
  %4750 = vmatpush1.msra.mxu0 %v4738
  %4751 = vmatprep.subr.mxu0 0.0
  %4752 = vmatpush1.msra.mxu0 0.0
  %4753 = vmatprep.subr.mxu0 0.0
  %4754 = vmatpush1.msra.mxu0 0.0
  %4755 = vmatprep.subr.mxu0 0.0
  %4756 = vmatpush1.msra.mxu0 0.0
  %4757 = vmatprep.subr.mxu0 0.0
  %4758 = vmatpush1.msra.mxu0 0.0
  %4759 = vmatprep.subr.mxu0 0.0
  %4760 = vmatpush1.msra.mxu0 0.0
  %4761 = vmatprep.subr.mxu0 0.0
  %4762 = vmatpush1.msra.mxu0 0.0
  %4763 = vmatprep.subr.mxu0 0.0
  %4764 = vmatpush1.msra.mxu0 0.0
  %4765 = vmatprep.subr.mxu0 0.0
  %4766 = vmatpush1.msra.mxu0 0.0
  %4767 = vmatprep.subr.mxu0 0.0
  %4768 = vmatpush1.msra.mxu0 0.0
  %4769 = vmatprep.subr.mxu0 0.0
  %4770 = vmatpush1.msra.mxu0 0.0
  %4771 = vmatprep.subr.mxu0 0.0
  %4772 = vmatpush1.msra.mxu0 0.0
  %4773 = vmatprep.subr.mxu0 0.0
  %4774 = vmatpush1.msra.mxu0 0.0
  %4775 = vmatprep.subr.mxu0 0.0
  %4776 = vmatpush1.msra.mxu0 0.0
  %4777 = vmatprep.subr.mxu0 0.0
  %4778 = vmatpush1.msra.mxu0 0.0
  %4779 = vmatprep.subr.mxu0 0.0
  %4780 = vmatpush1.msra.mxu0 0.0
  %4781 = vmatprep.subr.mxu0 0.0
  %4782 = vmatpush1.msra.mxu0 0.0
  %4783 = vmatprep.subr.mxu0 0.0
  %4784 = vmatpush1.msra.mxu0 0.0
  %4785 = vmatprep.subr.mxu0 0.0
  %4786 = vmatpush1.msra.mxu0 0.0
  %4787 = vmatprep.subr.mxu0 0.0
  %4788 = vmatpush1.msra.mxu0 0.0
  %4789 = vmatprep.subr.mxu0 0.0
  %4790 = vmatpush1.msra.mxu0 0.0
  %4791 = vmatprep.subr.mxu0 0.0
  %4792 = vmatpush1.msra.mxu0 0.0
  %4793 = vmatprep.subr.mxu0 0.0
  %4794 = vmatpush1.msra.mxu0 0.0
  %4795 = vmatprep.subr.mxu0 0.0
  %4796 = vmatpush1.msra.mxu0 0.0
  %4797 = vmatprep.subr.mxu0 0.0
  %4798 = vmatpush1.msra.mxu0 0.0
  %4799 = vmatprep.subr.mxu0 0.0
  %4800 = vmatpush1.msra.mxu0 0.0
  %4801 = vmatprep.subr.mxu0 0.0
  %4802 = vmatpush1.msra.mxu0 0.0
  %4803 = vmatprep.subr.mxu0 0.0
  %4804 = vmatpush1.msra.mxu0 0.0
  %4805 = vmatprep.subr.mxu0 0.0
  %4806 = vmatpush1.msra.mxu0 0.0
  %4807 = vmatprep.subr.mxu0 0.0
  %4808 = vmatpush1.msra.mxu0 0.0
  %4809 = vmatprep.subr.mxu0 0.0
  %4810 = vmatpush1.msra.mxu0 0.0
  %4811 = vmatprep.subr.mxu0 0.0
  %4812 = vmatpush1.msra.mxu0 0.0
  %4813 = vmatprep.mubr.f32.mxu0 0.0
  %4814 = vmatmul.mubr.f32.gmra.mrb[0].mxu0 %v4734
  %v4815 = vpop.f32.mrb[0].mxu0
  %v4816 = vadd.f32 0.0, %v4815
  %v4817 = vpop.f32.mrb[0].mxu0
  %v4818 = vadd.f32 0.0, %v4817
  %4819 = vdwg.mxu0
  %4820 = vmatprep.subr.mxu0 %v4747
  %4821 = vmatpush1.msra.mxu0 %v4744
  %4822 = vmatprep.subr.mxu0 0.0
  %4823 = vmatpush1.msra.mxu0 0.0
  %4824 = vmatprep.subr.mxu0 0.0
  %4825 = vmatpush1.msra.mxu0 0.0
  %4826 = vmatprep.subr.mxu0 0.0
  %4827 = vmatpush1.msra.mxu0 0.0
  %4828 = vmatprep.subr.mxu0 0.0
  %4829 = vmatpush1.msra.mxu0 0.0
  %4830 = vmatprep.subr.mxu0 0.0
  %4831 = vmatpush1.msra.mxu0 0.0
  %4832 = vmatprep.subr.mxu0 0.0
  %4833 = vmatpush1.msra.mxu0 0.0
  %4834 = vmatprep.subr.mxu0 0.0
  %4835 = vmatpush1.msra.mxu0 0.0
  %4836 = vmatprep.subr.mxu0 0.0
  %4837 = vmatpush1.msra.mxu0 0.0
  %4838 = vmatprep.subr.mxu0 0.0
  %4839 = vmatpush1.msra.mxu0 0.0
  %4840 = vmatprep.subr.mxu0 0.0
  %4841 = vmatpush1.msra.mxu0 0.0
  %4842 = vmatprep.subr.mxu0 0.0
  %4843 = vmatpush1.msra.mxu0 0.0
  %4844 = vmatprep.subr.mxu0 0.0
  %4845 = vmatpush1.msra.mxu0 0.0
  %4846 = vmatprep.subr.mxu0 0.0
  %4847 = vmatpush1.msra.mxu0 0.0
  %4848 = vmatprep.subr.mxu0 0.0
  %4849 = vmatpush1.msra.mxu0 0.0
  %4850 = vmatprep.subr.mxu0 0.0
  %4851 = vmatpush1.msra.mxu0 0.0
  %4852 = vmatprep.subr.mxu0 0.0
  %4853 = vmatpush1.msra.mxu0 0.0
  %4854 = vmatprep.subr.mxu0 0.0
  %4855 = vmatpush1.msra.mxu0 0.0
  %4856 = vmatprep.subr.mxu0 0.0
  %4857 = vmatpush1.msra.mxu0 0.0
  %4858 = vmatprep.subr.mxu0 0.0
  %4859 = vmatpush1.msra.mxu0 0.0
  %4860 = vmatprep.subr.mxu0 0.0
  %4861 = vmatpush1.msra.mxu0 0.0
  %4862 = vmatprep.subr.mxu0 0.0
  %4863 = vmatpush1.msra.mxu0 0.0
  %4864 = vmatprep.subr.mxu0 0.0
  %4865 = vmatpush1.msra.mxu0 0.0
  %4866 = vmatprep.subr.mxu0 0.0
  %4867 = vmatpush1.msra.mxu0 0.0
  %4868 = vmatprep.subr.mxu0 0.0
  %4869 = vmatpush1.msra.mxu0 0.0
  %4870 = vmatprep.subr.mxu0 0.0
  %4871 = vmatpush1.msra.mxu0 0.0
  %4872 = vmatprep.subr.mxu0 0.0
  %4873 = vmatpush1.msra.mxu0 0.0
  %4874 = vmatprep.subr.mxu0 0.0
  %4875 = vmatpush1.msra.mxu0 0.0
  %4876 = vmatprep.subr.mxu0 0.0
  %4877 = vmatpush1.msra.mxu0 0.0
  %4878 = vmatprep.subr.mxu0 0.0
  %4879 = vmatpush1.msra.mxu0 0.0
  %4880 = vmatprep.subr.mxu0 0.0
  %4881 = vmatpush1.msra.mxu0 0.0
  %4882 = vmatprep.subr.mxu0 0.0
  %4883 = vmatpush1.msra.mxu0 0.0
  %4884 = vmatprep.mubr.f32.mxu0 0.0
  %4885 = vmatmul.mubr.f32.gmra.mrb[0].mxu0 %v4734
  %v4886 = vpop.f32.mrb[0].mxu0
  %v4887 = vadd.f32 0.0, %v4886
  %v4888 = vpop.f32.mrb[0].mxu0
  %v4889 = vadd.f32 0.0, %v4888
  %4890 = vdwg.mxu0
  %v4892 = vsel %vm4732, %v4698, 0
  %v4895 = vsel %vm4736, %v4711, 0
  %v4898 = vsel %vm4736, %v4712, 0
  %v4901 = vsel %vm4736, %v4713, 0
  %v4904 = vsel %vm4736, %v4714, 0
  %4906 = vmatprep.subr.mxu0 %v4898
  %4907 = vmatpush1.msra.mxu0 %v4895
  %4908 = vmatprep.subr.mxu0 0.0
  %4909 = vmatpush1.msra.mxu0 0.0
  %4910 = vmatprep.subr.mxu0 0.0
  %4911 = vmatpush1.msra.mxu0 0.0
  %4912 = vmatprep.subr.mxu0 0.0
  %4913 = vmatpush1.msra.mxu0 0.0
  %4914 = vmatprep.subr.mxu0 0.0
  %4915 = vmatpush1.msra.mxu0 0.0
  %4916 = vmatprep.subr.mxu0 0.0
  %4917 = vmatpush1.msra.mxu0 0.0
  %4918 = vmatprep.subr.mxu0 0.0
  %4919 = vmatpush1.msra.mxu0 0.0
  %4920 = vmatprep.subr.mxu0 0.0
  %4921 = vmatpush1.msra.mxu0 0.0
  %4922 = vmatprep.subr.mxu0 0.0
  %4923 = vmatpush1.msra.mxu0 0.0
  %4924 = vmatprep.subr.mxu0 0.0
  %4925 = vmatpush1.msra.mxu0 0.0
  %4926 = vmatprep.subr.mxu0 0.0
  %4927 = vmatpush1.msra.mxu0 0.0
  %4928 = vmatprep.subr.mxu0 0.0
  %4929 = vmatpush1.msra.mxu0 0.0
  %4930 = vmatprep.subr.mxu0 0.0
  %4931 = vmatpush1.msra.mxu0 0.0
  %4932 = vmatprep.subr.mxu0 0.0
  %4933 = vmatpush1.msra.mxu0 0.0
  %4934 = vmatprep.subr.mxu0 0.0
  %4935 = vmatpush1.msra.mxu0 0.0
  %4936 = vmatprep.subr.mxu0 0.0
  %4937 = vmatpush1.msra.mxu0 0.0
  %4938 = vmatprep.subr.mxu0 0.0
  %4939 = vmatpush1.msra.mxu0 0.0
  %4940 = vmatprep.subr.mxu0 0.0
  %4941 = vmatpush1.msra.mxu0 0.0
  %4942 = vmatprep.subr.mxu0 0.0
  %4943 = vmatpush1.msra.mxu0 0.0
  %4944 = vmatprep.subr.mxu0 0.0
  %4945 = vmatpush1.msra.mxu0 0.0
  %4946 = vmatprep.subr.mxu0 0.0
  %4947 = vmatpush1.msra.mxu0 0.0
  %4948 = vmatprep.subr.mxu0 0.0
  %4949 = vmatpush1.msra.mxu0 0.0
  %4950 = vmatprep.subr.mxu0 0.0
  %4951 = vmatpush1.msra.mxu0 0.0
  %4952 = vmatprep.subr.mxu0 0.0
  %4953 = vmatpush1.msra.mxu0 0.0
  %4954 = vmatprep.subr.mxu0 0.0
  %4955 = vmatpush1.msra.mxu0 0.0
  %4956 = vmatprep.subr.mxu0 0.0
  %4957 = vmatpush1.msra.mxu0 0.0
  %4958 = vmatprep.subr.mxu0 0.0
  %4959 = vmatpush1.msra.mxu0 0.0
  %4960 = vmatprep.subr.mxu0 0.0
  %4961 = vmatpush1.msra.mxu0 0.0
  %4962 = vmatprep.subr.mxu0 0.0
  %4963 = vmatpush1.msra.mxu0 0.0
  %4964 = vmatprep.subr.mxu0 0.0
  %4965 = vmatpush1.msra.mxu0 0.0
  %4966 = vmatprep.subr.mxu0 0.0
  %4967 = vmatpush1.msra.mxu0 0.0
  %4968 = vmatprep.subr.mxu0 0.0
  %4969 = vmatpush1.msra.mxu0 0.0
  %4970 = vmatprep.mubr.f32.mxu0 0.0
  %4971 = vmatmul.mubr.f32.gmra.mrb[0].mxu0 %v4892
  %v4972 = vpop.f32.mrb[0].mxu0
  %v4973 = vadd.f32 %v4816, %v4972
  %v4974 = vpop.f32.mrb[0].mxu0
  %v4975 = vadd.f32 %v4818, %v4974
  %4976 = vdwg.mxu0
  %4977 = vmatprep.subr.mxu0 %v4904
  %4978 = vmatpush1.msra.mxu0 %v4901
  %4979 = vmatprep.subr.mxu0 0.0
  %4980 = vmatpush1.msra.mxu0 0.0
  %4981 = vmatprep.subr.mxu0 0.0
  %4982 = vmatpush1.msra.mxu0 0.0
  %4983 = vmatprep.subr.mxu0 0.0
  %4984 = vmatpush1.msra.mxu0 0.0
  %4985 = vmatprep.subr.mxu0 0.0
  %4986 = vmatpush1.msra.mxu0 0.0
  %4987 = vmatprep.subr.mxu0 0.0
  %4988 = vmatpush1.msra.mxu0 0.0
  %4989 = vmatprep.subr.mxu0 0.0
  %4990 = vmatpush1.msra.mxu0 0.0
  %4991 = vmatprep.subr.mxu0 0.0
  %4992 = vmatpush1.msra.mxu0 0.0
  %4993 = vmatprep.subr.mxu0 0.0
  %4994 = vmatpush1.msra.mxu0 0.0
  %4995 = vmatprep.subr.mxu0 0.0
  %4996 = vmatpush1.msra.mxu0 0.0
  %4997 = vmatprep.subr.mxu0 0.0
  %4998 = vmatpush1.msra.mxu0 0.0
  %4999 = vmatprep.subr.mxu0 0.0
  %5000 = vmatpush1.msra.mxu0 0.0
  %5001 = vmatprep.subr.mxu0 0.0
  %5002 = vmatpush1.msra.mxu0 0.0
  %5003 = vmatprep.subr.mxu0 0.0
  %5004 = vmatpush1.msra.mxu0 0.0
  %5005 = vmatprep.subr.mxu0 0.0
  %5006 = vmatpush1.msra.mxu0 0.0
  %5007 = vmatprep.subr.mxu0 0.0
  %5008 = vmatpush1.msra.mxu0 0.0
  %5009 = vmatprep.subr.mxu0 0.0
  %5010 = vmatpush1.msra.mxu0 0.0
  %5011 = vmatprep.subr.mxu0 0.0
  %5012 = vmatpush1.msra.mxu0 0.0
  %5013 = vmatprep.subr.mxu0 0.0
  %5014 = vmatpush1.msra.mxu0 0.0
  %5015 = vmatprep.subr.mxu0 0.0
  %5016 = vmatpush1.msra.mxu0 0.0
  %5017 = vmatprep.subr.mxu0 0.0
  %5018 = vmatpush1.msra.mxu0 0.0
  %5019 = vmatprep.subr.mxu0 0.0
  %5020 = vmatpush1.msra.mxu0 0.0
  %5021 = vmatprep.subr.mxu0 0.0
  %5022 = vmatpush1.msra.mxu0 0.0
  %5023 = vmatprep.subr.mxu0 0.0
  %5024 = vmatpush1.msra.mxu0 0.0
  %5025 = vmatprep.subr.mxu0 0.0
  %5026 = vmatpush1.msra.mxu0 0.0
  %5027 = vmatprep.subr.mxu0 0.0
  %5028 = vmatpush1.msra.mxu0 0.0
  %5029 = vmatprep.subr.mxu0 0.0
  %5030 = vmatpush1.msra.mxu0 0.0
  %5031 = vmatprep.subr.mxu0 0.0
  %5032 = vmatpush1.msra.mxu0 0.0
  %5033 = vmatprep.subr.mxu0 0.0
  %5034 = vmatpush1.msra.mxu0 0.0
  %5035 = vmatprep.subr.mxu0 0.0
  %5036 = vmatpush1.msra.mxu0 0.0
  %5037 = vmatprep.subr.mxu0 0.0
  %5038 = vmatpush1.msra.mxu0 0.0
  %5039 = vmatprep.subr.mxu0 0.0
  %5040 = vmatpush1.msra.mxu0 0.0
  %5041 = vmatprep.mubr.f32.mxu0 0.0
  %5042 = vmatmul.mubr.f32.gmra.mrb[0].mxu0 %v4892
  %v5043 = vpop.f32.mrb[0].mxu0
  %v5044 = vadd.f32 %v4887, %v5043
  %v5045 = vpop.f32.mrb[0].mxu0
  %v5046 = vadd.f32 %v4889, %v5045
  %5047 = vdwg.mxu0
  %v5048 = vld [vmem:[%s1 + $0xe0] sm:$0xf]
  %5049 = vrot.lane.b32.xlu0 %v4694, 15
  %v5050 = vpop.permute.xlu0 %5049
  %5051 = vrot.lane.b32.xlu0 %v4695, 15
  %v5052 = vpop.permute.xlu0 %5051
  %5053 = vrot.lane.b32.xlu0 %v4696, 15
  %v5054 = vpop.permute.xlu0 %5053
  %5055 = vrot.lane.b32.xlu0 %v4697, 15
  %v5056 = vpop.permute.xlu0 %5055
  %v5057 = vsel %vm556, %v5054, %v5056
  %v5058 = vsel %vm556, %v5052, %v5054
  %v5059 = vsel %vm556, %v5050, %v5052
  %v5060 = vsel %vm556, %v5056, %v5050
  %v5061 = vmul.f32 %v5060, %v567
  %v5062 = vmul.f32 %v5059, %v571
  %v5063 = vmul.f32 %v5058, %v575
  %v5064 = vmul.f32 %v5057, %v579
  %v5066 = vsel %vm4732, %v5048, 0
  %v5069 = vsel %vm4736, %v5061, 0
  %v5072 = vsel %vm4736, %v5062, 0
  %v5075 = vsel %vm4736, %v5063, 0
  %v5078 = vsel %vm4736, %v5064, 0
  %5080 = vmatprep.subr.mxu0 %v5072
  %5081 = vmatpush1.msra.mxu0 %v5069
  %5082 = vmatprep.subr.mxu0 0.0
  %5083 = vmatpush1.msra.mxu0 0.0
  %5084 = vmatprep.subr.mxu0 0.0
  %5085 = vmatpush1.msra.mxu0 0.0
  %5086 = vmatprep.subr.mxu0 0.0
  %5087 = vmatpush1.msra.mxu0 0.0
  %5088 = vmatprep.subr.mxu0 0.0
  %5089 = vmatpush1.msra.mxu0 0.0
  %5090 = vmatprep.subr.mxu0 0.0
  %5091 = vmatpush1.msra.mxu0 0.0
  %5092 = vmatprep.subr.mxu0 0.0
  %5093 = vmatpush1.msra.mxu0 0.0
  %5094 = vmatprep.subr.mxu0 0.0
  %5095 = vmatpush1.msra.mxu0 0.0
  %5096 = vmatprep.subr.mxu0 0.0
  %5097 = vmatpush1.msra.mxu0 0.0
  %5098 = vmatprep.subr.mxu0 0.0
  %5099 = vmatpush1.msra.mxu0 0.0
  %5100 = vmatprep.subr.mxu0 0.0
  %5101 = vmatpush1.msra.mxu0 0.0
  %5102 = vmatprep.subr.mxu0 0.0
  %5103 = vmatpush1.msra.mxu0 0.0
  %5104 = vmatprep.subr.mxu0 0.0
  %5105 = vmatpush1.msra.mxu0 0.0
  %5106 = vmatprep.subr.mxu0 0.0
  %5107 = vmatpush1.msra.mxu0 0.0
  %5108 = vmatprep.subr.mxu0 0.0
  %5109 = vmatpush1.msra.mxu0 0.0
  %5110 = vmatprep.subr.mxu0 0.0
  %5111 = vmatpush1.msra.mxu0 0.0
  %5112 = vmatprep.subr.mxu0 0.0
  %5113 = vmatpush1.msra.mxu0 0.0
  %5114 = vmatprep.subr.mxu0 0.0
  %5115 = vmatpush1.msra.mxu0 0.0
  %5116 = vmatprep.subr.mxu0 0.0
  %5117 = vmatpush1.msra.mxu0 0.0
  %5118 = vmatprep.subr.mxu0 0.0
  %5119 = vmatpush1.msra.mxu0 0.0
  %5120 = vmatprep.subr.mxu0 0.0
  %5121 = vmatpush1.msra.mxu0 0.0
  %5122 = vmatprep.subr.mxu0 0.0
  %5123 = vmatpush1.msra.mxu0 0.0
  %5124 = vmatprep.subr.mxu0 0.0
  %5125 = vmatpush1.msra.mxu0 0.0
  %5126 = vmatprep.subr.mxu0 0.0
  %5127 = vmatpush1.msra.mxu0 0.0
  %5128 = vmatprep.subr.mxu0 0.0
  %5129 = vmatpush1.msra.mxu0 0.0
  %5130 = vmatprep.subr.mxu0 0.0
  %5131 = vmatpush1.msra.mxu0 0.0
  %5132 = vmatprep.subr.mxu0 0.0
  %5133 = vmatpush1.msra.mxu0 0.0
  %5134 = vmatprep.subr.mxu0 0.0
  %5135 = vmatpush1.msra.mxu0 0.0
  %5136 = vmatprep.subr.mxu0 0.0
  %5137 = vmatpush1.msra.mxu0 0.0
  %5138 = vmatprep.subr.mxu0 0.0
  %5139 = vmatpush1.msra.mxu0 0.0
  %5140 = vmatprep.subr.mxu0 0.0
  %5141 = vmatpush1.msra.mxu0 0.0
  %5142 = vmatprep.subr.mxu0 0.0
  %5143 = vmatpush1.msra.mxu0 0.0
  %5144 = vmatprep.mubr.f32.mxu0 0.0
  %5145 = vmatmul.mubr.f32.gmra.mrb[0].mxu0 %v5066
  %v5146 = vpop.f32.mrb[0].mxu0
  %v5147 = vadd.f32 0.0, %v5146
  %v5148 = vpop.f32.mrb[0].mxu0
  %v5149 = vadd.f32 0.0, %v5148
  %5150 = vdwg.mxu0
  %5151 = vmatprep.subr.mxu0 %v5078
  %5152 = vmatpush1.msra.mxu0 %v5075
  %5153 = vmatprep.subr.mxu0 0.0
  %5154 = vmatpush1.msra.mxu0 0.0
  %5155 = vmatprep.subr.mxu0 0.0
  %5156 = vmatpush1.msra.mxu0 0.0
  %5157 = vmatprep.subr.mxu0 0.0
  %5158 = vmatpush1.msra.mxu0 0.0
  %5159 = vmatprep.subr.mxu0 0.0
  %5160 = vmatpush1.msra.mxu0 0.0
  %5161 = vmatprep.subr.mxu0 0.0
  %5162 = vmatpush1.msra.mxu0 0.0
  %5163 = vmatprep.subr.mxu0 0.0
  %5164 = vmatpush1.msra.mxu0 0.0
  %5165 = vmatprep.subr.mxu0 0.0
  %5166 = vmatpush1.msra.mxu0 0.0
  %5167 = vmatprep.subr.mxu0 0.0
  %5168 = vmatpush1.msra.mxu0 0.0
  %5169 = vmatprep.subr.mxu0 0.0
  %5170 = vmatpush1.msra.mxu0 0.0
  %5171 = vmatprep.subr.mxu0 0.0
  %5172 = vmatpush1.msra.mxu0 0.0
  %5173 = vmatprep.subr.mxu0 0.0
  %5174 = vmatpush1.msra.mxu0 0.0
  %5175 = vmatprep.subr.mxu0 0.0
  %5176 = vmatpush1.msra.mxu0 0.0
  %5177 = vmatprep.subr.mxu0 0.0
  %5178 = vmatpush1.msra.mxu0 0.0
  %5179 = vmatprep.subr.mxu0 0.0
  %5180 = vmatpush1.msra.mxu0 0.0
  %5181 = vmatprep.subr.mxu0 0.0
  %5182 = vmatpush1.msra.mxu0 0.0
  %5183 = vmatprep.subr.mxu0 0.0
  %5184 = vmatpush1.msra.mxu0 0.0
  %5185 = vmatprep.subr.mxu0 0.0
  %5186 = vmatpush1.msra.mxu0 0.0
  %5187 = vmatprep.subr.mxu0 0.0
  %5188 = vmatpush1.msra.mxu0 0.0
  %5189 = vmatprep.subr.mxu0 0.0
  %5190 = vmatpush1.msra.mxu0 0.0
  %5191 = vmatprep.subr.mxu0 0.0
  %5192 = vmatpush1.msra.mxu0 0.0
  %5193 = vmatprep.subr.mxu0 0.0
  %5194 = vmatpush1.msra.mxu0 0.0
  %5195 = vmatprep.subr.mxu0 0.0
  %5196 = vmatpush1.msra.mxu0 0.0
  %5197 = vmatprep.subr.mxu0 0.0
  %5198 = vmatpush1.msra.mxu0 0.0
  %5199 = vmatprep.subr.mxu0 0.0
  %5200 = vmatpush1.msra.mxu0 0.0
  %5201 = vmatprep.subr.mxu0 0.0
  %5202 = vmatpush1.msra.mxu0 0.0
  %5203 = vmatprep.subr.mxu0 0.0
  %5204 = vmatpush1.msra.mxu0 0.0
  %5205 = vmatprep.subr.mxu0 0.0
  %5206 = vmatpush1.msra.mxu0 0.0
  %5207 = vmatprep.subr.mxu0 0.0
  %5208 = vmatpush1.msra.mxu0 0.0
  %5209 = vmatprep.subr.mxu0 0.0
  %5210 = vmatpush1.msra.mxu0 0.0
  %5211 = vmatprep.subr.mxu0 0.0
  %5212 = vmatpush1.msra.mxu0 0.0
  %5213 = vmatprep.subr.mxu0 0.0
  %5214 = vmatpush1.msra.mxu0 0.0
  %5215 = vmatprep.mubr.f32.mxu0 0.0
  %5216 = vmatmul.mubr.f32.gmra.mrb[0].mxu0 %v5066
  %v5217 = vpop.f32.mrb[0].mxu0
  %v5218 = vadd.f32 0.0, %v5217
  %v5219 = vpop.f32.mrb[0].mxu0
  %v5220 = vadd.f32 0.0, %v5219
  %5221 = vdwg.mxu0
  %v5222 = vadd.f32 %v4973, %v5147
  %v5223 = vadd.f32 %v4975, %v5149
  %v5224 = vadd.f32 %v5044, %v5218
  %v5225 = vadd.f32 %v5046, %v5220
  %v5226 = vld [vmem:[%s1 + $0xe8] sm:$0xf]
  %5227 = vrot.lane.b32.xlu0 %v4694, 1
  %v5228 = vpop.permute.xlu0 %5227
  %5229 = vrot.lane.b32.xlu0 %v4695, 1
  %v5230 = vpop.permute.xlu0 %5229
  %5231 = vrot.lane.b32.xlu0 %v4696, 1
  %v5232 = vpop.permute.xlu0 %5231
  %5233 = vrot.lane.b32.xlu0 %v4697, 1
  %v5234 = vpop.permute.xlu0 %5233
  %v5235 = vsel %vm746, %v5232, %v5234
  %v5236 = vsel %vm746, %v5230, %v5232
  %v5237 = vsel %vm746, %v5228, %v5230
  %v5238 = vsel %vm746, %v5234, %v5228
  %v5239 = vmul.f32 %v5238, %v757
  %v5240 = vmul.f32 %v5237, %v761
  %v5241 = vmul.f32 %v5236, %v765
  %v5242 = vmul.f32 %v5235, %v769
  %v5244 = vsel %vm4732, %v5226, 0
  %v5247 = vsel %vm4736, %v5239, 0
  %v5250 = vsel %vm4736, %v5240, 0
  %v5253 = vsel %vm4736, %v5241, 0
  %v5256 = vsel %vm4736, %v5242, 0
  %5258 = vmatprep.subr.mxu0 %v5250
  %5259 = vmatpush1.msra.mxu0 %v5247
  %5260 = vmatprep.subr.mxu0 0.0
  %5261 = vmatpush1.msra.mxu0 0.0
  %5262 = vmatprep.subr.mxu0 0.0
  %5263 = vmatpush1.msra.mxu0 0.0
  %5264 = vmatprep.subr.mxu0 0.0
  %5265 = vmatpush1.msra.mxu0 0.0
  %5266 = vmatprep.subr.mxu0 0.0
  %5267 = vmatpush1.msra.mxu0 0.0
  %5268 = vmatprep.subr.mxu0 0.0
  %5269 = vmatpush1.msra.mxu0 0.0
  %5270 = vmatprep.subr.mxu0 0.0
  %5271 = vmatpush1.msra.mxu0 0.0
  %5272 = vmatprep.subr.mxu0 0.0
  %5273 = vmatpush1.msra.mxu0 0.0
  %5274 = vmatprep.subr.mxu0 0.0
  %5275 = vmatpush1.msra.mxu0 0.0
  %5276 = vmatprep.subr.mxu0 0.0
  %5277 = vmatpush1.msra.mxu0 0.0
  %5278 = vmatprep.subr.mxu0 0.0
  %5279 = vmatpush1.msra.mxu0 0.0
  %5280 = vmatprep.subr.mxu0 0.0
  %5281 = vmatpush1.msra.mxu0 0.0
  %5282 = vmatprep.subr.mxu0 0.0
  %5283 = vmatpush1.msra.mxu0 0.0
  %5284 = vmatprep.subr.mxu0 0.0
  %5285 = vmatpush1.msra.mxu0 0.0
  %5286 = vmatprep.subr.mxu0 0.0
  %5287 = vmatpush1.msra.mxu0 0.0
  %5288 = vmatprep.subr.mxu0 0.0
  %5289 = vmatpush1.msra.mxu0 0.0
  %5290 = vmatprep.subr.mxu0 0.0
  %5291 = vmatpush1.msra.mxu0 0.0
  %5292 = vmatprep.subr.mxu0 0.0
  %5293 = vmatpush1.msra.mxu0 0.0
  %5294 = vmatprep.subr.mxu0 0.0
  %5295 = vmatpush1.msra.mxu0 0.0
  %5296 = vmatprep.subr.mxu0 0.0
  %5297 = vmatpush1.msra.mxu0 0.0
  %5298 = vmatprep.subr.mxu0 0.0
  %5299 = vmatpush1.msra.mxu0 0.0
  %5300 = vmatprep.subr.mxu0 0.0
  %5301 = vmatpush1.msra.mxu0 0.0
  %5302 = vmatprep.subr.mxu0 0.0
  %5303 = vmatpush1.msra.mxu0 0.0
  %5304 = vmatprep.subr.mxu0 0.0
  %5305 = vmatpush1.msra.mxu0 0.0
  %5306 = vmatprep.subr.mxu0 0.0
  %5307 = vmatpush1.msra.mxu0 0.0
  %5308 = vmatprep.subr.mxu0 0.0
  %5309 = vmatpush1.msra.mxu0 0.0
  %5310 = vmatprep.subr.mxu0 0.0
  %5311 = vmatpush1.msra.mxu0 0.0
  %5312 = vmatprep.subr.mxu0 0.0
  %5313 = vmatpush1.msra.mxu0 0.0
  %5314 = vmatprep.subr.mxu0 0.0
  %5315 = vmatpush1.msra.mxu0 0.0
  %5316 = vmatprep.subr.mxu0 0.0
  %5317 = vmatpush1.msra.mxu0 0.0
  %5318 = vmatprep.subr.mxu0 0.0
  %5319 = vmatpush1.msra.mxu0 0.0
  %5320 = vmatprep.subr.mxu0 0.0
  %5321 = vmatpush1.msra.mxu0 0.0
  %5322 = vmatprep.mubr.f32.mxu0 0.0
  %5323 = vmatmul.mubr.f32.gmra.mrb[0].mxu0 %v5244
  %v5324 = vpop.f32.mrb[0].mxu0
  %v5325 = vadd.f32 0.0, %v5324
  %v5326 = vpop.f32.mrb[0].mxu0
  %v5327 = vadd.f32 0.0, %v5326
  %5328 = vdwg.mxu0
  %5329 = vmatprep.subr.mxu0 %v5256
  %5330 = vmatpush1.msra.mxu0 %v5253
  %5331 = vmatprep.subr.mxu0 0.0
  %5332 = vmatpush1.msra.mxu0 0.0
  %5333 = vmatprep.subr.mxu0 0.0
  %5334 = vmatpush1.msra.mxu0 0.0
  %5335 = vmatprep.subr.mxu0 0.0
  %5336 = vmatpush1.msra.mxu0 0.0
  %5337 = vmatprep.subr.mxu0 0.0
  %5338 = vmatpush1.msra.mxu0 0.0
  %5339 = vmatprep.subr.mxu0 0.0
  %5340 = vmatpush1.msra.mxu0 0.0
  %5341 = vmatprep.subr.mxu0 0.0
  %5342 = vmatpush1.msra.mxu0 0.0
  %5343 = vmatprep.subr.mxu0 0.0
  %5344 = vmatpush1.msra.mxu0 0.0
  %5345 = vmatprep.subr.mxu0 0.0
  %5346 = vmatpush1.msra.mxu0 0.0
  %5347 = vmatprep.subr.mxu0 0.0
  %5348 = vmatpush1.msra.mxu0 0.0
  %5349 = vmatprep.subr.mxu0 0.0
  %5350 = vmatpush1.msra.mxu0 0.0
  %5351 = vmatprep.subr.mxu0 0.0
  %5352 = vmatpush1.msra.mxu0 0.0
  %5353 = vmatprep.subr.mxu0 0.0
  %5354 = vmatpush1.msra.mxu0 0.0
  %5355 = vmatprep.subr.mxu0 0.0
  %5356 = vmatpush1.msra.mxu0 0.0
  %5357 = vmatprep.subr.mxu0 0.0
  %5358 = vmatpush1.msra.mxu0 0.0
  %5359 = vmatprep.subr.mxu0 0.0
  %5360 = vmatpush1.msra.mxu0 0.0
  %5361 = vmatprep.subr.mxu0 0.0
  %5362 = vmatpush1.msra.mxu0 0.0
  %5363 = vmatprep.subr.mxu0 0.0
  %5364 = vmatpush1.msra.mxu0 0.0
  %5365 = vmatprep.subr.mxu0 0.0
  %5366 = vmatpush1.msra.mxu0 0.0
  %5367 = vmatprep.subr.mxu0 0.0
  %5368 = vmatpush1.msra.mxu0 0.0
  %5369 = vmatprep.subr.mxu0 0.0
  %5370 = vmatpush1.msra.mxu0 0.0
  %5371 = vmatprep.subr.mxu0 0.0
  %5372 = vmatpush1.msra.mxu0 0.0
  %5373 = vmatprep.subr.mxu0 0.0
  %5374 = vmatpush1.msra.mxu0 0.0
  %5375 = vmatprep.subr.mxu0 0.0
  %5376 = vmatpush1.msra.mxu0 0.0
  %5377 = vmatprep.subr.mxu0 0.0
  %5378 = vmatpush1.msra.mxu0 0.0
  %5379 = vmatprep.subr.mxu0 0.0
  %5380 = vmatpush1.msra.mxu0 0.0
  %5381 = vmatprep.subr.mxu0 0.0
  %5382 = vmatpush1.msra.mxu0 0.0
  %5383 = vmatprep.subr.mxu0 0.0
  %5384 = vmatpush1.msra.mxu0 0.0
  %5385 = vmatprep.subr.mxu0 0.0
  %5386 = vmatpush1.msra.mxu0 0.0
  %5387 = vmatprep.subr.mxu0 0.0
  %5388 = vmatpush1.msra.mxu0 0.0
  %5389 = vmatprep.subr.mxu0 0.0
  %5390 = vmatpush1.msra.mxu0 0.0
  %5391 = vmatprep.subr.mxu0 0.0
  %5392 = vmatpush1.msra.mxu0 0.0
  %5393 = vmatprep.mubr.f32.mxu0 0.0
  %5394 = vmatmul.mubr.f32.gmra.mrb[0].mxu0 %v5244
  %v5395 = vpop.f32.mrb[0].mxu0
  %v5396 = vadd.f32 0.0, %v5395
  %v5397 = vpop.f32.mrb[0].mxu0
  %v5398 = vadd.f32 0.0, %v5397
  %5399 = vdwg.mxu0
  %v5400 = vadd.f32 %v5222, %v5325
  %v5401 = vadd.f32 %v5223, %v5327
  %v5402 = vadd.f32 %v5224, %v5396
  %v5403 = vadd.f32 %v5225, %v5398
  %v5404 = vld [vmem:[%s1 + $0xf0] sm:$0xf]
  %v5406 = vsel %vm4732, %v5404, 0
  %v5409 = vsel %vm4736, %v4694, 0
  %v5412 = vsel %vm4736, %v4695, 0
  %v5415 = vsel %vm4736, %v4696, 0
  %v5418 = vsel %vm4736, %v4697, 0
  %5420 = vmatprep.subr.mxu0 %v5412
  %5421 = vmatpush1.msra.mxu0 %v5409
  %5422 = vmatprep.subr.mxu0 0.0
  %5423 = vmatpush1.msra.mxu0 0.0
  %5424 = vmatprep.subr.mxu0 0.0
  %5425 = vmatpush1.msra.mxu0 0.0
  %5426 = vmatprep.subr.mxu0 0.0
  %5427 = vmatpush1.msra.mxu0 0.0
  %5428 = vmatprep.subr.mxu0 0.0
  %5429 = vmatpush1.msra.mxu0 0.0
  %5430 = vmatprep.subr.mxu0 0.0
  %5431 = vmatpush1.msra.mxu0 0.0
  %5432 = vmatprep.subr.mxu0 0.0
  %5433 = vmatpush1.msra.mxu0 0.0
  %5434 = vmatprep.subr.mxu0 0.0
  %5435 = vmatpush1.msra.mxu0 0.0
  %5436 = vmatprep.subr.mxu0 0.0
  %5437 = vmatpush1.msra.mxu0 0.0
  %5438 = vmatprep.subr.mxu0 0.0
  %5439 = vmatpush1.msra.mxu0 0.0
  %5440 = vmatprep.subr.mxu0 0.0
  %5441 = vmatpush1.msra.mxu0 0.0
  %5442 = vmatprep.subr.mxu0 0.0
  %5443 = vmatpush1.msra.mxu0 0.0
  %5444 = vmatprep.subr.mxu0 0.0
  %5445 = vmatpush1.msra.mxu0 0.0
  %5446 = vmatprep.subr.mxu0 0.0
  %5447 = vmatpush1.msra.mxu0 0.0
  %5448 = vmatprep.subr.mxu0 0.0
  %5449 = vmatpush1.msra.mxu0 0.0
  %5450 = vmatprep.subr.mxu0 0.0
  %5451 = vmatpush1.msra.mxu0 0.0
  %5452 = vmatprep.subr.mxu0 0.0
  %5453 = vmatpush1.msra.mxu0 0.0
  %5454 = vmatprep.subr.mxu0 0.0
  %5455 = vmatpush1.msra.mxu0 0.0
  %5456 = vmatprep.subr.mxu0 0.0
  %5457 = vmatpush1.msra.mxu0 0.0
  %5458 = vmatprep.subr.mxu0 0.0
  %5459 = vmatpush1.msra.mxu0 0.0
  %5460 = vmatprep.subr.mxu0 0.0
  %5461 = vmatpush1.msra.mxu0 0.0
  %5462 = vmatprep.subr.mxu0 0.0
  %5463 = vmatpush1.msra.mxu0 0.0
  %5464 = vmatprep.subr.mxu0 0.0
  %5465 = vmatpush1.msra.mxu0 0.0
  %5466 = vmatprep.subr.mxu0 0.0
  %5467 = vmatpush1.msra.mxu0 0.0
  %5468 = vmatprep.subr.mxu0 0.0
  %5469 = vmatpush1.msra.mxu0 0.0
  %5470 = vmatprep.subr.mxu0 0.0
  %5471 = vmatpush1.msra.mxu0 0.0
  %5472 = vmatprep.subr.mxu0 0.0
  %5473 = vmatpush1.msra.mxu0 0.0
  %5474 = vmatprep.subr.mxu0 0.0
  %5475 = vmatpush1.msra.mxu0 0.0
  %5476 = vmatprep.subr.mxu0 0.0
  %5477 = vmatpush1.msra.mxu0 0.0
  %5478 = vmatprep.subr.mxu0 0.0
  %5479 = vmatpush1.msra.mxu0 0.0
  %5480 = vmatprep.subr.mxu0 0.0
  %5481 = vmatpush1.msra.mxu0 0.0
  %5482 = vmatprep.subr.mxu0 0.0
  %5483 = vmatpush1.msra.mxu0 0.0
  %5484 = vmatprep.mubr.f32.mxu0 0.0
  %5485 = vmatmul.mubr.f32.gmra.mrb[0].mxu0 %v5406
  %v5486 = vpop.f32.mrb[0].mxu0
  %v5487 = vadd.f32 0.0, %v5486
  %v5488 = vpop.f32.mrb[0].mxu0
  %v5489 = vadd.f32 0.0, %v5488
  %5490 = vdwg.mxu0
  %5491 = vmatprep.subr.mxu0 %v5418
  %5492 = vmatpush1.msra.mxu0 %v5415
  %5493 = vmatprep.subr.mxu0 0.0
  %5494 = vmatpush1.msra.mxu0 0.0
  %5495 = vmatprep.subr.mxu0 0.0
  %5496 = vmatpush1.msra.mxu0 0.0
  %5497 = vmatprep.subr.mxu0 0.0
  %5498 = vmatpush1.msra.mxu0 0.0
  %5499 = vmatprep.subr.mxu0 0.0
  %5500 = vmatpush1.msra.mxu0 0.0
  %5501 = vmatprep.subr.mxu0 0.0
  %5502 = vmatpush1.msra.mxu0 0.0
  %5503 = vmatprep.subr.mxu0 0.0
  %5504 = vmatpush1.msra.mxu0 0.0
  %5505 = vmatprep.subr.mxu0 0.0
  %5506 = vmatpush1.msra.mxu0 0.0
  %5507 = vmatprep.subr.mxu0 0.0
  %5508 = vmatpush1.msra.mxu0 0.0
  %5509 = vmatprep.subr.mxu0 0.0
  %5510 = vmatpush1.msra.mxu0 0.0
  %5511 = vmatprep.subr.mxu0 0.0
  %5512 = vmatpush1.msra.mxu0 0.0
  %5513 = vmatprep.subr.mxu0 0.0
  %5514 = vmatpush1.msra.mxu0 0.0
  %5515 = vmatprep.subr.mxu0 0.0
  %5516 = vmatpush1.msra.mxu0 0.0
  %5517 = vmatprep.subr.mxu0 0.0
  %5518 = vmatpush1.msra.mxu0 0.0
  %5519 = vmatprep.subr.mxu0 0.0
  %5520 = vmatpush1.msra.mxu0 0.0
  %5521 = vmatprep.subr.mxu0 0.0
  %5522 = vmatpush1.msra.mxu0 0.0
  %5523 = vmatprep.subr.mxu0 0.0
  %5524 = vmatpush1.msra.mxu0 0.0
  %5525 = vmatprep.subr.mxu0 0.0
  %5526 = vmatpush1.msra.mxu0 0.0
  %5527 = vmatprep.subr.mxu0 0.0
  %5528 = vmatpush1.msra.mxu0 0.0
  %5529 = vmatprep.subr.mxu0 0.0
  %5530 = vmatpush1.msra.mxu0 0.0
  %5531 = vmatprep.subr.mxu0 0.0
  %5532 = vmatpush1.msra.mxu0 0.0
  %5533 = vmatprep.subr.mxu0 0.0
  %5534 = vmatpush1.msra.mxu0 0.0
  %5535 = vmatprep.subr.mxu0 0.0
  %5536 = vmatpush1.msra.mxu0 0.0
  %5537 = vmatprep.subr.mxu0 0.0
  %5538 = vmatpush1.msra.mxu0 0.0
  %5539 = vmatprep.subr.mxu0 0.0
  %5540 = vmatpush1.msra.mxu0 0.0
  %5541 = vmatprep.subr.mxu0 0.0
  %5542 = vmatpush1.msra.mxu0 0.0
  %5543 = vmatprep.subr.mxu0 0.0
  %5544 = vmatpush1.msra.mxu0 0.0
  %5545 = vmatprep.subr.mxu0 0.0
  %5546 = vmatpush1.msra.mxu0 0.0
  %5547 = vmatprep.subr.mxu0 0.0
  %5548 = vmatpush1.msra.mxu0 0.0
  %5549 = vmatprep.subr.mxu0 0.0
  %5550 = vmatpush1.msra.mxu0 0.0
  %5551 = vmatprep.subr.mxu0 0.0
  %5552 = vmatpush1.msra.mxu0 0.0
  %5553 = vmatprep.subr.mxu0 0.0
  %5554 = vmatpush1.msra.mxu0 0.0
  %5555 = vmatprep.mubr.f32.mxu0 0.0
  %5556 = vmatmul.mubr.f32.gmra.mrb[0].mxu0 %v5406
  %v5557 = vpop.f32.mrb[0].mxu0
  %v5558 = vadd.f32 0.0, %v5557
  %v5559 = vpop.f32.mrb[0].mxu0
  %v5560 = vadd.f32 0.0, %v5559
  %5561 = vdwg.mxu0
  %v5562 = vadd.f32 %v5400, %v5487
  %v5563 = vadd.f32 %v5401, %v5489
  %v5564 = vadd.f32 %v5402, %v5558
  %v5565 = vadd.f32 %v5403, %v5560
  %v5566 = vld [vmem:[%s1 + $0xf8] sm:$0xf]
  %5567 = vrot.lane.b32.xlu0 %v4694, 127
  %v5568 = vpop.permute.xlu0 %5567
  %5569 = vrot.lane.b32.xlu0 %v4695, 127
  %v5570 = vpop.permute.xlu0 %5569
  %5571 = vrot.lane.b32.xlu0 %v4696, 127
  %v5572 = vpop.permute.xlu0 %5571
  %5573 = vrot.lane.b32.xlu0 %v4697, 127
  %v5574 = vpop.permute.xlu0 %5573
  %v5575 = vsel %vm1086, %v5572, %v5574
  %v5576 = vsel %vm1086, %v5570, %v5572
  %v5577 = vsel %vm1086, %v5568, %v5570
  %v5578 = vsel %vm1086, %v5574, %v5568
  %v5579 = vmul.f32 %v5577, %v1097
  %v5580 = vmul.f32 %v5576, %v1101
  %v5581 = vmul.f32 %v5575, %v1105
  %v5582 = vmul.f32 %v5578, %v1109
  %v5584 = vsel %vm4732, %v5566, 0
  %v5587 = vsel %vm4736, %v5579, 0
  %v5590 = vsel %vm4736, %v5580, 0
  %v5593 = vsel %vm4736, %v5581, 0
  %v5596 = vsel %vm4736, %v5582, 0
  %5598 = vmatprep.subr.mxu0 %v5590
  %5599 = vmatpush1.msra.mxu0 %v5587
  %5600 = vmatprep.subr.mxu0 0.0
  %5601 = vmatpush1.msra.mxu0 0.0
  %5602 = vmatprep.subr.mxu0 0.0
  %5603 = vmatpush1.msra.mxu0 0.0
  %5604 = vmatprep.subr.mxu0 0.0
  %5605 = vmatpush1.msra.mxu0 0.0
  %5606 = vmatprep.subr.mxu0 0.0
  %5607 = vmatpush1.msra.mxu0 0.0
  %5608 = vmatprep.subr.mxu0 0.0
  %5609 = vmatpush1.msra.mxu0 0.0
  %5610 = vmatprep.subr.mxu0 0.0
  %5611 = vmatpush1.msra.mxu0 0.0
  %5612 = vmatprep.subr.mxu0 0.0
  %5613 = vmatpush1.msra.mxu0 0.0
  %5614 = vmatprep.subr.mxu0 0.0
  %5615 = vmatpush1.msra.mxu0 0.0
  %5616 = vmatprep.subr.mxu0 0.0
  %5617 = vmatpush1.msra.mxu0 0.0
  %5618 = vmatprep.subr.mxu0 0.0
  %5619 = vmatpush1.msra.mxu0 0.0
  %5620 = vmatprep.subr.mxu0 0.0
  %5621 = vmatpush1.msra.mxu0 0.0
  %5622 = vmatprep.subr.mxu0 0.0
  %5623 = vmatpush1.msra.mxu0 0.0
  %5624 = vmatprep.subr.mxu0 0.0
  %5625 = vmatpush1.msra.mxu0 0.0
  %5626 = vmatprep.subr.mxu0 0.0
  %5627 = vmatpush1.msra.mxu0 0.0
  %5628 = vmatprep.subr.mxu0 0.0
  %5629 = vmatpush1.msra.mxu0 0.0
  %5630 = vmatprep.subr.mxu0 0.0
  %5631 = vmatpush1.msra.mxu0 0.0
  %5632 = vmatprep.subr.mxu0 0.0
  %5633 = vmatpush1.msra.mxu0 0.0
  %5634 = vmatprep.subr.mxu0 0.0
  %5635 = vmatpush1.msra.mxu0 0.0
  %5636 = vmatprep.subr.mxu0 0.0
  %5637 = vmatpush1.msra.mxu0 0.0
  %5638 = vmatprep.subr.mxu0 0.0
  %5639 = vmatpush1.msra.mxu0 0.0
  %5640 = vmatprep.subr.mxu0 0.0
  %5641 = vmatpush1.msra.mxu0 0.0
  %5642 = vmatprep.subr.mxu0 0.0
  %5643 = vmatpush1.msra.mxu0 0.0
  %5644 = vmatprep.subr.mxu0 0.0
  %5645 = vmatpush1.msra.mxu0 0.0
  %5646 = vmatprep.subr.mxu0 0.0
  %5647 = vmatpush1.msra.mxu0 0.0
  %5648 = vmatprep.subr.mxu0 0.0
  %5649 = vmatpush1.msra.mxu0 0.0
  %5650 = vmatprep.subr.mxu0 0.0
  %5651 = vmatpush1.msra.mxu0 0.0
  %5652 = vmatprep.subr.mxu0 0.0
  %5653 = vmatpush1.msra.mxu0 0.0
  %5654 = vmatprep.subr.mxu0 0.0
  %5655 = vmatpush1.msra.mxu0 0.0
  %5656 = vmatprep.subr.mxu0 0.0
  %5657 = vmatpush1.msra.mxu0 0.0
  %5658 = vmatprep.subr.mxu0 0.0
  %5659 = vmatpush1.msra.mxu0 0.0
  %5660 = vmatprep.subr.mxu0 0.0
  %5661 = vmatpush1.msra.mxu0 0.0
  %5662 = vmatprep.mubr.f32.mxu0 0.0
  %5663 = vmatmul.mubr.f32.gmra.mrb[0].mxu0 %v5584
  %v5664 = vpop.f32.mrb[0].mxu0
  %v5665 = vadd.f32 0.0, %v5664
  %v5666 = vpop.f32.mrb[0].mxu0
  %v5667 = vadd.f32 0.0, %v5666
  %5668 = vdwg.mxu0
  %5669 = vmatprep.subr.mxu0 %v5596
  %5670 = vmatpush1.msra.mxu0 %v5593
  %5671 = vmatprep.subr.mxu0 0.0
  %5672 = vmatpush1.msra.mxu0 0.0
  %5673 = vmatprep.subr.mxu0 0.0
  %5674 = vmatpush1.msra.mxu0 0.0
  %5675 = vmatprep.subr.mxu0 0.0
  %5676 = vmatpush1.msra.mxu0 0.0
  %5677 = vmatprep.subr.mxu0 0.0
  %5678 = vmatpush1.msra.mxu0 0.0
  %5679 = vmatprep.subr.mxu0 0.0
  %5680 = vmatpush1.msra.mxu0 0.0
  %5681 = vmatprep.subr.mxu0 0.0
  %5682 = vmatpush1.msra.mxu0 0.0
  %5683 = vmatprep.subr.mxu0 0.0
  %5684 = vmatpush1.msra.mxu0 0.0
  %5685 = vmatprep.subr.mxu0 0.0
  %5686 = vmatpush1.msra.mxu0 0.0
  %5687 = vmatprep.subr.mxu0 0.0
  %5688 = vmatpush1.msra.mxu0 0.0
  %5689 = vmatprep.subr.mxu0 0.0
  %5690 = vmatpush1.msra.mxu0 0.0
  %5691 = vmatprep.subr.mxu0 0.0
  %5692 = vmatpush1.msra.mxu0 0.0
  %5693 = vmatprep.subr.mxu0 0.0
  %5694 = vmatpush1.msra.mxu0 0.0
  %5695 = vmatprep.subr.mxu0 0.0
  %5696 = vmatpush1.msra.mxu0 0.0
  %5697 = vmatprep.subr.mxu0 0.0
  %5698 = vmatpush1.msra.mxu0 0.0
  %5699 = vmatprep.subr.mxu0 0.0
  %5700 = vmatpush1.msra.mxu0 0.0
  %5701 = vmatprep.subr.mxu0 0.0
  %5702 = vmatpush1.msra.mxu0 0.0
  %5703 = vmatprep.subr.mxu0 0.0
  %5704 = vmatpush1.msra.mxu0 0.0
  %5705 = vmatprep.subr.mxu0 0.0
  %5706 = vmatpush1.msra.mxu0 0.0
  %5707 = vmatprep.subr.mxu0 0.0
  %5708 = vmatpush1.msra.mxu0 0.0
  %5709 = vmatprep.subr.mxu0 0.0
  %5710 = vmatpush1.msra.mxu0 0.0
  %5711 = vmatprep.subr.mxu0 0.0
  %5712 = vmatpush1.msra.mxu0 0.0
  %5713 = vmatprep.subr.mxu0 0.0
  %5714 = vmatpush1.msra.mxu0 0.0
  %5715 = vmatprep.subr.mxu0 0.0
  %5716 = vmatpush1.msra.mxu0 0.0
  %5717 = vmatprep.subr.mxu0 0.0
  %5718 = vmatpush1.msra.mxu0 0.0
  %5719 = vmatprep.subr.mxu0 0.0
  %5720 = vmatpush1.msra.mxu0 0.0
  %5721 = vmatprep.subr.mxu0 0.0
  %5722 = vmatpush1.msra.mxu0 0.0
  %5723 = vmatprep.subr.mxu0 0.0
  %5724 = vmatpush1.msra.mxu0 0.0
  %5725 = vmatprep.subr.mxu0 0.0
  %5726 = vmatpush1.msra.mxu0 0.0
  %5727 = vmatprep.subr.mxu0 0.0
  %5728 = vmatpush1.msra.mxu0 0.0
  %5729 = vmatprep.subr.mxu0 0.0
  %5730 = vmatpush1.msra.mxu0 0.0
  %5731 = vmatprep.subr.mxu0 0.0
  %5732 = vmatpush1.msra.mxu0 0.0
  %5733 = vmatprep.mubr.f32.mxu0 0.0
  %5734 = vmatmul.mubr.f32.gmra.mrb[0].mxu0 %v5584
  %v5735 = vpop.f32.mrb[0].mxu0
  %v5736 = vadd.f32 0.0, %v5735
  %v5737 = vpop.f32.mrb[0].mxu0
  %v5738 = vadd.f32 0.0, %v5737
  %5739 = vdwg.mxu0
  %v5740 = vadd.f32 %v5562, %v5665
  %v5741 = vadd.f32 %v5563, %v5667
  %v5742 = vadd.f32 %v5564, %v5736
  %v5743 = vadd.f32 %v5565, %v5738
  %v5744 = vld [vmem:[%s1 + $0x100] sm:$0xf]
  %5745 = vrot.lane.b32.xlu0 %v4694, 113
  %v5746 = vpop.permute.xlu0 %5745
  %5747 = vrot.lane.b32.xlu0 %v4695, 113
  %v5748 = vpop.permute.xlu0 %5747
  %5749 = vrot.lane.b32.xlu0 %v4696, 113
  %v5750 = vpop.permute.xlu0 %5749
  %5751 = vrot.lane.b32.xlu0 %v4697, 113
  %v5752 = vpop.permute.xlu0 %5751
  %v5753 = vsel %vm1276, %v5750, %v5752
  %v5754 = vsel %vm1276, %v5748, %v5750
  %v5755 = vsel %vm1276, %v5746, %v5748
  %v5756 = vsel %vm1276, %v5752, %v5746
  %v5757 = vmul.f32 %v5755, %v1287
  %v5758 = vmul.f32 %v5754, %v1291
  %v5759 = vmul.f32 %v5753, %v1295
  %v5760 = vmul.f32 %v5756, %v1299
  %v5762 = vsel %vm4732, %v5744, 0
  %v5765 = vsel %vm4736, %v5757, 0
  %v5768 = vsel %vm4736, %v5758, 0
  %v5771 = vsel %vm4736, %v5759, 0
  %v5774 = vsel %vm4736, %v5760, 0
  %5776 = vmatprep.subr.mxu0 %v5768
  %5777 = vmatpush1.msra.mxu0 %v5765
  %5778 = vmatprep.subr.mxu0 0.0
  %5779 = vmatpush1.msra.mxu0 0.0
  %5780 = vmatprep.subr.mxu0 0.0
  %5781 = vmatpush1.msra.mxu0 0.0
  %5782 = vmatprep.subr.mxu0 0.0
  %5783 = vmatpush1.msra.mxu0 0.0
  %5784 = vmatprep.subr.mxu0 0.0
  %5785 = vmatpush1.msra.mxu0 0.0
  %5786 = vmatprep.subr.mxu0 0.0
  %5787 = vmatpush1.msra.mxu0 0.0
  %5788 = vmatprep.subr.mxu0 0.0
  %5789 = vmatpush1.msra.mxu0 0.0
  %5790 = vmatprep.subr.mxu0 0.0
  %5791 = vmatpush1.msra.mxu0 0.0
  %5792 = vmatprep.subr.mxu0 0.0
  %5793 = vmatpush1.msra.mxu0 0.0
  %5794 = vmatprep.subr.mxu0 0.0
  %5795 = vmatpush1.msra.mxu0 0.0
  %5796 = vmatprep.subr.mxu0 0.0
  %5797 = vmatpush1.msra.mxu0 0.0
  %5798 = vmatprep.subr.mxu0 0.0
  %5799 = vmatpush1.msra.mxu0 0.0
  %5800 = vmatprep.subr.mxu0 0.0
  %5801 = vmatpush1.msra.mxu0 0.0
  %5802 = vmatprep.subr.mxu0 0.0
  %5803 = vmatpush1.msra.mxu0 0.0
  %5804 = vmatprep.subr.mxu0 0.0
  %5805 = vmatpush1.msra.mxu0 0.0
  %5806 = vmatprep.subr.mxu0 0.0
  %5807 = vmatpush1.msra.mxu0 0.0
  %5808 = vmatprep.subr.mxu0 0.0
  %5809 = vmatpush1.msra.mxu0 0.0
  %5810 = vmatprep.subr.mxu0 0.0
  %5811 = vmatpush1.msra.mxu0 0.0
  %5812 = vmatprep.subr.mxu0 0.0
  %5813 = vmatpush1.msra.mxu0 0.0
  %5814 = vmatprep.subr.mxu0 0.0
  %5815 = vmatpush1.msra.mxu0 0.0
  %5816 = vmatprep.subr.mxu0 0.0
  %5817 = vmatpush1.msra.mxu0 0.0
  %5818 = vmatprep.subr.mxu0 0.0
  %5819 = vmatpush1.msra.mxu0 0.0
  %5820 = vmatprep.subr.mxu0 0.0
  %5821 = vmatpush1.msra.mxu0 0.0
  %5822 = vmatprep.subr.mxu0 0.0
  %5823 = vmatpush1.msra.mxu0 0.0
  %5824 = vmatprep.subr.mxu0 0.0
  %5825 = vmatpush1.msra.mxu0 0.0
  %5826 = vmatprep.subr.mxu0 0.0
  %5827 = vmatpush1.msra.mxu0 0.0
  %5828 = vmatprep.subr.mxu0 0.0
  %5829 = vmatpush1.msra.mxu0 0.0
  %5830 = vmatprep.subr.mxu0 0.0
  %5831 = vmatpush1.msra.mxu0 0.0
  %5832 = vmatprep.subr.mxu0 0.0
  %5833 = vmatpush1.msra.mxu0 0.0
  %5834 = vmatprep.subr.mxu0 0.0
  %5835 = vmatpush1.msra.mxu0 0.0
  %5836 = vmatprep.subr.mxu0 0.0
  %5837 = vmatpush1.msra.mxu0 0.0
  %5838 = vmatprep.subr.mxu0 0.0
  %5839 = vmatpush1.msra.mxu0 0.0
  %5840 = vmatprep.mubr.f32.mxu0 0.0
  %5841 = vmatmul.mubr.f32.gmra.mrb[0].mxu0 %v5762
  %v5842 = vpop.f32.mrb[0].mxu0
  %v5843 = vadd.f32 0.0, %v5842
  %v5844 = vpop.f32.mrb[0].mxu0
  %v5845 = vadd.f32 0.0, %v5844
  %5846 = vdwg.mxu0
  %5847 = vmatprep.subr.mxu0 %v5774
  %5848 = vmatpush1.msra.mxu0 %v5771
  %5849 = vmatprep.subr.mxu0 0.0
  %5850 = vmatpush1.msra.mxu0 0.0
  %5851 = vmatprep.subr.mxu0 0.0
  %5852 = vmatpush1.msra.mxu0 0.0
  %5853 = vmatprep.subr.mxu0 0.0
  %5854 = vmatpush1.msra.mxu0 0.0
  %5855 = vmatprep.subr.mxu0 0.0
  %5856 = vmatpush1.msra.mxu0 0.0
  %5857 = vmatprep.subr.mxu0 0.0
  %5858 = vmatpush1.msra.mxu0 0.0
  %5859 = vmatprep.subr.mxu0 0.0
  %5860 = vmatpush1.msra.mxu0 0.0
  %5861 = vmatprep.subr.mxu0 0.0
  %5862 = vmatpush1.msra.mxu0 0.0
  %5863 = vmatprep.subr.mxu0 0.0
  %5864 = vmatpush1.msra.mxu0 0.0
  %5865 = vmatprep.subr.mxu0 0.0
  %5866 = vmatpush1.msra.mxu0 0.0
  %5867 = vmatprep.subr.mxu0 0.0
  %5868 = vmatpush1.msra.mxu0 0.0
  %5869 = vmatprep.subr.mxu0 0.0
  %5870 = vmatpush1.msra.mxu0 0.0
  %5871 = vmatprep.subr.mxu0 0.0
  %5872 = vmatpush1.msra.mxu0 0.0
  %5873 = vmatprep.subr.mxu0 0.0
  %5874 = vmatpush1.msra.mxu0 0.0
  %5875 = vmatprep.subr.mxu0 0.0
  %5876 = vmatpush1.msra.mxu0 0.0
  %5877 = vmatprep.subr.mxu0 0.0
  %5878 = vmatpush1.msra.mxu0 0.0
  %5879 = vmatprep.subr.mxu0 0.0
  %5880 = vmatpush1.msra.mxu0 0.0
  %5881 = vmatprep.subr.mxu0 0.0
  %5882 = vmatpush1.msra.mxu0 0.0
  %5883 = vmatprep.subr.mxu0 0.0
  %5884 = vmatpush1.msra.mxu0 0.0
  %5885 = vmatprep.subr.mxu0 0.0
  %5886 = vmatpush1.msra.mxu0 0.0
  %5887 = vmatprep.subr.mxu0 0.0
  %5888 = vmatpush1.msra.mxu0 0.0
  %5889 = vmatprep.subr.mxu0 0.0
  %5890 = vmatpush1.msra.mxu0 0.0
  %5891 = vmatprep.subr.mxu0 0.0
  %5892 = vmatpush1.msra.mxu0 0.0
  %5893 = vmatprep.subr.mxu0 0.0
  %5894 = vmatpush1.msra.mxu0 0.0
  %5895 = vmatprep.subr.mxu0 0.0
  %5896 = vmatpush1.msra.mxu0 0.0
  %5897 = vmatprep.subr.mxu0 0.0
  %5898 = vmatpush1.msra.mxu0 0.0
  %5899 = vmatprep.subr.mxu0 0.0
  %5900 = vmatpush1.msra.mxu0 0.0
  %5901 = vmatprep.subr.mxu0 0.0
  %5902 = vmatpush1.msra.mxu0 0.0
  %5903 = vmatprep.subr.mxu0 0.0
  %5904 = vmatpush1.msra.mxu0 0.0
  %5905 = vmatprep.subr.mxu0 0.0
  %5906 = vmatpush1.msra.mxu0 0.0
  %5907 = vmatprep.subr.mxu0 0.0
  %5908 = vmatpush1.msra.mxu0 0.0
  %5909 = vmatprep.subr.mxu0 0.0
  %5910 = vmatpush1.msra.mxu0 0.0
  %5911 = vmatprep.mubr.f32.mxu0 0.0
  %5912 = vmatmul.mubr.f32.gmra.mrb[0].mxu0 %v5762
  %v5913 = vpop.f32.mrb[0].mxu0
  %v5914 = vadd.f32 0.0, %v5913
  %v5915 = vpop.f32.mrb[0].mxu0
  %v5916 = vadd.f32 0.0, %v5915
  %5917 = vdwg.mxu0
  %v5918 = vadd.f32 %v5740, %v5843
  %v5919 = vadd.f32 %v5741, %v5845
  %v5920 = vadd.f32 %v5742, %v5914
  %v5921 = vadd.f32 %v5743, %v5916
  %v5922 = vld [vmem:[%s1 + $0x108] sm:$0xf]
  %5923 = vrot.lane.b32.xlu0 %v4694, 112
  %v5924 = vpop.permute.xlu0 %5923
  %5925 = vrot.lane.b32.xlu0 %v4695, 112
  %v5926 = vpop.permute.xlu0 %5925
  %5927 = vrot.lane.b32.xlu0 %v4696, 112
  %v5928 = vpop.permute.xlu0 %5927
  %5929 = vrot.lane.b32.xlu0 %v4697, 112
  %v5930 = vpop.permute.xlu0 %5929
  %v5931 = vsel %vm1466, %v5928, %v5930
  %v5932 = vsel %vm1466, %v5926, %v5928
  %v5933 = vsel %vm1466, %v5924, %v5926
  %v5934 = vsel %vm1466, %v5930, %v5924
  %v5935 = vmul.f32 %v5933, %v1477
  %v5936 = vmul.f32 %v5932, %v1481
  %v5937 = vmul.f32 %v5931, %v1485
  %v5938 = vmul.f32 %v5934, %v1489
  %v5940 = vsel %vm4732, %v5922, 0
  %v5943 = vsel %vm4736, %v5935, 0
  %v5946 = vsel %vm4736, %v5936, 0
  %v5949 = vsel %vm4736, %v5937, 0
  %v5952 = vsel %vm4736, %v5938, 0
  %5954 = vmatprep.subr.mxu0 %v5946
  %5955 = vmatpush1.msra.mxu0 %v5943
  %5956 = vmatprep.subr.mxu0 0.0
  %5957 = vmatpush1.msra.mxu0 0.0
  %5958 = vmatprep.subr.mxu0 0.0
  %5959 = vmatpush1.msra.mxu0 0.0
  %5960 = vmatprep.subr.mxu0 0.0
  %5961 = vmatpush1.msra.mxu0 0.0
  %5962 = vmatprep.subr.mxu0 0.0
  %5963 = vmatpush1.msra.mxu0 0.0
  %5964 = vmatprep.subr.mxu0 0.0
  %5965 = vmatpush1.msra.mxu0 0.0
  %5966 = vmatprep.subr.mxu0 0.0
  %5967 = vmatpush1.msra.mxu0 0.0
  %5968 = vmatprep.subr.mxu0 0.0
  %5969 = vmatpush1.msra.mxu0 0.0
  %5970 = vmatprep.subr.mxu0 0.0
  %5971 = vmatpush1.msra.mxu0 0.0
  %5972 = vmatprep.subr.mxu0 0.0
  %5973 = vmatpush1.msra.mxu0 0.0
  %5974 = vmatprep.subr.mxu0 0.0
  %5975 = vmatpush1.msra.mxu0 0.0
  %5976 = vmatprep.subr.mxu0 0.0
  %5977 = vmatpush1.msra.mxu0 0.0
  %5978 = vmatprep.subr.mxu0 0.0
  %5979 = vmatpush1.msra.mxu0 0.0
  %5980 = vmatprep.subr.mxu0 0.0
  %5981 = vmatpush1.msra.mxu0 0.0
  %5982 = vmatprep.subr.mxu0 0.0
  %5983 = vmatpush1.msra.mxu0 0.0
  %5984 = vmatprep.subr.mxu0 0.0
  %5985 = vmatpush1.msra.mxu0 0.0
  %5986 = vmatprep.subr.mxu0 0.0
  %5987 = vmatpush1.msra.mxu0 0.0
  %5988 = vmatprep.subr.mxu0 0.0
  %5989 = vmatpush1.msra.mxu0 0.0
  %5990 = vmatprep.subr.mxu0 0.0
  %5991 = vmatpush1.msra.mxu0 0.0
  %5992 = vmatprep.subr.mxu0 0.0
  %5993 = vmatpush1.msra.mxu0 0.0
  %5994 = vmatprep.subr.mxu0 0.0
  %5995 = vmatpush1.msra.mxu0 0.0
  %5996 = vmatprep.subr.mxu0 0.0
  %5997 = vmatpush1.msra.mxu0 0.0
  %5998 = vmatprep.subr.mxu0 0.0
  %5999 = vmatpush1.msra.mxu0 0.0
  %6000 = vmatprep.subr.mxu0 0.0
  %6001 = vmatpush1.msra.mxu0 0.0
  %6002 = vmatprep.subr.mxu0 0.0
  %6003 = vmatpush1.msra.mxu0 0.0
  %6004 = vmatprep.subr.mxu0 0.0
  %6005 = vmatpush1.msra.mxu0 0.0
  %6006 = vmatprep.subr.mxu0 0.0
  %6007 = vmatpush1.msra.mxu0 0.0
  %6008 = vmatprep.subr.mxu0 0.0
  %6009 = vmatpush1.msra.mxu0 0.0
  %6010 = vmatprep.subr.mxu0 0.0
  %6011 = vmatpush1.msra.mxu0 0.0
  %6012 = vmatprep.subr.mxu0 0.0
  %6013 = vmatpush1.msra.mxu0 0.0
  %6014 = vmatprep.subr.mxu0 0.0
  %6015 = vmatpush1.msra.mxu0 0.0
  %6016 = vmatprep.subr.mxu0 0.0
  %6017 = vmatpush1.msra.mxu0 0.0
  %6018 = vmatprep.mubr.f32.mxu0 0.0
  %6019 = vmatmul.mubr.f32.gmra.mrb[0].mxu0 %v5940
  %v6020 = vpop.f32.mrb[0].mxu0
  %v6021 = vadd.f32 0.0, %v6020
  %v6022 = vpop.f32.mrb[0].mxu0
  %v6023 = vadd.f32 0.0, %v6022
  %6024 = vdwg.mxu0
  %6025 = vmatprep.subr.mxu0 %v5952
  %6026 = vmatpush1.msra.mxu0 %v5949
  %6027 = vmatprep.subr.mxu0 0.0
  %6028 = vmatpush1.msra.mxu0 0.0
  %6029 = vmatprep.subr.mxu0 0.0
  %6030 = vmatpush1.msra.mxu0 0.0
  %6031 = vmatprep.subr.mxu0 0.0
  %6032 = vmatpush1.msra.mxu0 0.0
  %6033 = vmatprep.subr.mxu0 0.0
  %6034 = vmatpush1.msra.mxu0 0.0
  %6035 = vmatprep.subr.mxu0 0.0
  %6036 = vmatpush1.msra.mxu0 0.0
  %6037 = vmatprep.subr.mxu0 0.0
  %6038 = vmatpush1.msra.mxu0 0.0
  %6039 = vmatprep.subr.mxu0 0.0
  %6040 = vmatpush1.msra.mxu0 0.0
  %6041 = vmatprep.subr.mxu0 0.0
  %6042 = vmatpush1.msra.mxu0 0.0
  %6043 = vmatprep.subr.mxu0 0.0
  %6044 = vmatpush1.msra.mxu0 0.0
  %6045 = vmatprep.subr.mxu0 0.0
  %6046 = vmatpush1.msra.mxu0 0.0
  %6047 = vmatprep.subr.mxu0 0.0
  %6048 = vmatpush1.msra.mxu0 0.0
  %6049 = vmatprep.subr.mxu0 0.0
  %6050 = vmatpush1.msra.mxu0 0.0
  %6051 = vmatprep.subr.mxu0 0.0
  %6052 = vmatpush1.msra.mxu0 0.0
  %6053 = vmatprep.subr.mxu0 0.0
  %6054 = vmatpush1.msra.mxu0 0.0
  %6055 = vmatprep.subr.mxu0 0.0
  %6056 = vmatpush1.msra.mxu0 0.0
  %6057 = vmatprep.subr.mxu0 0.0
  %6058 = vmatpush1.msra.mxu0 0.0
  %6059 = vmatprep.subr.mxu0 0.0
  %6060 = vmatpush1.msra.mxu0 0.0
  %6061 = vmatprep.subr.mxu0 0.0
  %6062 = vmatpush1.msra.mxu0 0.0
  %6063 = vmatprep.subr.mxu0 0.0
  %6064 = vmatpush1.msra.mxu0 0.0
  %6065 = vmatprep.subr.mxu0 0.0
  %6066 = vmatpush1.msra.mxu0 0.0
  %6067 = vmatprep.subr.mxu0 0.0
  %6068 = vmatpush1.msra.mxu0 0.0
  %6069 = vmatprep.subr.mxu0 0.0
  %6070 = vmatpush1.msra.mxu0 0.0
  %6071 = vmatprep.subr.mxu0 0.0
  %6072 = vmatpush1.msra.mxu0 0.0
  %6073 = vmatprep.subr.mxu0 0.0
  %6074 = vmatpush1.msra.mxu0 0.0
  %6075 = vmatprep.subr.mxu0 0.0
  %6076 = vmatpush1.msra.mxu0 0.0
  %6077 = vmatprep.subr.mxu0 0.0
  %6078 = vmatpush1.msra.mxu0 0.0
  %6079 = vmatprep.subr.mxu0 0.0
  %6080 = vmatpush1.msra.mxu0 0.0
  %6081 = vmatprep.subr.mxu0 0.0
  %6082 = vmatpush1.msra.mxu0 0.0
  %6083 = vmatprep.subr.mxu0 0.0
  %6084 = vmatpush1.msra.mxu0 0.0
  %6085 = vmatprep.subr.mxu0 0.0
  %6086 = vmatpush1.msra.mxu0 0.0
  %6087 = vmatprep.subr.mxu0 0.0
  %6088 = vmatpush1.msra.mxu0 0.0
  %6089 = vmatprep.mubr.f32.mxu0 0.0
  %6090 = vmatmul.mubr.f32.gmra.mrb[0].mxu0 %v5940
  %v6091 = vpop.f32.mrb[0].mxu0
  %v6092 = vadd.f32 0.0, %v6091
  %v6093 = vpop.f32.mrb[0].mxu0
  %v6094 = vadd.f32 0.0, %v6093
  %6095 = vdwg.mxu0
  %v6096 = vadd.f32 %v5918, %v6021
  %v6097 = vadd.f32 %v5919, %v6023
  %v6098 = vadd.f32 %v5920, %v6092
  %v6099 = vadd.f32 %v5921, %v6094
  %v6100 = vld [vmem:[%s1 + $0x110] sm:$0xf]
  %6101 = vrot.lane.b32.xlu0 %v4694, 111
  %v6102 = vpop.permute.xlu0 %6101
  %6103 = vrot.lane.b32.xlu0 %v4695, 111
  %v6104 = vpop.permute.xlu0 %6103
  %6105 = vrot.lane.b32.xlu0 %v4696, 111
  %v6106 = vpop.permute.xlu0 %6105
  %6107 = vrot.lane.b32.xlu0 %v4697, 111
  %v6108 = vpop.permute.xlu0 %6107
  %v6109 = vsel %vm1656, %v6106, %v6108
  %v6110 = vsel %vm1656, %v6104, %v6106
  %v6111 = vsel %vm1656, %v6102, %v6104
  %v6112 = vsel %vm1656, %v6108, %v6102
  %v6113 = vmul.f32 %v6111, %v1667
  %v6114 = vmul.f32 %v6110, %v1671
  %v6115 = vmul.f32 %v6109, %v1675
  %v6116 = vmul.f32 %v6112, %v1679
  %v6118 = vsel %vm4732, %v6100, 0
  %v6121 = vsel %vm4736, %v6113, 0
  %v6124 = vsel %vm4736, %v6114, 0
  %v6127 = vsel %vm4736, %v6115, 0
  %v6130 = vsel %vm4736, %v6116, 0
  %6132 = vmatprep.subr.mxu0 %v6124
  %6133 = vmatpush1.msra.mxu0 %v6121
  %6134 = vmatprep.subr.mxu0 0.0
  %6135 = vmatpush1.msra.mxu0 0.0
  %6136 = vmatprep.subr.mxu0 0.0
  %6137 = vmatpush1.msra.mxu0 0.0
  %6138 = vmatprep.subr.mxu0 0.0
  %6139 = vmatpush1.msra.mxu0 0.0
  %6140 = vmatprep.subr.mxu0 0.0
  %6141 = vmatpush1.msra.mxu0 0.0
  %6142 = vmatprep.subr.mxu0 0.0
  %6143 = vmatpush1.msra.mxu0 0.0
  %6144 = vmatprep.subr.mxu0 0.0
  %6145 = vmatpush1.msra.mxu0 0.0
  %6146 = vmatprep.subr.mxu0 0.0
  %6147 = vmatpush1.msra.mxu0 0.0
  %6148 = vmatprep.subr.mxu0 0.0
  %6149 = vmatpush1.msra.mxu0 0.0
  %6150 = vmatprep.subr.mxu0 0.0
  %6151 = vmatpush1.msra.mxu0 0.0
  %6152 = vmatprep.subr.mxu0 0.0
  %6153 = vmatpush1.msra.mxu0 0.0
  %6154 = vmatprep.subr.mxu0 0.0
  %6155 = vmatpush1.msra.mxu0 0.0
  %6156 = vmatprep.subr.mxu0 0.0
  %6157 = vmatpush1.msra.mxu0 0.0
  %6158 = vmatprep.subr.mxu0 0.0
  %6159 = vmatpush1.msra.mxu0 0.0
  %6160 = vmatprep.subr.mxu0 0.0
  %6161 = vmatpush1.msra.mxu0 0.0
  %6162 = vmatprep.subr.mxu0 0.0
  %6163 = vmatpush1.msra.mxu0 0.0
  %6164 = vmatprep.subr.mxu0 0.0
  %6165 = vmatpush1.msra.mxu0 0.0
  %6166 = vmatprep.subr.mxu0 0.0
  %6167 = vmatpush1.msra.mxu0 0.0
  %6168 = vmatprep.subr.mxu0 0.0
  %6169 = vmatpush1.msra.mxu0 0.0
  %6170 = vmatprep.subr.mxu0 0.0
  %6171 = vmatpush1.msra.mxu0 0.0
  %6172 = vmatprep.subr.mxu0 0.0
  %6173 = vmatpush1.msra.mxu0 0.0
  %6174 = vmatprep.subr.mxu0 0.0
  %6175 = vmatpush1.msra.mxu0 0.0
  %6176 = vmatprep.subr.mxu0 0.0
  %6177 = vmatpush1.msra.mxu0 0.0
  %6178 = vmatprep.subr.mxu0 0.0
  %6179 = vmatpush1.msra.mxu0 0.0
  %6180 = vmatprep.subr.mxu0 0.0
  %6181 = vmatpush1.msra.mxu0 0.0
  %6182 = vmatprep.subr.mxu0 0.0
  %6183 = vmatpush1.msra.mxu0 0.0
  %6184 = vmatprep.subr.mxu0 0.0
  %6185 = vmatpush1.msra.mxu0 0.0
  %6186 = vmatprep.subr.mxu0 0.0
  %6187 = vmatpush1.msra.mxu0 0.0
  %6188 = vmatprep.subr.mxu0 0.0
  %6189 = vmatpush1.msra.mxu0 0.0
  %6190 = vmatprep.subr.mxu0 0.0
  %6191 = vmatpush1.msra.mxu0 0.0
  %6192 = vmatprep.subr.mxu0 0.0
  %6193 = vmatpush1.msra.mxu0 0.0
  %6194 = vmatprep.subr.mxu0 0.0
  %6195 = vmatpush1.msra.mxu0 0.0
  %6196 = vmatprep.mubr.f32.mxu0 0.0
  %6197 = vmatmul.mubr.f32.gmra.mrb[0].mxu0 %v6118
  %v6198 = vpop.f32.mrb[0].mxu0
  %v6199 = vadd.f32 0.0, %v6198
  %v6200 = vpop.f32.mrb[0].mxu0
  %v6201 = vadd.f32 0.0, %v6200
  %6202 = vdwg.mxu0
  %6203 = vmatprep.subr.mxu0 %v6130
  %6204 = vmatpush1.msra.mxu0 %v6127
  %6205 = vmatprep.subr.mxu0 0.0
  %6206 = vmatpush1.msra.mxu0 0.0
  %6207 = vmatprep.subr.mxu0 0.0
  %6208 = vmatpush1.msra.mxu0 0.0
  %6209 = vmatprep.subr.mxu0 0.0
  %6210 = vmatpush1.msra.mxu0 0.0
  %6211 = vmatprep.subr.mxu0 0.0
  %6212 = vmatpush1.msra.mxu0 0.0
  %6213 = vmatprep.subr.mxu0 0.0
  %6214 = vmatpush1.msra.mxu0 0.0
  %6215 = vmatprep.subr.mxu0 0.0
  %6216 = vmatpush1.msra.mxu0 0.0
  %6217 = vmatprep.subr.mxu0 0.0
  %6218 = vmatpush1.msra.mxu0 0.0
  %6219 = vmatprep.subr.mxu0 0.0
  %6220 = vmatpush1.msra.mxu0 0.0
  %6221 = vmatprep.subr.mxu0 0.0
  %6222 = vmatpush1.msra.mxu0 0.0
  %6223 = vmatprep.subr.mxu0 0.0
  %6224 = vmatpush1.msra.mxu0 0.0
  %6225 = vmatprep.subr.mxu0 0.0
  %6226 = vmatpush1.msra.mxu0 0.0
  %6227 = vmatprep.subr.mxu0 0.0
  %6228 = vmatpush1.msra.mxu0 0.0
  %6229 = vmatprep.subr.mxu0 0.0
  %6230 = vmatpush1.msra.mxu0 0.0
  %6231 = vmatprep.subr.mxu0 0.0
  %6232 = vmatpush1.msra.mxu0 0.0
  %6233 = vmatprep.subr.mxu0 0.0
  %6234 = vmatpush1.msra.mxu0 0.0
  %6235 = vmatprep.subr.mxu0 0.0
  %6236 = vmatpush1.msra.mxu0 0.0
  %6237 = vmatprep.subr.mxu0 0.0
  %6238 = vmatpush1.msra.mxu0 0.0
  %6239 = vmatprep.subr.mxu0 0.0
  %6240 = vmatpush1.msra.mxu0 0.0
  %6241 = vmatprep.subr.mxu0 0.0
  %6242 = vmatpush1.msra.mxu0 0.0
  %6243 = vmatprep.subr.mxu0 0.0
  %6244 = vmatpush1.msra.mxu0 0.0
  %6245 = vmatprep.subr.mxu0 0.0
  %6246 = vmatpush1.msra.mxu0 0.0
  %6247 = vmatprep.subr.mxu0 0.0
  %6248 = vmatpush1.msra.mxu0 0.0
  %6249 = vmatprep.subr.mxu0 0.0
  %6250 = vmatpush1.msra.mxu0 0.0
  %6251 = vmatprep.subr.mxu0 0.0
  %6252 = vmatpush1.msra.mxu0 0.0
  %6253 = vmatprep.subr.mxu0 0.0
  %6254 = vmatpush1.msra.mxu0 0.0
  %6255 = vmatprep.subr.mxu0 0.0
  %6256 = vmatpush1.msra.mxu0 0.0
  %6257 = vmatprep.subr.mxu0 0.0
  %6258 = vmatpush1.msra.mxu0 0.0
  %6259 = vmatprep.subr.mxu0 0.0
  %6260 = vmatpush1.msra.mxu0 0.0
  %6261 = vmatprep.subr.mxu0 0.0
  %6262 = vmatpush1.msra.mxu0 0.0
  %6263 = vmatprep.subr.mxu0 0.0
  %6264 = vmatpush1.msra.mxu0 0.0
  %6265 = vmatprep.subr.mxu0 0.0
  %6266 = vmatpush1.msra.mxu0 0.0
  %6267 = vmatprep.mubr.f32.mxu0 0.0
  %6268 = vmatmul.mubr.f32.gmra.mrb[0].mxu0 %v6118
  %v6269 = vpop.f32.mrb[0].mxu0
  %v6270 = vadd.f32 0.0, %v6269
  %v6271 = vpop.f32.mrb[0].mxu0
  %v6272 = vadd.f32 0.0, %v6271
  %6273 = vdwg.mxu0
  %v6274 = vadd.f32 %v6096, %v6199
  %v6275 = vadd.f32 %v6097, %v6201
  %v6276 = vadd.f32 %v6098, %v6270
  %v6277 = vadd.f32 %v6099, %v6272
  %v6278 = vmax.f32 %v6274, 0.0
  %v6279 = vmax.f32 %v6275, 0.0
  %v6280 = vmax.f32 %v6276, 0.0
  %v6281 = vmax.f32 %v6277, 0.0
  %v6282 = vld [vmem:[%s1 + $0x118] sm:$0xff]
  %v6283 = vld [vmem:[%s1 + $0x120] sm:$0xff]
  %v6285 = vsel %vm4732, %v6282, 0
  %v6288 = vsel %vm4732, %v6283, 0
  %v6291 = vsel %vm4736, %v6278, 0
  %v6294 = vsel %vm4736, %v6279, 0
  %v6297 = vsel %vm4736, %v6280, 0
  %v6300 = vsel %vm4736, %v6281, 0
  %6302 = vmatprep.subr.mxu0 %v6294
  %6303 = vmatpush1.msra.mxu0 %v6291
  %6304 = vmatprep.subr.mxu0 0.0
  %6305 = vmatpush1.msra.mxu0 0.0
  %6306 = vmatprep.subr.mxu0 0.0
  %6307 = vmatpush1.msra.mxu0 0.0
  %6308 = vmatprep.subr.mxu0 0.0
  %6309 = vmatpush1.msra.mxu0 0.0
  %6310 = vmatprep.subr.mxu0 0.0
  %6311 = vmatpush1.msra.mxu0 0.0
  %6312 = vmatprep.subr.mxu0 0.0
  %6313 = vmatpush1.msra.mxu0 0.0
  %6314 = vmatprep.subr.mxu0 0.0
  %6315 = vmatpush1.msra.mxu0 0.0
  %6316 = vmatprep.subr.mxu0 0.0
  %6317 = vmatpush1.msra.mxu0 0.0
  %6318 = vmatprep.subr.mxu0 0.0
  %6319 = vmatpush1.msra.mxu0 0.0
  %6320 = vmatprep.subr.mxu0 0.0
  %6321 = vmatpush1.msra.mxu0 0.0
  %6322 = vmatprep.subr.mxu0 0.0
  %6323 = vmatpush1.msra.mxu0 0.0
  %6324 = vmatprep.subr.mxu0 0.0
  %6325 = vmatpush1.msra.mxu0 0.0
  %6326 = vmatprep.subr.mxu0 0.0
  %6327 = vmatpush1.msra.mxu0 0.0
  %6328 = vmatprep.subr.mxu0 0.0
  %6329 = vmatpush1.msra.mxu0 0.0
  %6330 = vmatprep.subr.mxu0 0.0
  %6331 = vmatpush1.msra.mxu0 0.0
  %6332 = vmatprep.subr.mxu0 0.0
  %6333 = vmatpush1.msra.mxu0 0.0
  %6334 = vmatprep.subr.mxu0 0.0
  %6335 = vmatpush1.msra.mxu0 0.0
  %6336 = vmatprep.subr.mxu0 0.0
  %6337 = vmatpush1.msra.mxu0 0.0
  %6338 = vmatprep.subr.mxu0 0.0
  %6339 = vmatpush1.msra.mxu0 0.0
  %6340 = vmatprep.subr.mxu0 0.0
  %6341 = vmatpush1.msra.mxu0 0.0
  %6342 = vmatprep.subr.mxu0 0.0
  %6343 = vmatpush1.msra.mxu0 0.0
  %6344 = vmatprep.subr.mxu0 0.0
  %6345 = vmatpush1.msra.mxu0 0.0
  %6346 = vmatprep.subr.mxu0 0.0
  %6347 = vmatpush1.msra.mxu0 0.0
  %6348 = vmatprep.subr.mxu0 0.0
  %6349 = vmatpush1.msra.mxu0 0.0
  %6350 = vmatprep.subr.mxu0 0.0
  %6351 = vmatpush1.msra.mxu0 0.0
  %6352 = vmatprep.subr.mxu0 0.0
  %6353 = vmatpush1.msra.mxu0 0.0
  %6354 = vmatprep.subr.mxu0 0.0
  %6355 = vmatpush1.msra.mxu0 0.0
  %6356 = vmatprep.subr.mxu0 0.0
  %6357 = vmatpush1.msra.mxu0 0.0
  %6358 = vmatprep.subr.mxu0 0.0
  %6359 = vmatpush1.msra.mxu0 0.0
  %6360 = vmatprep.subr.mxu0 0.0
  %6361 = vmatpush1.msra.mxu0 0.0
  %6362 = vmatprep.subr.mxu0 0.0
  %6363 = vmatpush1.msra.mxu0 0.0
  %6364 = vmatprep.subr.mxu0 0.0
  %6365 = vmatpush1.msra.mxu0 0.0
  %6366 = vmatprep.mubr.f32.mxu0 0.0
  %6367 = vmatmul.mubr.f32.gmra.mrb[0].mxu0 %v6285
  %v6368 = vpop.f32.mrb[0].mxu0
  %v6369 = vadd.f32 0.0, %v6368
  %v6370 = vpop.f32.mrb[0].mxu0
  %v6371 = vadd.f32 0.0, %v6370
  %6372 = vmatprep.mubr.f32.mxu0 0.0
  %6373 = vmatmul.mubr.f32.gmra.mrb[0].mxu0 %v6288
  %v6374 = vpop.f32.mrb[0].mxu0
  %v6375 = vadd.f32 0.0, %v6374
  %v6376 = vpop.f32.mrb[0].mxu0
  %v6377 = vadd.f32 0.0, %v6376
  %6378 = vdwg.mxu0
  %6379 = vmatprep.subr.mxu0 %v6300
  %6380 = vmatpush1.msra.mxu0 %v6297
  %6381 = vmatprep.subr.mxu0 0.0
  %6382 = vmatpush1.msra.mxu0 0.0
  %6383 = vmatprep.subr.mxu0 0.0
  %6384 = vmatpush1.msra.mxu0 0.0
  %6385 = vmatprep.subr.mxu0 0.0
  %6386 = vmatpush1.msra.mxu0 0.0
  %6387 = vmatprep.subr.mxu0 0.0
  %6388 = vmatpush1.msra.mxu0 0.0
  %6389 = vmatprep.subr.mxu0 0.0
  %6390 = vmatpush1.msra.mxu0 0.0
  %6391 = vmatprep.subr.mxu0 0.0
  %6392 = vmatpush1.msra.mxu0 0.0
  %6393 = vmatprep.subr.mxu0 0.0
  %6394 = vmatpush1.msra.mxu0 0.0
  %6395 = vmatprep.subr.mxu0 0.0
  %6396 = vmatpush1.msra.mxu0 0.0
  %6397 = vmatprep.subr.mxu0 0.0
  %6398 = vmatpush1.msra.mxu0 0.0
  %6399 = vmatprep.subr.mxu0 0.0
  %6400 = vmatpush1.msra.mxu0 0.0
  %6401 = vmatprep.subr.mxu0 0.0
  %6402 = vmatpush1.msra.mxu0 0.0
  %6403 = vmatprep.subr.mxu0 0.0
  %6404 = vmatpush1.msra.mxu0 0.0
  %6405 = vmatprep.subr.mxu0 0.0
  %6406 = vmatpush1.msra.mxu0 0.0
  %6407 = vmatprep.subr.mxu0 0.0
  %6408 = vmatpush1.msra.mxu0 0.0
  %6409 = vmatprep.subr.mxu0 0.0
  %6410 = vmatpush1.msra.mxu0 0.0
  %6411 = vmatprep.subr.mxu0 0.0
  %6412 = vmatpush1.msra.mxu0 0.0
  %6413 = vmatprep.subr.mxu0 0.0
  %6414 = vmatpush1.msra.mxu0 0.0
  %6415 = vmatprep.subr.mxu0 0.0
  %6416 = vmatpush1.msra.mxu0 0.0
  %6417 = vmatprep.subr.mxu0 0.0
  %6418 = vmatpush1.msra.mxu0 0.0
  %6419 = vmatprep.subr.mxu0 0.0
  %6420 = vmatpush1.msra.mxu0 0.0
  %6421 = vmatprep.subr.mxu0 0.0
  %6422 = vmatpush1.msra.mxu0 0.0
  %6423 = vmatprep.subr.mxu0 0.0
  %6424 = vmatpush1.msra.mxu0 0.0
  %6425 = vmatprep.subr.mxu0 0.0
  %6426 = vmatpush1.msra.mxu0 0.0
  %6427 = vmatprep.subr.mxu0 0.0
  %6428 = vmatpush1.msra.mxu0 0.0
  %6429 = vmatprep.subr.mxu0 0.0
  %6430 = vmatpush1.msra.mxu0 0.0
  %6431 = vmatprep.subr.mxu0 0.0
  %6432 = vmatpush1.msra.mxu0 0.0
  %6433 = vmatprep.subr.mxu0 0.0
  %6434 = vmatpush1.msra.mxu0 0.0
  %6435 = vmatprep.subr.mxu0 0.0
  %6436 = vmatpush1.msra.mxu0 0.0
  %6437 = vmatprep.subr.mxu0 0.0
  %6438 = vmatpush1.msra.mxu0 0.0
  %6439 = vmatprep.subr.mxu0 0.0
  %6440 = vmatpush1.msra.mxu0 0.0
  %6441 = vmatprep.subr.mxu0 0.0
  %6442 = vmatpush1.msra.mxu0 0.0
  %6443 = vmatprep.mubr.f32.mxu0 0.0
  %6444 = vmatmul.mubr.f32.gmra.mrb[0].mxu0 %v6285
  %v6445 = vpop.f32.mrb[0].mxu0
  %v6446 = vadd.f32 0.0, %v6445
  %v6447 = vpop.f32.mrb[0].mxu0
  %v6448 = vadd.f32 0.0, %v6447
  %6449 = vmatprep.mubr.f32.mxu0 0.0
  %6450 = vmatmul.mubr.f32.gmra.mrb[0].mxu0 %v6288
  %v6451 = vpop.f32.mrb[0].mxu0
  %v6452 = vadd.f32 0.0, %v6451
  %v6453 = vpop.f32.mrb[0].mxu0
  %v6454 = vadd.f32 0.0, %v6453
  %6455 = vdwg.mxu0
  %v6456 = vld [vmem:[%s1 + $0x128] sm:$0xff]
  %v6457 = vld [vmem:[%s1 + $0x130] sm:$0xff]
  %v6458 = vld [vmem:[%s1 + $0x138] sm:$0xff]
  %v6459 = vld [vmem:[%s1 + $0x140] sm:$0xff]
  %v6460 = vadd.f32 %v6369, %v6371
  %6461 = vadd.xlane.f32.xlu0 %v6460
  %v6462 = vpop.xlane.xlu0 %6461
  %v6463 = vadd.f32 %v6375, %v6377
  %6464 = vadd.xlane.f32.xlu0 %v6463
  %v6465 = vpop.xlane.xlu0 %6464
  %v6466 = vmul.f32 %v6462, 0.00390625
  %v6467 = vmul.f32 %v6465, 0.00390625
  %v6468 = vmul.f32 %v6456, %v6466
  %v6469 = vmul.f32 %v6457, %v6467
  %vm6470 = vcmask 7168
  %v6471 = vsel %vm6470, %v6468, 0.0
  %v6472 = vsel %vm6470, %v6469, 0.0
  %v6473 = vadd.f32 %v6471, %v6472
  %v6474 = vrot.slane %v6473, 4
  %v6475 = vadd.f32 %v6473, %v6474
  %v6476 = vrot.slane %v6475, 2
  %v6477 = vadd.f32 %v6475, %v6476
  %v6478 = vrot.slane %v6477, 1
  %v6479 = vadd.f32 %v6477, %v6478
  %v6480 = vmax.f32 %v6479, 0.0
  %v6481 = vmul.f32 %v6458, %v6480
  %v6482 = vmul.f32 %v6459, %v6480
  %v6483 = vadd.f32 %v6481, 0.0
  %v6484 = vadd.f32 %v6482, 0.0
  %v6485 = vsub.f32 0.0, %v6483
  %v6486 = vsub.f32 0.0, %v6484
  %v6487 = vmul.f32 %v6485, 1.442695
  %v6488 = vpow.pop %v6487
  %v6489 = vmul.f32 %v6486, 1.442695
  %v6490 = vpow.pop %v6489
  %v6491 = vadd.f32 %v6488, 1.0
  %v6492 = vadd.f32 %v6490, 1.0
  %v6493 = vrcp.pop %v6491
  %v6494 = vrcp.pop %v6492
  %6496 = vset.pattern.permute.xlu0 0
  %6497 = vperm.xlu0 %6496, %v6493
  %v6498 = vpop.permute.xlu0 %6497
  %6501 = vset.pattern.permute.xlu0 0
  %6502 = vperm.xlu0 %6501, %v6494
  %v6503 = vpop.permute.xlu0 %6502
  %v6505 = vmul.f32 %v6498, %v2120
  %v6506 = vmul.f32 %v6498, %v2124
  %v6507 = vmul.f32 %v6498, %v2128
  %v6508 = vmul.f32 %v6498, %v2132
  %v6509 = vmul.f32 %v6503, %v2120
  %v6510 = vmul.f32 %v6503, %v2124
  %v6511 = vmul.f32 %v6503, %v2128
  %v6512 = vmul.f32 %v6503, %v2132
  %v6513 = vadd.f32 %v6446, %v6448
  %6514 = vadd.xlane.f32.xlu0 %v6513
  %v6515 = vpop.xlane.xlu0 %6514
  %v6516 = vadd.f32 %v6452, %v6454
  %6517 = vadd.xlane.f32.xlu0 %v6516
  %v6518 = vpop.xlane.xlu0 %6517
  %v6519 = vmul.f32 %v6515, 0.00390625
  %v6520 = vmul.f32 %v6518, 0.00390625
  %v6521 = vmul.f32 %v6456, %v6519
  %v6522 = vmul.f32 %v6457, %v6520
  %v6523 = vsel %vm6470, %v6521, 0.0
  %v6524 = vsel %vm6470, %v6522, 0.0
  %v6525 = vadd.f32 %v6523, %v6524
  %v6526 = vrot.slane %v6525, 4
  %v6527 = vadd.f32 %v6525, %v6526
  %v6528 = vrot.slane %v6527, 2
  %v6529 = vadd.f32 %v6527, %v6528
  %v6530 = vrot.slane %v6529, 1
  %v6531 = vadd.f32 %v6529, %v6530
  %v6532 = vmax.f32 %v6531, 0.0
  %v6533 = vmul.f32 %v6458, %v6532
  %v6534 = vmul.f32 %v6459, %v6532
  %v6535 = vadd.f32 %v6533, 0.0
  %v6536 = vadd.f32 %v6534, 0.0
  %v6537 = vsub.f32 0.0, %v6535
  %v6538 = vsub.f32 0.0, %v6536
  %v6539 = vmul.f32 %v6537, 1.442695
  %v6540 = vpow.pop %v6539
  %v6541 = vmul.f32 %v6538, 1.442695
  %v6542 = vpow.pop %v6541
  %v6543 = vadd.f32 %v6540, 1.0
  %v6544 = vadd.f32 %v6542, 1.0
  %v6545 = vrcp.pop %v6543
  %v6546 = vrcp.pop %v6544
  %6548 = vset.pattern.permute.xlu0 0
  %6549 = vperm.xlu0 %6548, %v6545
  %v6550 = vpop.permute.xlu0 %6549
  %6553 = vset.pattern.permute.xlu0 0
  %6554 = vperm.xlu0 %6553, %v6546
  %v6555 = vpop.permute.xlu0 %6554
  %v6557 = vmul.f32 %v6550, %v2229
  %v6558 = vmul.f32 %v6550, %v2233
  %v6559 = vmul.f32 %v6550, %v2237
  %v6560 = vmul.f32 %v6550, %v2241
  %v6561 = vmul.f32 %v6555, %v2229
  %v6562 = vmul.f32 %v6555, %v2233
  %v6563 = vmul.f32 %v6555, %v2237
  %v6564 = vmul.f32 %v6555, %v2241
  %v6565 = vadd.f32 %v6505, %v6557
  %v6566 = vadd.f32 %v6506, %v6558
  %v6567 = vadd.f32 %v6507, %v6559
  %v6568 = vadd.f32 %v6508, %v6560
  %v6569 = vadd.f32 %v6509, %v6561
  %v6570 = vadd.f32 %v6510, %v6562
  %v6571 = vadd.f32 %v6511, %v6563
  %v6572 = vadd.f32 %v6512, %v6564
  %v6573 = vmul.f32 %v6369, %v6565
  %v6574 = vmul.f32 %v6371, %v6566
  %v6575 = vmul.f32 %v6446, %v6567
  %v6576 = vmul.f32 %v6448, %v6568
  %v6577 = vmul.f32 %v6375, %v6569
  %v6578 = vmul.f32 %v6377, %v6570
  %v6579 = vmul.f32 %v6452, %v6571
  %v6580 = vmul.f32 %v6454, %v6572
  %v6581 = vadd.f32 %v14, %v6573
  %v6582 = vadd.f32 %v15, %v6574
  %v6583 = vadd.f32 %v16, %v6575
  %v6584 = vadd.f32 %v17, %v6576
  %v6585 = vadd.f32 %v18, %v6577
  %v6586 = vadd.f32 %v19, %v6578
  %v6587 = vadd.f32 %v20, %v6579
  %v6588 = vadd.f32 %v21, %v6580
  %6589 = vst [vmem:[%s3] sm:$0xff] %v6581
  %6590 = vst [vmem:[%s3 + $0x8] sm:$0xff] %v6582
  %6591 = vst [vmem:[%s3 + $0x10] sm:$0xff] %v6583
  %6592 = vst [vmem:[%s3 + $0x18] sm:$0xff] %v6584
  %6593 = vst [vmem:[%s3 + $0x20] sm:$0xff] %v6585
  %6594 = vst [vmem:[%s3 + $0x28] sm:$0xff] %v6586
  %6595 = vst [vmem:[%s3 + $0x30] sm:$0xff] %v6587
  %6596 = vst [vmem:[%s3 + $0x38] sm:$0xff] %v6588
  // Predicated region
  $region14: #{hyper_bottleneck_forward.1} parent=0 // pred_check
    _
  $region15: #{hyper_bottleneck_forward.1} parent=0 // pred_check_branch
    %6598 = sbr.rel (0) target = $region17
  $region16: #{hyper_bottleneck_forward.1} parent=0 // pred_region
    _
  $region17: #{hyper_bottleneck_forward.1} parent=0 // pred_fallthru
    _
  // Predicated region
  $region18: #{hyper_bottleneck_forward.1} parent=0 // pred_check
    _
  $region19: #{hyper_bottleneck_forward.1} parent=0 // pred_check_branch
    %6600 = sbr.rel (0) target = $region21
  $region20: #{hyper_bottleneck_forward.1} parent=0 // pred_region
    _
  $region21: #{hyper_bottleneck_forward.1} parent=0 // pred_fallthru
    _

</llo_original>
